<compile_context>
chip_gen: v5e
topology: v5e:2x2
jax: 0.10.0
libtpu: 0.0.40
codegen_flags: <defaults>
</compile_context>

<pallas_src>
import math

import jax
import jax.numpy as jnp
from jax.experimental import pallas as pl
from jax.experimental.pallas import tpu as pltpu

_INV_SQRT2 = 0.7071067811865476
_VMEM_LIMIT = 48 * 1024 * 1024          # safe on v7x (64 MiB/TC), v5e/v6e (128 MiB)
_RESIDENT_BUDGET = 44 * 1024 * 1024     # headroom below the 48 MiB limit


def _round_up(n, m):
    return ((n + m - 1) // m) * m


def _gelu_exact(h):
    # Exact (erf-based) GELU == torch.nn.GELU default, f32 on the VPU/EUP.
    return 0.5 * h * (1.0 + jax.lax.erf(h * _INV_SQRT2))


# ----------------------------------------------------------------------------
# Kernel A: weights VMEM-resident, grid = (M // TM,)
# ----------------------------------------------------------------------------
def _mlp_kernel_resident(x_ref,      # (TM, D)  bf16
                         w1_ref,     # (D, H)   bf16  (constant index map -> resident)
                         b1_ref,     # (1, H)   f32
                         w2_ref,     # (H, Do)  bf16  (resident)
                         b2_ref,     # (1, Do)  f32
                         out_ref):   # (TM, Do) f32
    h = jnp.dot(x_ref[...], w1_ref[...], preferred_element_type=jnp.float32)
    h = _gelu_exact(h + b1_ref[...])
    out_ref[...] = (jnp.dot(h.astype(jnp.bfloat16), w2_ref[...],
                            preferred_element_type=jnp.float32)
                    + b2_ref[...]).astype(out_ref.dtype)


# ----------------------------------------------------------------------------
# Kernel B: hidden dim streamed, grid = (M // TM, H // TH), accumulate in out_ref
# ----------------------------------------------------------------------------
def _mlp_kernel_streamed(x_ref,      # (TM, D)  bf16
                         w1_ref,     # (D, TH)  bf16
                         b1_ref,     # (1, TH)  f32
                         w2_ref,     # (TH, Do) bf16
                         b2_ref,     # (1, Do)  f32
                         out_ref):   # (TM, Do) f32  (resident across j -> accumulator)
    j = pl.program_id(1)

    @pl.when(j == 0)
    def _():
        out_ref[...] = jnp.zeros_like(out_ref)

    h = jnp.dot(x_ref[...], w1_ref[...], preferred_element_type=jnp.float32)
    h = _gelu_exact(h + b1_ref[...])
    out_ref[...] += jnp.dot(h.astype(jnp.bfloat16), w2_ref[...],
                            preferred_element_type=jnp.float32)

    @pl.when(j == pl.num_programs(1) - 1)
    def _():
        out_ref[...] += b2_ref[...]
    # NOTE: if profiling shows exposed weight DMA here, add
    # pipeline_mode=pl.Buffered(3) to the w1/w2 BlockSpecs (VMEM headroom allows it).


# ----------------------------------------------------------------------------
# Wrapper
# ----------------------------------------------------------------------------
def mlp_pallas(x, w1_t, b1, w2_t, b2, *, tile_m=256, tile_h=512,
               force_streamed=False):
    """x: (..., D). w1_t: (D, H), w2_t: (H, Do) -- Linear weights pre-transposed."""
    orig_lead = x.shape[:-1]
    D = x.shape[-1]
    H = w1_t.shape[1]
    Do = w2_t.shape[1]
    M = max(1, math.prod(orig_lead))

    # bf16 activations & weights at the boundary: halves DMA bytes / VMEM and
    # runs the MXU at its bf16 rate. Biases stay f32 (added to f32 accum).
    x2 = x.reshape(M, D).astype(jnp.bfloat16)
    w1_bf = w1_t.astype(jnp.bfloat16)
    w2_bf = w2_t.astype(jnp.bfloat16)
    b1_2 = b1.reshape(1, H).astype(jnp.float32)
    b2_2 = b2.reshape(1, Do).astype(jnp.float32)

    # Row tiling: pad M to a tile multiple (never fall back to one giant block).
    tm = min(tile_m, _round_up(M, 8))
    Mp = _round_up(M, tm)
    if Mp != M:
        x2 = jnp.pad(x2, ((0, Mp - M), (0, 0)))

    # Conservative VMEM estimate for the resident-weights path (double-buffered
    # allocations for weights/x/out + the (TM, H) fc1 activation intermediate).
    weight_bytes = (D * H + H * Do) * 2                       # bf16
    resident_bytes = (2 * weight_bytes
                      + 2 * tm * D * 2                        # x tile
                      + 2 * tm * Do * 4                       # out tile
                      + tm * H * 4                            # fc1 activations
                      + (H + Do) * 4)                         # biases
    use_resident = (not force_streamed) and resident_bytes <= _RESIDENT_BUDGET

    cp = pltpu.CompilerParams(
        dimension_semantics=("parallel",) if use_resident
        else ("parallel", "arbitrary"),
        vmem_limit_bytes=_VMEM_LIMIT,
    )

    if use_resident:
        grid = (Mp // tm,)
        out = pl.pallas_call(
            _mlp_kernel_resident,
            out_shape=jax.ShapeDtypeStruct((Mp, Do), jnp.float32),
            grid_spec=pltpu.PrefetchScalarGridSpec(
                num_scalar_prefetch=0,
                grid=grid,
                in_specs=[
                    pl.BlockSpec((tm, D), lambda i: (i, 0)),    # x rows (streamed)
                    pl.BlockSpec((D, H), lambda i: (0, 0)),     # fc1 W (resident)
                    pl.BlockSpec((1, H), lambda i: (0, 0)),     # fc1 b
                    pl.BlockSpec((H, Do), lambda i: (0, 0)),    # fc2 W (resident)
                    pl.BlockSpec((1, Do), lambda i: (0, 0)),    # fc2 b
                ],
                out_specs=pl.BlockSpec((tm, Do), lambda i: (i, 0)),
            ),
            compiler_params=cp,
        )(x2, w1_bf, b1_2, w2_bf, b2_2)
    else:
        # Stream the hidden dim; pad H to a TH multiple with zeros (zero weight
        # columns/rows contribute exactly zero through GELU(0)=0 and zero rows).
        th = min(tile_h, _round_up(H, 128))
        Hp = _round_up(H, th)
        if Hp != H:
            w1_bf = jnp.pad(w1_bf, ((0, 0), (0, Hp - H)))
            b1_2 = jnp.pad(b1_2, ((0, 0), (0, Hp - H)))
            w2_bf = jnp.pad(w2_bf, ((0, Hp - H), (0, 0)))
        grid = (Mp // tm, Hp // th)
        out = pl.pallas_call(
            _mlp_kernel_streamed,
            out_shape=jax.ShapeDtypeStruct((Mp, Do), jnp.float32),
            grid_spec=pltpu.PrefetchScalarGridSpec(
                num_scalar_prefetch=0,
                grid=grid,
                in_specs=[
                    pl.BlockSpec((tm, D), lambda i, j: (i, 0)),   # x rows
                    pl.BlockSpec((D, th), lambda i, j: (0, j)),   # fc1 W cols
                    pl.BlockSpec((1, th), lambda i, j: (0, j)),   # fc1 b slice
                    pl.BlockSpec((th, Do), lambda i, j: (j, 0)),  # fc2 W rows
                    pl.BlockSpec((1, Do), lambda i, j: (0, 0)),   # fc2 b
                ],
                out_specs=pl.BlockSpec((tm, Do), lambda i, j: (i, 0)),
            ),
            compiler_params=cp,
        )(x2, w1_bf, b1_2, w2_bf, b2_2)

    if Mp != M:
        out = out[:M]
    return out.reshape(*orig_lead, Do)


# ----------------------------------------------------------------------------
# Pure-JAX reference (f32)
# ----------------------------------------------------------------------------
def mlp_ref(x, w1_t, b1, w2_t, b2):
    h = x @ w1_t + b1
    h = _gelu_exact(h)
    return h @ w2_t + b2


# ----------------------------------------------------------------------------
# Main
# ----------------------------------------------------------------------------
if __name__ == "__main__":
    # Small, lane-aligned shapes: last dims multiples of 128, rows multiple of 8.
    B, N, D = 2, 128, 128          # tokens: M = B*N = 256
    H = 4 * D                      # hidden_features = 4 * in_features = 512

    key = jax.random.PRNGKey(0)
    k0, k1, k2, k3, k4 = jax.random.split(key, 5)

    # Linear weights stored pre-transposed as (in, out) so kernel does x @ W.
    w1_t = 0.02 * jax.random.normal(k0, (D, H), jnp.float32)
    b1 = 0.01 * jax.random.normal(k1, (H,), jnp.float32)
    w2_t = 0.02 * jax.random.normal(k2, (H, D), jnp.float32)
    b2 = 0.01 * jax.random.normal(k3, (D,), jnp.float32)
    x = jax.random.normal(k4, (B, N, D), jnp.float32)

    ref = jax.block_until_ready(mlp_ref(x, w1_t, b1, w2_t, b2))

    # Resident-weights path (default at these sizes).
    out_res = jax.block_until_ready(mlp_pallas(x, w1_t, b1, w2_t, b2))
    assert out_res.shape == (B, N, D)
    assert jnp.allclose(out_res, ref, atol=1e-2, rtol=1e-2), \
        "resident path mismatch vs JAX reference"

    # Streamed-H fallback path (exercised explicitly so both paths are validated).
    out_str = jax.block_until_ready(
        mlp_pallas(x, w1_t, b1, w2_t, b2, force_streamed=True))
    assert out_str.shape == (B, N, D)
    assert jnp.allclose(out_str, ref, atol=1e-2, rtol=1e-2), \
        "streamed path mismatch vs JAX reference"

    # TODO(synk): Dropout(drop) omitted — module default drop=0.0 makes it identity.
    print("KERNEL_OK")
</pallas_src>

<mosaic_0001>
module attributes {stable_mosaic.version = 11 : i64} {
  func.func @_mlp_kernel_resident(%arg0: i32, %arg1: memref<256x128xbf16, #tpu.memory_space<vmem>>, %arg2: memref<128x512xbf16, #tpu.memory_space<vmem>>, %arg3: memref<1x512xf32, #tpu.memory_space<vmem>>, %arg4: memref<512x128xbf16, #tpu.memory_space<vmem>>, %arg5: memref<1x128xf32, #tpu.memory_space<vmem>>, %arg6: memref<256x128xf32, #tpu.memory_space<vmem>>) attributes {dimension_semantics = [#tpu.dimension_semantics<parallel>], iteration_bounds = array<i64: 1>, scalar_prefetch = 0 : i64, scratch_operands = 0 : i64, tpu.core_type = #tpu.core_type<tc>, window_params = [{transform_indices = @transform_0, window_bounds = array<i64: 256, 128>}, {pipeline_mode = #tpu.pipeline_mode<synchronous>, transform_indices = @transform_1, window_bounds = array<i64: 128, 512>}, {pipeline_mode = #tpu.pipeline_mode<synchronous>, transform_indices = @transform_2, window_bounds = array<i64: 1, 512>}, {pipeline_mode = #tpu.pipeline_mode<synchronous>, transform_indices = @transform_3, window_bounds = array<i64: 512, 128>}, {pipeline_mode = #tpu.pipeline_mode<synchronous>, transform_indices = @transform_4, window_bounds = array<i64: 1, 128>}, {transform_indices = @transform_5, window_bounds = array<i64: 256, 128>}]} {
    %c0 = arith.constant 0 : index
    %c0_0 = arith.constant 0 : index
    %0 = vector.load %arg1[%c0, %c0_0] : memref<256x128xbf16, #tpu.memory_space<vmem>>, vector<256x128xbf16>
    %c0_1 = arith.constant 0 : index
    %c0_2 = arith.constant 0 : index
    %1 = vector.load %arg2[%c0_1, %c0_2] : memref<128x512xbf16, #tpu.memory_space<vmem>>, vector<128x512xbf16>
    %cst = arith.constant dense<0.000000e+00> : vector<256x512xf32>
    %2 = tpu.matmul %0, %1, %cst {dimension_numbers = #tpu.dot_dimension_numbers<[1], [0], [0], [1], [0, 0, 1, 1], [], []>} : vector<256x128xbf16>, vector<128x512xbf16>, vector<256x512xf32> -> vector<256x512xf32>
    %c0_3 = arith.constant 0 : index
    %c0_4 = arith.constant 0 : index
    %3 = vector.load %arg3[%c0_3, %c0_4] : memref<1x512xf32, #tpu.memory_space<vmem>>, vector<1x512xf32>
    %4 = vector.broadcast %3 : vector<1x512xf32> to vector<256x512xf32>
    %5 = arith.addf %2, %4 : vector<256x512xf32>
    %cst_5 = arith.constant 5.000000e-01 : f32
    %6 = vector.broadcast %cst_5 : f32 to vector<256x512xf32>
    %7 = arith.mulf %6, %5 : vector<256x512xf32>
    %cst_6 = arith.constant 0.707106769 : f32
    %8 = vector.broadcast %cst_6 : f32 to vector<256x512xf32>
    %9 = arith.mulf %5, %8 : vector<256x512xf32>
    %10 = math.erf %9 : vector<256x512xf32>
    %cst_7 = arith.constant 1.000000e+00 : f32
    %11 = vector.broadcast %cst_7 : f32 to vector<256x512xf32>
    %12 = arith.addf %11, %10 : vector<256x512xf32>
    %13 = arith.mulf %7, %12 : vector<256x512xf32>
    %14 = arith.truncf %13 : vector<256x512xf32> to vector<256x512xbf16>
    %c0_8 = arith.constant 0 : index
    %c0_9 = arith.constant 0 : index
    %15 = vector.load %arg4[%c0_8, %c0_9] : memref<512x128xbf16, #tpu.memory_space<vmem>>, vector<512x128xbf16>
    %cst_10 = arith.constant dense<0.000000e+00> : vector<256x128xf32>
    %16 = tpu.matmul %14, %15, %cst_10 {dimension_numbers = #tpu.dot_dimension_numbers<[1], [0], [0], [1], [0, 0, 1, 1], [], []>} : vector<256x512xbf16>, vector<512x128xbf16>, vector<256x128xf32> -> vector<256x128xf32>
    %c0_11 = arith.constant 0 : index
    %c0_12 = arith.constant 0 : index
    %17 = vector.load %arg5[%c0_11, %c0_12] : memref<1x128xf32, #tpu.memory_space<vmem>>, vector<1x128xf32>
    %18 = vector.broadcast %17 : vector<1x128xf32> to vector<256x128xf32>
    %19 = arith.addf %16, %18 : vector<256x128xf32>
    %c0_13 = arith.constant 0 : index
    %c0_14 = arith.constant 0 : index
    %20 = vector.load %arg6[%c0_13, %c0_14] : memref<256x128xf32, #tpu.memory_space<vmem>>, vector<256x128xf32>
    tpu.vector_store %arg6[%c0_13, %c0_14], %19 {strides = array<i32>} : memref<256x128xf32, #tpu.memory_space<vmem>>, vector<256x128xf32>,
    return
  }
  func.func @transform_0(%arg0: i32) -> (i32, i32) {
    %c0_i32 = arith.constant 0 : i32
    %c0_i32_0 = arith.constant 0 : i32
    return %arg0, %c0_i32 : i32, i32
  }
  func.func @transform_1(%arg0: i32) -> (i32, i32) {
    %c0_i32 = arith.constant 0 : i32
    %c0_i32_0 = arith.constant 0 : i32
    %c0_i32_1 = arith.constant 0 : i32
    return %c0_i32, %c0_i32_0 : i32, i32
  }
  func.func @transform_2(%arg0: i32) -> (i32, i32) {
    %c0_i32 = arith.constant 0 : i32
    %c0_i32_0 = arith.constant 0 : i32
    %c0_i32_1 = arith.constant 0 : i32
    return %c0_i32, %c0_i32_0 : i32, i32
  }
  func.func @transform_3(%arg0: i32) -> (i32, i32) {
    %c0_i32 = arith.constant 0 : i32
    %c0_i32_0 = arith.constant 0 : i32
    %c0_i32_1 = arith.constant 0 : i32
    return %c0_i32, %c0_i32_0 : i32, i32
  }
  func.func @transform_4(%arg0: i32) -> (i32, i32) {
    %c0_i32 = arith.constant 0 : i32
    %c0_i32_0 = arith.constant 0 : i32
    %c0_i32_1 = arith.constant 0 : i32
    return %c0_i32, %c0_i32_0 : i32, i32
  }
  func.func @transform_5(%arg0: i32) -> (i32, i32) {
    %c0_i32 = arith.constant 0 : i32
    %c0_i32_0 = arith.constant 0 : i32
    return %arg0, %c0_i32 : i32, i32
  }
}

</mosaic_0001>

<llo_original>
// kernel: tpu_custom_call.1
$region0: #{tpu_custom_call.1}
  #allocation0 [shape = 'u32[]', space=smem, size = 0x4, offset = 0x4, fixed_abs, tag = 'smem constant byte address 0x4 - core index']
  #allocation1 [shape = 'u32[72,128]{1,0:T(1,128)}', space=vmem, size = 0x9000, scoped, tag = 'internal scratch']
  %s0 = inlined_call_operand.hbm [shape: bf16[256,128], index: 0, kind: input, shape index: {}]
  %s1 = inlined_call_operand.hbm [shape: bf16[128,512], index: 1, kind: input, shape index: {}]
  %s2 = inlined_call_operand.hbm [shape: f32[1,512], index: 2, kind: input, shape index: {}]
  %s3 = inlined_call_operand.hbm [shape: bf16[512,128], index: 3, kind: input, shape index: {}]
  %s4 = inlined_call_operand.vmem [shape: f32[1,128], index: 4, kind: input, shape index: {}]
  %s5 = inlined_call_operand.hbm [shape: f32[256,128], index: 5, kind: output, shape index: {}]
  %s6 = sld [smem:[#allocation0]]
  $region46: #{tpu_custom_call.1} parent=0
    _
  %s8 = ssub.s32 1, %s6
  %s9 = scalar_select 0, %s8, %s6
  $region1: #{tpu_custom_call.1} parent=0
    #allocation2 [shape = 'u8[65536]{0}', space=vmem, size = 0x10000, scoped, tag = 'input window, operand 0, single buffered']
    #allocation3 [shape = 's32[1]{0}', space=sflag, size = 0x4, scoped, tag = 'scoped memory for tpu_custom_call.1']
    #allocation4 [shape = 's32[1]{0}', space=sflag, size = 0x4, scoped, tag = 'scoped memory for tpu_custom_call.1']
    #allocation5 [shape = 'u8[131072]{0}', space=vmem, size = 0x20000, scoped, tag = 'input window, operand 1, single buffered']
    #allocation6 [shape = 's32[1]{0}', space=sflag, size = 0x4, scoped, tag = 'scoped memory for tpu_custom_call.1']
    #allocation7 [shape = 'u8[2048]{0}', space=vmem, size = 0x800, scoped, tag = 'input window, operand 2, single buffered']
    #allocation8 [shape = 'u8[131072]{0}', space=vmem, size = 0x20000, scoped, tag = 'input window, operand 3, single buffered']
    #allocation9 [shape = 's32[1]{0}', space=sflag, size = 0x4, scoped, tag = 'scoped memory for tpu_custom_call.1']
    #allocation10 [shape = 'u8[131072]{0}', space=vmem, size = 0x20000, scoped, tag = 'output window, operand 0, single buffered']
    %10 = vsyncpa [#allocation3], 0
    %11 = vsyncpa [#allocation6], 0
    %12 = vsyncpa [#allocation9], 0
    %13 = vsyncpa [#allocation4], 0
    // Predicated region
    $region2: #{tpu_custom_call.1} parent=1 // pred_check
      _
    $region3: #{tpu_custom_call.1} parent=1 // pred_check_branch
      %15 = sbr.rel (0) target = $region5
    $region4: #{tpu_custom_call.1} parent=1 // pred_region
      %17 = vsyncadd [#allocation3], 0
      %s18 = sshll.u32 %s0, 4
      %s19 = int_to_ptr.hbm [resolvable:$true] %s18
      %s20 = sshll.u32 [#allocation2], 4
      %s21 = int_to_ptr.vmem [resolvable:$true] %s20
      %26 = dma.hbm_to_vmem [thread:$0]  %s19, 2048, %s21, [#allocation3], 64, 64, 4
    $region5: #{tpu_custom_call.1} parent=1 // pred_fallthru
      _
    // Predicated region
    $region6: #{tpu_custom_call.1} parent=1 // pred_check
      _
    $region7: #{tpu_custom_call.1} parent=1 // pred_check_branch
      %28 = sbr.rel (0) target = $region9
    $region8: #{tpu_custom_call.1} parent=1 // pred_region
      %30 = vsyncadd [#allocation6], 0
      %s31 = sshll.u32 %s1, 4
      %s32 = int_to_ptr.hbm [resolvable:$true] %s31
      %s33 = sshll.u32 [#allocation5], 4
      %s34 = int_to_ptr.vmem [resolvable:$true] %s33
      %39 = dma.hbm_to_vmem [thread:$0]  %s32, 4096, %s34, [#allocation6], 256, 256, 16
    $region9: #{tpu_custom_call.1} parent=1 // pred_fallthru
      _
    // Predicated region
    $region10: #{tpu_custom_call.1} parent=1 // pred_check
      _
    $region11: #{tpu_custom_call.1} parent=1 // pred_check_branch
      %41 = sbr.rel (0) target = $region13
    $region12: #{tpu_custom_call.1} parent=1 // pred_region
      %43 = vsyncadd [#allocation6], 0
      %s45 = sshll.u32 %s2, 4
      %s46 = int_to_ptr.hbm [resolvable:$true] %s45
      %s47 = sshll.u32 [#allocation7], 4
      %s48 = int_to_ptr.vmem [resolvable:$true] %s47
      %50 = dma.hbm_to_vmem [thread:$0]  %s46, 64, %s48, [#allocation6]
    $region13: #{tpu_custom_call.1} parent=1 // pred_fallthru
      _
    // Predicated region
    $region14: #{tpu_custom_call.1} parent=1 // pred_check
      _
    $region15: #{tpu_custom_call.1} parent=1 // pred_check_branch
      %52 = sbr.rel (0) target = $region17
    $region16: #{tpu_custom_call.1} parent=1 // pred_region
      %54 = vsyncadd [#allocation9], 0
      %s55 = sshll.u32 %s3, 4
      %s56 = int_to_ptr.hbm [resolvable:$true] %s55
      %s57 = sshll.u32 [#allocation8], 4
      %s58 = int_to_ptr.vmem [resolvable:$true] %s57
      %63 = dma.hbm_to_vmem [thread:$0]  %s56, 4096, %s58, [#allocation9], 64, 64, 4
    $region17: #{tpu_custom_call.1} parent=1 // pred_fallthru
      _
    // Predicated region
    $region18: #{tpu_custom_call.1} parent=1 // pred_check
      _
    $region19: #{tpu_custom_call.1} parent=1 // pred_check_branch
      %65 = sbr.rel (0) target = $region21
    $region20: #{tpu_custom_call.1} parent=1 // pred_region
      _
    $region21: #{tpu_custom_call.1} parent=1 // pred_fallthru
      _
    // Predicated region
    $region22: #{tpu_custom_call.1} parent=1 // pred_check
      _
    $region23: #{tpu_custom_call.1} parent=1 // pred_check_branch
      %67 = sbr.rel (0) target = $region25
    $region24: #{tpu_custom_call.1} parent=1 // pred_region
      %69 = dma.done [#allocation3], 2048
    $region25: #{tpu_custom_call.1} parent=1 // pred_fallthru
      _
    // Predicated region
    $region26: #{tpu_custom_call.1} parent=1 // pred_check
      _
    $region27: #{tpu_custom_call.1} parent=1 // pred_check_branch
      %71 = sbr.rel (0) target = $region29
    $region28: #{tpu_custom_call.1} parent=1 // pred_region
      %73 = dma.done [#allocation6], 4096
    $region29: #{tpu_custom_call.1} parent=1 // pred_fallthru
      _
    // Predicated region
    $region30: #{tpu_custom_call.1} parent=1 // pred_check
      _
    $region31: #{tpu_custom_call.1} parent=1 // pred_check_branch
      %75 = sbr.rel (0) target = $region33
    $region32: #{tpu_custom_call.1} parent=1 // pred_region
      %77 = dma.done [#allocation6], 64
    $region33: #{tpu_custom_call.1} parent=1 // pred_fallthru
      _
    // Predicated region
    $region34: #{tpu_custom_call.1} parent=1 // pred_check
      _
    $region35: #{tpu_custom_call.1} parent=1 // pred_check_branch
      %79 = sbr.rel (0) target = $region37
    $region36: #{tpu_custom_call.1} parent=1 // pred_region
      %81 = dma.done [#allocation9], 4096
    $region37: #{tpu_custom_call.1} parent=1 // pred_fallthru
      _
    %v82 = vld [vmem:[#allocation2] sm:$0xf]
    %v83 = vld [vmem:[#allocation2 + $0x4] sm:$0xf]
    %v84 = vld [vmem:[#allocation2 + $0x8] sm:$0xf]
    %v85 = vld [vmem:[#allocation2 + $0xc] sm:$0xf]
    %v86 = vld [vmem:[#allocation2 + $0x10] sm:$0xf]
    %v87 = vld [vmem:[#allocation2 + $0x14] sm:$0xf]
    %v88 = vld [vmem:[#allocation2 + $0x18] sm:$0xf]
    %v89 = vld [vmem:[#allocation2 + $0x1c] sm:$0xf]
    %v90 = vld [vmem:[#allocation2 + $0x20] sm:$0xf]
    %v91 = vld [vmem:[#allocation2 + $0x24] sm:$0xf]
    %v92 = vld [vmem:[#allocation2 + $0x28] sm:$0xf]
    %v93 = vld [vmem:[#allocation2 + $0x2c] sm:$0xf]
    %v94 = vld [vmem:[#allocation2 + $0x30] sm:$0xf]
    %v95 = vld [vmem:[#allocation2 + $0x34] sm:$0xf]
    %v96 = vld [vmem:[#allocation2 + $0x38] sm:$0xf]
    %v97 = vld [vmem:[#allocation2 + $0x3c] sm:$0xf]
    %v98 = vld [vmem:[#allocation2 + $0x40] sm:$0xf]
    %v99 = vld [vmem:[#allocation2 + $0x44] sm:$0xf]
    %v100 = vld [vmem:[#allocation2 + $0x48] sm:$0xf]
    %v101 = vld [vmem:[#allocation2 + $0x4c] sm:$0xf]
    %v102 = vld [vmem:[#allocation2 + $0x50] sm:$0xf]
    %v103 = vld [vmem:[#allocation2 + $0x54] sm:$0xf]
    %v104 = vld [vmem:[#allocation2 + $0x58] sm:$0xf]
    %v105 = vld [vmem:[#allocation2 + $0x5c] sm:$0xf]
    %v106 = vld [vmem:[#allocation2 + $0x60] sm:$0xf]
    %v107 = vld [vmem:[#allocation2 + $0x64] sm:$0xf]
    %v108 = vld [vmem:[#allocation2 + $0x68] sm:$0xf]
    %v109 = vld [vmem:[#allocation2 + $0x6c] sm:$0xf]
    %v110 = vld [vmem:[#allocation2 + $0x70] sm:$0xf]
    %v111 = vld [vmem:[#allocation2 + $0x74] sm:$0xf]
    %v112 = vld [vmem:[#allocation2 + $0x78] sm:$0xf]
    %v113 = vld [vmem:[#allocation2 + $0x7c] sm:$0xf]
    %v114 = vld [vmem:[#allocation5] sm:$0xff]
    %v115 = vld [vmem:[#allocation5 + $0x8] sm:$0xff]
    %v116 = vld [vmem:[#allocation5 + $0x10] sm:$0xff]
    %v117 = vld [vmem:[#allocation5 + $0x18] sm:$0xff]
    %v118 = vld [vmem:[#allocation5 + $0x20] sm:$0xff]
    %v119 = vld [vmem:[#allocation5 + $0x28] sm:$0xff]
    %v120 = vld [vmem:[#allocation5 + $0x30] sm:$0xff]
    %v121 = vld [vmem:[#allocation5 + $0x38] sm:$0xff]
    %v122 = vld [vmem:[#allocation5 + $0x40] sm:$0xff]
    %v123 = vld [vmem:[#allocation5 + $0x48] sm:$0xff]
    %v124 = vld [vmem:[#allocation5 + $0x50] sm:$0xff]
    %v125 = vld [vmem:[#allocation5 + $0x58] sm:$0xff]
    %v126 = vld [vmem:[#allocation5 + $0x60] sm:$0xff]
    %v127 = vld [vmem:[#allocation5 + $0x68] sm:$0xff]
    %v128 = vld [vmem:[#allocation5 + $0x70] sm:$0xff]
    %v129 = vld [vmem:[#allocation5 + $0x78] sm:$0xff]
    %v130 = vld [vmem:[#allocation5 + $0x80] sm:$0xff]
    %v131 = vld [vmem:[#allocation5 + $0x88] sm:$0xff]
    %v132 = vld [vmem:[#allocation5 + $0x90] sm:$0xff]
    %v133 = vld [vmem:[#allocation5 + $0x98] sm:$0xff]
    %v134 = vld [vmem:[#allocation5 + $0xa0] sm:$0xff]
    %v135 = vld [vmem:[#allocation5 + $0xa8] sm:$0xff]
    %v136 = vld [vmem:[#allocation5 + $0xb0] sm:$0xff]
    %v137 = vld [vmem:[#allocation5 + $0xb8] sm:$0xff]
    %v138 = vld [vmem:[#allocation5 + $0xc0] sm:$0xff]
    %v139 = vld [vmem:[#allocation5 + $0xc8] sm:$0xff]
    %v140 = vld [vmem:[#allocation5 + $0xd0] sm:$0xff]
    %v141 = vld [vmem:[#allocation5 + $0xd8] sm:$0xff]
    %v142 = vld [vmem:[#allocation5 + $0xe0] sm:$0xff]
    %v143 = vld [vmem:[#allocation5 + $0xe8] sm:$0xff]
    %v144 = vld [vmem:[#allocation5 + $0xf0] sm:$0xff]
    %v145 = vld [vmem:[#allocation5 + $0xf8] sm:$0xff]
    %v146 = vld [vmem:[#allocation7] sm:$0xf]
    %v148 = vperm.slane %v146, 0
    %v149 = vperm.slane %v146, 1
    %v150 = vperm.slane %v146, 2
    %v151 = vperm.slane %v146, 3
    %v188 = vunpack.c.l.b16 %v82
    %v189 = vunpack.c.l.b16 %v83
    %v190 = vunpack.c.l.b16 %v84
    %v191 = vunpack.c.l.b16 %v85
    %v192 = vunpack.c.l.b16 %v86
    %v193 = vunpack.c.l.b16 %v87
    %v194 = vunpack.c.l.b16 %v88
    %v195 = vunpack.c.l.b16 %v89
    %v196 = vunpack.c.l.b16 %v90
    %v197 = vunpack.c.l.b16 %v91
    %v198 = vunpack.c.l.b16 %v92
    %v199 = vunpack.c.l.b16 %v93
    %v200 = vunpack.c.l.b16 %v94
    %v201 = vunpack.c.l.b16 %v95
    %v202 = vunpack.c.l.b16 %v96
    %v203 = vunpack.c.l.b16 %v97
    %v204 = vunpack.c.l.b16 %v98
    %v205 = vunpack.c.l.b16 %v99
    %v206 = vunpack.c.l.b16 %v100
    %v207 = vunpack.c.l.b16 %v101
    %v208 = vunpack.c.l.b16 %v102
    %v209 = vunpack.c.l.b16 %v103
    %v210 = vunpack.c.l.b16 %v104
    %v211 = vunpack.c.l.b16 %v105
    %v212 = vunpack.c.l.b16 %v106
    %v213 = vunpack.c.l.b16 %v107
    %v214 = vunpack.c.l.b16 %v108
    %v215 = vunpack.c.l.b16 %v109
    %v216 = vunpack.c.l.b16 %v110
    %v217 = vunpack.c.l.b16 %v111
    %v218 = vunpack.c.l.b16 %v112
    %v219 = vunpack.c.l.b16 %v113
    %v220 = vpack.c.b16 %v189, %v188
    %v221 = vpack.c.b16 %v191, %v190
    %v222 = vpack.c.b16 %v193, %v192
    %v223 = vpack.c.b16 %v195, %v194
    %v224 = vpack.c.b16 %v197, %v196
    %v225 = vpack.c.b16 %v199, %v198
    %v226 = vpack.c.b16 %v201, %v200
    %v227 = vpack.c.b16 %v203, %v202
    %v228 = vpack.c.b16 %v205, %v204
    %v229 = vpack.c.b16 %v207, %v206
    %v230 = vpack.c.b16 %v209, %v208
    %v231 = vpack.c.b16 %v211, %v210
    %v232 = vpack.c.b16 %v213, %v212
    %v233 = vpack.c.b16 %v215, %v214
    %v234 = vpack.c.b16 %v217, %v216
    %v235 = vpack.c.b16 %v219, %v218
    %v284 = vunpack.c.l.b16 %v114
    %v285 = vunpack.c.h.b16 %v114
    %v286 = vunpack.c.l.b16 %v115
    %v287 = vunpack.c.h.b16 %v115
    %v288 = vunpack.c.l.b16 %v116
    %v289 = vunpack.c.h.b16 %v116
    %v290 = vunpack.c.l.b16 %v117
    %v291 = vunpack.c.h.b16 %v117
    %v292 = vunpack.c.l.b16 %v118
    %v293 = vunpack.c.h.b16 %v118
    %v294 = vunpack.c.l.b16 %v119
    %v295 = vunpack.c.h.b16 %v119
    %v296 = vunpack.c.l.b16 %v120
    %v297 = vunpack.c.h.b16 %v120
    %v298 = vunpack.c.l.b16 %v121
    %v299 = vunpack.c.h.b16 %v121
    %v300 = vunpack.c.l.b16 %v122
    %v301 = vunpack.c.h.b16 %v122
    %v302 = vunpack.c.l.b16 %v123
    %v303 = vunpack.c.h.b16 %v123
    %v304 = vunpack.c.l.b16 %v124
    %v305 = vunpack.c.h.b16 %v124
    %v306 = vunpack.c.l.b16 %v125
    %v307 = vunpack.c.h.b16 %v125
    %v308 = vunpack.c.l.b16 %v126
    %v309 = vunpack.c.h.b16 %v126
    %v310 = vunpack.c.l.b16 %v127
    %v311 = vunpack.c.h.b16 %v127
    %v312 = vunpack.c.l.b16 %v128
    %v313 = vunpack.c.h.b16 %v128
    %v314 = vunpack.c.l.b16 %v129
    %v315 = vunpack.c.h.b16 %v129
    %v316 = vunpack.c.l.b16 %v130
    %v317 = vunpack.c.h.b16 %v130
    %v318 = vunpack.c.l.b16 %v131
    %v319 = vunpack.c.h.b16 %v131
    %v320 = vunpack.c.l.b16 %v132
    %v321 = vunpack.c.h.b16 %v132
    %v322 = vunpack.c.l.b16 %v133
    %v323 = vunpack.c.h.b16 %v133
    %v324 = vunpack.c.l.b16 %v134
    %v325 = vunpack.c.h.b16 %v134
    %v326 = vunpack.c.l.b16 %v135
    %v327 = vunpack.c.h.b16 %v135
    %v328 = vunpack.c.l.b16 %v136
    %v329 = vunpack.c.h.b16 %v136
    %v330 = vunpack.c.l.b16 %v137
    %v331 = vunpack.c.h.b16 %v137
    %v332 = vunpack.c.l.b16 %v138
    %v333 = vunpack.c.h.b16 %v138
    %v334 = vunpack.c.l.b16 %v139
    %v335 = vunpack.c.h.b16 %v139
    %v336 = vunpack.c.l.b16 %v140
    %v337 = vunpack.c.h.b16 %v140
    %v338 = vunpack.c.l.b16 %v141
    %v339 = vunpack.c.h.b16 %v141
    %v340 = vunpack.c.l.b16 %v142
    %v341 = vunpack.c.h.b16 %v142
    %v342 = vunpack.c.l.b16 %v143
    %v343 = vunpack.c.h.b16 %v143
    %v344 = vunpack.c.l.b16 %v144
    %v345 = vunpack.c.h.b16 %v144
    %v346 = vunpack.c.l.b16 %v145
    %v347 = vunpack.c.h.b16 %v145
    %v348 = vpack.c.b16 %v288, %v284
    %v349 = vpack.c.b16 %v289, %v285
    %v350 = vpack.c.b16 %v290, %v286
    %v351 = vpack.c.b16 %v291, %v287
    %v352 = vpack.c.b16 %v296, %v292
    %v353 = vpack.c.b16 %v297, %v293
    %v354 = vpack.c.b16 %v298, %v294
    %v355 = vpack.c.b16 %v299, %v295
    %v356 = vpack.c.b16 %v304, %v300
    %v357 = vpack.c.b16 %v305, %v301
    %v358 = vpack.c.b16 %v306, %v302
    %v359 = vpack.c.b16 %v307, %v303
    %v360 = vpack.c.b16 %v312, %v308
    %v361 = vpack.c.b16 %v313, %v309
    %v362 = vpack.c.b16 %v314, %v310
    %v363 = vpack.c.b16 %v315, %v311
    %v364 = vpack.c.b16 %v320, %v316
    %v365 = vpack.c.b16 %v321, %v317
    %v366 = vpack.c.b16 %v322, %v318
    %v367 = vpack.c.b16 %v323, %v319
    %v368 = vpack.c.b16 %v328, %v324
    %v369 = vpack.c.b16 %v329, %v325
    %v370 = vpack.c.b16 %v330, %v326
    %v371 = vpack.c.b16 %v331, %v327
    %v372 = vpack.c.b16 %v336, %v332
    %v373 = vpack.c.b16 %v337, %v333
    %v374 = vpack.c.b16 %v338, %v334
    %v375 = vpack.c.b16 %v339, %v335
    %v376 = vpack.c.b16 %v344, %v340
    %v377 = vpack.c.b16 %v345, %v341
    %v378 = vpack.c.b16 %v346, %v342
    %v379 = vpack.c.b16 %v347, %v343
    %412 = vmatpush.bf16.msra.mxu0 %v376
    %413 = vmatpush.bf16.msra.mxu0 %v372
    %414 = vmatpush.bf16.msra.mxu0 %v368
    %415 = vmatpush.bf16.msra.mxu0 %v364
    %416 = vmatpush.bf16.msra.mxu0 %v360
    %417 = vmatpush.bf16.msra.mxu0 %v356
    %418 = vmatpush.bf16.msra.mxu0 %v352
    %419 = vmatpush.bf16.msra.mxu0 %v348
    %420 = vmatmul.bf16.gmra.mxu0 %v220
    %v421 = vpop.f32.mrf.mxu0
    %v422 = vadd.f32 %v148, %v421
    %v423 = vpop.f32.mrf.mxu0
    %v424 = vadd.f32 %v148, %v423
    %425 = vmatmul.bf16.gmra.mxu0 %v221
    %v426 = vpop.f32.mrf.mxu0
    %v427 = vadd.f32 %v148, %v426
    %v428 = vpop.f32.mrf.mxu0
    %v429 = vadd.f32 %v148, %v428
    %430 = vmatmul.bf16.gmra.mxu0 %v222
    %v431 = vpop.f32.mrf.mxu0
    %v432 = vadd.f32 %v148, %v431
    %v433 = vpop.f32.mrf.mxu0
    %v434 = vadd.f32 %v148, %v433
    %435 = vmatmul.bf16.gmra.mxu0 %v223
    %v436 = vpop.f32.mrf.mxu0
    %v437 = vadd.f32 %v148, %v436
    %v438 = vpop.f32.mrf.mxu0
    %v439 = vadd.f32 %v148, %v438
    %440 = vmatmul.bf16.gmra.mxu0 %v224
    %v441 = vpop.f32.mrf.mxu0
    %v442 = vadd.f32 %v148, %v441
    %v443 = vpop.f32.mrf.mxu0
    %v444 = vadd.f32 %v148, %v443
    %445 = vmatmul.bf16.gmra.mxu0 %v225
    %v446 = vpop.f32.mrf.mxu0
    %v447 = vadd.f32 %v148, %v446
    %v448 = vpop.f32.mrf.mxu0
    %v449 = vadd.f32 %v148, %v448
    %450 = vmatmul.bf16.gmra.mxu0 %v226
    %v451 = vpop.f32.mrf.mxu0
    %v452 = vadd.f32 %v148, %v451
    %v453 = vpop.f32.mrf.mxu0
    %v454 = vadd.f32 %v148, %v453
    %455 = vmatmul.bf16.gmra.mxu0 %v227
    %v456 = vpop.f32.mrf.mxu0
    %v457 = vadd.f32 %v148, %v456
    %v458 = vpop.f32.mrf.mxu0
    %v459 = vadd.f32 %v148, %v458
    %460 = vmatmul.bf16.gmra.mxu0 %v228
    %v461 = vpop.f32.mrf.mxu0
    %v462 = vadd.f32 %v148, %v461
    %v463 = vpop.f32.mrf.mxu0
    %v464 = vadd.f32 %v148, %v463
    %465 = vmatmul.bf16.gmra.mxu0 %v229
    %v466 = vpop.f32.mrf.mxu0
    %v467 = vadd.f32 %v148, %v466
    %v468 = vpop.f32.mrf.mxu0
    %v469 = vadd.f32 %v148, %v468
    %470 = vmatmul.bf16.gmra.mxu0 %v230
    %v471 = vpop.f32.mrf.mxu0
    %v472 = vadd.f32 %v148, %v471
    %v473 = vpop.f32.mrf.mxu0
    %v474 = vadd.f32 %v148, %v473
    %475 = vmatmul.bf16.gmra.mxu0 %v231
    %v476 = vpop.f32.mrf.mxu0
    %v477 = vadd.f32 %v148, %v476
    %v478 = vpop.f32.mrf.mxu0
    %v479 = vadd.f32 %v148, %v478
    %480 = vmatmul.bf16.gmra.mxu0 %v232
    %v481 = vpop.f32.mrf.mxu0
    %v482 = vadd.f32 %v148, %v481
    %v483 = vpop.f32.mrf.mxu0
    %v484 = vadd.f32 %v148, %v483
    %485 = vmatmul.bf16.gmra.mxu0 %v233
    %v486 = vpop.f32.mrf.mxu0
    %v487 = vadd.f32 %v148, %v486
    %v488 = vpop.f32.mrf.mxu0
    %v489 = vadd.f32 %v148, %v488
    %490 = vmatmul.bf16.gmra.mxu0 %v234
    %v491 = vpop.f32.mrf.mxu0
    %v492 = vadd.f32 %v148, %v491
    %v493 = vpop.f32.mrf.mxu0
    %v494 = vadd.f32 %v148, %v493
    %495 = vmatmul.bf16.gmra.mxu0 %v235
    %v496 = vpop.f32.mrf.mxu0
    %v497 = vadd.f32 %v148, %v496
    %v498 = vpop.f32.mrf.mxu0
    %v499 = vadd.f32 %v148, %v498
    %500 = vdwg.mxu0
    %501 = vmatpush.bf16.msra.mxu0 %v377
    %502 = vmatpush.bf16.msra.mxu0 %v373
    %503 = vmatpush.bf16.msra.mxu0 %v369
    %504 = vmatpush.bf16.msra.mxu0 %v365
    %505 = vmatpush.bf16.msra.mxu0 %v361
    %506 = vmatpush.bf16.msra.mxu0 %v357
    %507 = vmatpush.bf16.msra.mxu0 %v353
    %508 = vmatpush.bf16.msra.mxu0 %v349
    %509 = vmatmul.bf16.gmra.mxu0 %v220
    %v510 = vpop.f32.mrf.mxu0
    %v511 = vadd.f32 %v149, %v510
    %v512 = vpop.f32.mrf.mxu0
    %v513 = vadd.f32 %v149, %v512
    %514 = vmatmul.bf16.gmra.mxu0 %v221
    %v515 = vpop.f32.mrf.mxu0
    %v516 = vadd.f32 %v149, %v515
    %v517 = vpop.f32.mrf.mxu0
    %v518 = vadd.f32 %v149, %v517
    %519 = vmatmul.bf16.gmra.mxu0 %v222
    %v520 = vpop.f32.mrf.mxu0
    %v521 = vadd.f32 %v149, %v520
    %v522 = vpop.f32.mrf.mxu0
    %v523 = vadd.f32 %v149, %v522
    %524 = vmatmul.bf16.gmra.mxu0 %v223
    %v525 = vpop.f32.mrf.mxu0
    %v526 = vadd.f32 %v149, %v525
    %v527 = vpop.f32.mrf.mxu0
    %v528 = vadd.f32 %v149, %v527
    %529 = vmatmul.bf16.gmra.mxu0 %v224
    %v530 = vpop.f32.mrf.mxu0
    %v531 = vadd.f32 %v149, %v530
    %v532 = vpop.f32.mrf.mxu0
    %v533 = vadd.f32 %v149, %v532
    %534 = vmatmul.bf16.gmra.mxu0 %v225
    %v535 = vpop.f32.mrf.mxu0
    %v536 = vadd.f32 %v149, %v535
    %v537 = vpop.f32.mrf.mxu0
    %v538 = vadd.f32 %v149, %v537
    %539 = vmatmul.bf16.gmra.mxu0 %v226
    %v540 = vpop.f32.mrf.mxu0
    %v541 = vadd.f32 %v149, %v540
    %v542 = vpop.f32.mrf.mxu0
    %v543 = vadd.f32 %v149, %v542
    %544 = vmatmul.bf16.gmra.mxu0 %v227
    %v545 = vpop.f32.mrf.mxu0
    %v546 = vadd.f32 %v149, %v545
    %v547 = vpop.f32.mrf.mxu0
    %v548 = vadd.f32 %v149, %v547
    %549 = vmatmul.bf16.gmra.mxu0 %v228
    %v550 = vpop.f32.mrf.mxu0
    %v551 = vadd.f32 %v149, %v550
    %v552 = vpop.f32.mrf.mxu0
    %v553 = vadd.f32 %v149, %v552
    %554 = vmatmul.bf16.gmra.mxu0 %v229
    %v555 = vpop.f32.mrf.mxu0
    %v556 = vadd.f32 %v149, %v555
    %v557 = vpop.f32.mrf.mxu0
    %v558 = vadd.f32 %v149, %v557
    %559 = vmatmul.bf16.gmra.mxu0 %v230
    %v560 = vpop.f32.mrf.mxu0
    %v561 = vadd.f32 %v149, %v560
    %v562 = vpop.f32.mrf.mxu0
    %v563 = vadd.f32 %v149, %v562
    %564 = vmatmul.bf16.gmra.mxu0 %v231
    %v565 = vpop.f32.mrf.mxu0
    %v566 = vadd.f32 %v149, %v565
    %v567 = vpop.f32.mrf.mxu0
    %v568 = vadd.f32 %v149, %v567
    %569 = vmatmul.bf16.gmra.mxu0 %v232
    %v570 = vpop.f32.mrf.mxu0
    %v571 = vadd.f32 %v149, %v570
    %v572 = vpop.f32.mrf.mxu0
    %v573 = vadd.f32 %v149, %v572
    %574 = vmatmul.bf16.gmra.mxu0 %v233
    %v575 = vpop.f32.mrf.mxu0
    %v576 = vadd.f32 %v149, %v575
    %v577 = vpop.f32.mrf.mxu0
    %v578 = vadd.f32 %v149, %v577
    %579 = vmatmul.bf16.gmra.mxu0 %v234
    %v580 = vpop.f32.mrf.mxu0
    %v581 = vadd.f32 %v149, %v580
    %v582 = vpop.f32.mrf.mxu0
    %v583 = vadd.f32 %v149, %v582
    %584 = vmatmul.bf16.gmra.mxu0 %v235
    %v585 = vpop.f32.mrf.mxu0
    %v586 = vadd.f32 %v149, %v585
    %v587 = vpop.f32.mrf.mxu0
    %v588 = vadd.f32 %v149, %v587
    %589 = vdwg.mxu0
    %590 = vmatpush.bf16.msra.mxu0 %v378
    %591 = vmatpush.bf16.msra.mxu0 %v374
    %592 = vmatpush.bf16.msra.mxu0 %v370
    %593 = vmatpush.bf16.msra.mxu0 %v366
    %594 = vmatpush.bf16.msra.mxu0 %v362
    %595 = vmatpush.bf16.msra.mxu0 %v358
    %596 = vmatpush.bf16.msra.mxu0 %v354
    %597 = vmatpush.bf16.msra.mxu0 %v350
    %598 = vmatmul.bf16.gmra.mxu0 %v220
    %v599 = vpop.f32.mrf.mxu0
    %v600 = vadd.f32 %v150, %v599
    %v601 = vpop.f32.mrf.mxu0
    %v602 = vadd.f32 %v150, %v601
    %603 = vmatmul.bf16.gmra.mxu0 %v221
    %v604 = vpop.f32.mrf.mxu0
    %v605 = vadd.f32 %v150, %v604
    %v606 = vpop.f32.mrf.mxu0
    %v607 = vadd.f32 %v150, %v606
    %608 = vmatmul.bf16.gmra.mxu0 %v222
    %v609 = vpop.f32.mrf.mxu0
    %v610 = vadd.f32 %v150, %v609
    %v611 = vpop.f32.mrf.mxu0
    %v612 = vadd.f32 %v150, %v611
    %613 = vmatmul.bf16.gmra.mxu0 %v223
    %v614 = vpop.f32.mrf.mxu0
    %v615 = vadd.f32 %v150, %v614
    %v616 = vpop.f32.mrf.mxu0
    %v617 = vadd.f32 %v150, %v616
    %618 = vmatmul.bf16.gmra.mxu0 %v224
    %v619 = vpop.f32.mrf.mxu0
    %v620 = vadd.f32 %v150, %v619
    %v621 = vpop.f32.mrf.mxu0
    %v622 = vadd.f32 %v150, %v621
    %623 = vmatmul.bf16.gmra.mxu0 %v225
    %v624 = vpop.f32.mrf.mxu0
    %v625 = vadd.f32 %v150, %v624
    %v626 = vpop.f32.mrf.mxu0
    %v627 = vadd.f32 %v150, %v626
    %628 = vmatmul.bf16.gmra.mxu0 %v226
    %v629 = vpop.f32.mrf.mxu0
    %v630 = vadd.f32 %v150, %v629
    %v631 = vpop.f32.mrf.mxu0
    %v632 = vadd.f32 %v150, %v631
    %633 = vmatmul.bf16.gmra.mxu0 %v227
    %v634 = vpop.f32.mrf.mxu0
    %v635 = vadd.f32 %v150, %v634
    %v636 = vpop.f32.mrf.mxu0
    %v637 = vadd.f32 %v150, %v636
    %638 = vmatmul.bf16.gmra.mxu0 %v228
    %v639 = vpop.f32.mrf.mxu0
    %v640 = vadd.f32 %v150, %v639
    %v641 = vpop.f32.mrf.mxu0
    %v642 = vadd.f32 %v150, %v641
    %643 = vmatmul.bf16.gmra.mxu0 %v229
    %v644 = vpop.f32.mrf.mxu0
    %v645 = vadd.f32 %v150, %v644
    %v646 = vpop.f32.mrf.mxu0
    %v647 = vadd.f32 %v150, %v646
    %648 = vmatmul.bf16.gmra.mxu0 %v230
    %v649 = vpop.f32.mrf.mxu0
    %v650 = vadd.f32 %v150, %v649
    %v651 = vpop.f32.mrf.mxu0
    %v652 = vadd.f32 %v150, %v651
    %653 = vmatmul.bf16.gmra.mxu0 %v231
    %v654 = vpop.f32.mrf.mxu0
    %v655 = vadd.f32 %v150, %v654
    %v656 = vpop.f32.mrf.mxu0
    %v657 = vadd.f32 %v150, %v656
    %658 = vmatmul.bf16.gmra.mxu0 %v232
    %v659 = vpop.f32.mrf.mxu0
    %v660 = vadd.f32 %v150, %v659
    %v661 = vpop.f32.mrf.mxu0
    %v662 = vadd.f32 %v150, %v661
    %663 = vmatmul.bf16.gmra.mxu0 %v233
    %v664 = vpop.f32.mrf.mxu0
    %v665 = vadd.f32 %v150, %v664
    %v666 = vpop.f32.mrf.mxu0
    %v667 = vadd.f32 %v150, %v666
    %668 = vmatmul.bf16.gmra.mxu0 %v234
    %v669 = vpop.f32.mrf.mxu0
    %v670 = vadd.f32 %v150, %v669
    %v671 = vpop.f32.mrf.mxu0
    %v672 = vadd.f32 %v150, %v671
    %673 = vmatmul.bf16.gmra.mxu0 %v235
    %v674 = vpop.f32.mrf.mxu0
    %v675 = vadd.f32 %v150, %v674
    %v676 = vpop.f32.mrf.mxu0
    %v677 = vadd.f32 %v150, %v676
    %678 = vdwg.mxu0
    %679 = vmatpush.bf16.msra.mxu0 %v379
    %680 = vmatpush.bf16.msra.mxu0 %v375
    %681 = vmatpush.bf16.msra.mxu0 %v371
    %682 = vmatpush.bf16.msra.mxu0 %v367
    %683 = vmatpush.bf16.msra.mxu0 %v363
    %684 = vmatpush.bf16.msra.mxu0 %v359
    %685 = vmatpush.bf16.msra.mxu0 %v355
    %686 = vmatpush.bf16.msra.mxu0 %v351
    %687 = vmatmul.bf16.gmra.mxu0 %v220
    %v688 = vpop.f32.mrf.mxu0
    %v689 = vadd.f32 %v151, %v688
    %v690 = vpop.f32.mrf.mxu0
    %v691 = vadd.f32 %v151, %v690
    %692 = vmatmul.bf16.gmra.mxu0 %v221
    %v693 = vpop.f32.mrf.mxu0
    %v694 = vadd.f32 %v151, %v693
    %v695 = vpop.f32.mrf.mxu0
    %v696 = vadd.f32 %v151, %v695
    %697 = vmatmul.bf16.gmra.mxu0 %v222
    %v698 = vpop.f32.mrf.mxu0
    %v699 = vadd.f32 %v151, %v698
    %v700 = vpop.f32.mrf.mxu0
    %v701 = vadd.f32 %v151, %v700
    %702 = vmatmul.bf16.gmra.mxu0 %v223
    %v703 = vpop.f32.mrf.mxu0
    %v704 = vadd.f32 %v151, %v703
    %v705 = vpop.f32.mrf.mxu0
    %v706 = vadd.f32 %v151, %v705
    %707 = vmatmul.bf16.gmra.mxu0 %v224
    %v708 = vpop.f32.mrf.mxu0
    %v709 = vadd.f32 %v151, %v708
    %v710 = vpop.f32.mrf.mxu0
    %v711 = vadd.f32 %v151, %v710
    %712 = vmatmul.bf16.gmra.mxu0 %v225
    %v713 = vpop.f32.mrf.mxu0
    %v714 = vadd.f32 %v151, %v713
    %v715 = vpop.f32.mrf.mxu0
    %v716 = vadd.f32 %v151, %v715
    %717 = vmatmul.bf16.gmra.mxu0 %v226
    %v718 = vpop.f32.mrf.mxu0
    %v719 = vadd.f32 %v151, %v718
    %v720 = vpop.f32.mrf.mxu0
    %v721 = vadd.f32 %v151, %v720
    %722 = vmatmul.bf16.gmra.mxu0 %v227
    %v723 = vpop.f32.mrf.mxu0
    %v724 = vadd.f32 %v151, %v723
    %v725 = vpop.f32.mrf.mxu0
    %v726 = vadd.f32 %v151, %v725
    %727 = vmatmul.bf16.gmra.mxu0 %v228
    %v728 = vpop.f32.mrf.mxu0
    %v729 = vadd.f32 %v151, %v728
    %v730 = vpop.f32.mrf.mxu0
    %v731 = vadd.f32 %v151, %v730
    %732 = vmatmul.bf16.gmra.mxu0 %v229
    %v733 = vpop.f32.mrf.mxu0
    %v734 = vadd.f32 %v151, %v733
    %v735 = vpop.f32.mrf.mxu0
    %v736 = vadd.f32 %v151, %v735
    %737 = vmatmul.bf16.gmra.mxu0 %v230
    %v738 = vpop.f32.mrf.mxu0
    %v739 = vadd.f32 %v151, %v738
    %v740 = vpop.f32.mrf.mxu0
    %v741 = vadd.f32 %v151, %v740
    %742 = vmatmul.bf16.gmra.mxu0 %v231
    %v743 = vpop.f32.mrf.mxu0
    %v744 = vadd.f32 %v151, %v743
    %v745 = vpop.f32.mrf.mxu0
    %v746 = vadd.f32 %v151, %v745
    %747 = vmatmul.bf16.gmra.mxu0 %v232
    %v748 = vpop.f32.mrf.mxu0
    %v749 = vadd.f32 %v151, %v748
    %v750 = vpop.f32.mrf.mxu0
    %v751 = vadd.f32 %v151, %v750
    %752 = vmatmul.bf16.gmra.mxu0 %v233
    %v753 = vpop.f32.mrf.mxu0
    %v754 = vadd.f32 %v151, %v753
    %v755 = vpop.f32.mrf.mxu0
    %v756 = vadd.f32 %v151, %v755
    %757 = vmatmul.bf16.gmra.mxu0 %v234
    %v758 = vpop.f32.mrf.mxu0
    %v759 = vadd.f32 %v151, %v758
    %v760 = vpop.f32.mrf.mxu0
    %v761 = vadd.f32 %v151, %v760
    %762 = vmatmul.bf16.gmra.mxu0 %v235
    %v763 = vpop.f32.mrf.mxu0
    %v764 = vadd.f32 %v151, %v763
    %v765 = vpop.f32.mrf.mxu0
    %v766 = vadd.f32 %v151, %v765
    %767 = vdwg.mxu0
    %v768 = vmul.f32 %v422, 0.5
    %v769 = vmul.f32 %v511, 0.5
    %v770 = vmul.f32 %v600, 0.5
    %v771 = vmul.f32 %v689, 0.5
    %v772 = vmul.f32 %v424, 0.5
    %v773 = vmul.f32 %v513, 0.5
    %v774 = vmul.f32 %v602, 0.5
    %v775 = vmul.f32 %v691, 0.5
    %v776 = vmul.f32 %v427, 0.5
    %v777 = vmul.f32 %v516, 0.5
    %v778 = vmul.f32 %v605, 0.5
    %v779 = vmul.f32 %v694, 0.5
    %v780 = vmul.f32 %v429, 0.5
    %v781 = vmul.f32 %v518, 0.5
    %v782 = vmul.f32 %v607, 0.5
    %v783 = vmul.f32 %v696, 0.5
    %v784 = vmul.f32 %v432, 0.5
    %v785 = vmul.f32 %v521, 0.5
    %v786 = vmul.f32 %v610, 0.5
    %v787 = vmul.f32 %v699, 0.5
    %v788 = vmul.f32 %v434, 0.5
    %v789 = vmul.f32 %v523, 0.5
    %v790 = vmul.f32 %v612, 0.5
    %v791 = vmul.f32 %v701, 0.5
    %v792 = vmul.f32 %v437, 0.5
    %v793 = vmul.f32 %v526, 0.5
    %v794 = vmul.f32 %v615, 0.5
    %v795 = vmul.f32 %v704, 0.5
    %v796 = vmul.f32 %v439, 0.5
    %v797 = vmul.f32 %v528, 0.5
    %v798 = vmul.f32 %v617, 0.5
    %v799 = vmul.f32 %v706, 0.5
    %v800 = vmul.f32 %v442, 0.5
    %v801 = vmul.f32 %v531, 0.5
    %v802 = vmul.f32 %v620, 0.5
    %v803 = vmul.f32 %v709, 0.5
    %v804 = vmul.f32 %v444, 0.5
    %v805 = vmul.f32 %v533, 0.5
    %v806 = vmul.f32 %v622, 0.5
    %v807 = vmul.f32 %v711, 0.5
    %v808 = vmul.f32 %v447, 0.5
    %v809 = vmul.f32 %v536, 0.5
    %v810 = vmul.f32 %v625, 0.5
    %v811 = vmul.f32 %v714, 0.5
    %v812 = vmul.f32 %v449, 0.5
    %v813 = vmul.f32 %v538, 0.5
    %v814 = vmul.f32 %v627, 0.5
    %v815 = vmul.f32 %v716, 0.5
    %v816 = vmul.f32 %v452, 0.5
    %v817 = vmul.f32 %v541, 0.5
    %v818 = vmul.f32 %v630, 0.5
    %v819 = vmul.f32 %v719, 0.5
    %v820 = vmul.f32 %v454, 0.5
    %v821 = vmul.f32 %v543, 0.5
    %v822 = vmul.f32 %v632, 0.5
    %v823 = vmul.f32 %v721, 0.5
    %v824 = vmul.f32 %v457, 0.5
    %v825 = vmul.f32 %v546, 0.5
    %v826 = vmul.f32 %v635, 0.5
    %v827 = vmul.f32 %v724, 0.5
    %v828 = vmul.f32 %v459, 0.5
    %v829 = vmul.f32 %v548, 0.5
    %v830 = vmul.f32 %v637, 0.5
    %v831 = vmul.f32 %v726, 0.5
    %v832 = vmul.f32 %v462, 0.5
    %v833 = vmul.f32 %v551, 0.5
    %v834 = vmul.f32 %v640, 0.5
    %v835 = vmul.f32 %v729, 0.5
    %v836 = vmul.f32 %v464, 0.5
    %v837 = vmul.f32 %v553, 0.5
    %v838 = vmul.f32 %v642, 0.5
    %v839 = vmul.f32 %v731, 0.5
    %v840 = vmul.f32 %v467, 0.5
    %v841 = vmul.f32 %v556, 0.5
    %v842 = vmul.f32 %v645, 0.5
    %v843 = vmul.f32 %v734, 0.5
    %v844 = vmul.f32 %v469, 0.5
    %v845 = vmul.f32 %v558, 0.5
    %v846 = vmul.f32 %v647, 0.5
    %v847 = vmul.f32 %v736, 0.5
    %v848 = vmul.f32 %v472, 0.5
    %v849 = vmul.f32 %v561, 0.5
    %v850 = vmul.f32 %v650, 0.5
    %v851 = vmul.f32 %v739, 0.5
    %v852 = vmul.f32 %v474, 0.5
    %v853 = vmul.f32 %v563, 0.5
    %v854 = vmul.f32 %v652, 0.5
    %v855 = vmul.f32 %v741, 0.5
    %v856 = vmul.f32 %v477, 0.5
    %v857 = vmul.f32 %v566, 0.5
    %v858 = vmul.f32 %v655, 0.5
    %v859 = vmul.f32 %v744, 0.5
    %v860 = vmul.f32 %v479, 0.5
    %v861 = vmul.f32 %v568, 0.5
    %v862 = vmul.f32 %v657, 0.5
    %v863 = vmul.f32 %v746, 0.5
    %v864 = vmul.f32 %v482, 0.5
    %v865 = vmul.f32 %v571, 0.5
    %v866 = vmul.f32 %v660, 0.5
    %v867 = vmul.f32 %v749, 0.5
    %v868 = vmul.f32 %v484, 0.5
    %v869 = vmul.f32 %v573, 0.5
    %v870 = vmul.f32 %v662, 0.5
    %v871 = vmul.f32 %v751, 0.5
    %v872 = vmul.f32 %v487, 0.5
    %v873 = vmul.f32 %v576, 0.5
    %v874 = vmul.f32 %v665, 0.5
    %v875 = vmul.f32 %v754, 0.5
    %v876 = vmul.f32 %v489, 0.5
    %v877 = vmul.f32 %v578, 0.5
    %v878 = vmul.f32 %v667, 0.5
    %v879 = vmul.f32 %v756, 0.5
    %v880 = vmul.f32 %v492, 0.5
    %v881 = vmul.f32 %v581, 0.5
    %v882 = vmul.f32 %v670, 0.5
    %v883 = vmul.f32 %v759, 0.5
    %v884 = vmul.f32 %v494, 0.5
    %v885 = vmul.f32 %v583, 0.5
    %v886 = vmul.f32 %v672, 0.5
    %v887 = vmul.f32 %v761, 0.5
    %v888 = vmul.f32 %v497, 0.5
    %v889 = vmul.f32 %v586, 0.5
    %v890 = vmul.f32 %v675, 0.5
    %v891 = vmul.f32 %v764, 0.5
    %v892 = vmul.f32 %v499, 0.5
    %v893 = vmul.f32 %v588, 0.5
    %v894 = vmul.f32 %v677, 0.5
    %v895 = vmul.f32 %v766, 0.5
    %v896 = vmul.f32 %v422, 0.70710677
    %v897 = vmul.f32 %v511, 0.70710677
    %v898 = vmul.f32 %v600, 0.70710677
    %v899 = vmul.f32 %v689, 0.70710677
    %v900 = vmul.f32 %v424, 0.70710677
    %v901 = vmul.f32 %v513, 0.70710677
    %v902 = vmul.f32 %v602, 0.70710677
    %v903 = vmul.f32 %v691, 0.70710677
    %v904 = vmul.f32 %v427, 0.70710677
    %v905 = vmul.f32 %v516, 0.70710677
    %v906 = vmul.f32 %v605, 0.70710677
    %v907 = vmul.f32 %v694, 0.70710677
    %v908 = vmul.f32 %v429, 0.70710677
    %v909 = vmul.f32 %v518, 0.70710677
    %v910 = vmul.f32 %v607, 0.70710677
    %v911 = vmul.f32 %v696, 0.70710677
    %v912 = vmul.f32 %v432, 0.70710677
    %v913 = vmul.f32 %v521, 0.70710677
    %v914 = vmul.f32 %v610, 0.70710677
    %v915 = vmul.f32 %v699, 0.70710677
    %v916 = vmul.f32 %v434, 0.70710677
    %v917 = vmul.f32 %v523, 0.70710677
    %v918 = vmul.f32 %v612, 0.70710677
    %v919 = vmul.f32 %v701, 0.70710677
    %v920 = vmul.f32 %v437, 0.70710677
    %v921 = vmul.f32 %v526, 0.70710677
    %v922 = vmul.f32 %v615, 0.70710677
    %v923 = vmul.f32 %v704, 0.70710677
    %v924 = vmul.f32 %v439, 0.70710677
    %v925 = vmul.f32 %v528, 0.70710677
    %v926 = vmul.f32 %v617, 0.70710677
    %v927 = vmul.f32 %v706, 0.70710677
    %v928 = vmul.f32 %v442, 0.70710677
    %v929 = vmul.f32 %v531, 0.70710677
    %v930 = vmul.f32 %v620, 0.70710677
    %v931 = vmul.f32 %v709, 0.70710677
    %v932 = vmul.f32 %v444, 0.70710677
    %v933 = vmul.f32 %v533, 0.70710677
    %v934 = vmul.f32 %v622, 0.70710677
    %v935 = vmul.f32 %v711, 0.70710677
    %v936 = vmul.f32 %v447, 0.70710677
    %v937 = vmul.f32 %v536, 0.70710677
    %v938 = vmul.f32 %v625, 0.70710677
    %v939 = vmul.f32 %v714, 0.70710677
    %v940 = vmul.f32 %v449, 0.70710677
    %v941 = vmul.f32 %v538, 0.70710677
    %v942 = vmul.f32 %v627, 0.70710677
    %v943 = vmul.f32 %v716, 0.70710677
    %v944 = vmul.f32 %v452, 0.70710677
    %v945 = vmul.f32 %v541, 0.70710677
    %v946 = vmul.f32 %v630, 0.70710677
    %v947 = vmul.f32 %v719, 0.70710677
    %v948 = vmul.f32 %v454, 0.70710677
    %v949 = vmul.f32 %v543, 0.70710677
    %v950 = vmul.f32 %v632, 0.70710677
    %v951 = vmul.f32 %v721, 0.70710677
    %v952 = vmul.f32 %v457, 0.70710677
    %v953 = vmul.f32 %v546, 0.70710677
    %v954 = vmul.f32 %v635, 0.70710677
    %v955 = vmul.f32 %v724, 0.70710677
    %v956 = vmul.f32 %v459, 0.70710677
    %v957 = vmul.f32 %v548, 0.70710677
    %v958 = vmul.f32 %v637, 0.70710677
    %v959 = vmul.f32 %v726, 0.70710677
    %v960 = vmul.f32 %v462, 0.70710677
    %v961 = vmul.f32 %v551, 0.70710677
    %v962 = vmul.f32 %v640, 0.70710677
    %v963 = vmul.f32 %v729, 0.70710677
    %v964 = vmul.f32 %v464, 0.70710677
    %v965 = vmul.f32 %v553, 0.70710677
    %v966 = vmul.f32 %v642, 0.70710677
    %v967 = vmul.f32 %v731, 0.70710677
    %v968 = vmul.f32 %v467, 0.70710677
    %v969 = vmul.f32 %v556, 0.70710677
    %v970 = vmul.f32 %v645, 0.70710677
    %v971 = vmul.f32 %v734, 0.70710677
    %v972 = vmul.f32 %v469, 0.70710677
    %v973 = vmul.f32 %v558, 0.70710677
    %v974 = vmul.f32 %v647, 0.70710677
    %v975 = vmul.f32 %v736, 0.70710677
    %v976 = vmul.f32 %v472, 0.70710677
    %v977 = vmul.f32 %v561, 0.70710677
    %v978 = vmul.f32 %v650, 0.70710677
    %v979 = vmul.f32 %v739, 0.70710677
    %v980 = vmul.f32 %v474, 0.70710677
    %v981 = vmul.f32 %v563, 0.70710677
    %v982 = vmul.f32 %v652, 0.70710677
    %v983 = vmul.f32 %v741, 0.70710677
    %v984 = vmul.f32 %v477, 0.70710677
    %v985 = vmul.f32 %v566, 0.70710677
    %v986 = vmul.f32 %v655, 0.70710677
    %v987 = vmul.f32 %v744, 0.70710677
    %v988 = vmul.f32 %v479, 0.70710677
    %v989 = vmul.f32 %v568, 0.70710677
    %v990 = vmul.f32 %v657, 0.70710677
    %v991 = vmul.f32 %v746, 0.70710677
    %v992 = vmul.f32 %v482, 0.70710677
    %v993 = vmul.f32 %v571, 0.70710677
    %v994 = vmul.f32 %v660, 0.70710677
    %v995 = vmul.f32 %v749, 0.70710677
    %v996 = vmul.f32 %v484, 0.70710677
    %v997 = vmul.f32 %v573, 0.70710677
    %v998 = vmul.f32 %v662, 0.70710677
    %v999 = vmul.f32 %v751, 0.70710677
    %v1000 = vmul.f32 %v487, 0.70710677
    %v1001 = vmul.f32 %v576, 0.70710677
    %v1002 = vmul.f32 %v665, 0.70710677
    %v1003 = vmul.f32 %v754, 0.70710677
    %v1004 = vmul.f32 %v489, 0.70710677
    %v1005 = vmul.f32 %v578, 0.70710677
    %v1006 = vmul.f32 %v667, 0.70710677
    %v1007 = vmul.f32 %v756, 0.70710677
    %v1008 = vmul.f32 %v492, 0.70710677
    %v1009 = vmul.f32 %v581, 0.70710677
    %v1010 = vmul.f32 %v670, 0.70710677
    %v1011 = vmul.f32 %v759, 0.70710677
    %v1012 = vmul.f32 %v494, 0.70710677
    %v1013 = vmul.f32 %v583, 0.70710677
    %v1014 = vmul.f32 %v672, 0.70710677
    %v1015 = vmul.f32 %v761, 0.70710677
    %v1016 = vmul.f32 %v497, 0.70710677
    %v1017 = vmul.f32 %v586, 0.70710677
    %v1018 = vmul.f32 %v675, 0.70710677
    %v1019 = vmul.f32 %v764, 0.70710677
    %v1020 = vmul.f32 %v499, 0.70710677
    %v1021 = vmul.f32 %v588, 0.70710677
    %v1022 = vmul.f32 %v677, 0.70710677
    %v1023 = vmul.f32 %v766, 0.70710677
    %v1024 = vmul.f32 %v896, %v896
    %v1025 = vmin.f32 16.0, %v1024
    %v1026 = vmul.f32 %v1025, 2.1237322e-06
    %v1027 = vadd.f32 %v1026, 0.00028619796
    %v1028 = vmul.f32 %v1025, %v1027
    %v1029 = vadd.f32 %v1028, 0.0036580483
    %v1030 = vmul.f32 %v1025, %v1029
    %v1031 = vadd.f32 %v1030, 0.05243302
    %v1032 = vmul.f32 %v1025, %v1031
    %v1033 = vadd.f32 %v1032, 0.18741608
    %v1034 = vmul.f32 %v1025, %v1033
    %v1035 = vadd.f32 %v1034, 1.1283791
    %v1036 = vmul.f32 %v896, %v1035
    %v1037 = vmul.f32 %v1025, 3.8918573e-05
    %v1038 = vadd.f32 %v1037, 0.001143296
    %v1039 = vmul.f32 %v1025, %v1038
    %v1040 = vadd.f32 %v1039, 0.014752088
    %v1041 = vmul.f32 %v1025, %v1040
    %v1042 = vadd.f32 %v1041, 0.112945676
    %v1043 = vmul.f32 %v1025, %v1042
    %v1044 = vadd.f32 %v1043, 0.4994258
    %v1045 = vmul.f32 %v1025, %v1044
    %v1046 = vadd.f32 %v1045, 1.0
    %v1047 = vrcp.pop %v1046
    %v1048 = vmul.f32 %v1046, %v1047
    %v1049 = vsub.f32 1.0, %v1048
    %v1050 = vmul.f32 %v1047, %v1049
    %v1051 = vadd.f32 %v1047, %v1050
    %vm1052 = vweird.f32 %v1046
    %vm1053 = vweird.f32 %v1047
    %vm1054 = vmor %vm1052, %vm1053
    %v1055 = vsel %vm1054, %v1047, %v1051
    %v1056 = vand.u32 2147483647, %v1046
    %vm1057 = vcmp.eq.f32.partialorder %v1056, 8.507059e+37
    %v1058 = vand.u32 %v1046, 2147483648
    %v1059 = vor.u32 1.1754944e-38, %v1058
    %v1060 = vsel %vm1057, %v1059, %v1055
    %v1061 = vmul.f32 %v1036, %v1060
    %v1062 = vmin.f32 %v1061, 1.0
    %v1063 = vmax.f32 %v1062, -1.0
    %v1064 = vmul.f32 %v897, %v897
    %v1065 = vmin.f32 16.0, %v1064
    %v1066 = vmul.f32 %v1065, 2.1237322e-06
    %v1067 = vadd.f32 %v1066, 0.00028619796
    %v1068 = vmul.f32 %v1065, %v1067
    %v1069 = vadd.f32 %v1068, 0.0036580483
    %v1070 = vmul.f32 %v1065, %v1069
    %v1071 = vadd.f32 %v1070, 0.05243302
    %v1072 = vmul.f32 %v1065, %v1071
    %v1073 = vadd.f32 %v1072, 0.18741608
    %v1074 = vmul.f32 %v1065, %v1073
    %v1075 = vadd.f32 %v1074, 1.1283791
    %v1076 = vmul.f32 %v897, %v1075
    %v1077 = vmul.f32 %v1065, 3.8918573e-05
    %v1078 = vadd.f32 %v1077, 0.001143296
    %v1079 = vmul.f32 %v1065, %v1078
    %v1080 = vadd.f32 %v1079, 0.014752088
    %v1081 = vmul.f32 %v1065, %v1080
    %v1082 = vadd.f32 %v1081, 0.112945676
    %v1083 = vmul.f32 %v1065, %v1082
    %v1084 = vadd.f32 %v1083, 0.4994258
    %v1085 = vmul.f32 %v1065, %v1084
    %v1086 = vadd.f32 %v1085, 1.0
    %v1087 = vrcp.pop %v1086
    %v1088 = vmul.f32 %v1086, %v1087
    %v1089 = vsub.f32 1.0, %v1088
    %v1090 = vmul.f32 %v1087, %v1089
    %v1091 = vadd.f32 %v1087, %v1090
    %vm1092 = vweird.f32 %v1086
    %vm1093 = vweird.f32 %v1087
    %vm1094 = vmor %vm1092, %vm1093
    %v1095 = vsel %vm1094, %v1087, %v1091
    %v1096 = vand.u32 2147483647, %v1086
    %vm1097 = vcmp.eq.f32.partialorder %v1096, 8.507059e+37
    %v1098 = vand.u32 %v1086, 2147483648
    %v1099 = vor.u32 1.1754944e-38, %v1098
    %v1100 = vsel %vm1097, %v1099, %v1095
    %v1101 = vmul.f32 %v1076, %v1100
    %v1102 = vmin.f32 %v1101, 1.0
    %v1103 = vmax.f32 %v1102, -1.0
    %v1104 = vmul.f32 %v898, %v898
    %v1105 = vmin.f32 16.0, %v1104
    %v1106 = vmul.f32 %v1105, 2.1237322e-06
    %v1107 = vadd.f32 %v1106, 0.00028619796
    %v1108 = vmul.f32 %v1105, %v1107
    %v1109 = vadd.f32 %v1108, 0.0036580483
    %v1110 = vmul.f32 %v1105, %v1109
    %v1111 = vadd.f32 %v1110, 0.05243302
    %v1112 = vmul.f32 %v1105, %v1111
    %v1113 = vadd.f32 %v1112, 0.18741608
    %v1114 = vmul.f32 %v1105, %v1113
    %v1115 = vadd.f32 %v1114, 1.1283791
    %v1116 = vmul.f32 %v898, %v1115
    %v1117 = vmul.f32 %v1105, 3.8918573e-05
    %v1118 = vadd.f32 %v1117, 0.001143296
    %v1119 = vmul.f32 %v1105, %v1118
    %v1120 = vadd.f32 %v1119, 0.014752088
    %v1121 = vmul.f32 %v1105, %v1120
    %v1122 = vadd.f32 %v1121, 0.112945676
    %v1123 = vmul.f32 %v1105, %v1122
    %v1124 = vadd.f32 %v1123, 0.4994258
    %v1125 = vmul.f32 %v1105, %v1124
    %v1126 = vadd.f32 %v1125, 1.0
    %v1127 = vrcp.pop %v1126
    %v1128 = vmul.f32 %v1126, %v1127
    %v1129 = vsub.f32 1.0, %v1128
    %v1130 = vmul.f32 %v1127, %v1129
    %v1131 = vadd.f32 %v1127, %v1130
    %vm1132 = vweird.f32 %v1126
    %vm1133 = vweird.f32 %v1127
    %vm1134 = vmor %vm1132, %vm1133
    %v1135 = vsel %vm1134, %v1127, %v1131
    %v1136 = vand.u32 2147483647, %v1126
    %vm1137 = vcmp.eq.f32.partialorder %v1136, 8.507059e+37
    %v1138 = vand.u32 %v1126, 2147483648
    %v1139 = vor.u32 1.1754944e-38, %v1138
    %v1140 = vsel %vm1137, %v1139, %v1135
    %v1141 = vmul.f32 %v1116, %v1140
    %v1142 = vmin.f32 %v1141, 1.0
    %v1143 = vmax.f32 %v1142, -1.0
    %v1144 = vmul.f32 %v899, %v899
    %v1145 = vmin.f32 16.0, %v1144
    %v1146 = vmul.f32 %v1145, 2.1237322e-06
    %v1147 = vadd.f32 %v1146, 0.00028619796
    %v1148 = vmul.f32 %v1145, %v1147
    %v1149 = vadd.f32 %v1148, 0.0036580483
    %v1150 = vmul.f32 %v1145, %v1149
    %v1151 = vadd.f32 %v1150, 0.05243302
    %v1152 = vmul.f32 %v1145, %v1151
    %v1153 = vadd.f32 %v1152, 0.18741608
    %v1154 = vmul.f32 %v1145, %v1153
    %v1155 = vadd.f32 %v1154, 1.1283791
    %v1156 = vmul.f32 %v899, %v1155
    %v1157 = vmul.f32 %v1145, 3.8918573e-05
    %v1158 = vadd.f32 %v1157, 0.001143296
    %v1159 = vmul.f32 %v1145, %v1158
    %v1160 = vadd.f32 %v1159, 0.014752088
    %v1161 = vmul.f32 %v1145, %v1160
    %v1162 = vadd.f32 %v1161, 0.112945676
    %v1163 = vmul.f32 %v1145, %v1162
    %v1164 = vadd.f32 %v1163, 0.4994258
    %v1165 = vmul.f32 %v1145, %v1164
    %v1166 = vadd.f32 %v1165, 1.0
    %v1167 = vrcp.pop %v1166
    %v1168 = vmul.f32 %v1166, %v1167
    %v1169 = vsub.f32 1.0, %v1168
    %v1170 = vmul.f32 %v1167, %v1169
    %v1171 = vadd.f32 %v1167, %v1170
    %vm1172 = vweird.f32 %v1166
    %vm1173 = vweird.f32 %v1167
    %vm1174 = vmor %vm1172, %vm1173
    %v1175 = vsel %vm1174, %v1167, %v1171
    %v1176 = vand.u32 2147483647, %v1166
    %vm1177 = vcmp.eq.f32.partialorder %v1176, 8.507059e+37
    %v1178 = vand.u32 %v1166, 2147483648
    %v1179 = vor.u32 1.1754944e-38, %v1178
    %v1180 = vsel %vm1177, %v1179, %v1175
    %v1181 = vmul.f32 %v1156, %v1180
    %v1182 = vmin.f32 %v1181, 1.0
    %v1183 = vmax.f32 %v1182, -1.0
    %v1184 = vmul.f32 %v900, %v900
    %v1185 = vmin.f32 16.0, %v1184
    %v1186 = vmul.f32 %v1185, 2.1237322e-06
    %v1187 = vadd.f32 %v1186, 0.00028619796
    %v1188 = vmul.f32 %v1185, %v1187
    %v1189 = vadd.f32 %v1188, 0.0036580483
    %v1190 = vmul.f32 %v1185, %v1189
    %v1191 = vadd.f32 %v1190, 0.05243302
    %v1192 = vmul.f32 %v1185, %v1191
    %v1193 = vadd.f32 %v1192, 0.18741608
    %v1194 = vmul.f32 %v1185, %v1193
    %v1195 = vadd.f32 %v1194, 1.1283791
    %v1196 = vmul.f32 %v900, %v1195
    %v1197 = vmul.f32 %v1185, 3.8918573e-05
    %v1198 = vadd.f32 %v1197, 0.001143296
    %v1199 = vmul.f32 %v1185, %v1198
    %v1200 = vadd.f32 %v1199, 0.014752088
    %v1201 = vmul.f32 %v1185, %v1200
    %v1202 = vadd.f32 %v1201, 0.112945676
    %v1203 = vmul.f32 %v1185, %v1202
    %v1204 = vadd.f32 %v1203, 0.4994258
    %v1205 = vmul.f32 %v1185, %v1204
    %v1206 = vadd.f32 %v1205, 1.0
    %v1207 = vrcp.pop %v1206
    %v1208 = vmul.f32 %v1206, %v1207
    %v1209 = vsub.f32 1.0, %v1208
    %v1210 = vmul.f32 %v1207, %v1209
    %v1211 = vadd.f32 %v1207, %v1210
    %vm1212 = vweird.f32 %v1206
    %vm1213 = vweird.f32 %v1207
    %vm1214 = vmor %vm1212, %vm1213
    %v1215 = vsel %vm1214, %v1207, %v1211
    %v1216 = vand.u32 2147483647, %v1206
    %vm1217 = vcmp.eq.f32.partialorder %v1216, 8.507059e+37
    %v1218 = vand.u32 %v1206, 2147483648
    %v1219 = vor.u32 1.1754944e-38, %v1218
    %v1220 = vsel %vm1217, %v1219, %v1215
    %v1221 = vmul.f32 %v1196, %v1220
    %v1222 = vmin.f32 %v1221, 1.0
    %v1223 = vmax.f32 %v1222, -1.0
    %v1224 = vmul.f32 %v901, %v901
    %v1225 = vmin.f32 16.0, %v1224
    %v1226 = vmul.f32 %v1225, 2.1237322e-06
    %v1227 = vadd.f32 %v1226, 0.00028619796
    %v1228 = vmul.f32 %v1225, %v1227
    %v1229 = vadd.f32 %v1228, 0.0036580483
    %v1230 = vmul.f32 %v1225, %v1229
    %v1231 = vadd.f32 %v1230, 0.05243302
    %v1232 = vmul.f32 %v1225, %v1231
    %v1233 = vadd.f32 %v1232, 0.18741608
    %v1234 = vmul.f32 %v1225, %v1233
    %v1235 = vadd.f32 %v1234, 1.1283791
    %v1236 = vmul.f32 %v901, %v1235
    %v1237 = vmul.f32 %v1225, 3.8918573e-05
    %v1238 = vadd.f32 %v1237, 0.001143296
    %v1239 = vmul.f32 %v1225, %v1238
    %v1240 = vadd.f32 %v1239, 0.014752088
    %v1241 = vmul.f32 %v1225, %v1240
    %v1242 = vadd.f32 %v1241, 0.112945676
    %v1243 = vmul.f32 %v1225, %v1242
    %v1244 = vadd.f32 %v1243, 0.4994258
    %v1245 = vmul.f32 %v1225, %v1244
    %v1246 = vadd.f32 %v1245, 1.0
    %v1247 = vrcp.pop %v1246
    %v1248 = vmul.f32 %v1246, %v1247
    %v1249 = vsub.f32 1.0, %v1248
    %v1250 = vmul.f32 %v1247, %v1249
    %v1251 = vadd.f32 %v1247, %v1250
    %vm1252 = vweird.f32 %v1246
    %vm1253 = vweird.f32 %v1247
    %vm1254 = vmor %vm1252, %vm1253
    %v1255 = vsel %vm1254, %v1247, %v1251
    %v1256 = vand.u32 2147483647, %v1246
    %vm1257 = vcmp.eq.f32.partialorder %v1256, 8.507059e+37
    %v1258 = vand.u32 %v1246, 2147483648
    %v1259 = vor.u32 1.1754944e-38, %v1258
    %v1260 = vsel %vm1257, %v1259, %v1255
    %v1261 = vmul.f32 %v1236, %v1260
    %v1262 = vmin.f32 %v1261, 1.0
    %v1263 = vmax.f32 %v1262, -1.0
    %v1264 = vmul.f32 %v902, %v902
    %v1265 = vmin.f32 16.0, %v1264
    %v1266 = vmul.f32 %v1265, 2.1237322e-06
    %v1267 = vadd.f32 %v1266, 0.00028619796
    %v1268 = vmul.f32 %v1265, %v1267
    %v1269 = vadd.f32 %v1268, 0.0036580483
    %v1270 = vmul.f32 %v1265, %v1269
    %v1271 = vadd.f32 %v1270, 0.05243302
    %v1272 = vmul.f32 %v1265, %v1271
    %v1273 = vadd.f32 %v1272, 0.18741608
    %v1274 = vmul.f32 %v1265, %v1273
    %v1275 = vadd.f32 %v1274, 1.1283791
    %v1276 = vmul.f32 %v902, %v1275
    %v1277 = vmul.f32 %v1265, 3.8918573e-05
    %v1278 = vadd.f32 %v1277, 0.001143296
    %v1279 = vmul.f32 %v1265, %v1278
    %v1280 = vadd.f32 %v1279, 0.014752088
    %v1281 = vmul.f32 %v1265, %v1280
    %v1282 = vadd.f32 %v1281, 0.112945676
    %v1283 = vmul.f32 %v1265, %v1282
    %v1284 = vadd.f32 %v1283, 0.4994258
    %v1285 = vmul.f32 %v1265, %v1284
    %v1286 = vadd.f32 %v1285, 1.0
    %v1287 = vrcp.pop %v1286
    %v1288 = vmul.f32 %v1286, %v1287
    %v1289 = vsub.f32 1.0, %v1288
    %v1290 = vmul.f32 %v1287, %v1289
    %v1291 = vadd.f32 %v1287, %v1290
    %vm1292 = vweird.f32 %v1286
    %vm1293 = vweird.f32 %v1287
    %vm1294 = vmor %vm1292, %vm1293
    %v1295 = vsel %vm1294, %v1287, %v1291
    %v1296 = vand.u32 2147483647, %v1286
    %vm1297 = vcmp.eq.f32.partialorder %v1296, 8.507059e+37
    %v1298 = vand.u32 %v1286, 2147483648
    %v1299 = vor.u32 1.1754944e-38, %v1298
    %v1300 = vsel %vm1297, %v1299, %v1295
    %v1301 = vmul.f32 %v1276, %v1300
    %v1302 = vmin.f32 %v1301, 1.0
    %v1303 = vmax.f32 %v1302, -1.0
    %v1304 = vmul.f32 %v903, %v903
    %v1305 = vmin.f32 16.0, %v1304
    %v1306 = vmul.f32 %v1305, 2.1237322e-06
    %v1307 = vadd.f32 %v1306, 0.00028619796
    %v1308 = vmul.f32 %v1305, %v1307
    %v1309 = vadd.f32 %v1308, 0.0036580483
    %v1310 = vmul.f32 %v1305, %v1309
    %v1311 = vadd.f32 %v1310, 0.05243302
    %v1312 = vmul.f32 %v1305, %v1311
    %v1313 = vadd.f32 %v1312, 0.18741608
    %v1314 = vmul.f32 %v1305, %v1313
    %v1315 = vadd.f32 %v1314, 1.1283791
    %v1316 = vmul.f32 %v903, %v1315
    %v1317 = vmul.f32 %v1305, 3.8918573e-05
    %v1318 = vadd.f32 %v1317, 0.001143296
    %v1319 = vmul.f32 %v1305, %v1318
    %v1320 = vadd.f32 %v1319, 0.014752088
    %v1321 = vmul.f32 %v1305, %v1320
    %v1322 = vadd.f32 %v1321, 0.112945676
    %v1323 = vmul.f32 %v1305, %v1322
    %v1324 = vadd.f32 %v1323, 0.4994258
    %v1325 = vmul.f32 %v1305, %v1324
    %v1326 = vadd.f32 %v1325, 1.0
    %v1327 = vrcp.pop %v1326
    %v1328 = vmul.f32 %v1326, %v1327
    %v1329 = vsub.f32 1.0, %v1328
    %v1330 = vmul.f32 %v1327, %v1329
    %v1331 = vadd.f32 %v1327, %v1330
    %vm1332 = vweird.f32 %v1326
    %vm1333 = vweird.f32 %v1327
    %vm1334 = vmor %vm1332, %vm1333
    %v1335 = vsel %vm1334, %v1327, %v1331
    %v1336 = vand.u32 2147483647, %v1326
    %vm1337 = vcmp.eq.f32.partialorder %v1336, 8.507059e+37
    %v1338 = vand.u32 %v1326, 2147483648
    %v1339 = vor.u32 1.1754944e-38, %v1338
    %v1340 = vsel %vm1337, %v1339, %v1335
    %v1341 = vmul.f32 %v1316, %v1340
    %v1342 = vmin.f32 %v1341, 1.0
    %v1343 = vmax.f32 %v1342, -1.0
    %v1344 = vmul.f32 %v904, %v904
    %v1345 = vmin.f32 16.0, %v1344
    %v1346 = vmul.f32 %v1345, 2.1237322e-06
    %v1347 = vadd.f32 %v1346, 0.00028619796
    %v1348 = vmul.f32 %v1345, %v1347
    %v1349 = vadd.f32 %v1348, 0.0036580483
    %v1350 = vmul.f32 %v1345, %v1349
    %v1351 = vadd.f32 %v1350, 0.05243302
    %v1352 = vmul.f32 %v1345, %v1351
    %v1353 = vadd.f32 %v1352, 0.18741608
    %v1354 = vmul.f32 %v1345, %v1353
    %v1355 = vadd.f32 %v1354, 1.1283791
    %v1356 = vmul.f32 %v904, %v1355
    %v1357 = vmul.f32 %v1345, 3.8918573e-05
    %v1358 = vadd.f32 %v1357, 0.001143296
    %v1359 = vmul.f32 %v1345, %v1358
    %v1360 = vadd.f32 %v1359, 0.014752088
    %v1361 = vmul.f32 %v1345, %v1360
    %v1362 = vadd.f32 %v1361, 0.112945676
    %v1363 = vmul.f32 %v1345, %v1362
    %v1364 = vadd.f32 %v1363, 0.4994258
    %v1365 = vmul.f32 %v1345, %v1364
    %v1366 = vadd.f32 %v1365, 1.0
    %v1367 = vrcp.pop %v1366
    %v1368 = vmul.f32 %v1366, %v1367
    %v1369 = vsub.f32 1.0, %v1368
    %v1370 = vmul.f32 %v1367, %v1369
    %v1371 = vadd.f32 %v1367, %v1370
    %vm1372 = vweird.f32 %v1366
    %vm1373 = vweird.f32 %v1367
    %vm1374 = vmor %vm1372, %vm1373
    %v1375 = vsel %vm1374, %v1367, %v1371
    %v1376 = vand.u32 2147483647, %v1366
    %vm1377 = vcmp.eq.f32.partialorder %v1376, 8.507059e+37
    %v1378 = vand.u32 %v1366, 2147483648
    %v1379 = vor.u32 1.1754944e-38, %v1378
    %v1380 = vsel %vm1377, %v1379, %v1375
    %v1381 = vmul.f32 %v1356, %v1380
    %v1382 = vmin.f32 %v1381, 1.0
    %v1383 = vmax.f32 %v1382, -1.0
    %v1384 = vmul.f32 %v905, %v905
    %v1385 = vmin.f32 16.0, %v1384
    %v1386 = vmul.f32 %v1385, 2.1237322e-06
    %v1387 = vadd.f32 %v1386, 0.00028619796
    %v1388 = vmul.f32 %v1385, %v1387
    %v1389 = vadd.f32 %v1388, 0.0036580483
    %v1390 = vmul.f32 %v1385, %v1389
    %v1391 = vadd.f32 %v1390, 0.05243302
    %v1392 = vmul.f32 %v1385, %v1391
    %v1393 = vadd.f32 %v1392, 0.18741608
    %v1394 = vmul.f32 %v1385, %v1393
    %v1395 = vadd.f32 %v1394, 1.1283791
    %v1396 = vmul.f32 %v905, %v1395
    %v1397 = vmul.f32 %v1385, 3.8918573e-05
    %v1398 = vadd.f32 %v1397, 0.001143296
    %v1399 = vmul.f32 %v1385, %v1398
    %v1400 = vadd.f32 %v1399, 0.014752088
    %v1401 = vmul.f32 %v1385, %v1400
    %v1402 = vadd.f32 %v1401, 0.112945676
    %v1403 = vmul.f32 %v1385, %v1402
    %v1404 = vadd.f32 %v1403, 0.4994258
    %v1405 = vmul.f32 %v1385, %v1404
    %v1406 = vadd.f32 %v1405, 1.0
    %v1407 = vrcp.pop %v1406
    %v1408 = vmul.f32 %v1406, %v1407
    %v1409 = vsub.f32 1.0, %v1408
    %v1410 = vmul.f32 %v1407, %v1409
    %v1411 = vadd.f32 %v1407, %v1410
    %vm1412 = vweird.f32 %v1406
    %vm1413 = vweird.f32 %v1407
    %vm1414 = vmor %vm1412, %vm1413
    %v1415 = vsel %vm1414, %v1407, %v1411
    %v1416 = vand.u32 2147483647, %v1406
    %vm1417 = vcmp.eq.f32.partialorder %v1416, 8.507059e+37
    %v1418 = vand.u32 %v1406, 2147483648
    %v1419 = vor.u32 1.1754944e-38, %v1418
    %v1420 = vsel %vm1417, %v1419, %v1415
    %v1421 = vmul.f32 %v1396, %v1420
    %v1422 = vmin.f32 %v1421, 1.0
    %v1423 = vmax.f32 %v1422, -1.0
    %v1424 = vmul.f32 %v906, %v906
    %v1425 = vmin.f32 16.0, %v1424
    %v1426 = vmul.f32 %v1425, 2.1237322e-06
    %v1427 = vadd.f32 %v1426, 0.00028619796
    %v1428 = vmul.f32 %v1425, %v1427
    %v1429 = vadd.f32 %v1428, 0.0036580483
    %v1430 = vmul.f32 %v1425, %v1429
    %v1431 = vadd.f32 %v1430, 0.05243302
    %v1432 = vmul.f32 %v1425, %v1431
    %v1433 = vadd.f32 %v1432, 0.18741608
    %v1434 = vmul.f32 %v1425, %v1433
    %v1435 = vadd.f32 %v1434, 1.1283791
    %v1436 = vmul.f32 %v906, %v1435
    %v1437 = vmul.f32 %v1425, 3.8918573e-05
    %v1438 = vadd.f32 %v1437, 0.001143296
    %v1439 = vmul.f32 %v1425, %v1438
    %v1440 = vadd.f32 %v1439, 0.014752088
    %v1441 = vmul.f32 %v1425, %v1440
    %v1442 = vadd.f32 %v1441, 0.112945676
    %v1443 = vmul.f32 %v1425, %v1442
    %v1444 = vadd.f32 %v1443, 0.4994258
    %v1445 = vmul.f32 %v1425, %v1444
    %v1446 = vadd.f32 %v1445, 1.0
    %v1447 = vrcp.pop %v1446
    %v1448 = vmul.f32 %v1446, %v1447
    %v1449 = vsub.f32 1.0, %v1448
    %v1450 = vmul.f32 %v1447, %v1449
    %v1451 = vadd.f32 %v1447, %v1450
    %vm1452 = vweird.f32 %v1446
    %vm1453 = vweird.f32 %v1447
    %vm1454 = vmor %vm1452, %vm1453
    %v1455 = vsel %vm1454, %v1447, %v1451
    %v1456 = vand.u32 2147483647, %v1446
    %vm1457 = vcmp.eq.f32.partialorder %v1456, 8.507059e+37
    %v1458 = vand.u32 %v1446, 2147483648
    %v1459 = vor.u32 1.1754944e-38, %v1458
    %v1460 = vsel %vm1457, %v1459, %v1455
    %v1461 = vmul.f32 %v1436, %v1460
    %v1462 = vmin.f32 %v1461, 1.0
    %v1463 = vmax.f32 %v1462, -1.0
    %v1464 = vmul.f32 %v907, %v907
    %v1465 = vmin.f32 16.0, %v1464
    %v1466 = vmul.f32 %v1465, 2.1237322e-06
    %v1467 = vadd.f32 %v1466, 0.00028619796
    %v1468 = vmul.f32 %v1465, %v1467
    %v1469 = vadd.f32 %v1468, 0.0036580483
    %v1470 = vmul.f32 %v1465, %v1469
    %v1471 = vadd.f32 %v1470, 0.05243302
    %v1472 = vmul.f32 %v1465, %v1471
    %v1473 = vadd.f32 %v1472, 0.18741608
    %v1474 = vmul.f32 %v1465, %v1473
    %v1475 = vadd.f32 %v1474, 1.1283791
    %v1476 = vmul.f32 %v907, %v1475
    %v1477 = vmul.f32 %v1465, 3.8918573e-05
    %v1478 = vadd.f32 %v1477, 0.001143296
    %v1479 = vmul.f32 %v1465, %v1478
    %v1480 = vadd.f32 %v1479, 0.014752088
    %v1481 = vmul.f32 %v1465, %v1480
    %v1482 = vadd.f32 %v1481, 0.112945676
    %v1483 = vmul.f32 %v1465, %v1482
    %v1484 = vadd.f32 %v1483, 0.4994258
    %v1485 = vmul.f32 %v1465, %v1484
    %v1486 = vadd.f32 %v1485, 1.0
    %v1487 = vrcp.pop %v1486
    %v1488 = vmul.f32 %v1486, %v1487
    %v1489 = vsub.f32 1.0, %v1488
    %v1490 = vmul.f32 %v1487, %v1489
    %v1491 = vadd.f32 %v1487, %v1490
    %vm1492 = vweird.f32 %v1486
    %vm1493 = vweird.f32 %v1487
    %vm1494 = vmor %vm1492, %vm1493
    %v1495 = vsel %vm1494, %v1487, %v1491
    %v1496 = vand.u32 2147483647, %v1486
    %vm1497 = vcmp.eq.f32.partialorder %v1496, 8.507059e+37
    %v1498 = vand.u32 %v1486, 2147483648
    %v1499 = vor.u32 1.1754944e-38, %v1498
    %v1500 = vsel %vm1497, %v1499, %v1495
    %v1501 = vmul.f32 %v1476, %v1500
    %v1502 = vmin.f32 %v1501, 1.0
    %v1503 = vmax.f32 %v1502, -1.0
    %v1504 = vmul.f32 %v908, %v908
    %v1505 = vmin.f32 16.0, %v1504
    %v1506 = vmul.f32 %v1505, 2.1237322e-06
    %v1507 = vadd.f32 %v1506, 0.00028619796
    %v1508 = vmul.f32 %v1505, %v1507
    %v1509 = vadd.f32 %v1508, 0.0036580483
    %v1510 = vmul.f32 %v1505, %v1509
    %v1511 = vadd.f32 %v1510, 0.05243302
    %v1512 = vmul.f32 %v1505, %v1511
    %v1513 = vadd.f32 %v1512, 0.18741608
    %v1514 = vmul.f32 %v1505, %v1513
    %v1515 = vadd.f32 %v1514, 1.1283791
    %v1516 = vmul.f32 %v908, %v1515
    %v1517 = vmul.f32 %v1505, 3.8918573e-05
    %v1518 = vadd.f32 %v1517, 0.001143296
    %v1519 = vmul.f32 %v1505, %v1518
    %v1520 = vadd.f32 %v1519, 0.014752088
    %v1521 = vmul.f32 %v1505, %v1520
    %v1522 = vadd.f32 %v1521, 0.112945676
    %v1523 = vmul.f32 %v1505, %v1522
    %v1524 = vadd.f32 %v1523, 0.4994258
    %v1525 = vmul.f32 %v1505, %v1524
    %v1526 = vadd.f32 %v1525, 1.0
    %v1527 = vrcp.pop %v1526
    %v1528 = vmul.f32 %v1526, %v1527
    %v1529 = vsub.f32 1.0, %v1528
    %v1530 = vmul.f32 %v1527, %v1529
    %v1531 = vadd.f32 %v1527, %v1530
    %vm1532 = vweird.f32 %v1526
    %vm1533 = vweird.f32 %v1527
    %vm1534 = vmor %vm1532, %vm1533
    %v1535 = vsel %vm1534, %v1527, %v1531
    %v1536 = vand.u32 2147483647, %v1526
    %vm1537 = vcmp.eq.f32.partialorder %v1536, 8.507059e+37
    %v1538 = vand.u32 %v1526, 2147483648
    %v1539 = vor.u32 1.1754944e-38, %v1538
    %v1540 = vsel %vm1537, %v1539, %v1535
    %v1541 = vmul.f32 %v1516, %v1540
    %v1542 = vmin.f32 %v1541, 1.0
    %v1543 = vmax.f32 %v1542, -1.0
    %v1544 = vmul.f32 %v909, %v909
    %v1545 = vmin.f32 16.0, %v1544
    %v1546 = vmul.f32 %v1545, 2.1237322e-06
    %v1547 = vadd.f32 %v1546, 0.00028619796
    %v1548 = vmul.f32 %v1545, %v1547
    %v1549 = vadd.f32 %v1548, 0.0036580483
    %v1550 = vmul.f32 %v1545, %v1549
    %v1551 = vadd.f32 %v1550, 0.05243302
    %v1552 = vmul.f32 %v1545, %v1551
    %v1553 = vadd.f32 %v1552, 0.18741608
    %v1554 = vmul.f32 %v1545, %v1553
    %v1555 = vadd.f32 %v1554, 1.1283791
    %v1556 = vmul.f32 %v909, %v1555
    %v1557 = vmul.f32 %v1545, 3.8918573e-05
    %v1558 = vadd.f32 %v1557, 0.001143296
    %v1559 = vmul.f32 %v1545, %v1558
    %v1560 = vadd.f32 %v1559, 0.014752088
    %v1561 = vmul.f32 %v1545, %v1560
    %v1562 = vadd.f32 %v1561, 0.112945676
    %v1563 = vmul.f32 %v1545, %v1562
    %v1564 = vadd.f32 %v1563, 0.4994258
    %v1565 = vmul.f32 %v1545, %v1564
    %v1566 = vadd.f32 %v1565, 1.0
    %v1567 = vrcp.pop %v1566
    %v1568 = vmul.f32 %v1566, %v1567
    %v1569 = vsub.f32 1.0, %v1568
    %v1570 = vmul.f32 %v1567, %v1569
    %v1571 = vadd.f32 %v1567, %v1570
    %vm1572 = vweird.f32 %v1566
    %vm1573 = vweird.f32 %v1567
    %vm1574 = vmor %vm1572, %vm1573
    %v1575 = vsel %vm1574, %v1567, %v1571
    %v1576 = vand.u32 2147483647, %v1566
    %vm1577 = vcmp.eq.f32.partialorder %v1576, 8.507059e+37
    %v1578 = vand.u32 %v1566, 2147483648
    %v1579 = vor.u32 1.1754944e-38, %v1578
    %v1580 = vsel %vm1577, %v1579, %v1575
    %v1581 = vmul.f32 %v1556, %v1580
    %v1582 = vmin.f32 %v1581, 1.0
    %v1583 = vmax.f32 %v1582, -1.0
    %v1584 = vmul.f32 %v910, %v910
    %v1585 = vmin.f32 16.0, %v1584
    %v1586 = vmul.f32 %v1585, 2.1237322e-06
    %v1587 = vadd.f32 %v1586, 0.00028619796
    %v1588 = vmul.f32 %v1585, %v1587
    %v1589 = vadd.f32 %v1588, 0.0036580483
    %v1590 = vmul.f32 %v1585, %v1589
    %v1591 = vadd.f32 %v1590, 0.05243302
    %v1592 = vmul.f32 %v1585, %v1591
    %v1593 = vadd.f32 %v1592, 0.18741608
    %v1594 = vmul.f32 %v1585, %v1593
    %v1595 = vadd.f32 %v1594, 1.1283791
    %v1596 = vmul.f32 %v910, %v1595
    %v1597 = vmul.f32 %v1585, 3.8918573e-05
    %v1598 = vadd.f32 %v1597, 0.001143296
    %v1599 = vmul.f32 %v1585, %v1598
    %v1600 = vadd.f32 %v1599, 0.014752088
    %v1601 = vmul.f32 %v1585, %v1600
    %v1602 = vadd.f32 %v1601, 0.112945676
    %v1603 = vmul.f32 %v1585, %v1602
    %v1604 = vadd.f32 %v1603, 0.4994258
    %v1605 = vmul.f32 %v1585, %v1604
    %v1606 = vadd.f32 %v1605, 1.0
    %v1607 = vrcp.pop %v1606
    %v1608 = vmul.f32 %v1606, %v1607
    %v1609 = vsub.f32 1.0, %v1608
    %v1610 = vmul.f32 %v1607, %v1609
    %v1611 = vadd.f32 %v1607, %v1610
    %vm1612 = vweird.f32 %v1606
    %vm1613 = vweird.f32 %v1607
    %vm1614 = vmor %vm1612, %vm1613
    %v1615 = vsel %vm1614, %v1607, %v1611
    %v1616 = vand.u32 2147483647, %v1606
    %vm1617 = vcmp.eq.f32.partialorder %v1616, 8.507059e+37
    %v1618 = vand.u32 %v1606, 2147483648
    %v1619 = vor.u32 1.1754944e-38, %v1618
    %v1620 = vsel %vm1617, %v1619, %v1615
    %v1621 = vmul.f32 %v1596, %v1620
    %v1622 = vmin.f32 %v1621, 1.0
    %v1623 = vmax.f32 %v1622, -1.0
    %v1624 = vmul.f32 %v911, %v911
    %v1625 = vmin.f32 16.0, %v1624
    %v1626 = vmul.f32 %v1625, 2.1237322e-06
    %v1627 = vadd.f32 %v1626, 0.00028619796
    %v1628 = vmul.f32 %v1625, %v1627
    %v1629 = vadd.f32 %v1628, 0.0036580483
    %v1630 = vmul.f32 %v1625, %v1629
    %v1631 = vadd.f32 %v1630, 0.05243302
    %v1632 = vmul.f32 %v1625, %v1631
    %v1633 = vadd.f32 %v1632, 0.18741608
    %v1634 = vmul.f32 %v1625, %v1633
    %v1635 = vadd.f32 %v1634, 1.1283791
    %v1636 = vmul.f32 %v911, %v1635
    %v1637 = vmul.f32 %v1625, 3.8918573e-05
    %v1638 = vadd.f32 %v1637, 0.001143296
    %v1639 = vmul.f32 %v1625, %v1638
    %v1640 = vadd.f32 %v1639, 0.014752088
    %v1641 = vmul.f32 %v1625, %v1640
    %v1642 = vadd.f32 %v1641, 0.112945676
    %v1643 = vmul.f32 %v1625, %v1642
    %v1644 = vadd.f32 %v1643, 0.4994258
    %v1645 = vmul.f32 %v1625, %v1644
    %v1646 = vadd.f32 %v1645, 1.0
    %v1647 = vrcp.pop %v1646
    %v1648 = vmul.f32 %v1646, %v1647
    %v1649 = vsub.f32 1.0, %v1648
    %v1650 = vmul.f32 %v1647, %v1649
    %v1651 = vadd.f32 %v1647, %v1650
    %vm1652 = vweird.f32 %v1646
    %vm1653 = vweird.f32 %v1647
    %vm1654 = vmor %vm1652, %vm1653
    %v1655 = vsel %vm1654, %v1647, %v1651
    %v1656 = vand.u32 2147483647, %v1646
    %vm1657 = vcmp.eq.f32.partialorder %v1656, 8.507059e+37
    %v1658 = vand.u32 %v1646, 2147483648
    %v1659 = vor.u32 1.1754944e-38, %v1658
    %v1660 = vsel %vm1657, %v1659, %v1655
    %v1661 = vmul.f32 %v1636, %v1660
    %v1662 = vmin.f32 %v1661, 1.0
    %v1663 = vmax.f32 %v1662, -1.0
    %v1664 = vmul.f32 %v912, %v912
    %v1665 = vmin.f32 16.0, %v1664
    %v1666 = vmul.f32 %v1665, 2.1237322e-06
    %v1667 = vadd.f32 %v1666, 0.00028619796
    %v1668 = vmul.f32 %v1665, %v1667
    %v1669 = vadd.f32 %v1668, 0.0036580483
    %v1670 = vmul.f32 %v1665, %v1669
    %v1671 = vadd.f32 %v1670, 0.05243302
    %v1672 = vmul.f32 %v1665, %v1671
    %v1673 = vadd.f32 %v1672, 0.18741608
    %v1674 = vmul.f32 %v1665, %v1673
    %v1675 = vadd.f32 %v1674, 1.1283791
    %v1676 = vmul.f32 %v912, %v1675
    %v1677 = vmul.f32 %v1665, 3.8918573e-05
    %v1678 = vadd.f32 %v1677, 0.001143296
    %v1679 = vmul.f32 %v1665, %v1678
    %v1680 = vadd.f32 %v1679, 0.014752088
    %v1681 = vmul.f32 %v1665, %v1680
    %v1682 = vadd.f32 %v1681, 0.112945676
    %v1683 = vmul.f32 %v1665, %v1682
    %v1684 = vadd.f32 %v1683, 0.4994258
    %v1685 = vmul.f32 %v1665, %v1684
    %v1686 = vadd.f32 %v1685, 1.0
    %v1687 = vrcp.pop %v1686
    %v1688 = vmul.f32 %v1686, %v1687
    %v1689 = vsub.f32 1.0, %v1688
    %v1690 = vmul.f32 %v1687, %v1689
    %v1691 = vadd.f32 %v1687, %v1690
    %vm1692 = vweird.f32 %v1686
    %vm1693 = vweird.f32 %v1687
    %vm1694 = vmor %vm1692, %vm1693
    %v1695 = vsel %vm1694, %v1687, %v1691
    %v1696 = vand.u32 2147483647, %v1686
    %vm1697 = vcmp.eq.f32.partialorder %v1696, 8.507059e+37
    %v1698 = vand.u32 %v1686, 2147483648
    %v1699 = vor.u32 1.1754944e-38, %v1698
    %v1700 = vsel %vm1697, %v1699, %v1695
    %v1701 = vmul.f32 %v1676, %v1700
    %v1702 = vmin.f32 %v1701, 1.0
    %v1703 = vmax.f32 %v1702, -1.0
    %v1704 = vmul.f32 %v913, %v913
    %v1705 = vmin.f32 16.0, %v1704
    %v1706 = vmul.f32 %v1705, 2.1237322e-06
    %v1707 = vadd.f32 %v1706, 0.00028619796
    %v1708 = vmul.f32 %v1705, %v1707
    %v1709 = vadd.f32 %v1708, 0.0036580483
    %v1710 = vmul.f32 %v1705, %v1709
    %v1711 = vadd.f32 %v1710, 0.05243302
    %v1712 = vmul.f32 %v1705, %v1711
    %v1713 = vadd.f32 %v1712, 0.18741608
    %v1714 = vmul.f32 %v1705, %v1713
    %v1715 = vadd.f32 %v1714, 1.1283791
    %v1716 = vmul.f32 %v913, %v1715
    %v1717 = vmul.f32 %v1705, 3.8918573e-05
    %v1718 = vadd.f32 %v1717, 0.001143296
    %v1719 = vmul.f32 %v1705, %v1718
    %v1720 = vadd.f32 %v1719, 0.014752088
    %v1721 = vmul.f32 %v1705, %v1720
    %v1722 = vadd.f32 %v1721, 0.112945676
    %v1723 = vmul.f32 %v1705, %v1722
    %v1724 = vadd.f32 %v1723, 0.4994258
    %v1725 = vmul.f32 %v1705, %v1724
    %v1726 = vadd.f32 %v1725, 1.0
    %v1727 = vrcp.pop %v1726
    %v1728 = vmul.f32 %v1726, %v1727
    %v1729 = vsub.f32 1.0, %v1728
    %v1730 = vmul.f32 %v1727, %v1729
    %v1731 = vadd.f32 %v1727, %v1730
    %vm1732 = vweird.f32 %v1726
    %vm1733 = vweird.f32 %v1727
    %vm1734 = vmor %vm1732, %vm1733
    %v1735 = vsel %vm1734, %v1727, %v1731
    %v1736 = vand.u32 2147483647, %v1726
    %vm1737 = vcmp.eq.f32.partialorder %v1736, 8.507059e+37
    %v1738 = vand.u32 %v1726, 2147483648
    %v1739 = vor.u32 1.1754944e-38, %v1738
    %v1740 = vsel %vm1737, %v1739, %v1735
    %v1741 = vmul.f32 %v1716, %v1740
    %v1742 = vmin.f32 %v1741, 1.0
    %v1743 = vmax.f32 %v1742, -1.0
    %v1744 = vmul.f32 %v914, %v914
    %v1745 = vmin.f32 16.0, %v1744
    %v1746 = vmul.f32 %v1745, 2.1237322e-06
    %v1747 = vadd.f32 %v1746, 0.00028619796
    %v1748 = vmul.f32 %v1745, %v1747
    %v1749 = vadd.f32 %v1748, 0.0036580483
    %v1750 = vmul.f32 %v1745, %v1749
    %v1751 = vadd.f32 %v1750, 0.05243302
    %v1752 = vmul.f32 %v1745, %v1751
    %v1753 = vadd.f32 %v1752, 0.18741608
    %v1754 = vmul.f32 %v1745, %v1753
    %v1755 = vadd.f32 %v1754, 1.1283791
    %v1756 = vmul.f32 %v914, %v1755
    %v1757 = vmul.f32 %v1745, 3.8918573e-05
    %v1758 = vadd.f32 %v1757, 0.001143296
    %v1759 = vmul.f32 %v1745, %v1758
    %v1760 = vadd.f32 %v1759, 0.014752088
    %v1761 = vmul.f32 %v1745, %v1760
    %v1762 = vadd.f32 %v1761, 0.112945676
    %v1763 = vmul.f32 %v1745, %v1762
    %v1764 = vadd.f32 %v1763, 0.4994258
    %v1765 = vmul.f32 %v1745, %v1764
    %v1766 = vadd.f32 %v1765, 1.0
    %v1767 = vrcp.pop %v1766
    %v1768 = vmul.f32 %v1766, %v1767
    %v1769 = vsub.f32 1.0, %v1768
    %v1770 = vmul.f32 %v1767, %v1769
    %v1771 = vadd.f32 %v1767, %v1770
    %vm1772 = vweird.f32 %v1766
    %vm1773 = vweird.f32 %v1767
    %vm1774 = vmor %vm1772, %vm1773
    %v1775 = vsel %vm1774, %v1767, %v1771
    %v1776 = vand.u32 2147483647, %v1766
    %vm1777 = vcmp.eq.f32.partialorder %v1776, 8.507059e+37
    %v1778 = vand.u32 %v1766, 2147483648
    %v1779 = vor.u32 1.1754944e-38, %v1778
    %v1780 = vsel %vm1777, %v1779, %v1775
    %v1781 = vmul.f32 %v1756, %v1780
    %v1782 = vmin.f32 %v1781, 1.0
    %v1783 = vmax.f32 %v1782, -1.0
    %v1784 = vmul.f32 %v915, %v915
    %v1785 = vmin.f32 16.0, %v1784
    %v1786 = vmul.f32 %v1785, 2.1237322e-06
    %v1787 = vadd.f32 %v1786, 0.00028619796
    %v1788 = vmul.f32 %v1785, %v1787
    %v1789 = vadd.f32 %v1788, 0.0036580483
    %v1790 = vmul.f32 %v1785, %v1789
    %v1791 = vadd.f32 %v1790, 0.05243302
    %v1792 = vmul.f32 %v1785, %v1791
    %v1793 = vadd.f32 %v1792, 0.18741608
    %v1794 = vmul.f32 %v1785, %v1793
    %v1795 = vadd.f32 %v1794, 1.1283791
    %v1796 = vmul.f32 %v915, %v1795
    %v1797 = vmul.f32 %v1785, 3.8918573e-05
    %v1798 = vadd.f32 %v1797, 0.001143296
    %v1799 = vmul.f32 %v1785, %v1798
    %v1800 = vadd.f32 %v1799, 0.014752088
    %v1801 = vmul.f32 %v1785, %v1800
    %v1802 = vadd.f32 %v1801, 0.112945676
    %v1803 = vmul.f32 %v1785, %v1802
    %v1804 = vadd.f32 %v1803, 0.4994258
    %v1805 = vmul.f32 %v1785, %v1804
    %v1806 = vadd.f32 %v1805, 1.0
    %v1807 = vrcp.pop %v1806
    %v1808 = vmul.f32 %v1806, %v1807
    %v1809 = vsub.f32 1.0, %v1808
    %v1810 = vmul.f32 %v1807, %v1809
    %v1811 = vadd.f32 %v1807, %v1810
    %vm1812 = vweird.f32 %v1806
    %vm1813 = vweird.f32 %v1807
    %vm1814 = vmor %vm1812, %vm1813
    %v1815 = vsel %vm1814, %v1807, %v1811
    %v1816 = vand.u32 2147483647, %v1806
    %vm1817 = vcmp.eq.f32.partialorder %v1816, 8.507059e+37
    %v1818 = vand.u32 %v1806, 2147483648
    %v1819 = vor.u32 1.1754944e-38, %v1818
    %v1820 = vsel %vm1817, %v1819, %v1815
    %v1821 = vmul.f32 %v1796, %v1820
    %v1822 = vmin.f32 %v1821, 1.0
    %v1823 = vmax.f32 %v1822, -1.0
    %v1824 = vmul.f32 %v916, %v916
    %v1825 = vmin.f32 16.0, %v1824
    %v1826 = vmul.f32 %v1825, 2.1237322e-06
    %v1827 = vadd.f32 %v1826, 0.00028619796
    %v1828 = vmul.f32 %v1825, %v1827
    %v1829 = vadd.f32 %v1828, 0.0036580483
    %v1830 = vmul.f32 %v1825, %v1829
    %v1831 = vadd.f32 %v1830, 0.05243302
    %v1832 = vmul.f32 %v1825, %v1831
    %v1833 = vadd.f32 %v1832, 0.18741608
    %v1834 = vmul.f32 %v1825, %v1833
    %v1835 = vadd.f32 %v1834, 1.1283791
    %v1836 = vmul.f32 %v916, %v1835
    %v1837 = vmul.f32 %v1825, 3.8918573e-05
    %v1838 = vadd.f32 %v1837, 0.001143296
    %v1839 = vmul.f32 %v1825, %v1838
    %v1840 = vadd.f32 %v1839, 0.014752088
    %v1841 = vmul.f32 %v1825, %v1840
    %v1842 = vadd.f32 %v1841, 0.112945676
    %v1843 = vmul.f32 %v1825, %v1842
    %v1844 = vadd.f32 %v1843, 0.4994258
    %v1845 = vmul.f32 %v1825, %v1844
    %v1846 = vadd.f32 %v1845, 1.0
    %v1847 = vrcp.pop %v1846
    %v1848 = vmul.f32 %v1846, %v1847
    %v1849 = vsub.f32 1.0, %v1848
    %v1850 = vmul.f32 %v1847, %v1849
    %v1851 = vadd.f32 %v1847, %v1850
    %vm1852 = vweird.f32 %v1846
    %vm1853 = vweird.f32 %v1847
    %vm1854 = vmor %vm1852, %vm1853
    %v1855 = vsel %vm1854, %v1847, %v1851
    %v1856 = vand.u32 2147483647, %v1846
    %vm1857 = vcmp.eq.f32.partialorder %v1856, 8.507059e+37
    %v1858 = vand.u32 %v1846, 2147483648
    %v1859 = vor.u32 1.1754944e-38, %v1858
    %v1860 = vsel %vm1857, %v1859, %v1855
    %v1861 = vmul.f32 %v1836, %v1860
    %v1862 = vmin.f32 %v1861, 1.0
    %v1863 = vmax.f32 %v1862, -1.0
    %v1864 = vmul.f32 %v917, %v917
    %v1865 = vmin.f32 16.0, %v1864
    %v1866 = vmul.f32 %v1865, 2.1237322e-06
    %v1867 = vadd.f32 %v1866, 0.00028619796
    %v1868 = vmul.f32 %v1865, %v1867
    %v1869 = vadd.f32 %v1868, 0.0036580483
    %v1870 = vmul.f32 %v1865, %v1869
    %v1871 = vadd.f32 %v1870, 0.05243302
    %v1872 = vmul.f32 %v1865, %v1871
    %v1873 = vadd.f32 %v1872, 0.18741608
    %v1874 = vmul.f32 %v1865, %v1873
    %v1875 = vadd.f32 %v1874, 1.1283791
    %v1876 = vmul.f32 %v917, %v1875
    %v1877 = vmul.f32 %v1865, 3.8918573e-05
    %v1878 = vadd.f32 %v1877, 0.001143296
    %v1879 = vmul.f32 %v1865, %v1878
    %v1880 = vadd.f32 %v1879, 0.014752088
    %v1881 = vmul.f32 %v1865, %v1880
    %v1882 = vadd.f32 %v1881, 0.112945676
    %v1883 = vmul.f32 %v1865, %v1882
    %v1884 = vadd.f32 %v1883, 0.4994258
    %v1885 = vmul.f32 %v1865, %v1884
    %v1886 = vadd.f32 %v1885, 1.0
    %v1887 = vrcp.pop %v1886
    %v1888 = vmul.f32 %v1886, %v1887
    %v1889 = vsub.f32 1.0, %v1888
    %v1890 = vmul.f32 %v1887, %v1889
    %v1891 = vadd.f32 %v1887, %v1890
    %vm1892 = vweird.f32 %v1886
    %vm1893 = vweird.f32 %v1887
    %vm1894 = vmor %vm1892, %vm1893
    %v1895 = vsel %vm1894, %v1887, %v1891
    %v1896 = vand.u32 2147483647, %v1886
    %vm1897 = vcmp.eq.f32.partialorder %v1896, 8.507059e+37
    %v1898 = vand.u32 %v1886, 2147483648
    %v1899 = vor.u32 1.1754944e-38, %v1898
    %v1900 = vsel %vm1897, %v1899, %v1895
    %v1901 = vmul.f32 %v1876, %v1900
    %v1902 = vmin.f32 %v1901, 1.0
    %v1903 = vmax.f32 %v1902, -1.0
    %v1904 = vmul.f32 %v918, %v918
    %v1905 = vmin.f32 16.0, %v1904
    %v1906 = vmul.f32 %v1905, 2.1237322e-06
    %v1907 = vadd.f32 %v1906, 0.00028619796
    %v1908 = vmul.f32 %v1905, %v1907
    %v1909 = vadd.f32 %v1908, 0.0036580483
    %v1910 = vmul.f32 %v1905, %v1909
    %v1911 = vadd.f32 %v1910, 0.05243302
    %v1912 = vmul.f32 %v1905, %v1911
    %v1913 = vadd.f32 %v1912, 0.18741608
    %v1914 = vmul.f32 %v1905, %v1913
    %v1915 = vadd.f32 %v1914, 1.1283791
    %v1916 = vmul.f32 %v918, %v1915
    %v1917 = vmul.f32 %v1905, 3.8918573e-05
    %v1918 = vadd.f32 %v1917, 0.001143296
    %v1919 = vmul.f32 %v1905, %v1918
    %v1920 = vadd.f32 %v1919, 0.014752088
    %v1921 = vmul.f32 %v1905, %v1920
    %v1922 = vadd.f32 %v1921, 0.112945676
    %v1923 = vmul.f32 %v1905, %v1922
    %v1924 = vadd.f32 %v1923, 0.4994258
    %v1925 = vmul.f32 %v1905, %v1924
    %v1926 = vadd.f32 %v1925, 1.0
    %v1927 = vrcp.pop %v1926
    %v1928 = vmul.f32 %v1926, %v1927
    %v1929 = vsub.f32 1.0, %v1928
    %v1930 = vmul.f32 %v1927, %v1929
    %v1931 = vadd.f32 %v1927, %v1930
    %vm1932 = vweird.f32 %v1926
    %vm1933 = vweird.f32 %v1927
    %vm1934 = vmor %vm1932, %vm1933
    %v1935 = vsel %vm1934, %v1927, %v1931
    %v1936 = vand.u32 2147483647, %v1926
    %vm1937 = vcmp.eq.f32.partialorder %v1936, 8.507059e+37
    %v1938 = vand.u32 %v1926, 2147483648
    %v1939 = vor.u32 1.1754944e-38, %v1938
    %v1940 = vsel %vm1937, %v1939, %v1935
    %v1941 = vmul.f32 %v1916, %v1940
    %v1942 = vmin.f32 %v1941, 1.0
    %v1943 = vmax.f32 %v1942, -1.0
    %v1944 = vmul.f32 %v919, %v919
    %v1945 = vmin.f32 16.0, %v1944
    %v1946 = vmul.f32 %v1945, 2.1237322e-06
    %v1947 = vadd.f32 %v1946, 0.00028619796
    %v1948 = vmul.f32 %v1945, %v1947
    %v1949 = vadd.f32 %v1948, 0.0036580483
    %v1950 = vmul.f32 %v1945, %v1949
    %v1951 = vadd.f32 %v1950, 0.05243302
    %v1952 = vmul.f32 %v1945, %v1951
    %v1953 = vadd.f32 %v1952, 0.18741608
    %v1954 = vmul.f32 %v1945, %v1953
    %v1955 = vadd.f32 %v1954, 1.1283791
    %v1956 = vmul.f32 %v919, %v1955
    %v1957 = vmul.f32 %v1945, 3.8918573e-05
    %v1958 = vadd.f32 %v1957, 0.001143296
    %v1959 = vmul.f32 %v1945, %v1958
    %v1960 = vadd.f32 %v1959, 0.014752088
    %v1961 = vmul.f32 %v1945, %v1960
    %v1962 = vadd.f32 %v1961, 0.112945676
    %v1963 = vmul.f32 %v1945, %v1962
    %v1964 = vadd.f32 %v1963, 0.4994258
    %v1965 = vmul.f32 %v1945, %v1964
    %v1966 = vadd.f32 %v1965, 1.0
    %v1967 = vrcp.pop %v1966
    %v1968 = vmul.f32 %v1966, %v1967
    %v1969 = vsub.f32 1.0, %v1968
    %v1970 = vmul.f32 %v1967, %v1969
    %v1971 = vadd.f32 %v1967, %v1970
    %vm1972 = vweird.f32 %v1966
    %vm1973 = vweird.f32 %v1967
    %vm1974 = vmor %vm1972, %vm1973
    %v1975 = vsel %vm1974, %v1967, %v1971
    %v1976 = vand.u32 2147483647, %v1966
    %vm1977 = vcmp.eq.f32.partialorder %v1976, 8.507059e+37
    %v1978 = vand.u32 %v1966, 2147483648
    %v1979 = vor.u32 1.1754944e-38, %v1978
    %v1980 = vsel %vm1977, %v1979, %v1975
    %v1981 = vmul.f32 %v1956, %v1980
    %v1982 = vmin.f32 %v1981, 1.0
    %v1983 = vmax.f32 %v1982, -1.0
    %v1984 = vmul.f32 %v920, %v920
    %v1985 = vmin.f32 16.0, %v1984
    %v1986 = vmul.f32 %v1985, 2.1237322e-06
    %v1987 = vadd.f32 %v1986, 0.00028619796
    %v1988 = vmul.f32 %v1985, %v1987
    %v1989 = vadd.f32 %v1988, 0.0036580483
    %v1990 = vmul.f32 %v1985, %v1989
    %v1991 = vadd.f32 %v1990, 0.05243302
    %v1992 = vmul.f32 %v1985, %v1991
    %v1993 = vadd.f32 %v1992, 0.18741608
    %v1994 = vmul.f32 %v1985, %v1993
    %v1995 = vadd.f32 %v1994, 1.1283791
    %v1996 = vmul.f32 %v920, %v1995
    %v1997 = vmul.f32 %v1985, 3.8918573e-05
    %v1998 = vadd.f32 %v1997, 0.001143296
    %v1999 = vmul.f32 %v1985, %v1998
    %v2000 = vadd.f32 %v1999, 0.014752088
    %v2001 = vmul.f32 %v1985, %v2000
    %v2002 = vadd.f32 %v2001, 0.112945676
    %v2003 = vmul.f32 %v1985, %v2002
    %v2004 = vadd.f32 %v2003, 0.4994258
    %v2005 = vmul.f32 %v1985, %v2004
    %v2006 = vadd.f32 %v2005, 1.0
    %v2007 = vrcp.pop %v2006
    %v2008 = vmul.f32 %v2006, %v2007
    %v2009 = vsub.f32 1.0, %v2008
    %v2010 = vmul.f32 %v2007, %v2009
    %v2011 = vadd.f32 %v2007, %v2010
    %vm2012 = vweird.f32 %v2006
    %vm2013 = vweird.f32 %v2007
    %vm2014 = vmor %vm2012, %vm2013
    %v2015 = vsel %vm2014, %v2007, %v2011
    %v2016 = vand.u32 2147483647, %v2006
    %vm2017 = vcmp.eq.f32.partialorder %v2016, 8.507059e+37
    %v2018 = vand.u32 %v2006, 2147483648
    %v2019 = vor.u32 1.1754944e-38, %v2018
    %v2020 = vsel %vm2017, %v2019, %v2015
    %v2021 = vmul.f32 %v1996, %v2020
    %v2022 = vmin.f32 %v2021, 1.0
    %v2023 = vmax.f32 %v2022, -1.0
    %v2024 = vmul.f32 %v921, %v921
    %v2025 = vmin.f32 16.0, %v2024
    %v2026 = vmul.f32 %v2025, 2.1237322e-06
    %v2027 = vadd.f32 %v2026, 0.00028619796
    %v2028 = vmul.f32 %v2025, %v2027
    %v2029 = vadd.f32 %v2028, 0.0036580483
    %v2030 = vmul.f32 %v2025, %v2029
    %v2031 = vadd.f32 %v2030, 0.05243302
    %v2032 = vmul.f32 %v2025, %v2031
    %v2033 = vadd.f32 %v2032, 0.18741608
    %v2034 = vmul.f32 %v2025, %v2033
    %v2035 = vadd.f32 %v2034, 1.1283791
    %v2036 = vmul.f32 %v921, %v2035
    %v2037 = vmul.f32 %v2025, 3.8918573e-05
    %v2038 = vadd.f32 %v2037, 0.001143296
    %v2039 = vmul.f32 %v2025, %v2038
    %v2040 = vadd.f32 %v2039, 0.014752088
    %v2041 = vmul.f32 %v2025, %v2040
    %v2042 = vadd.f32 %v2041, 0.112945676
    %v2043 = vmul.f32 %v2025, %v2042
    %v2044 = vadd.f32 %v2043, 0.4994258
    %v2045 = vmul.f32 %v2025, %v2044
    %v2046 = vadd.f32 %v2045, 1.0
    %v2047 = vrcp.pop %v2046
    %v2048 = vmul.f32 %v2046, %v2047
    %v2049 = vsub.f32 1.0, %v2048
    %v2050 = vmul.f32 %v2047, %v2049
    %v2051 = vadd.f32 %v2047, %v2050
    %vm2052 = vweird.f32 %v2046
    %vm2053 = vweird.f32 %v2047
    %vm2054 = vmor %vm2052, %vm2053
    %v2055 = vsel %vm2054, %v2047, %v2051
    %v2056 = vand.u32 2147483647, %v2046
    %vm2057 = vcmp.eq.f32.partialorder %v2056, 8.507059e+37
    %v2058 = vand.u32 %v2046, 2147483648
    %v2059 = vor.u32 1.1754944e-38, %v2058
    %v2060 = vsel %vm2057, %v2059, %v2055
    %v2061 = vmul.f32 %v2036, %v2060
    %v2062 = vmin.f32 %v2061, 1.0
    %v2063 = vmax.f32 %v2062, -1.0
    %v2064 = vmul.f32 %v922, %v922
    %v2065 = vmin.f32 16.0, %v2064
    %v2066 = vmul.f32 %v2065, 2.1237322e-06
    %v2067 = vadd.f32 %v2066, 0.00028619796
    %v2068 = vmul.f32 %v2065, %v2067
    %v2069 = vadd.f32 %v2068, 0.0036580483
    %v2070 = vmul.f32 %v2065, %v2069
    %v2071 = vadd.f32 %v2070, 0.05243302
    %v2072 = vmul.f32 %v2065, %v2071
    %v2073 = vadd.f32 %v2072, 0.18741608
    %v2074 = vmul.f32 %v2065, %v2073
    %v2075 = vadd.f32 %v2074, 1.1283791
    %v2076 = vmul.f32 %v922, %v2075
    %v2077 = vmul.f32 %v2065, 3.8918573e-05
    %v2078 = vadd.f32 %v2077, 0.001143296
    %v2079 = vmul.f32 %v2065, %v2078
    %v2080 = vadd.f32 %v2079, 0.014752088
    %v2081 = vmul.f32 %v2065, %v2080
    %v2082 = vadd.f32 %v2081, 0.112945676
    %v2083 = vmul.f32 %v2065, %v2082
    %v2084 = vadd.f32 %v2083, 0.4994258
    %v2085 = vmul.f32 %v2065, %v2084
    %v2086 = vadd.f32 %v2085, 1.0
    %v2087 = vrcp.pop %v2086
    %v2088 = vmul.f32 %v2086, %v2087
    %v2089 = vsub.f32 1.0, %v2088
    %v2090 = vmul.f32 %v2087, %v2089
    %v2091 = vadd.f32 %v2087, %v2090
    %vm2092 = vweird.f32 %v2086
    %vm2093 = vweird.f32 %v2087
    %vm2094 = vmor %vm2092, %vm2093
    %v2095 = vsel %vm2094, %v2087, %v2091
    %v2096 = vand.u32 2147483647, %v2086
    %vm2097 = vcmp.eq.f32.partialorder %v2096, 8.507059e+37
    %v2098 = vand.u32 %v2086, 2147483648
    %v2099 = vor.u32 1.1754944e-38, %v2098
    %v2100 = vsel %vm2097, %v2099, %v2095
    %v2101 = vmul.f32 %v2076, %v2100
    %v2102 = vmin.f32 %v2101, 1.0
    %v2103 = vmax.f32 %v2102, -1.0
    %v2104 = vmul.f32 %v923, %v923
    %v2105 = vmin.f32 16.0, %v2104
    %v2106 = vmul.f32 %v2105, 2.1237322e-06
    %v2107 = vadd.f32 %v2106, 0.00028619796
    %v2108 = vmul.f32 %v2105, %v2107
    %v2109 = vadd.f32 %v2108, 0.0036580483
    %v2110 = vmul.f32 %v2105, %v2109
    %v2111 = vadd.f32 %v2110, 0.05243302
    %v2112 = vmul.f32 %v2105, %v2111
    %v2113 = vadd.f32 %v2112, 0.18741608
    %v2114 = vmul.f32 %v2105, %v2113
    %v2115 = vadd.f32 %v2114, 1.1283791
    %v2116 = vmul.f32 %v923, %v2115
    %v2117 = vmul.f32 %v2105, 3.8918573e-05
    %v2118 = vadd.f32 %v2117, 0.001143296
    %v2119 = vmul.f32 %v2105, %v2118
    %v2120 = vadd.f32 %v2119, 0.014752088
    %v2121 = vmul.f32 %v2105, %v2120
    %v2122 = vadd.f32 %v2121, 0.112945676
    %v2123 = vmul.f32 %v2105, %v2122
    %v2124 = vadd.f32 %v2123, 0.4994258
    %v2125 = vmul.f32 %v2105, %v2124
    %v2126 = vadd.f32 %v2125, 1.0
    %v2127 = vrcp.pop %v2126
    %v2128 = vmul.f32 %v2126, %v2127
    %v2129 = vsub.f32 1.0, %v2128
    %v2130 = vmul.f32 %v2127, %v2129
    %v2131 = vadd.f32 %v2127, %v2130
    %vm2132 = vweird.f32 %v2126
    %vm2133 = vweird.f32 %v2127
    %vm2134 = vmor %vm2132, %vm2133
    %v2135 = vsel %vm2134, %v2127, %v2131
    %v2136 = vand.u32 2147483647, %v2126
    %vm2137 = vcmp.eq.f32.partialorder %v2136, 8.507059e+37
    %v2138 = vand.u32 %v2126, 2147483648
    %v2139 = vor.u32 1.1754944e-38, %v2138
    %v2140 = vsel %vm2137, %v2139, %v2135
    %v2141 = vmul.f32 %v2116, %v2140
    %v2142 = vmin.f32 %v2141, 1.0
    %v2143 = vmax.f32 %v2142, -1.0
    %v2144 = vmul.f32 %v924, %v924
    %v2145 = vmin.f32 16.0, %v2144
    %v2146 = vmul.f32 %v2145, 2.1237322e-06
    %v2147 = vadd.f32 %v2146, 0.00028619796
    %v2148 = vmul.f32 %v2145, %v2147
    %v2149 = vadd.f32 %v2148, 0.0036580483
    %v2150 = vmul.f32 %v2145, %v2149
    %v2151 = vadd.f32 %v2150, 0.05243302
    %v2152 = vmul.f32 %v2145, %v2151
    %v2153 = vadd.f32 %v2152, 0.18741608
    %v2154 = vmul.f32 %v2145, %v2153
    %v2155 = vadd.f32 %v2154, 1.1283791
    %v2156 = vmul.f32 %v924, %v2155
    %v2157 = vmul.f32 %v2145, 3.8918573e-05
    %v2158 = vadd.f32 %v2157, 0.001143296
    %v2159 = vmul.f32 %v2145, %v2158
    %v2160 = vadd.f32 %v2159, 0.014752088
    %v2161 = vmul.f32 %v2145, %v2160
    %v2162 = vadd.f32 %v2161, 0.112945676
    %v2163 = vmul.f32 %v2145, %v2162
    %v2164 = vadd.f32 %v2163, 0.4994258
    %v2165 = vmul.f32 %v2145, %v2164
    %v2166 = vadd.f32 %v2165, 1.0
    %v2167 = vrcp.pop %v2166
    %v2168 = vmul.f32 %v2166, %v2167
    %v2169 = vsub.f32 1.0, %v2168
    %v2170 = vmul.f32 %v2167, %v2169
    %v2171 = vadd.f32 %v2167, %v2170
    %vm2172 = vweird.f32 %v2166
    %vm2173 = vweird.f32 %v2167
    %vm2174 = vmor %vm2172, %vm2173
    %v2175 = vsel %vm2174, %v2167, %v2171
    %v2176 = vand.u32 2147483647, %v2166
    %vm2177 = vcmp.eq.f32.partialorder %v2176, 8.507059e+37
    %v2178 = vand.u32 %v2166, 2147483648
    %v2179 = vor.u32 1.1754944e-38, %v2178
    %v2180 = vsel %vm2177, %v2179, %v2175
    %v2181 = vmul.f32 %v2156, %v2180
    %v2182 = vmin.f32 %v2181, 1.0
    %v2183 = vmax.f32 %v2182, -1.0
    %v2184 = vmul.f32 %v925, %v925
    %v2185 = vmin.f32 16.0, %v2184
    %v2186 = vmul.f32 %v2185, 2.1237322e-06
    %v2187 = vadd.f32 %v2186, 0.00028619796
    %v2188 = vmul.f32 %v2185, %v2187
    %v2189 = vadd.f32 %v2188, 0.0036580483
    %v2190 = vmul.f32 %v2185, %v2189
    %v2191 = vadd.f32 %v2190, 0.05243302
    %v2192 = vmul.f32 %v2185, %v2191
    %v2193 = vadd.f32 %v2192, 0.18741608
    %v2194 = vmul.f32 %v2185, %v2193
    %v2195 = vadd.f32 %v2194, 1.1283791
    %v2196 = vmul.f32 %v925, %v2195
    %v2197 = vmul.f32 %v2185, 3.8918573e-05
    %v2198 = vadd.f32 %v2197, 0.001143296
    %v2199 = vmul.f32 %v2185, %v2198
    %v2200 = vadd.f32 %v2199, 0.014752088
    %v2201 = vmul.f32 %v2185, %v2200
    %v2202 = vadd.f32 %v2201, 0.112945676
    %v2203 = vmul.f32 %v2185, %v2202
    %v2204 = vadd.f32 %v2203, 0.4994258
    %v2205 = vmul.f32 %v2185, %v2204
    %v2206 = vadd.f32 %v2205, 1.0
    %v2207 = vrcp.pop %v2206
    %v2208 = vmul.f32 %v2206, %v2207
    %v2209 = vsub.f32 1.0, %v2208
    %v2210 = vmul.f32 %v2207, %v2209
    %v2211 = vadd.f32 %v2207, %v2210
    %vm2212 = vweird.f32 %v2206
    %vm2213 = vweird.f32 %v2207
    %vm2214 = vmor %vm2212, %vm2213
    %v2215 = vsel %vm2214, %v2207, %v2211
    %v2216 = vand.u32 2147483647, %v2206
    %vm2217 = vcmp.eq.f32.partialorder %v2216, 8.507059e+37
    %v2218 = vand.u32 %v2206, 2147483648
    %v2219 = vor.u32 1.1754944e-38, %v2218
    %v2220 = vsel %vm2217, %v2219, %v2215
    %v2221 = vmul.f32 %v2196, %v2220
    %v2222 = vmin.f32 %v2221, 1.0
    %v2223 = vmax.f32 %v2222, -1.0
    %v2224 = vmul.f32 %v926, %v926
    %v2225 = vmin.f32 16.0, %v2224
    %v2226 = vmul.f32 %v2225, 2.1237322e-06
    %v2227 = vadd.f32 %v2226, 0.00028619796
    %v2228 = vmul.f32 %v2225, %v2227
    %v2229 = vadd.f32 %v2228, 0.0036580483
    %v2230 = vmul.f32 %v2225, %v2229
    %v2231 = vadd.f32 %v2230, 0.05243302
    %v2232 = vmul.f32 %v2225, %v2231
    %v2233 = vadd.f32 %v2232, 0.18741608
    %v2234 = vmul.f32 %v2225, %v2233
    %v2235 = vadd.f32 %v2234, 1.1283791
    %v2236 = vmul.f32 %v926, %v2235
    %v2237 = vmul.f32 %v2225, 3.8918573e-05
    %v2238 = vadd.f32 %v2237, 0.001143296
    %v2239 = vmul.f32 %v2225, %v2238
    %v2240 = vadd.f32 %v2239, 0.014752088
    %v2241 = vmul.f32 %v2225, %v2240
    %v2242 = vadd.f32 %v2241, 0.112945676
    %v2243 = vmul.f32 %v2225, %v2242
    %v2244 = vadd.f32 %v2243, 0.4994258
    %v2245 = vmul.f32 %v2225, %v2244
    %v2246 = vadd.f32 %v2245, 1.0
    %v2247 = vrcp.pop %v2246
    %v2248 = vmul.f32 %v2246, %v2247
    %v2249 = vsub.f32 1.0, %v2248
    %v2250 = vmul.f32 %v2247, %v2249
    %v2251 = vadd.f32 %v2247, %v2250
    %vm2252 = vweird.f32 %v2246
    %vm2253 = vweird.f32 %v2247
    %vm2254 = vmor %vm2252, %vm2253
    %v2255 = vsel %vm2254, %v2247, %v2251
    %v2256 = vand.u32 2147483647, %v2246
    %vm2257 = vcmp.eq.f32.partialorder %v2256, 8.507059e+37
    %v2258 = vand.u32 %v2246, 2147483648
    %v2259 = vor.u32 1.1754944e-38, %v2258
    %v2260 = vsel %vm2257, %v2259, %v2255
    %v2261 = vmul.f32 %v2236, %v2260
    %v2262 = vmin.f32 %v2261, 1.0
    %v2263 = vmax.f32 %v2262, -1.0
    %v2264 = vmul.f32 %v927, %v927
    %v2265 = vmin.f32 16.0, %v2264
    %v2266 = vmul.f32 %v2265, 2.1237322e-06
    %v2267 = vadd.f32 %v2266, 0.00028619796
    %v2268 = vmul.f32 %v2265, %v2267
    %v2269 = vadd.f32 %v2268, 0.0036580483
    %v2270 = vmul.f32 %v2265, %v2269
    %v2271 = vadd.f32 %v2270, 0.05243302
    %v2272 = vmul.f32 %v2265, %v2271
    %v2273 = vadd.f32 %v2272, 0.18741608
    %v2274 = vmul.f32 %v2265, %v2273
    %v2275 = vadd.f32 %v2274, 1.1283791
    %v2276 = vmul.f32 %v927, %v2275
    %v2277 = vmul.f32 %v2265, 3.8918573e-05
    %v2278 = vadd.f32 %v2277, 0.001143296
    %v2279 = vmul.f32 %v2265, %v2278
    %v2280 = vadd.f32 %v2279, 0.014752088
    %v2281 = vmul.f32 %v2265, %v2280
    %v2282 = vadd.f32 %v2281, 0.112945676
    %v2283 = vmul.f32 %v2265, %v2282
    %v2284 = vadd.f32 %v2283, 0.4994258
    %v2285 = vmul.f32 %v2265, %v2284
    %v2286 = vadd.f32 %v2285, 1.0
    %v2287 = vrcp.pop %v2286
    %v2288 = vmul.f32 %v2286, %v2287
    %v2289 = vsub.f32 1.0, %v2288
    %v2290 = vmul.f32 %v2287, %v2289
    %v2291 = vadd.f32 %v2287, %v2290
    %vm2292 = vweird.f32 %v2286
    %vm2293 = vweird.f32 %v2287
    %vm2294 = vmor %vm2292, %vm2293
    %v2295 = vsel %vm2294, %v2287, %v2291
    %v2296 = vand.u32 2147483647, %v2286
    %vm2297 = vcmp.eq.f32.partialorder %v2296, 8.507059e+37
    %v2298 = vand.u32 %v2286, 2147483648
    %v2299 = vor.u32 1.1754944e-38, %v2298
    %v2300 = vsel %vm2297, %v2299, %v2295
    %v2301 = vmul.f32 %v2276, %v2300
    %v2302 = vmin.f32 %v2301, 1.0
    %v2303 = vmax.f32 %v2302, -1.0
    %v2304 = vmul.f32 %v928, %v928
    %v2305 = vmin.f32 16.0, %v2304
    %v2306 = vmul.f32 %v2305, 2.1237322e-06
    %v2307 = vadd.f32 %v2306, 0.00028619796
    %v2308 = vmul.f32 %v2305, %v2307
    %v2309 = vadd.f32 %v2308, 0.0036580483
    %v2310 = vmul.f32 %v2305, %v2309
    %v2311 = vadd.f32 %v2310, 0.05243302
    %v2312 = vmul.f32 %v2305, %v2311
    %v2313 = vadd.f32 %v2312, 0.18741608
    %v2314 = vmul.f32 %v2305, %v2313
    %v2315 = vadd.f32 %v2314, 1.1283791
    %v2316 = vmul.f32 %v928, %v2315
    %v2317 = vmul.f32 %v2305, 3.8918573e-05
    %v2318 = vadd.f32 %v2317, 0.001143296
    %v2319 = vmul.f32 %v2305, %v2318
    %v2320 = vadd.f32 %v2319, 0.014752088
    %v2321 = vmul.f32 %v2305, %v2320
    %v2322 = vadd.f32 %v2321, 0.112945676
    %v2323 = vmul.f32 %v2305, %v2322
    %v2324 = vadd.f32 %v2323, 0.4994258
    %v2325 = vmul.f32 %v2305, %v2324
    %v2326 = vadd.f32 %v2325, 1.0
    %v2327 = vrcp.pop %v2326
    %v2328 = vmul.f32 %v2326, %v2327
    %v2329 = vsub.f32 1.0, %v2328
    %v2330 = vmul.f32 %v2327, %v2329
    %v2331 = vadd.f32 %v2327, %v2330
    %vm2332 = vweird.f32 %v2326
    %vm2333 = vweird.f32 %v2327
    %vm2334 = vmor %vm2332, %vm2333
    %v2335 = vsel %vm2334, %v2327, %v2331
    %v2336 = vand.u32 2147483647, %v2326
    %vm2337 = vcmp.eq.f32.partialorder %v2336, 8.507059e+37
    %v2338 = vand.u32 %v2326, 2147483648
    %v2339 = vor.u32 1.1754944e-38, %v2338
    %v2340 = vsel %vm2337, %v2339, %v2335
    %v2341 = vmul.f32 %v2316, %v2340
    %v2342 = vmin.f32 %v2341, 1.0
    %v2343 = vmax.f32 %v2342, -1.0
    %v2344 = vmul.f32 %v929, %v929
    %v2345 = vmin.f32 16.0, %v2344
    %v2346 = vmul.f32 %v2345, 2.1237322e-06
    %v2347 = vadd.f32 %v2346, 0.00028619796
    %v2348 = vmul.f32 %v2345, %v2347
    %v2349 = vadd.f32 %v2348, 0.0036580483
    %v2350 = vmul.f32 %v2345, %v2349
    %v2351 = vadd.f32 %v2350, 0.05243302
    %v2352 = vmul.f32 %v2345, %v2351
    %v2353 = vadd.f32 %v2352, 0.18741608
    %v2354 = vmul.f32 %v2345, %v2353
    %v2355 = vadd.f32 %v2354, 1.1283791
    %v2356 = vmul.f32 %v929, %v2355
    %v2357 = vmul.f32 %v2345, 3.8918573e-05
    %v2358 = vadd.f32 %v2357, 0.001143296
    %v2359 = vmul.f32 %v2345, %v2358
    %v2360 = vadd.f32 %v2359, 0.014752088
    %v2361 = vmul.f32 %v2345, %v2360
    %v2362 = vadd.f32 %v2361, 0.112945676
    %v2363 = vmul.f32 %v2345, %v2362
    %v2364 = vadd.f32 %v2363, 0.4994258
    %v2365 = vmul.f32 %v2345, %v2364
    %v2366 = vadd.f32 %v2365, 1.0
    %v2367 = vrcp.pop %v2366
    %v2368 = vmul.f32 %v2366, %v2367
    %v2369 = vsub.f32 1.0, %v2368
    %v2370 = vmul.f32 %v2367, %v2369
    %v2371 = vadd.f32 %v2367, %v2370
    %vm2372 = vweird.f32 %v2366
    %vm2373 = vweird.f32 %v2367
    %vm2374 = vmor %vm2372, %vm2373
    %v2375 = vsel %vm2374, %v2367, %v2371
    %v2376 = vand.u32 2147483647, %v2366
    %vm2377 = vcmp.eq.f32.partialorder %v2376, 8.507059e+37
    %v2378 = vand.u32 %v2366, 2147483648
    %v2379 = vor.u32 1.1754944e-38, %v2378
    %v2380 = vsel %vm2377, %v2379, %v2375
    %v2381 = vmul.f32 %v2356, %v2380
    %v2382 = vmin.f32 %v2381, 1.0
    %v2383 = vmax.f32 %v2382, -1.0
    %v2384 = vmul.f32 %v930, %v930
    %v2385 = vmin.f32 16.0, %v2384
    %v2386 = vmul.f32 %v2385, 2.1237322e-06
    %v2387 = vadd.f32 %v2386, 0.00028619796
    %v2388 = vmul.f32 %v2385, %v2387
    %v2389 = vadd.f32 %v2388, 0.0036580483
    %v2390 = vmul.f32 %v2385, %v2389
    %v2391 = vadd.f32 %v2390, 0.05243302
    %v2392 = vmul.f32 %v2385, %v2391
    %v2393 = vadd.f32 %v2392, 0.18741608
    %v2394 = vmul.f32 %v2385, %v2393
    %v2395 = vadd.f32 %v2394, 1.1283791
    %v2396 = vmul.f32 %v930, %v2395
    %v2397 = vmul.f32 %v2385, 3.8918573e-05
    %v2398 = vadd.f32 %v2397, 0.001143296
    %v2399 = vmul.f32 %v2385, %v2398
    %v2400 = vadd.f32 %v2399, 0.014752088
    %v2401 = vmul.f32 %v2385, %v2400
    %v2402 = vadd.f32 %v2401, 0.112945676
    %v2403 = vmul.f32 %v2385, %v2402
    %v2404 = vadd.f32 %v2403, 0.4994258
    %v2405 = vmul.f32 %v2385, %v2404
    %v2406 = vadd.f32 %v2405, 1.0
    %v2407 = vrcp.pop %v2406
    %v2408 = vmul.f32 %v2406, %v2407
    %v2409 = vsub.f32 1.0, %v2408
    %v2410 = vmul.f32 %v2407, %v2409
    %v2411 = vadd.f32 %v2407, %v2410
    %vm2412 = vweird.f32 %v2406
    %vm2413 = vweird.f32 %v2407
    %vm2414 = vmor %vm2412, %vm2413
    %v2415 = vsel %vm2414, %v2407, %v2411
    %v2416 = vand.u32 2147483647, %v2406
    %vm2417 = vcmp.eq.f32.partialorder %v2416, 8.507059e+37
    %v2418 = vand.u32 %v2406, 2147483648
    %v2419 = vor.u32 1.1754944e-38, %v2418
    %v2420 = vsel %vm2417, %v2419, %v2415
    %v2421 = vmul.f32 %v2396, %v2420
    %v2422 = vmin.f32 %v2421, 1.0
    %v2423 = vmax.f32 %v2422, -1.0
    %v2424 = vmul.f32 %v931, %v931
    %v2425 = vmin.f32 16.0, %v2424
    %v2426 = vmul.f32 %v2425, 2.1237322e-06
    %v2427 = vadd.f32 %v2426, 0.00028619796
    %v2428 = vmul.f32 %v2425, %v2427
    %v2429 = vadd.f32 %v2428, 0.0036580483
    %v2430 = vmul.f32 %v2425, %v2429
    %v2431 = vadd.f32 %v2430, 0.05243302
    %v2432 = vmul.f32 %v2425, %v2431
    %v2433 = vadd.f32 %v2432, 0.18741608
    %v2434 = vmul.f32 %v2425, %v2433
    %v2435 = vadd.f32 %v2434, 1.1283791
    %v2436 = vmul.f32 %v931, %v2435
    %v2437 = vmul.f32 %v2425, 3.8918573e-05
    %v2438 = vadd.f32 %v2437, 0.001143296
    %v2439 = vmul.f32 %v2425, %v2438
    %v2440 = vadd.f32 %v2439, 0.014752088
    %v2441 = vmul.f32 %v2425, %v2440
    %v2442 = vadd.f32 %v2441, 0.112945676
    %v2443 = vmul.f32 %v2425, %v2442
    %v2444 = vadd.f32 %v2443, 0.4994258
    %v2445 = vmul.f32 %v2425, %v2444
    %v2446 = vadd.f32 %v2445, 1.0
    %v2447 = vrcp.pop %v2446
    %v2448 = vmul.f32 %v2446, %v2447
    %v2449 = vsub.f32 1.0, %v2448
    %v2450 = vmul.f32 %v2447, %v2449
    %v2451 = vadd.f32 %v2447, %v2450
    %vm2452 = vweird.f32 %v2446
    %vm2453 = vweird.f32 %v2447
    %vm2454 = vmor %vm2452, %vm2453
    %v2455 = vsel %vm2454, %v2447, %v2451
    %v2456 = vand.u32 2147483647, %v2446
    %vm2457 = vcmp.eq.f32.partialorder %v2456, 8.507059e+37
    %v2458 = vand.u32 %v2446, 2147483648
    %v2459 = vor.u32 1.1754944e-38, %v2458
    %v2460 = vsel %vm2457, %v2459, %v2455
    %v2461 = vmul.f32 %v2436, %v2460
    %v2462 = vmin.f32 %v2461, 1.0
    %v2463 = vmax.f32 %v2462, -1.0
    %v2464 = vmul.f32 %v932, %v932
    %v2465 = vmin.f32 16.0, %v2464
    %v2466 = vmul.f32 %v2465, 2.1237322e-06
    %v2467 = vadd.f32 %v2466, 0.00028619796
    %v2468 = vmul.f32 %v2465, %v2467
    %v2469 = vadd.f32 %v2468, 0.0036580483
    %v2470 = vmul.f32 %v2465, %v2469
    %v2471 = vadd.f32 %v2470, 0.05243302
    %v2472 = vmul.f32 %v2465, %v2471
    %v2473 = vadd.f32 %v2472, 0.18741608
    %v2474 = vmul.f32 %v2465, %v2473
    %v2475 = vadd.f32 %v2474, 1.1283791
    %v2476 = vmul.f32 %v932, %v2475
    %v2477 = vmul.f32 %v2465, 3.8918573e-05
    %v2478 = vadd.f32 %v2477, 0.001143296
    %v2479 = vmul.f32 %v2465, %v2478
    %v2480 = vadd.f32 %v2479, 0.014752088
    %v2481 = vmul.f32 %v2465, %v2480
    %v2482 = vadd.f32 %v2481, 0.112945676
    %v2483 = vmul.f32 %v2465, %v2482
    %v2484 = vadd.f32 %v2483, 0.4994258
    %v2485 = vmul.f32 %v2465, %v2484
    %v2486 = vadd.f32 %v2485, 1.0
    %v2487 = vrcp.pop %v2486
    %v2488 = vmul.f32 %v2486, %v2487
    %v2489 = vsub.f32 1.0, %v2488
    %v2490 = vmul.f32 %v2487, %v2489
    %v2491 = vadd.f32 %v2487, %v2490
    %vm2492 = vweird.f32 %v2486
    %vm2493 = vweird.f32 %v2487
    %vm2494 = vmor %vm2492, %vm2493
    %v2495 = vsel %vm2494, %v2487, %v2491
    %v2496 = vand.u32 2147483647, %v2486
    %vm2497 = vcmp.eq.f32.partialorder %v2496, 8.507059e+37
    %v2498 = vand.u32 %v2486, 2147483648
    %v2499 = vor.u32 1.1754944e-38, %v2498
    %v2500 = vsel %vm2497, %v2499, %v2495
    %v2501 = vmul.f32 %v2476, %v2500
    %v2502 = vmin.f32 %v2501, 1.0
    %v2503 = vmax.f32 %v2502, -1.0
    %v2504 = vmul.f32 %v933, %v933
    %v2505 = vmin.f32 16.0, %v2504
    %v2506 = vmul.f32 %v2505, 2.1237322e-06
    %v2507 = vadd.f32 %v2506, 0.00028619796
    %v2508 = vmul.f32 %v2505, %v2507
    %v2509 = vadd.f32 %v2508, 0.0036580483
    %v2510 = vmul.f32 %v2505, %v2509
    %v2511 = vadd.f32 %v2510, 0.05243302
    %v2512 = vmul.f32 %v2505, %v2511
    %v2513 = vadd.f32 %v2512, 0.18741608
    %v2514 = vmul.f32 %v2505, %v2513
    %v2515 = vadd.f32 %v2514, 1.1283791
    %v2516 = vmul.f32 %v933, %v2515
    %v2517 = vmul.f32 %v2505, 3.8918573e-05
    %v2518 = vadd.f32 %v2517, 0.001143296
    %v2519 = vmul.f32 %v2505, %v2518
    %v2520 = vadd.f32 %v2519, 0.014752088
    %v2521 = vmul.f32 %v2505, %v2520
    %v2522 = vadd.f32 %v2521, 0.112945676
    %v2523 = vmul.f32 %v2505, %v2522
    %v2524 = vadd.f32 %v2523, 0.4994258
    %v2525 = vmul.f32 %v2505, %v2524
    %v2526 = vadd.f32 %v2525, 1.0
    %v2527 = vrcp.pop %v2526
    %v2528 = vmul.f32 %v2526, %v2527
    %v2529 = vsub.f32 1.0, %v2528
    %v2530 = vmul.f32 %v2527, %v2529
    %v2531 = vadd.f32 %v2527, %v2530
    %vm2532 = vweird.f32 %v2526
    %vm2533 = vweird.f32 %v2527
    %vm2534 = vmor %vm2532, %vm2533
    %v2535 = vsel %vm2534, %v2527, %v2531
    %v2536 = vand.u32 2147483647, %v2526
    %vm2537 = vcmp.eq.f32.partialorder %v2536, 8.507059e+37
    %v2538 = vand.u32 %v2526, 2147483648
    %v2539 = vor.u32 1.1754944e-38, %v2538
    %v2540 = vsel %vm2537, %v2539, %v2535
    %v2541 = vmul.f32 %v2516, %v2540
    %v2542 = vmin.f32 %v2541, 1.0
    %v2543 = vmax.f32 %v2542, -1.0
    %v2544 = vmul.f32 %v934, %v934
    %v2545 = vmin.f32 16.0, %v2544
    %v2546 = vmul.f32 %v2545, 2.1237322e-06
    %v2547 = vadd.f32 %v2546, 0.00028619796
    %v2548 = vmul.f32 %v2545, %v2547
    %v2549 = vadd.f32 %v2548, 0.0036580483
    %v2550 = vmul.f32 %v2545, %v2549
    %v2551 = vadd.f32 %v2550, 0.05243302
    %v2552 = vmul.f32 %v2545, %v2551
    %v2553 = vadd.f32 %v2552, 0.18741608
    %v2554 = vmul.f32 %v2545, %v2553
    %v2555 = vadd.f32 %v2554, 1.1283791
    %v2556 = vmul.f32 %v934, %v2555
    %v2557 = vmul.f32 %v2545, 3.8918573e-05
    %v2558 = vadd.f32 %v2557, 0.001143296
    %v2559 = vmul.f32 %v2545, %v2558
    %v2560 = vadd.f32 %v2559, 0.014752088
    %v2561 = vmul.f32 %v2545, %v2560
    %v2562 = vadd.f32 %v2561, 0.112945676
    %v2563 = vmul.f32 %v2545, %v2562
    %v2564 = vadd.f32 %v2563, 0.4994258
    %v2565 = vmul.f32 %v2545, %v2564
    %v2566 = vadd.f32 %v2565, 1.0
    %v2567 = vrcp.pop %v2566
    %v2568 = vmul.f32 %v2566, %v2567
    %v2569 = vsub.f32 1.0, %v2568
    %v2570 = vmul.f32 %v2567, %v2569
    %v2571 = vadd.f32 %v2567, %v2570
    %vm2572 = vweird.f32 %v2566
    %vm2573 = vweird.f32 %v2567
    %vm2574 = vmor %vm2572, %vm2573
    %v2575 = vsel %vm2574, %v2567, %v2571
    %v2576 = vand.u32 2147483647, %v2566
    %vm2577 = vcmp.eq.f32.partialorder %v2576, 8.507059e+37
    %v2578 = vand.u32 %v2566, 2147483648
    %v2579 = vor.u32 1.1754944e-38, %v2578
    %v2580 = vsel %vm2577, %v2579, %v2575
    %v2581 = vmul.f32 %v2556, %v2580
    %v2582 = vmin.f32 %v2581, 1.0
    %v2583 = vmax.f32 %v2582, -1.0
    %v2584 = vmul.f32 %v935, %v935
    %v2585 = vmin.f32 16.0, %v2584
    %v2586 = vmul.f32 %v2585, 2.1237322e-06
    %v2587 = vadd.f32 %v2586, 0.00028619796
    %v2588 = vmul.f32 %v2585, %v2587
    %v2589 = vadd.f32 %v2588, 0.0036580483
    %v2590 = vmul.f32 %v2585, %v2589
    %v2591 = vadd.f32 %v2590, 0.05243302
    %v2592 = vmul.f32 %v2585, %v2591
    %v2593 = vadd.f32 %v2592, 0.18741608
    %v2594 = vmul.f32 %v2585, %v2593
    %v2595 = vadd.f32 %v2594, 1.1283791
    %v2596 = vmul.f32 %v935, %v2595
    %v2597 = vmul.f32 %v2585, 3.8918573e-05
    %v2598 = vadd.f32 %v2597, 0.001143296
    %v2599 = vmul.f32 %v2585, %v2598
    %v2600 = vadd.f32 %v2599, 0.014752088
    %v2601 = vmul.f32 %v2585, %v2600
    %v2602 = vadd.f32 %v2601, 0.112945676
    %v2603 = vmul.f32 %v2585, %v2602
    %v2604 = vadd.f32 %v2603, 0.4994258
    %v2605 = vmul.f32 %v2585, %v2604
    %v2606 = vadd.f32 %v2605, 1.0
    %v2607 = vrcp.pop %v2606
    %v2608 = vmul.f32 %v2606, %v2607
    %v2609 = vsub.f32 1.0, %v2608
    %v2610 = vmul.f32 %v2607, %v2609
    %v2611 = vadd.f32 %v2607, %v2610
    %vm2612 = vweird.f32 %v2606
    %vm2613 = vweird.f32 %v2607
    %vm2614 = vmor %vm2612, %vm2613
    %v2615 = vsel %vm2614, %v2607, %v2611
    %v2616 = vand.u32 2147483647, %v2606
    %vm2617 = vcmp.eq.f32.partialorder %v2616, 8.507059e+37
    %v2618 = vand.u32 %v2606, 2147483648
    %v2619 = vor.u32 1.1754944e-38, %v2618
    %v2620 = vsel %vm2617, %v2619, %v2615
    %v2621 = vmul.f32 %v2596, %v2620
    %v2622 = vmin.f32 %v2621, 1.0
    %v2623 = vmax.f32 %v2622, -1.0
    %v2624 = vmul.f32 %v936, %v936
    %v2625 = vmin.f32 16.0, %v2624
    %v2626 = vmul.f32 %v2625, 2.1237322e-06
    %v2627 = vadd.f32 %v2626, 0.00028619796
    %v2628 = vmul.f32 %v2625, %v2627
    %v2629 = vadd.f32 %v2628, 0.0036580483
    %v2630 = vmul.f32 %v2625, %v2629
    %v2631 = vadd.f32 %v2630, 0.05243302
    %v2632 = vmul.f32 %v2625, %v2631
    %v2633 = vadd.f32 %v2632, 0.18741608
    %v2634 = vmul.f32 %v2625, %v2633
    %v2635 = vadd.f32 %v2634, 1.1283791
    %v2636 = vmul.f32 %v936, %v2635
    %v2637 = vmul.f32 %v2625, 3.8918573e-05
    %v2638 = vadd.f32 %v2637, 0.001143296
    %v2639 = vmul.f32 %v2625, %v2638
    %v2640 = vadd.f32 %v2639, 0.014752088
    %v2641 = vmul.f32 %v2625, %v2640
    %v2642 = vadd.f32 %v2641, 0.112945676
    %v2643 = vmul.f32 %v2625, %v2642
    %v2644 = vadd.f32 %v2643, 0.4994258
    %v2645 = vmul.f32 %v2625, %v2644
    %v2646 = vadd.f32 %v2645, 1.0
    %v2647 = vrcp.pop %v2646
    %v2648 = vmul.f32 %v2646, %v2647
    %v2649 = vsub.f32 1.0, %v2648
    %v2650 = vmul.f32 %v2647, %v2649
    %v2651 = vadd.f32 %v2647, %v2650
    %vm2652 = vweird.f32 %v2646
    %vm2653 = vweird.f32 %v2647
    %vm2654 = vmor %vm2652, %vm2653
    %v2655 = vsel %vm2654, %v2647, %v2651
    %v2656 = vand.u32 2147483647, %v2646
    %vm2657 = vcmp.eq.f32.partialorder %v2656, 8.507059e+37
    %v2658 = vand.u32 %v2646, 2147483648
    %v2659 = vor.u32 1.1754944e-38, %v2658
    %v2660 = vsel %vm2657, %v2659, %v2655
    %v2661 = vmul.f32 %v2636, %v2660
    %v2662 = vmin.f32 %v2661, 1.0
    %v2663 = vmax.f32 %v2662, -1.0
    %v2664 = vmul.f32 %v937, %v937
    %v2665 = vmin.f32 16.0, %v2664
    %v2666 = vmul.f32 %v2665, 2.1237322e-06
    %v2667 = vadd.f32 %v2666, 0.00028619796
    %v2668 = vmul.f32 %v2665, %v2667
    %v2669 = vadd.f32 %v2668, 0.0036580483
    %v2670 = vmul.f32 %v2665, %v2669
    %v2671 = vadd.f32 %v2670, 0.05243302
    %v2672 = vmul.f32 %v2665, %v2671
    %v2673 = vadd.f32 %v2672, 0.18741608
    %v2674 = vmul.f32 %v2665, %v2673
    %v2675 = vadd.f32 %v2674, 1.1283791
    %v2676 = vmul.f32 %v937, %v2675
    %v2677 = vmul.f32 %v2665, 3.8918573e-05
    %v2678 = vadd.f32 %v2677, 0.001143296
    %v2679 = vmul.f32 %v2665, %v2678
    %v2680 = vadd.f32 %v2679, 0.014752088
    %v2681 = vmul.f32 %v2665, %v2680
    %v2682 = vadd.f32 %v2681, 0.112945676
    %v2683 = vmul.f32 %v2665, %v2682
    %v2684 = vadd.f32 %v2683, 0.4994258
    %v2685 = vmul.f32 %v2665, %v2684
    %v2686 = vadd.f32 %v2685, 1.0
    %v2687 = vrcp.pop %v2686
    %v2688 = vmul.f32 %v2686, %v2687
    %v2689 = vsub.f32 1.0, %v2688
    %v2690 = vmul.f32 %v2687, %v2689
    %v2691 = vadd.f32 %v2687, %v2690
    %vm2692 = vweird.f32 %v2686
    %vm2693 = vweird.f32 %v2687
    %vm2694 = vmor %vm2692, %vm2693
    %v2695 = vsel %vm2694, %v2687, %v2691
    %v2696 = vand.u32 2147483647, %v2686
    %vm2697 = vcmp.eq.f32.partialorder %v2696, 8.507059e+37
    %v2698 = vand.u32 %v2686, 2147483648
    %v2699 = vor.u32 1.1754944e-38, %v2698
    %v2700 = vsel %vm2697, %v2699, %v2695
    %v2701 = vmul.f32 %v2676, %v2700
    %v2702 = vmin.f32 %v2701, 1.0
    %v2703 = vmax.f32 %v2702, -1.0
    %v2704 = vmul.f32 %v938, %v938
    %v2705 = vmin.f32 16.0, %v2704
    %v2706 = vmul.f32 %v2705, 2.1237322e-06
    %v2707 = vadd.f32 %v2706, 0.00028619796
    %v2708 = vmul.f32 %v2705, %v2707
    %v2709 = vadd.f32 %v2708, 0.0036580483
    %v2710 = vmul.f32 %v2705, %v2709
    %v2711 = vadd.f32 %v2710, 0.05243302
    %v2712 = vmul.f32 %v2705, %v2711
    %v2713 = vadd.f32 %v2712, 0.18741608
    %v2714 = vmul.f32 %v2705, %v2713
    %v2715 = vadd.f32 %v2714, 1.1283791
    %v2716 = vmul.f32 %v938, %v2715
    %v2717 = vmul.f32 %v2705, 3.8918573e-05
    %v2718 = vadd.f32 %v2717, 0.001143296
    %v2719 = vmul.f32 %v2705, %v2718
    %v2720 = vadd.f32 %v2719, 0.014752088
    %v2721 = vmul.f32 %v2705, %v2720
    %v2722 = vadd.f32 %v2721, 0.112945676
    %v2723 = vmul.f32 %v2705, %v2722
    %v2724 = vadd.f32 %v2723, 0.4994258
    %v2725 = vmul.f32 %v2705, %v2724
    %v2726 = vadd.f32 %v2725, 1.0
    %v2727 = vrcp.pop %v2726
    %v2728 = vmul.f32 %v2726, %v2727
    %v2729 = vsub.f32 1.0, %v2728
    %v2730 = vmul.f32 %v2727, %v2729
    %v2731 = vadd.f32 %v2727, %v2730
    %vm2732 = vweird.f32 %v2726
    %vm2733 = vweird.f32 %v2727
    %vm2734 = vmor %vm2732, %vm2733
    %v2735 = vsel %vm2734, %v2727, %v2731
    %v2736 = vand.u32 2147483647, %v2726
    %vm2737 = vcmp.eq.f32.partialorder %v2736, 8.507059e+37
    %v2738 = vand.u32 %v2726, 2147483648
    %v2739 = vor.u32 1.1754944e-38, %v2738
    %v2740 = vsel %vm2737, %v2739, %v2735
    %v2741 = vmul.f32 %v2716, %v2740
    %v2742 = vmin.f32 %v2741, 1.0
    %v2743 = vmax.f32 %v2742, -1.0
    %v2744 = vmul.f32 %v939, %v939
    %v2745 = vmin.f32 16.0, %v2744
    %v2746 = vmul.f32 %v2745, 2.1237322e-06
    %v2747 = vadd.f32 %v2746, 0.00028619796
    %v2748 = vmul.f32 %v2745, %v2747
    %v2749 = vadd.f32 %v2748, 0.0036580483
    %v2750 = vmul.f32 %v2745, %v2749
    %v2751 = vadd.f32 %v2750, 0.05243302
    %v2752 = vmul.f32 %v2745, %v2751
    %v2753 = vadd.f32 %v2752, 0.18741608
    %v2754 = vmul.f32 %v2745, %v2753
    %v2755 = vadd.f32 %v2754, 1.1283791
    %v2756 = vmul.f32 %v939, %v2755
    %v2757 = vmul.f32 %v2745, 3.8918573e-05
    %v2758 = vadd.f32 %v2757, 0.001143296
    %v2759 = vmul.f32 %v2745, %v2758
    %v2760 = vadd.f32 %v2759, 0.014752088
    %v2761 = vmul.f32 %v2745, %v2760
    %v2762 = vadd.f32 %v2761, 0.112945676
    %v2763 = vmul.f32 %v2745, %v2762
    %v2764 = vadd.f32 %v2763, 0.4994258
    %v2765 = vmul.f32 %v2745, %v2764
    %v2766 = vadd.f32 %v2765, 1.0
    %v2767 = vrcp.pop %v2766
    %v2768 = vmul.f32 %v2766, %v2767
    %v2769 = vsub.f32 1.0, %v2768
    %v2770 = vmul.f32 %v2767, %v2769
    %v2771 = vadd.f32 %v2767, %v2770
    %vm2772 = vweird.f32 %v2766
    %vm2773 = vweird.f32 %v2767
    %vm2774 = vmor %vm2772, %vm2773
    %v2775 = vsel %vm2774, %v2767, %v2771
    %v2776 = vand.u32 2147483647, %v2766
    %vm2777 = vcmp.eq.f32.partialorder %v2776, 8.507059e+37
    %v2778 = vand.u32 %v2766, 2147483648
    %v2779 = vor.u32 1.1754944e-38, %v2778
    %v2780 = vsel %vm2777, %v2779, %v2775
    %v2781 = vmul.f32 %v2756, %v2780
    %v2782 = vmin.f32 %v2781, 1.0
    %v2783 = vmax.f32 %v2782, -1.0
    %v2784 = vmul.f32 %v940, %v940
    %v2785 = vmin.f32 16.0, %v2784
    %v2786 = vmul.f32 %v2785, 2.1237322e-06
    %v2787 = vadd.f32 %v2786, 0.00028619796
    %v2788 = vmul.f32 %v2785, %v2787
    %v2789 = vadd.f32 %v2788, 0.0036580483
    %v2790 = vmul.f32 %v2785, %v2789
    %v2791 = vadd.f32 %v2790, 0.05243302
    %v2792 = vmul.f32 %v2785, %v2791
    %v2793 = vadd.f32 %v2792, 0.18741608
    %v2794 = vmul.f32 %v2785, %v2793
    %v2795 = vadd.f32 %v2794, 1.1283791
    %v2796 = vmul.f32 %v940, %v2795
    %v2797 = vmul.f32 %v2785, 3.8918573e-05
    %v2798 = vadd.f32 %v2797, 0.001143296
    %v2799 = vmul.f32 %v2785, %v2798
    %v2800 = vadd.f32 %v2799, 0.014752088
    %v2801 = vmul.f32 %v2785, %v2800
    %v2802 = vadd.f32 %v2801, 0.112945676
    %v2803 = vmul.f32 %v2785, %v2802
    %v2804 = vadd.f32 %v2803, 0.4994258
    %v2805 = vmul.f32 %v2785, %v2804
    %v2806 = vadd.f32 %v2805, 1.0
    %v2807 = vrcp.pop %v2806
    %v2808 = vmul.f32 %v2806, %v2807
    %v2809 = vsub.f32 1.0, %v2808
    %v2810 = vmul.f32 %v2807, %v2809
    %v2811 = vadd.f32 %v2807, %v2810
    %vm2812 = vweird.f32 %v2806
    %vm2813 = vweird.f32 %v2807
    %vm2814 = vmor %vm2812, %vm2813
    %v2815 = vsel %vm2814, %v2807, %v2811
    %v2816 = vand.u32 2147483647, %v2806
    %vm2817 = vcmp.eq.f32.partialorder %v2816, 8.507059e+37
    %v2818 = vand.u32 %v2806, 2147483648
    %v2819 = vor.u32 1.1754944e-38, %v2818
    %v2820 = vsel %vm2817, %v2819, %v2815
    %v2821 = vmul.f32 %v2796, %v2820
    %v2822 = vmin.f32 %v2821, 1.0
    %v2823 = vmax.f32 %v2822, -1.0
    %v2824 = vmul.f32 %v941, %v941
    %v2825 = vmin.f32 16.0, %v2824
    %v2826 = vmul.f32 %v2825, 2.1237322e-06
    %v2827 = vadd.f32 %v2826, 0.00028619796
    %v2828 = vmul.f32 %v2825, %v2827
    %v2829 = vadd.f32 %v2828, 0.0036580483
    %v2830 = vmul.f32 %v2825, %v2829
    %v2831 = vadd.f32 %v2830, 0.05243302
    %v2832 = vmul.f32 %v2825, %v2831
    %v2833 = vadd.f32 %v2832, 0.18741608
    %v2834 = vmul.f32 %v2825, %v2833
    %v2835 = vadd.f32 %v2834, 1.1283791
    %v2836 = vmul.f32 %v941, %v2835
    %v2837 = vmul.f32 %v2825, 3.8918573e-05
    %v2838 = vadd.f32 %v2837, 0.001143296
    %v2839 = vmul.f32 %v2825, %v2838
    %v2840 = vadd.f32 %v2839, 0.014752088
    %v2841 = vmul.f32 %v2825, %v2840
    %v2842 = vadd.f32 %v2841, 0.112945676
    %v2843 = vmul.f32 %v2825, %v2842
    %v2844 = vadd.f32 %v2843, 0.4994258
    %v2845 = vmul.f32 %v2825, %v2844
    %v2846 = vadd.f32 %v2845, 1.0
    %v2847 = vrcp.pop %v2846
    %v2848 = vmul.f32 %v2846, %v2847
    %v2849 = vsub.f32 1.0, %v2848
    %v2850 = vmul.f32 %v2847, %v2849
    %v2851 = vadd.f32 %v2847, %v2850
    %vm2852 = vweird.f32 %v2846
    %vm2853 = vweird.f32 %v2847
    %vm2854 = vmor %vm2852, %vm2853
    %v2855 = vsel %vm2854, %v2847, %v2851
    %v2856 = vand.u32 2147483647, %v2846
    %vm2857 = vcmp.eq.f32.partialorder %v2856, 8.507059e+37
    %v2858 = vand.u32 %v2846, 2147483648
    %v2859 = vor.u32 1.1754944e-38, %v2858
    %v2860 = vsel %vm2857, %v2859, %v2855
    %v2861 = vmul.f32 %v2836, %v2860
    %v2862 = vmin.f32 %v2861, 1.0
    %v2863 = vmax.f32 %v2862, -1.0
    %v2864 = vmul.f32 %v942, %v942
    %v2865 = vmin.f32 16.0, %v2864
    %v2866 = vmul.f32 %v2865, 2.1237322e-06
    %v2867 = vadd.f32 %v2866, 0.00028619796
    %v2868 = vmul.f32 %v2865, %v2867
    %v2869 = vadd.f32 %v2868, 0.0036580483
    %v2870 = vmul.f32 %v2865, %v2869
    %v2871 = vadd.f32 %v2870, 0.05243302
    %v2872 = vmul.f32 %v2865, %v2871
    %v2873 = vadd.f32 %v2872, 0.18741608
    %v2874 = vmul.f32 %v2865, %v2873
    %v2875 = vadd.f32 %v2874, 1.1283791
    %v2876 = vmul.f32 %v942, %v2875
    %v2877 = vmul.f32 %v2865, 3.8918573e-05
    %v2878 = vadd.f32 %v2877, 0.001143296
    %v2879 = vmul.f32 %v2865, %v2878
    %v2880 = vadd.f32 %v2879, 0.014752088
    %v2881 = vmul.f32 %v2865, %v2880
    %v2882 = vadd.f32 %v2881, 0.112945676
    %v2883 = vmul.f32 %v2865, %v2882
    %v2884 = vadd.f32 %v2883, 0.4994258
    %v2885 = vmul.f32 %v2865, %v2884
    %v2886 = vadd.f32 %v2885, 1.0
    %v2887 = vrcp.pop %v2886
    %v2888 = vmul.f32 %v2886, %v2887
    %v2889 = vsub.f32 1.0, %v2888
    %v2890 = vmul.f32 %v2887, %v2889
    %v2891 = vadd.f32 %v2887, %v2890
    %vm2892 = vweird.f32 %v2886
    %vm2893 = vweird.f32 %v2887
    %vm2894 = vmor %vm2892, %vm2893
    %v2895 = vsel %vm2894, %v2887, %v2891
    %v2896 = vand.u32 2147483647, %v2886
    %vm2897 = vcmp.eq.f32.partialorder %v2896, 8.507059e+37
    %v2898 = vand.u32 %v2886, 2147483648
    %v2899 = vor.u32 1.1754944e-38, %v2898
    %v2900 = vsel %vm2897, %v2899, %v2895
    %v2901 = vmul.f32 %v2876, %v2900
    %v2902 = vmin.f32 %v2901, 1.0
    %v2903 = vmax.f32 %v2902, -1.0
    %v2904 = vmul.f32 %v943, %v943
    %v2905 = vmin.f32 16.0, %v2904
    %v2906 = vmul.f32 %v2905, 2.1237322e-06
    %v2907 = vadd.f32 %v2906, 0.00028619796
    %v2908 = vmul.f32 %v2905, %v2907
    %v2909 = vadd.f32 %v2908, 0.0036580483
    %v2910 = vmul.f32 %v2905, %v2909
    %v2911 = vadd.f32 %v2910, 0.05243302
    %v2912 = vmul.f32 %v2905, %v2911
    %v2913 = vadd.f32 %v2912, 0.18741608
    %v2914 = vmul.f32 %v2905, %v2913
    %v2915 = vadd.f32 %v2914, 1.1283791
    %v2916 = vmul.f32 %v943, %v2915
    %v2917 = vmul.f32 %v2905, 3.8918573e-05
    %v2918 = vadd.f32 %v2917, 0.001143296
    %v2919 = vmul.f32 %v2905, %v2918
    %v2920 = vadd.f32 %v2919, 0.014752088
    %v2921 = vmul.f32 %v2905, %v2920
    %v2922 = vadd.f32 %v2921, 0.112945676
    %v2923 = vmul.f32 %v2905, %v2922
    %v2924 = vadd.f32 %v2923, 0.4994258
    %v2925 = vmul.f32 %v2905, %v2924
    %v2926 = vadd.f32 %v2925, 1.0
    %v2927 = vrcp.pop %v2926
    %v2928 = vmul.f32 %v2926, %v2927
    %v2929 = vsub.f32 1.0, %v2928
    %v2930 = vmul.f32 %v2927, %v2929
    %v2931 = vadd.f32 %v2927, %v2930
    %vm2932 = vweird.f32 %v2926
    %vm2933 = vweird.f32 %v2927
    %vm2934 = vmor %vm2932, %vm2933
    %v2935 = vsel %vm2934, %v2927, %v2931
    %v2936 = vand.u32 2147483647, %v2926
    %vm2937 = vcmp.eq.f32.partialorder %v2936, 8.507059e+37
    %v2938 = vand.u32 %v2926, 2147483648
    %v2939 = vor.u32 1.1754944e-38, %v2938
    %v2940 = vsel %vm2937, %v2939, %v2935
    %v2941 = vmul.f32 %v2916, %v2940
    %v2942 = vmin.f32 %v2941, 1.0
    %v2943 = vmax.f32 %v2942, -1.0
    %v2944 = vmul.f32 %v944, %v944
    %v2945 = vmin.f32 16.0, %v2944
    %v2946 = vmul.f32 %v2945, 2.1237322e-06
    %v2947 = vadd.f32 %v2946, 0.00028619796
    %v2948 = vmul.f32 %v2945, %v2947
    %v2949 = vadd.f32 %v2948, 0.0036580483
    %v2950 = vmul.f32 %v2945, %v2949
    %v2951 = vadd.f32 %v2950, 0.05243302
    %v2952 = vmul.f32 %v2945, %v2951
    %v2953 = vadd.f32 %v2952, 0.18741608
    %v2954 = vmul.f32 %v2945, %v2953
    %v2955 = vadd.f32 %v2954, 1.1283791
    %v2956 = vmul.f32 %v944, %v2955
    %v2957 = vmul.f32 %v2945, 3.8918573e-05
    %v2958 = vadd.f32 %v2957, 0.001143296
    %v2959 = vmul.f32 %v2945, %v2958
    %v2960 = vadd.f32 %v2959, 0.014752088
    %v2961 = vmul.f32 %v2945, %v2960
    %v2962 = vadd.f32 %v2961, 0.112945676
    %v2963 = vmul.f32 %v2945, %v2962
    %v2964 = vadd.f32 %v2963, 0.4994258
    %v2965 = vmul.f32 %v2945, %v2964
    %v2966 = vadd.f32 %v2965, 1.0
    %v2967 = vrcp.pop %v2966
    %v2968 = vmul.f32 %v2966, %v2967
    %v2969 = vsub.f32 1.0, %v2968
    %v2970 = vmul.f32 %v2967, %v2969
    %v2971 = vadd.f32 %v2967, %v2970
    %vm2972 = vweird.f32 %v2966
    %vm2973 = vweird.f32 %v2967
    %vm2974 = vmor %vm2972, %vm2973
    %v2975 = vsel %vm2974, %v2967, %v2971
    %v2976 = vand.u32 2147483647, %v2966
    %vm2977 = vcmp.eq.f32.partialorder %v2976, 8.507059e+37
    %v2978 = vand.u32 %v2966, 2147483648
    %v2979 = vor.u32 1.1754944e-38, %v2978
    %v2980 = vsel %vm2977, %v2979, %v2975
    %v2981 = vmul.f32 %v2956, %v2980
    %v2982 = vmin.f32 %v2981, 1.0
    %v2983 = vmax.f32 %v2982, -1.0
    %v2984 = vmul.f32 %v945, %v945
    %v2985 = vmin.f32 16.0, %v2984
    %v2986 = vmul.f32 %v2985, 2.1237322e-06
    %v2987 = vadd.f32 %v2986, 0.00028619796
    %v2988 = vmul.f32 %v2985, %v2987
    %v2989 = vadd.f32 %v2988, 0.0036580483
    %v2990 = vmul.f32 %v2985, %v2989
    %v2991 = vadd.f32 %v2990, 0.05243302
    %v2992 = vmul.f32 %v2985, %v2991
    %v2993 = vadd.f32 %v2992, 0.18741608
    %v2994 = vmul.f32 %v2985, %v2993
    %v2995 = vadd.f32 %v2994, 1.1283791
    %v2996 = vmul.f32 %v945, %v2995
    %v2997 = vmul.f32 %v2985, 3.8918573e-05
    %v2998 = vadd.f32 %v2997, 0.001143296
    %v2999 = vmul.f32 %v2985, %v2998
    %v3000 = vadd.f32 %v2999, 0.014752088
    %v3001 = vmul.f32 %v2985, %v3000
    %v3002 = vadd.f32 %v3001, 0.112945676
    %v3003 = vmul.f32 %v2985, %v3002
    %v3004 = vadd.f32 %v3003, 0.4994258
    %v3005 = vmul.f32 %v2985, %v3004
    %v3006 = vadd.f32 %v3005, 1.0
    %v3007 = vrcp.pop %v3006
    %v3008 = vmul.f32 %v3006, %v3007
    %v3009 = vsub.f32 1.0, %v3008
    %v3010 = vmul.f32 %v3007, %v3009
    %v3011 = vadd.f32 %v3007, %v3010
    %vm3012 = vweird.f32 %v3006
    %vm3013 = vweird.f32 %v3007
    %vm3014 = vmor %vm3012, %vm3013
    %v3015 = vsel %vm3014, %v3007, %v3011
    %v3016 = vand.u32 2147483647, %v3006
    %vm3017 = vcmp.eq.f32.partialorder %v3016, 8.507059e+37
    %v3018 = vand.u32 %v3006, 2147483648
    %v3019 = vor.u32 1.1754944e-38, %v3018
    %v3020 = vsel %vm3017, %v3019, %v3015
    %v3021 = vmul.f32 %v2996, %v3020
    %v3022 = vmin.f32 %v3021, 1.0
    %v3023 = vmax.f32 %v3022, -1.0
    %v3024 = vmul.f32 %v946, %v946
    %v3025 = vmin.f32 16.0, %v3024
    %v3026 = vmul.f32 %v3025, 2.1237322e-06
    %v3027 = vadd.f32 %v3026, 0.00028619796
    %v3028 = vmul.f32 %v3025, %v3027
    %v3029 = vadd.f32 %v3028, 0.0036580483
    %v3030 = vmul.f32 %v3025, %v3029
    %v3031 = vadd.f32 %v3030, 0.05243302
    %v3032 = vmul.f32 %v3025, %v3031
    %v3033 = vadd.f32 %v3032, 0.18741608
    %v3034 = vmul.f32 %v3025, %v3033
    %v3035 = vadd.f32 %v3034, 1.1283791
    %v3036 = vmul.f32 %v946, %v3035
    %v3037 = vmul.f32 %v3025, 3.8918573e-05
    %v3038 = vadd.f32 %v3037, 0.001143296
    %v3039 = vmul.f32 %v3025, %v3038
    %v3040 = vadd.f32 %v3039, 0.014752088
    %v3041 = vmul.f32 %v3025, %v3040
    %v3042 = vadd.f32 %v3041, 0.112945676
    %v3043 = vmul.f32 %v3025, %v3042
    %v3044 = vadd.f32 %v3043, 0.4994258
    %v3045 = vmul.f32 %v3025, %v3044
    %v3046 = vadd.f32 %v3045, 1.0
    %v3047 = vrcp.pop %v3046
    %v3048 = vmul.f32 %v3046, %v3047
    %v3049 = vsub.f32 1.0, %v3048
    %v3050 = vmul.f32 %v3047, %v3049
    %v3051 = vadd.f32 %v3047, %v3050
    %vm3052 = vweird.f32 %v3046
    %vm3053 = vweird.f32 %v3047
    %vm3054 = vmor %vm3052, %vm3053
    %v3055 = vsel %vm3054, %v3047, %v3051
    %v3056 = vand.u32 2147483647, %v3046
    %vm3057 = vcmp.eq.f32.partialorder %v3056, 8.507059e+37
    %v3058 = vand.u32 %v3046, 2147483648
    %v3059 = vor.u32 1.1754944e-38, %v3058
    %v3060 = vsel %vm3057, %v3059, %v3055
    %v3061 = vmul.f32 %v3036, %v3060
    %v3062 = vmin.f32 %v3061, 1.0
    %v3063 = vmax.f32 %v3062, -1.0
    %v3064 = vmul.f32 %v947, %v947
    %v3065 = vmin.f32 16.0, %v3064
    %v3066 = vmul.f32 %v3065, 2.1237322e-06
    %v3067 = vadd.f32 %v3066, 0.00028619796
    %v3068 = vmul.f32 %v3065, %v3067
    %v3069 = vadd.f32 %v3068, 0.0036580483
    %v3070 = vmul.f32 %v3065, %v3069
    %v3071 = vadd.f32 %v3070, 0.05243302
    %v3072 = vmul.f32 %v3065, %v3071
    %v3073 = vadd.f32 %v3072, 0.18741608
    %v3074 = vmul.f32 %v3065, %v3073
    %v3075 = vadd.f32 %v3074, 1.1283791
    %v3076 = vmul.f32 %v947, %v3075
    %v3077 = vmul.f32 %v3065, 3.8918573e-05
    %v3078 = vadd.f32 %v3077, 0.001143296
    %v3079 = vmul.f32 %v3065, %v3078
    %v3080 = vadd.f32 %v3079, 0.014752088
    %v3081 = vmul.f32 %v3065, %v3080
    %v3082 = vadd.f32 %v3081, 0.112945676
    %v3083 = vmul.f32 %v3065, %v3082
    %v3084 = vadd.f32 %v3083, 0.4994258
    %v3085 = vmul.f32 %v3065, %v3084
    %v3086 = vadd.f32 %v3085, 1.0
    %v3087 = vrcp.pop %v3086
    %v3088 = vmul.f32 %v3086, %v3087
    %v3089 = vsub.f32 1.0, %v3088
    %v3090 = vmul.f32 %v3087, %v3089
    %v3091 = vadd.f32 %v3087, %v3090
    %vm3092 = vweird.f32 %v3086
    %vm3093 = vweird.f32 %v3087
    %vm3094 = vmor %vm3092, %vm3093
    %v3095 = vsel %vm3094, %v3087, %v3091
    %v3096 = vand.u32 2147483647, %v3086
    %vm3097 = vcmp.eq.f32.partialorder %v3096, 8.507059e+37
    %v3098 = vand.u32 %v3086, 2147483648
    %v3099 = vor.u32 1.1754944e-38, %v3098
    %v3100 = vsel %vm3097, %v3099, %v3095
    %v3101 = vmul.f32 %v3076, %v3100
    %v3102 = vmin.f32 %v3101, 1.0
    %v3103 = vmax.f32 %v3102, -1.0
    %v3104 = vmul.f32 %v948, %v948
    %v3105 = vmin.f32 16.0, %v3104
    %v3106 = vmul.f32 %v3105, 2.1237322e-06
    %v3107 = vadd.f32 %v3106, 0.00028619796
    %v3108 = vmul.f32 %v3105, %v3107
    %v3109 = vadd.f32 %v3108, 0.0036580483
    %v3110 = vmul.f32 %v3105, %v3109
    %v3111 = vadd.f32 %v3110, 0.05243302
    %v3112 = vmul.f32 %v3105, %v3111
    %v3113 = vadd.f32 %v3112, 0.18741608
    %v3114 = vmul.f32 %v3105, %v3113
    %v3115 = vadd.f32 %v3114, 1.1283791
    %v3116 = vmul.f32 %v948, %v3115
    %v3117 = vmul.f32 %v3105, 3.8918573e-05
    %v3118 = vadd.f32 %v3117, 0.001143296
    %v3119 = vmul.f32 %v3105, %v3118
    %v3120 = vadd.f32 %v3119, 0.014752088
    %v3121 = vmul.f32 %v3105, %v3120
    %v3122 = vadd.f32 %v3121, 0.112945676
    %v3123 = vmul.f32 %v3105, %v3122
    %v3124 = vadd.f32 %v3123, 0.4994258
    %v3125 = vmul.f32 %v3105, %v3124
    %v3126 = vadd.f32 %v3125, 1.0
    %v3127 = vrcp.pop %v3126
    %v3128 = vmul.f32 %v3126, %v3127
    %v3129 = vsub.f32 1.0, %v3128
    %v3130 = vmul.f32 %v3127, %v3129
    %v3131 = vadd.f32 %v3127, %v3130
    %vm3132 = vweird.f32 %v3126
    %vm3133 = vweird.f32 %v3127
    %vm3134 = vmor %vm3132, %vm3133
    %v3135 = vsel %vm3134, %v3127, %v3131
    %v3136 = vand.u32 2147483647, %v3126
    %vm3137 = vcmp.eq.f32.partialorder %v3136, 8.507059e+37
    %v3138 = vand.u32 %v3126, 2147483648
    %v3139 = vor.u32 1.1754944e-38, %v3138
    %v3140 = vsel %vm3137, %v3139, %v3135
    %v3141 = vmul.f32 %v3116, %v3140
    %v3142 = vmin.f32 %v3141, 1.0
    %v3143 = vmax.f32 %v3142, -1.0
    %v3144 = vmul.f32 %v949, %v949
    %v3145 = vmin.f32 16.0, %v3144
    %v3146 = vmul.f32 %v3145, 2.1237322e-06
    %v3147 = vadd.f32 %v3146, 0.00028619796
    %v3148 = vmul.f32 %v3145, %v3147
    %v3149 = vadd.f32 %v3148, 0.0036580483
    %v3150 = vmul.f32 %v3145, %v3149
    %v3151 = vadd.f32 %v3150, 0.05243302
    %v3152 = vmul.f32 %v3145, %v3151
    %v3153 = vadd.f32 %v3152, 0.18741608
    %v3154 = vmul.f32 %v3145, %v3153
    %v3155 = vadd.f32 %v3154, 1.1283791
    %v3156 = vmul.f32 %v949, %v3155
    %v3157 = vmul.f32 %v3145, 3.8918573e-05
    %v3158 = vadd.f32 %v3157, 0.001143296
    %v3159 = vmul.f32 %v3145, %v3158
    %v3160 = vadd.f32 %v3159, 0.014752088
    %v3161 = vmul.f32 %v3145, %v3160
    %v3162 = vadd.f32 %v3161, 0.112945676
    %v3163 = vmul.f32 %v3145, %v3162
    %v3164 = vadd.f32 %v3163, 0.4994258
    %v3165 = vmul.f32 %v3145, %v3164
    %v3166 = vadd.f32 %v3165, 1.0
    %v3167 = vrcp.pop %v3166
    %v3168 = vmul.f32 %v3166, %v3167
    %v3169 = vsub.f32 1.0, %v3168
    %v3170 = vmul.f32 %v3167, %v3169
    %v3171 = vadd.f32 %v3167, %v3170
    %vm3172 = vweird.f32 %v3166
    %vm3173 = vweird.f32 %v3167
    %vm3174 = vmor %vm3172, %vm3173
    %v3175 = vsel %vm3174, %v3167, %v3171
    %v3176 = vand.u32 2147483647, %v3166
    %vm3177 = vcmp.eq.f32.partialorder %v3176, 8.507059e+37
    %v3178 = vand.u32 %v3166, 2147483648
    %v3179 = vor.u32 1.1754944e-38, %v3178
    %v3180 = vsel %vm3177, %v3179, %v3175
    %v3181 = vmul.f32 %v3156, %v3180
    %v3182 = vmin.f32 %v3181, 1.0
    %v3183 = vmax.f32 %v3182, -1.0
    %v3184 = vmul.f32 %v950, %v950
    %v3185 = vmin.f32 16.0, %v3184
    %v3186 = vmul.f32 %v3185, 2.1237322e-06
    %v3187 = vadd.f32 %v3186, 0.00028619796
    %v3188 = vmul.f32 %v3185, %v3187
    %v3189 = vadd.f32 %v3188, 0.0036580483
    %v3190 = vmul.f32 %v3185, %v3189
    %v3191 = vadd.f32 %v3190, 0.05243302
    %v3192 = vmul.f32 %v3185, %v3191
    %v3193 = vadd.f32 %v3192, 0.18741608
    %v3194 = vmul.f32 %v3185, %v3193
    %v3195 = vadd.f32 %v3194, 1.1283791
    %v3196 = vmul.f32 %v950, %v3195
    %v3197 = vmul.f32 %v3185, 3.8918573e-05
    %v3198 = vadd.f32 %v3197, 0.001143296
    %v3199 = vmul.f32 %v3185, %v3198
    %v3200 = vadd.f32 %v3199, 0.014752088
    %v3201 = vmul.f32 %v3185, %v3200
    %v3202 = vadd.f32 %v3201, 0.112945676
    %v3203 = vmul.f32 %v3185, %v3202
    %v3204 = vadd.f32 %v3203, 0.4994258
    %v3205 = vmul.f32 %v3185, %v3204
    %v3206 = vadd.f32 %v3205, 1.0
    %v3207 = vrcp.pop %v3206
    %v3208 = vmul.f32 %v3206, %v3207
    %v3209 = vsub.f32 1.0, %v3208
    %v3210 = vmul.f32 %v3207, %v3209
    %v3211 = vadd.f32 %v3207, %v3210
    %vm3212 = vweird.f32 %v3206
    %vm3213 = vweird.f32 %v3207
    %vm3214 = vmor %vm3212, %vm3213
    %v3215 = vsel %vm3214, %v3207, %v3211
    %v3216 = vand.u32 2147483647, %v3206
    %vm3217 = vcmp.eq.f32.partialorder %v3216, 8.507059e+37
    %v3218 = vand.u32 %v3206, 2147483648
    %v3219 = vor.u32 1.1754944e-38, %v3218
    %v3220 = vsel %vm3217, %v3219, %v3215
    %v3221 = vmul.f32 %v3196, %v3220
    %v3222 = vmin.f32 %v3221, 1.0
    %v3223 = vmax.f32 %v3222, -1.0
    %v3224 = vmul.f32 %v951, %v951
    %v3225 = vmin.f32 16.0, %v3224
    %v3226 = vmul.f32 %v3225, 2.1237322e-06
    %v3227 = vadd.f32 %v3226, 0.00028619796
    %v3228 = vmul.f32 %v3225, %v3227
    %v3229 = vadd.f32 %v3228, 0.0036580483
    %v3230 = vmul.f32 %v3225, %v3229
    %v3231 = vadd.f32 %v3230, 0.05243302
    %v3232 = vmul.f32 %v3225, %v3231
    %v3233 = vadd.f32 %v3232, 0.18741608
    %v3234 = vmul.f32 %v3225, %v3233
    %v3235 = vadd.f32 %v3234, 1.1283791
    %v3236 = vmul.f32 %v951, %v3235
    %v3237 = vmul.f32 %v3225, 3.8918573e-05
    %v3238 = vadd.f32 %v3237, 0.001143296
    %v3239 = vmul.f32 %v3225, %v3238
    %v3240 = vadd.f32 %v3239, 0.014752088
    %v3241 = vmul.f32 %v3225, %v3240
    %v3242 = vadd.f32 %v3241, 0.112945676
    %v3243 = vmul.f32 %v3225, %v3242
    %v3244 = vadd.f32 %v3243, 0.4994258
    %v3245 = vmul.f32 %v3225, %v3244
    %v3246 = vadd.f32 %v3245, 1.0
    %v3247 = vrcp.pop %v3246
    %v3248 = vmul.f32 %v3246, %v3247
    %v3249 = vsub.f32 1.0, %v3248
    %v3250 = vmul.f32 %v3247, %v3249
    %v3251 = vadd.f32 %v3247, %v3250
    %vm3252 = vweird.f32 %v3246
    %vm3253 = vweird.f32 %v3247
    %vm3254 = vmor %vm3252, %vm3253
    %v3255 = vsel %vm3254, %v3247, %v3251
    %v3256 = vand.u32 2147483647, %v3246
    %vm3257 = vcmp.eq.f32.partialorder %v3256, 8.507059e+37
    %v3258 = vand.u32 %v3246, 2147483648
    %v3259 = vor.u32 1.1754944e-38, %v3258
    %v3260 = vsel %vm3257, %v3259, %v3255
    %v3261 = vmul.f32 %v3236, %v3260
    %v3262 = vmin.f32 %v3261, 1.0
    %v3263 = vmax.f32 %v3262, -1.0
    %v3264 = vmul.f32 %v952, %v952
    %v3265 = vmin.f32 16.0, %v3264
    %v3266 = vmul.f32 %v3265, 2.1237322e-06
    %v3267 = vadd.f32 %v3266, 0.00028619796
    %v3268 = vmul.f32 %v3265, %v3267
    %v3269 = vadd.f32 %v3268, 0.0036580483
    %v3270 = vmul.f32 %v3265, %v3269
    %v3271 = vadd.f32 %v3270, 0.05243302
    %v3272 = vmul.f32 %v3265, %v3271
    %v3273 = vadd.f32 %v3272, 0.18741608
    %v3274 = vmul.f32 %v3265, %v3273
    %v3275 = vadd.f32 %v3274, 1.1283791
    %v3276 = vmul.f32 %v952, %v3275
    %v3277 = vmul.f32 %v3265, 3.8918573e-05
    %v3278 = vadd.f32 %v3277, 0.001143296
    %v3279 = vmul.f32 %v3265, %v3278
    %v3280 = vadd.f32 %v3279, 0.014752088
    %v3281 = vmul.f32 %v3265, %v3280
    %v3282 = vadd.f32 %v3281, 0.112945676
    %v3283 = vmul.f32 %v3265, %v3282
    %v3284 = vadd.f32 %v3283, 0.4994258
    %v3285 = vmul.f32 %v3265, %v3284
    %v3286 = vadd.f32 %v3285, 1.0
    %v3287 = vrcp.pop %v3286
    %v3288 = vmul.f32 %v3286, %v3287
    %v3289 = vsub.f32 1.0, %v3288
    %v3290 = vmul.f32 %v3287, %v3289
    %v3291 = vadd.f32 %v3287, %v3290
    %vm3292 = vweird.f32 %v3286
    %vm3293 = vweird.f32 %v3287
    %vm3294 = vmor %vm3292, %vm3293
    %v3295 = vsel %vm3294, %v3287, %v3291
    %v3296 = vand.u32 2147483647, %v3286
    %vm3297 = vcmp.eq.f32.partialorder %v3296, 8.507059e+37
    %v3298 = vand.u32 %v3286, 2147483648
    %v3299 = vor.u32 1.1754944e-38, %v3298
    %v3300 = vsel %vm3297, %v3299, %v3295
    %v3301 = vmul.f32 %v3276, %v3300
    %v3302 = vmin.f32 %v3301, 1.0
    %v3303 = vmax.f32 %v3302, -1.0
    %v3304 = vmul.f32 %v953, %v953
    %v3305 = vmin.f32 16.0, %v3304
    %v3306 = vmul.f32 %v3305, 2.1237322e-06
    %v3307 = vadd.f32 %v3306, 0.00028619796
    %v3308 = vmul.f32 %v3305, %v3307
    %v3309 = vadd.f32 %v3308, 0.0036580483
    %v3310 = vmul.f32 %v3305, %v3309
    %v3311 = vadd.f32 %v3310, 0.05243302
    %v3312 = vmul.f32 %v3305, %v3311
    %v3313 = vadd.f32 %v3312, 0.18741608
    %v3314 = vmul.f32 %v3305, %v3313
    %v3315 = vadd.f32 %v3314, 1.1283791
    %v3316 = vmul.f32 %v953, %v3315
    %v3317 = vmul.f32 %v3305, 3.8918573e-05
    %v3318 = vadd.f32 %v3317, 0.001143296
    %v3319 = vmul.f32 %v3305, %v3318
    %v3320 = vadd.f32 %v3319, 0.014752088
    %v3321 = vmul.f32 %v3305, %v3320
    %v3322 = vadd.f32 %v3321, 0.112945676
    %v3323 = vmul.f32 %v3305, %v3322
    %v3324 = vadd.f32 %v3323, 0.4994258
    %v3325 = vmul.f32 %v3305, %v3324
    %v3326 = vadd.f32 %v3325, 1.0
    %v3327 = vrcp.pop %v3326
    %v3328 = vmul.f32 %v3326, %v3327
    %v3329 = vsub.f32 1.0, %v3328
    %v3330 = vmul.f32 %v3327, %v3329
    %v3331 = vadd.f32 %v3327, %v3330
    %vm3332 = vweird.f32 %v3326
    %vm3333 = vweird.f32 %v3327
    %vm3334 = vmor %vm3332, %vm3333
    %v3335 = vsel %vm3334, %v3327, %v3331
    %v3336 = vand.u32 2147483647, %v3326
    %vm3337 = vcmp.eq.f32.partialorder %v3336, 8.507059e+37
    %v3338 = vand.u32 %v3326, 2147483648
    %v3339 = vor.u32 1.1754944e-38, %v3338
    %v3340 = vsel %vm3337, %v3339, %v3335
    %v3341 = vmul.f32 %v3316, %v3340
    %v3342 = vmin.f32 %v3341, 1.0
    %v3343 = vmax.f32 %v3342, -1.0
    %v3344 = vmul.f32 %v954, %v954
    %v3345 = vmin.f32 16.0, %v3344
    %v3346 = vmul.f32 %v3345, 2.1237322e-06
    %v3347 = vadd.f32 %v3346, 0.00028619796
    %v3348 = vmul.f32 %v3345, %v3347
    %v3349 = vadd.f32 %v3348, 0.0036580483
    %v3350 = vmul.f32 %v3345, %v3349
    %v3351 = vadd.f32 %v3350, 0.05243302
    %v3352 = vmul.f32 %v3345, %v3351
    %v3353 = vadd.f32 %v3352, 0.18741608
    %v3354 = vmul.f32 %v3345, %v3353
    %v3355 = vadd.f32 %v3354, 1.1283791
    %v3356 = vmul.f32 %v954, %v3355
    %v3357 = vmul.f32 %v3345, 3.8918573e-05
    %v3358 = vadd.f32 %v3357, 0.001143296
    %v3359 = vmul.f32 %v3345, %v3358
    %v3360 = vadd.f32 %v3359, 0.014752088
    %v3361 = vmul.f32 %v3345, %v3360
    %v3362 = vadd.f32 %v3361, 0.112945676
    %v3363 = vmul.f32 %v3345, %v3362
    %v3364 = vadd.f32 %v3363, 0.4994258
    %v3365 = vmul.f32 %v3345, %v3364
    %v3366 = vadd.f32 %v3365, 1.0
    %v3367 = vrcp.pop %v3366
    %v3368 = vmul.f32 %v3366, %v3367
    %v3369 = vsub.f32 1.0, %v3368
    %v3370 = vmul.f32 %v3367, %v3369
    %v3371 = vadd.f32 %v3367, %v3370
    %vm3372 = vweird.f32 %v3366
    %vm3373 = vweird.f32 %v3367
    %vm3374 = vmor %vm3372, %vm3373
    %v3375 = vsel %vm3374, %v3367, %v3371
    %v3376 = vand.u32 2147483647, %v3366
    %vm3377 = vcmp.eq.f32.partialorder %v3376, 8.507059e+37
    %v3378 = vand.u32 %v3366, 2147483648
    %v3379 = vor.u32 1.1754944e-38, %v3378
    %v3380 = vsel %vm3377, %v3379, %v3375
    %v3381 = vmul.f32 %v3356, %v3380
    %v3382 = vmin.f32 %v3381, 1.0
    %v3383 = vmax.f32 %v3382, -1.0
    %v3384 = vmul.f32 %v955, %v955
    %v3385 = vmin.f32 16.0, %v3384
    %v3386 = vmul.f32 %v3385, 2.1237322e-06
    %v3387 = vadd.f32 %v3386, 0.00028619796
    %v3388 = vmul.f32 %v3385, %v3387
    %v3389 = vadd.f32 %v3388, 0.0036580483
    %v3390 = vmul.f32 %v3385, %v3389
    %v3391 = vadd.f32 %v3390, 0.05243302
    %v3392 = vmul.f32 %v3385, %v3391
    %v3393 = vadd.f32 %v3392, 0.18741608
    %v3394 = vmul.f32 %v3385, %v3393
    %v3395 = vadd.f32 %v3394, 1.1283791
    %v3396 = vmul.f32 %v955, %v3395
    %v3397 = vmul.f32 %v3385, 3.8918573e-05
    %v3398 = vadd.f32 %v3397, 0.001143296
    %v3399 = vmul.f32 %v3385, %v3398
    %v3400 = vadd.f32 %v3399, 0.014752088
    %v3401 = vmul.f32 %v3385, %v3400
    %v3402 = vadd.f32 %v3401, 0.112945676
    %v3403 = vmul.f32 %v3385, %v3402
    %v3404 = vadd.f32 %v3403, 0.4994258
    %v3405 = vmul.f32 %v3385, %v3404
    %v3406 = vadd.f32 %v3405, 1.0
    %v3407 = vrcp.pop %v3406
    %v3408 = vmul.f32 %v3406, %v3407
    %v3409 = vsub.f32 1.0, %v3408
    %v3410 = vmul.f32 %v3407, %v3409
    %v3411 = vadd.f32 %v3407, %v3410
    %vm3412 = vweird.f32 %v3406
    %vm3413 = vweird.f32 %v3407
    %vm3414 = vmor %vm3412, %vm3413
    %v3415 = vsel %vm3414, %v3407, %v3411
    %v3416 = vand.u32 2147483647, %v3406
    %vm3417 = vcmp.eq.f32.partialorder %v3416, 8.507059e+37
    %v3418 = vand.u32 %v3406, 2147483648
    %v3419 = vor.u32 1.1754944e-38, %v3418
    %v3420 = vsel %vm3417, %v3419, %v3415
    %v3421 = vmul.f32 %v3396, %v3420
    %v3422 = vmin.f32 %v3421, 1.0
    %v3423 = vmax.f32 %v3422, -1.0
    %v3424 = vmul.f32 %v956, %v956
    %v3425 = vmin.f32 16.0, %v3424
    %v3426 = vmul.f32 %v3425, 2.1237322e-06
    %v3427 = vadd.f32 %v3426, 0.00028619796
    %v3428 = vmul.f32 %v3425, %v3427
    %v3429 = vadd.f32 %v3428, 0.0036580483
    %v3430 = vmul.f32 %v3425, %v3429
    %v3431 = vadd.f32 %v3430, 0.05243302
    %v3432 = vmul.f32 %v3425, %v3431
    %v3433 = vadd.f32 %v3432, 0.18741608
    %v3434 = vmul.f32 %v3425, %v3433
    %v3435 = vadd.f32 %v3434, 1.1283791
    %v3436 = vmul.f32 %v956, %v3435
    %v3437 = vmul.f32 %v3425, 3.8918573e-05
    %v3438 = vadd.f32 %v3437, 0.001143296
    %v3439 = vmul.f32 %v3425, %v3438
    %v3440 = vadd.f32 %v3439, 0.014752088
    %v3441 = vmul.f32 %v3425, %v3440
    %v3442 = vadd.f32 %v3441, 0.112945676
    %v3443 = vmul.f32 %v3425, %v3442
    %v3444 = vadd.f32 %v3443, 0.4994258
    %v3445 = vmul.f32 %v3425, %v3444
    %v3446 = vadd.f32 %v3445, 1.0
    %v3447 = vrcp.pop %v3446
    %v3448 = vmul.f32 %v3446, %v3447
    %v3449 = vsub.f32 1.0, %v3448
    %v3450 = vmul.f32 %v3447, %v3449
    %v3451 = vadd.f32 %v3447, %v3450
    %vm3452 = vweird.f32 %v3446
    %vm3453 = vweird.f32 %v3447
    %vm3454 = vmor %vm3452, %vm3453
    %v3455 = vsel %vm3454, %v3447, %v3451
    %v3456 = vand.u32 2147483647, %v3446
    %vm3457 = vcmp.eq.f32.partialorder %v3456, 8.507059e+37
    %v3458 = vand.u32 %v3446, 2147483648
    %v3459 = vor.u32 1.1754944e-38, %v3458
    %v3460 = vsel %vm3457, %v3459, %v3455
    %v3461 = vmul.f32 %v3436, %v3460
    %v3462 = vmin.f32 %v3461, 1.0
    %v3463 = vmax.f32 %v3462, -1.0
    %v3464 = vmul.f32 %v957, %v957
    %v3465 = vmin.f32 16.0, %v3464
    %v3466 = vmul.f32 %v3465, 2.1237322e-06
    %v3467 = vadd.f32 %v3466, 0.00028619796
    %v3468 = vmul.f32 %v3465, %v3467
    %v3469 = vadd.f32 %v3468, 0.0036580483
    %v3470 = vmul.f32 %v3465, %v3469
    %v3471 = vadd.f32 %v3470, 0.05243302
    %v3472 = vmul.f32 %v3465, %v3471
    %v3473 = vadd.f32 %v3472, 0.18741608
    %v3474 = vmul.f32 %v3465, %v3473
    %v3475 = vadd.f32 %v3474, 1.1283791
    %v3476 = vmul.f32 %v957, %v3475
    %v3477 = vmul.f32 %v3465, 3.8918573e-05
    %v3478 = vadd.f32 %v3477, 0.001143296
    %v3479 = vmul.f32 %v3465, %v3478
    %v3480 = vadd.f32 %v3479, 0.014752088
    %v3481 = vmul.f32 %v3465, %v3480
    %v3482 = vadd.f32 %v3481, 0.112945676
    %v3483 = vmul.f32 %v3465, %v3482
    %v3484 = vadd.f32 %v3483, 0.4994258
    %v3485 = vmul.f32 %v3465, %v3484
    %v3486 = vadd.f32 %v3485, 1.0
    %v3487 = vrcp.pop %v3486
    %v3488 = vmul.f32 %v3486, %v3487
    %v3489 = vsub.f32 1.0, %v3488
    %v3490 = vmul.f32 %v3487, %v3489
    %v3491 = vadd.f32 %v3487, %v3490
    %vm3492 = vweird.f32 %v3486
    %vm3493 = vweird.f32 %v3487
    %vm3494 = vmor %vm3492, %vm3493
    %v3495 = vsel %vm3494, %v3487, %v3491
    %v3496 = vand.u32 2147483647, %v3486
    %vm3497 = vcmp.eq.f32.partialorder %v3496, 8.507059e+37
    %v3498 = vand.u32 %v3486, 2147483648
    %v3499 = vor.u32 1.1754944e-38, %v3498
    %v3500 = vsel %vm3497, %v3499, %v3495
    %v3501 = vmul.f32 %v3476, %v3500
    %v3502 = vmin.f32 %v3501, 1.0
    %v3503 = vmax.f32 %v3502, -1.0
    %v3504 = vmul.f32 %v958, %v958
    %v3505 = vmin.f32 16.0, %v3504
    %v3506 = vmul.f32 %v3505, 2.1237322e-06
    %v3507 = vadd.f32 %v3506, 0.00028619796
    %v3508 = vmul.f32 %v3505, %v3507
    %v3509 = vadd.f32 %v3508, 0.0036580483
    %v3510 = vmul.f32 %v3505, %v3509
    %v3511 = vadd.f32 %v3510, 0.05243302
    %v3512 = vmul.f32 %v3505, %v3511
    %v3513 = vadd.f32 %v3512, 0.18741608
    %v3514 = vmul.f32 %v3505, %v3513
    %v3515 = vadd.f32 %v3514, 1.1283791
    %v3516 = vmul.f32 %v958, %v3515
    %v3517 = vmul.f32 %v3505, 3.8918573e-05
    %v3518 = vadd.f32 %v3517, 0.001143296
    %v3519 = vmul.f32 %v3505, %v3518
    %v3520 = vadd.f32 %v3519, 0.014752088
    %v3521 = vmul.f32 %v3505, %v3520
    %v3522 = vadd.f32 %v3521, 0.112945676
    %v3523 = vmul.f32 %v3505, %v3522
    %v3524 = vadd.f32 %v3523, 0.4994258
    %v3525 = vmul.f32 %v3505, %v3524
    %v3526 = vadd.f32 %v3525, 1.0
    %v3527 = vrcp.pop %v3526
    %v3528 = vmul.f32 %v3526, %v3527
    %v3529 = vsub.f32 1.0, %v3528
    %v3530 = vmul.f32 %v3527, %v3529
    %v3531 = vadd.f32 %v3527, %v3530
    %vm3532 = vweird.f32 %v3526
    %vm3533 = vweird.f32 %v3527
    %vm3534 = vmor %vm3532, %vm3533
    %v3535 = vsel %vm3534, %v3527, %v3531
    %v3536 = vand.u32 2147483647, %v3526
    %vm3537 = vcmp.eq.f32.partialorder %v3536, 8.507059e+37
    %v3538 = vand.u32 %v3526, 2147483648
    %v3539 = vor.u32 1.1754944e-38, %v3538
    %v3540 = vsel %vm3537, %v3539, %v3535
    %v3541 = vmul.f32 %v3516, %v3540
    %v3542 = vmin.f32 %v3541, 1.0
    %v3543 = vmax.f32 %v3542, -1.0
    %v3544 = vmul.f32 %v959, %v959
    %v3545 = vmin.f32 16.0, %v3544
    %v3546 = vmul.f32 %v3545, 2.1237322e-06
    %v3547 = vadd.f32 %v3546, 0.00028619796
    %v3548 = vmul.f32 %v3545, %v3547
    %v3549 = vadd.f32 %v3548, 0.0036580483
    %v3550 = vmul.f32 %v3545, %v3549
    %v3551 = vadd.f32 %v3550, 0.05243302
    %v3552 = vmul.f32 %v3545, %v3551
    %v3553 = vadd.f32 %v3552, 0.18741608
    %v3554 = vmul.f32 %v3545, %v3553
    %v3555 = vadd.f32 %v3554, 1.1283791
    %v3556 = vmul.f32 %v959, %v3555
    %v3557 = vmul.f32 %v3545, 3.8918573e-05
    %v3558 = vadd.f32 %v3557, 0.001143296
    %v3559 = vmul.f32 %v3545, %v3558
    %v3560 = vadd.f32 %v3559, 0.014752088
    %v3561 = vmul.f32 %v3545, %v3560
    %v3562 = vadd.f32 %v3561, 0.112945676
    %v3563 = vmul.f32 %v3545, %v3562
    %v3564 = vadd.f32 %v3563, 0.4994258
    %v3565 = vmul.f32 %v3545, %v3564
    %v3566 = vadd.f32 %v3565, 1.0
    %v3567 = vrcp.pop %v3566
    %v3568 = vmul.f32 %v3566, %v3567
    %v3569 = vsub.f32 1.0, %v3568
    %v3570 = vmul.f32 %v3567, %v3569
    %v3571 = vadd.f32 %v3567, %v3570
    %vm3572 = vweird.f32 %v3566
    %vm3573 = vweird.f32 %v3567
    %vm3574 = vmor %vm3572, %vm3573
    %v3575 = vsel %vm3574, %v3567, %v3571
    %v3576 = vand.u32 2147483647, %v3566
    %vm3577 = vcmp.eq.f32.partialorder %v3576, 8.507059e+37
    %v3578 = vand.u32 %v3566, 2147483648
    %v3579 = vor.u32 1.1754944e-38, %v3578
    %v3580 = vsel %vm3577, %v3579, %v3575
    %v3581 = vmul.f32 %v3556, %v3580
    %v3582 = vmin.f32 %v3581, 1.0
    %v3583 = vmax.f32 %v3582, -1.0
    %v3584 = vmul.f32 %v960, %v960
    %v3585 = vmin.f32 16.0, %v3584
    %v3586 = vmul.f32 %v3585, 2.1237322e-06
    %v3587 = vadd.f32 %v3586, 0.00028619796
    %v3588 = vmul.f32 %v3585, %v3587
    %v3589 = vadd.f32 %v3588, 0.0036580483
    %v3590 = vmul.f32 %v3585, %v3589
    %v3591 = vadd.f32 %v3590, 0.05243302
    %v3592 = vmul.f32 %v3585, %v3591
    %v3593 = vadd.f32 %v3592, 0.18741608
    %v3594 = vmul.f32 %v3585, %v3593
    %v3595 = vadd.f32 %v3594, 1.1283791
    %v3596 = vmul.f32 %v960, %v3595
    %v3597 = vmul.f32 %v3585, 3.8918573e-05
    %v3598 = vadd.f32 %v3597, 0.001143296
    %v3599 = vmul.f32 %v3585, %v3598
    %v3600 = vadd.f32 %v3599, 0.014752088
    %v3601 = vmul.f32 %v3585, %v3600
    %v3602 = vadd.f32 %v3601, 0.112945676
    %v3603 = vmul.f32 %v3585, %v3602
    %v3604 = vadd.f32 %v3603, 0.4994258
    %v3605 = vmul.f32 %v3585, %v3604
    %v3606 = vadd.f32 %v3605, 1.0
    %v3607 = vrcp.pop %v3606
    %v3608 = vmul.f32 %v3606, %v3607
    %v3609 = vsub.f32 1.0, %v3608
    %v3610 = vmul.f32 %v3607, %v3609
    %v3611 = vadd.f32 %v3607, %v3610
    %vm3612 = vweird.f32 %v3606
    %vm3613 = vweird.f32 %v3607
    %vm3614 = vmor %vm3612, %vm3613
    %v3615 = vsel %vm3614, %v3607, %v3611
    %v3616 = vand.u32 2147483647, %v3606
    %vm3617 = vcmp.eq.f32.partialorder %v3616, 8.507059e+37
    %v3618 = vand.u32 %v3606, 2147483648
    %v3619 = vor.u32 1.1754944e-38, %v3618
    %v3620 = vsel %vm3617, %v3619, %v3615
    %v3621 = vmul.f32 %v3596, %v3620
    %v3622 = vmin.f32 %v3621, 1.0
    %v3623 = vmax.f32 %v3622, -1.0
    %v3624 = vmul.f32 %v961, %v961
    %v3625 = vmin.f32 16.0, %v3624
    %v3626 = vmul.f32 %v3625, 2.1237322e-06
    %v3627 = vadd.f32 %v3626, 0.00028619796
    %v3628 = vmul.f32 %v3625, %v3627
    %v3629 = vadd.f32 %v3628, 0.0036580483
    %v3630 = vmul.f32 %v3625, %v3629
    %v3631 = vadd.f32 %v3630, 0.05243302
    %v3632 = vmul.f32 %v3625, %v3631
    %v3633 = vadd.f32 %v3632, 0.18741608
    %v3634 = vmul.f32 %v3625, %v3633
    %v3635 = vadd.f32 %v3634, 1.1283791
    %v3636 = vmul.f32 %v961, %v3635
    %v3637 = vmul.f32 %v3625, 3.8918573e-05
    %v3638 = vadd.f32 %v3637, 0.001143296
    %v3639 = vmul.f32 %v3625, %v3638
    %v3640 = vadd.f32 %v3639, 0.014752088
    %v3641 = vmul.f32 %v3625, %v3640
    %v3642 = vadd.f32 %v3641, 0.112945676
    %v3643 = vmul.f32 %v3625, %v3642
    %v3644 = vadd.f32 %v3643, 0.4994258
    %v3645 = vmul.f32 %v3625, %v3644
    %v3646 = vadd.f32 %v3645, 1.0
    %v3647 = vrcp.pop %v3646
    %v3648 = vmul.f32 %v3646, %v3647
    %v3649 = vsub.f32 1.0, %v3648
    %v3650 = vmul.f32 %v3647, %v3649
    %v3651 = vadd.f32 %v3647, %v3650
    %vm3652 = vweird.f32 %v3646
    %vm3653 = vweird.f32 %v3647
    %vm3654 = vmor %vm3652, %vm3653
    %v3655 = vsel %vm3654, %v3647, %v3651
    %v3656 = vand.u32 2147483647, %v3646
    %vm3657 = vcmp.eq.f32.partialorder %v3656, 8.507059e+37
    %v3658 = vand.u32 %v3646, 2147483648
    %v3659 = vor.u32 1.1754944e-38, %v3658
    %v3660 = vsel %vm3657, %v3659, %v3655
    %v3661 = vmul.f32 %v3636, %v3660
    %v3662 = vmin.f32 %v3661, 1.0
    %v3663 = vmax.f32 %v3662, -1.0
    %v3664 = vmul.f32 %v962, %v962
    %v3665 = vmin.f32 16.0, %v3664
    %v3666 = vmul.f32 %v3665, 2.1237322e-06
    %v3667 = vadd.f32 %v3666, 0.00028619796
    %v3668 = vmul.f32 %v3665, %v3667
    %v3669 = vadd.f32 %v3668, 0.0036580483
    %v3670 = vmul.f32 %v3665, %v3669
    %v3671 = vadd.f32 %v3670, 0.05243302
    %v3672 = vmul.f32 %v3665, %v3671
    %v3673 = vadd.f32 %v3672, 0.18741608
    %v3674 = vmul.f32 %v3665, %v3673
    %v3675 = vadd.f32 %v3674, 1.1283791
    %v3676 = vmul.f32 %v962, %v3675
    %v3677 = vmul.f32 %v3665, 3.8918573e-05
    %v3678 = vadd.f32 %v3677, 0.001143296
    %v3679 = vmul.f32 %v3665, %v3678
    %v3680 = vadd.f32 %v3679, 0.014752088
    %v3681 = vmul.f32 %v3665, %v3680
    %v3682 = vadd.f32 %v3681, 0.112945676
    %v3683 = vmul.f32 %v3665, %v3682
    %v3684 = vadd.f32 %v3683, 0.4994258
    %v3685 = vmul.f32 %v3665, %v3684
    %v3686 = vadd.f32 %v3685, 1.0
    %v3687 = vrcp.pop %v3686
    %v3688 = vmul.f32 %v3686, %v3687
    %v3689 = vsub.f32 1.0, %v3688
    %v3690 = vmul.f32 %v3687, %v3689
    %v3691 = vadd.f32 %v3687, %v3690
    %vm3692 = vweird.f32 %v3686
    %vm3693 = vweird.f32 %v3687
    %vm3694 = vmor %vm3692, %vm3693
    %v3695 = vsel %vm3694, %v3687, %v3691
    %v3696 = vand.u32 2147483647, %v3686
    %vm3697 = vcmp.eq.f32.partialorder %v3696, 8.507059e+37
    %v3698 = vand.u32 %v3686, 2147483648
    %v3699 = vor.u32 1.1754944e-38, %v3698
    %v3700 = vsel %vm3697, %v3699, %v3695
    %v3701 = vmul.f32 %v3676, %v3700
    %v3702 = vmin.f32 %v3701, 1.0
    %v3703 = vmax.f32 %v3702, -1.0
    %v3704 = vmul.f32 %v963, %v963
    %v3705 = vmin.f32 16.0, %v3704
    %v3706 = vmul.f32 %v3705, 2.1237322e-06
    %v3707 = vadd.f32 %v3706, 0.00028619796
    %v3708 = vmul.f32 %v3705, %v3707
    %v3709 = vadd.f32 %v3708, 0.0036580483
    %v3710 = vmul.f32 %v3705, %v3709
    %v3711 = vadd.f32 %v3710, 0.05243302
    %v3712 = vmul.f32 %v3705, %v3711
    %v3713 = vadd.f32 %v3712, 0.18741608
    %v3714 = vmul.f32 %v3705, %v3713
    %v3715 = vadd.f32 %v3714, 1.1283791
    %v3716 = vmul.f32 %v963, %v3715
    %v3717 = vmul.f32 %v3705, 3.8918573e-05
    %v3718 = vadd.f32 %v3717, 0.001143296
    %v3719 = vmul.f32 %v3705, %v3718
    %v3720 = vadd.f32 %v3719, 0.014752088
    %v3721 = vmul.f32 %v3705, %v3720
    %v3722 = vadd.f32 %v3721, 0.112945676
    %v3723 = vmul.f32 %v3705, %v3722
    %v3724 = vadd.f32 %v3723, 0.4994258
    %v3725 = vmul.f32 %v3705, %v3724
    %v3726 = vadd.f32 %v3725, 1.0
    %v3727 = vrcp.pop %v3726
    %v3728 = vmul.f32 %v3726, %v3727
    %v3729 = vsub.f32 1.0, %v3728
    %v3730 = vmul.f32 %v3727, %v3729
    %v3731 = vadd.f32 %v3727, %v3730
    %vm3732 = vweird.f32 %v3726
    %vm3733 = vweird.f32 %v3727
    %vm3734 = vmor %vm3732, %vm3733
    %v3735 = vsel %vm3734, %v3727, %v3731
    %v3736 = vand.u32 2147483647, %v3726
    %vm3737 = vcmp.eq.f32.partialorder %v3736, 8.507059e+37
    %v3738 = vand.u32 %v3726, 2147483648
    %v3739 = vor.u32 1.1754944e-38, %v3738
    %v3740 = vsel %vm3737, %v3739, %v3735
    %v3741 = vmul.f32 %v3716, %v3740
    %v3742 = vmin.f32 %v3741, 1.0
    %v3743 = vmax.f32 %v3742, -1.0
    %v3744 = vmul.f32 %v964, %v964
    %v3745 = vmin.f32 16.0, %v3744
    %v3746 = vmul.f32 %v3745, 2.1237322e-06
    %v3747 = vadd.f32 %v3746, 0.00028619796
    %v3748 = vmul.f32 %v3745, %v3747
    %v3749 = vadd.f32 %v3748, 0.0036580483
    %v3750 = vmul.f32 %v3745, %v3749
    %v3751 = vadd.f32 %v3750, 0.05243302
    %v3752 = vmul.f32 %v3745, %v3751
    %v3753 = vadd.f32 %v3752, 0.18741608
    %v3754 = vmul.f32 %v3745, %v3753
    %v3755 = vadd.f32 %v3754, 1.1283791
    %v3756 = vmul.f32 %v964, %v3755
    %v3757 = vmul.f32 %v3745, 3.8918573e-05
    %v3758 = vadd.f32 %v3757, 0.001143296
    %v3759 = vmul.f32 %v3745, %v3758
    %v3760 = vadd.f32 %v3759, 0.014752088
    %v3761 = vmul.f32 %v3745, %v3760
    %v3762 = vadd.f32 %v3761, 0.112945676
    %v3763 = vmul.f32 %v3745, %v3762
    %v3764 = vadd.f32 %v3763, 0.4994258
    %v3765 = vmul.f32 %v3745, %v3764
    %v3766 = vadd.f32 %v3765, 1.0
    %v3767 = vrcp.pop %v3766
    %v3768 = vmul.f32 %v3766, %v3767
    %v3769 = vsub.f32 1.0, %v3768
    %v3770 = vmul.f32 %v3767, %v3769
    %v3771 = vadd.f32 %v3767, %v3770
    %vm3772 = vweird.f32 %v3766
    %vm3773 = vweird.f32 %v3767
    %vm3774 = vmor %vm3772, %vm3773
    %v3775 = vsel %vm3774, %v3767, %v3771
    %v3776 = vand.u32 2147483647, %v3766
    %vm3777 = vcmp.eq.f32.partialorder %v3776, 8.507059e+37
    %v3778 = vand.u32 %v3766, 2147483648
    %v3779 = vor.u32 1.1754944e-38, %v3778
    %v3780 = vsel %vm3777, %v3779, %v3775
    %v3781 = vmul.f32 %v3756, %v3780
    %v3782 = vmin.f32 %v3781, 1.0
    %v3783 = vmax.f32 %v3782, -1.0
    %v3784 = vmul.f32 %v965, %v965
    %v3785 = vmin.f32 16.0, %v3784
    %v3786 = vmul.f32 %v3785, 2.1237322e-06
    %v3787 = vadd.f32 %v3786, 0.00028619796
    %v3788 = vmul.f32 %v3785, %v3787
    %v3789 = vadd.f32 %v3788, 0.0036580483
    %v3790 = vmul.f32 %v3785, %v3789
    %v3791 = vadd.f32 %v3790, 0.05243302
    %v3792 = vmul.f32 %v3785, %v3791
    %v3793 = vadd.f32 %v3792, 0.18741608
    %v3794 = vmul.f32 %v3785, %v3793
    %v3795 = vadd.f32 %v3794, 1.1283791
    %v3796 = vmul.f32 %v965, %v3795
    %v3797 = vmul.f32 %v3785, 3.8918573e-05
    %v3798 = vadd.f32 %v3797, 0.001143296
    %v3799 = vmul.f32 %v3785, %v3798
    %v3800 = vadd.f32 %v3799, 0.014752088
    %v3801 = vmul.f32 %v3785, %v3800
    %v3802 = vadd.f32 %v3801, 0.112945676
    %v3803 = vmul.f32 %v3785, %v3802
    %v3804 = vadd.f32 %v3803, 0.4994258
    %v3805 = vmul.f32 %v3785, %v3804
    %v3806 = vadd.f32 %v3805, 1.0
    %v3807 = vrcp.pop %v3806
    %v3808 = vmul.f32 %v3806, %v3807
    %v3809 = vsub.f32 1.0, %v3808
    %v3810 = vmul.f32 %v3807, %v3809
    %v3811 = vadd.f32 %v3807, %v3810
    %vm3812 = vweird.f32 %v3806
    %vm3813 = vweird.f32 %v3807
    %vm3814 = vmor %vm3812, %vm3813
    %v3815 = vsel %vm3814, %v3807, %v3811
    %v3816 = vand.u32 2147483647, %v3806
    %vm3817 = vcmp.eq.f32.partialorder %v3816, 8.507059e+37
    %v3818 = vand.u32 %v3806, 2147483648
    %v3819 = vor.u32 1.1754944e-38, %v3818
    %v3820 = vsel %vm3817, %v3819, %v3815
    %v3821 = vmul.f32 %v3796, %v3820
    %v3822 = vmin.f32 %v3821, 1.0
    %v3823 = vmax.f32 %v3822, -1.0
    %v3824 = vmul.f32 %v966, %v966
    %v3825 = vmin.f32 16.0, %v3824
    %v3826 = vmul.f32 %v3825, 2.1237322e-06
    %v3827 = vadd.f32 %v3826, 0.00028619796
    %v3828 = vmul.f32 %v3825, %v3827
    %v3829 = vadd.f32 %v3828, 0.0036580483
    %v3830 = vmul.f32 %v3825, %v3829
    %v3831 = vadd.f32 %v3830, 0.05243302
    %v3832 = vmul.f32 %v3825, %v3831
    %v3833 = vadd.f32 %v3832, 0.18741608
    %v3834 = vmul.f32 %v3825, %v3833
    %v3835 = vadd.f32 %v3834, 1.1283791
    %v3836 = vmul.f32 %v966, %v3835
    %v3837 = vmul.f32 %v3825, 3.8918573e-05
    %v3838 = vadd.f32 %v3837, 0.001143296
    %v3839 = vmul.f32 %v3825, %v3838
    %v3840 = vadd.f32 %v3839, 0.014752088
    %v3841 = vmul.f32 %v3825, %v3840
    %v3842 = vadd.f32 %v3841, 0.112945676
    %v3843 = vmul.f32 %v3825, %v3842
    %v3844 = vadd.f32 %v3843, 0.4994258
    %v3845 = vmul.f32 %v3825, %v3844
    %v3846 = vadd.f32 %v3845, 1.0
    %v3847 = vrcp.pop %v3846
    %v3848 = vmul.f32 %v3846, %v3847
    %v3849 = vsub.f32 1.0, %v3848
    %v3850 = vmul.f32 %v3847, %v3849
    %v3851 = vadd.f32 %v3847, %v3850
    %vm3852 = vweird.f32 %v3846
    %vm3853 = vweird.f32 %v3847
    %vm3854 = vmor %vm3852, %vm3853
    %v3855 = vsel %vm3854, %v3847, %v3851
    %v3856 = vand.u32 2147483647, %v3846
    %vm3857 = vcmp.eq.f32.partialorder %v3856, 8.507059e+37
    %v3858 = vand.u32 %v3846, 2147483648
    %v3859 = vor.u32 1.1754944e-38, %v3858
    %v3860 = vsel %vm3857, %v3859, %v3855
    %v3861 = vmul.f32 %v3836, %v3860
    %v3862 = vmin.f32 %v3861, 1.0
    %v3863 = vmax.f32 %v3862, -1.0
    %v3864 = vmul.f32 %v967, %v967
    %v3865 = vmin.f32 16.0, %v3864
    %v3866 = vmul.f32 %v3865, 2.1237322e-06
    %v3867 = vadd.f32 %v3866, 0.00028619796
    %v3868 = vmul.f32 %v3865, %v3867
    %v3869 = vadd.f32 %v3868, 0.0036580483
    %v3870 = vmul.f32 %v3865, %v3869
    %v3871 = vadd.f32 %v3870, 0.05243302
    %v3872 = vmul.f32 %v3865, %v3871
    %v3873 = vadd.f32 %v3872, 0.18741608
    %v3874 = vmul.f32 %v3865, %v3873
    %v3875 = vadd.f32 %v3874, 1.1283791
    %v3876 = vmul.f32 %v967, %v3875
    %v3877 = vmul.f32 %v3865, 3.8918573e-05
    %v3878 = vadd.f32 %v3877, 0.001143296
    %v3879 = vmul.f32 %v3865, %v3878
    %v3880 = vadd.f32 %v3879, 0.014752088
    %v3881 = vmul.f32 %v3865, %v3880
    %v3882 = vadd.f32 %v3881, 0.112945676
    %v3883 = vmul.f32 %v3865, %v3882
    %v3884 = vadd.f32 %v3883, 0.4994258
    %v3885 = vmul.f32 %v3865, %v3884
    %v3886 = vadd.f32 %v3885, 1.0
    %v3887 = vrcp.pop %v3886
    %v3888 = vmul.f32 %v3886, %v3887
    %v3889 = vsub.f32 1.0, %v3888
    %v3890 = vmul.f32 %v3887, %v3889
    %v3891 = vadd.f32 %v3887, %v3890
    %vm3892 = vweird.f32 %v3886
    %vm3893 = vweird.f32 %v3887
    %vm3894 = vmor %vm3892, %vm3893
    %v3895 = vsel %vm3894, %v3887, %v3891
    %v3896 = vand.u32 2147483647, %v3886
    %vm3897 = vcmp.eq.f32.partialorder %v3896, 8.507059e+37
    %v3898 = vand.u32 %v3886, 2147483648
    %v3899 = vor.u32 1.1754944e-38, %v3898
    %v3900 = vsel %vm3897, %v3899, %v3895
    %v3901 = vmul.f32 %v3876, %v3900
    %v3902 = vmin.f32 %v3901, 1.0
    %v3903 = vmax.f32 %v3902, -1.0
    %v3904 = vmul.f32 %v968, %v968
    %v3905 = vmin.f32 16.0, %v3904
    %v3906 = vmul.f32 %v3905, 2.1237322e-06
    %v3907 = vadd.f32 %v3906, 0.00028619796
    %v3908 = vmul.f32 %v3905, %v3907
    %v3909 = vadd.f32 %v3908, 0.0036580483
    %v3910 = vmul.f32 %v3905, %v3909
    %v3911 = vadd.f32 %v3910, 0.05243302
    %v3912 = vmul.f32 %v3905, %v3911
    %v3913 = vadd.f32 %v3912, 0.18741608
    %v3914 = vmul.f32 %v3905, %v3913
    %v3915 = vadd.f32 %v3914, 1.1283791
    %v3916 = vmul.f32 %v968, %v3915
    %v3917 = vmul.f32 %v3905, 3.8918573e-05
    %v3918 = vadd.f32 %v3917, 0.001143296
    %v3919 = vmul.f32 %v3905, %v3918
    %v3920 = vadd.f32 %v3919, 0.014752088
    %v3921 = vmul.f32 %v3905, %v3920
    %v3922 = vadd.f32 %v3921, 0.112945676
    %v3923 = vmul.f32 %v3905, %v3922
    %v3924 = vadd.f32 %v3923, 0.4994258
    %v3925 = vmul.f32 %v3905, %v3924
    %v3926 = vadd.f32 %v3925, 1.0
    %v3927 = vrcp.pop %v3926
    %v3928 = vmul.f32 %v3926, %v3927
    %v3929 = vsub.f32 1.0, %v3928
    %v3930 = vmul.f32 %v3927, %v3929
    %v3931 = vadd.f32 %v3927, %v3930
    %vm3932 = vweird.f32 %v3926
    %vm3933 = vweird.f32 %v3927
    %vm3934 = vmor %vm3932, %vm3933
    %v3935 = vsel %vm3934, %v3927, %v3931
    %v3936 = vand.u32 2147483647, %v3926
    %vm3937 = vcmp.eq.f32.partialorder %v3936, 8.507059e+37
    %v3938 = vand.u32 %v3926, 2147483648
    %v3939 = vor.u32 1.1754944e-38, %v3938
    %v3940 = vsel %vm3937, %v3939, %v3935
    %v3941 = vmul.f32 %v3916, %v3940
    %v3942 = vmin.f32 %v3941, 1.0
    %v3943 = vmax.f32 %v3942, -1.0
    %v3944 = vmul.f32 %v969, %v969
    %v3945 = vmin.f32 16.0, %v3944
    %v3946 = vmul.f32 %v3945, 2.1237322e-06
    %v3947 = vadd.f32 %v3946, 0.00028619796
    %v3948 = vmul.f32 %v3945, %v3947
    %v3949 = vadd.f32 %v3948, 0.0036580483
    %v3950 = vmul.f32 %v3945, %v3949
    %v3951 = vadd.f32 %v3950, 0.05243302
    %v3952 = vmul.f32 %v3945, %v3951
    %v3953 = vadd.f32 %v3952, 0.18741608
    %v3954 = vmul.f32 %v3945, %v3953
    %v3955 = vadd.f32 %v3954, 1.1283791
    %v3956 = vmul.f32 %v969, %v3955
    %v3957 = vmul.f32 %v3945, 3.8918573e-05
    %v3958 = vadd.f32 %v3957, 0.001143296
    %v3959 = vmul.f32 %v3945, %v3958
    %v3960 = vadd.f32 %v3959, 0.014752088
    %v3961 = vmul.f32 %v3945, %v3960
    %v3962 = vadd.f32 %v3961, 0.112945676
    %v3963 = vmul.f32 %v3945, %v3962
    %v3964 = vadd.f32 %v3963, 0.4994258
    %v3965 = vmul.f32 %v3945, %v3964
    %v3966 = vadd.f32 %v3965, 1.0
    %v3967 = vrcp.pop %v3966
    %v3968 = vmul.f32 %v3966, %v3967
    %v3969 = vsub.f32 1.0, %v3968
    %v3970 = vmul.f32 %v3967, %v3969
    %v3971 = vadd.f32 %v3967, %v3970
    %vm3972 = vweird.f32 %v3966
    %vm3973 = vweird.f32 %v3967
    %vm3974 = vmor %vm3972, %vm3973
    %v3975 = vsel %vm3974, %v3967, %v3971
    %v3976 = vand.u32 2147483647, %v3966
    %vm3977 = vcmp.eq.f32.partialorder %v3976, 8.507059e+37
    %v3978 = vand.u32 %v3966, 2147483648
    %v3979 = vor.u32 1.1754944e-38, %v3978
    %v3980 = vsel %vm3977, %v3979, %v3975
    %v3981 = vmul.f32 %v3956, %v3980
    %v3982 = vmin.f32 %v3981, 1.0
    %v3983 = vmax.f32 %v3982, -1.0
    %v3984 = vmul.f32 %v970, %v970
    %v3985 = vmin.f32 16.0, %v3984
    %v3986 = vmul.f32 %v3985, 2.1237322e-06
    %v3987 = vadd.f32 %v3986, 0.00028619796
    %v3988 = vmul.f32 %v3985, %v3987
    %v3989 = vadd.f32 %v3988, 0.0036580483
    %v3990 = vmul.f32 %v3985, %v3989
    %v3991 = vadd.f32 %v3990, 0.05243302
    %v3992 = vmul.f32 %v3985, %v3991
    %v3993 = vadd.f32 %v3992, 0.18741608
    %v3994 = vmul.f32 %v3985, %v3993
    %v3995 = vadd.f32 %v3994, 1.1283791
    %v3996 = vmul.f32 %v970, %v3995
    %v3997 = vmul.f32 %v3985, 3.8918573e-05
    %v3998 = vadd.f32 %v3997, 0.001143296
    %v3999 = vmul.f32 %v3985, %v3998
    %v4000 = vadd.f32 %v3999, 0.014752088
    %v4001 = vmul.f32 %v3985, %v4000
    %v4002 = vadd.f32 %v4001, 0.112945676
    %v4003 = vmul.f32 %v3985, %v4002
    %v4004 = vadd.f32 %v4003, 0.4994258
    %v4005 = vmul.f32 %v3985, %v4004
    %v4006 = vadd.f32 %v4005, 1.0
    %v4007 = vrcp.pop %v4006
    %v4008 = vmul.f32 %v4006, %v4007
    %v4009 = vsub.f32 1.0, %v4008
    %v4010 = vmul.f32 %v4007, %v4009
    %v4011 = vadd.f32 %v4007, %v4010
    %vm4012 = vweird.f32 %v4006
    %vm4013 = vweird.f32 %v4007
    %vm4014 = vmor %vm4012, %vm4013
    %v4015 = vsel %vm4014, %v4007, %v4011
    %v4016 = vand.u32 2147483647, %v4006
    %vm4017 = vcmp.eq.f32.partialorder %v4016, 8.507059e+37
    %v4018 = vand.u32 %v4006, 2147483648
    %v4019 = vor.u32 1.1754944e-38, %v4018
    %v4020 = vsel %vm4017, %v4019, %v4015
    %v4021 = vmul.f32 %v3996, %v4020
    %v4022 = vmin.f32 %v4021, 1.0
    %v4023 = vmax.f32 %v4022, -1.0
    %v4024 = vmul.f32 %v971, %v971
    %v4025 = vmin.f32 16.0, %v4024
    %v4026 = vmul.f32 %v4025, 2.1237322e-06
    %v4027 = vadd.f32 %v4026, 0.00028619796
    %v4028 = vmul.f32 %v4025, %v4027
    %v4029 = vadd.f32 %v4028, 0.0036580483
    %v4030 = vmul.f32 %v4025, %v4029
    %v4031 = vadd.f32 %v4030, 0.05243302
    %v4032 = vmul.f32 %v4025, %v4031
    %v4033 = vadd.f32 %v4032, 0.18741608
    %v4034 = vmul.f32 %v4025, %v4033
    %v4035 = vadd.f32 %v4034, 1.1283791
    %v4036 = vmul.f32 %v971, %v4035
    %v4037 = vmul.f32 %v4025, 3.8918573e-05
    %v4038 = vadd.f32 %v4037, 0.001143296
    %v4039 = vmul.f32 %v4025, %v4038
    %v4040 = vadd.f32 %v4039, 0.014752088
    %v4041 = vmul.f32 %v4025, %v4040
    %v4042 = vadd.f32 %v4041, 0.112945676
    %v4043 = vmul.f32 %v4025, %v4042
    %v4044 = vadd.f32 %v4043, 0.4994258
    %v4045 = vmul.f32 %v4025, %v4044
    %v4046 = vadd.f32 %v4045, 1.0
    %v4047 = vrcp.pop %v4046
    %v4048 = vmul.f32 %v4046, %v4047
    %v4049 = vsub.f32 1.0, %v4048
    %v4050 = vmul.f32 %v4047, %v4049
    %v4051 = vadd.f32 %v4047, %v4050
    %vm4052 = vweird.f32 %v4046
    %vm4053 = vweird.f32 %v4047
    %vm4054 = vmor %vm4052, %vm4053
    %v4055 = vsel %vm4054, %v4047, %v4051
    %v4056 = vand.u32 2147483647, %v4046
    %vm4057 = vcmp.eq.f32.partialorder %v4056, 8.507059e+37
    %v4058 = vand.u32 %v4046, 2147483648
    %v4059 = vor.u32 1.1754944e-38, %v4058
    %v4060 = vsel %vm4057, %v4059, %v4055
    %v4061 = vmul.f32 %v4036, %v4060
    %v4062 = vmin.f32 %v4061, 1.0
    %v4063 = vmax.f32 %v4062, -1.0
    %v4064 = vmul.f32 %v972, %v972
    %v4065 = vmin.f32 16.0, %v4064
    %v4066 = vmul.f32 %v4065, 2.1237322e-06
    %v4067 = vadd.f32 %v4066, 0.00028619796
    %v4068 = vmul.f32 %v4065, %v4067
    %v4069 = vadd.f32 %v4068, 0.0036580483
    %v4070 = vmul.f32 %v4065, %v4069
    %v4071 = vadd.f32 %v4070, 0.05243302
    %v4072 = vmul.f32 %v4065, %v4071
    %v4073 = vadd.f32 %v4072, 0.18741608
    %v4074 = vmul.f32 %v4065, %v4073
    %v4075 = vadd.f32 %v4074, 1.1283791
    %v4076 = vmul.f32 %v972, %v4075
    %v4077 = vmul.f32 %v4065, 3.8918573e-05
    %v4078 = vadd.f32 %v4077, 0.001143296
    %v4079 = vmul.f32 %v4065, %v4078
    %v4080 = vadd.f32 %v4079, 0.014752088
    %v4081 = vmul.f32 %v4065, %v4080
    %v4082 = vadd.f32 %v4081, 0.112945676
    %v4083 = vmul.f32 %v4065, %v4082
    %v4084 = vadd.f32 %v4083, 0.4994258
    %v4085 = vmul.f32 %v4065, %v4084
    %v4086 = vadd.f32 %v4085, 1.0
    %v4087 = vrcp.pop %v4086
    %v4088 = vmul.f32 %v4086, %v4087
    %v4089 = vsub.f32 1.0, %v4088
    %v4090 = vmul.f32 %v4087, %v4089
    %v4091 = vadd.f32 %v4087, %v4090
    %vm4092 = vweird.f32 %v4086
    %vm4093 = vweird.f32 %v4087
    %vm4094 = vmor %vm4092, %vm4093
    %v4095 = vsel %vm4094, %v4087, %v4091
    %v4096 = vand.u32 2147483647, %v4086
    %vm4097 = vcmp.eq.f32.partialorder %v4096, 8.507059e+37
    %v4098 = vand.u32 %v4086, 2147483648
    %v4099 = vor.u32 1.1754944e-38, %v4098
    %v4100 = vsel %vm4097, %v4099, %v4095
    %v4101 = vmul.f32 %v4076, %v4100
    %v4102 = vmin.f32 %v4101, 1.0
    %v4103 = vmax.f32 %v4102, -1.0
    %v4104 = vmul.f32 %v973, %v973
    %v4105 = vmin.f32 16.0, %v4104
    %v4106 = vmul.f32 %v4105, 2.1237322e-06
    %v4107 = vadd.f32 %v4106, 0.00028619796
    %v4108 = vmul.f32 %v4105, %v4107
    %v4109 = vadd.f32 %v4108, 0.0036580483
    %v4110 = vmul.f32 %v4105, %v4109
    %v4111 = vadd.f32 %v4110, 0.05243302
    %v4112 = vmul.f32 %v4105, %v4111
    %v4113 = vadd.f32 %v4112, 0.18741608
    %v4114 = vmul.f32 %v4105, %v4113
    %v4115 = vadd.f32 %v4114, 1.1283791
    %v4116 = vmul.f32 %v973, %v4115
    %v4117 = vmul.f32 %v4105, 3.8918573e-05
    %v4118 = vadd.f32 %v4117, 0.001143296
    %v4119 = vmul.f32 %v4105, %v4118
    %v4120 = vadd.f32 %v4119, 0.014752088
    %v4121 = vmul.f32 %v4105, %v4120
    %v4122 = vadd.f32 %v4121, 0.112945676
    %v4123 = vmul.f32 %v4105, %v4122
    %v4124 = vadd.f32 %v4123, 0.4994258
    %v4125 = vmul.f32 %v4105, %v4124
    %v4126 = vadd.f32 %v4125, 1.0
    %v4127 = vrcp.pop %v4126
    %v4128 = vmul.f32 %v4126, %v4127
    %v4129 = vsub.f32 1.0, %v4128
    %v4130 = vmul.f32 %v4127, %v4129
    %v4131 = vadd.f32 %v4127, %v4130
    %vm4132 = vweird.f32 %v4126
    %vm4133 = vweird.f32 %v4127
    %vm4134 = vmor %vm4132, %vm4133
    %v4135 = vsel %vm4134, %v4127, %v4131
    %v4136 = vand.u32 2147483647, %v4126
    %vm4137 = vcmp.eq.f32.partialorder %v4136, 8.507059e+37
    %v4138 = vand.u32 %v4126, 2147483648
    %v4139 = vor.u32 1.1754944e-38, %v4138
    %v4140 = vsel %vm4137, %v4139, %v4135
    %v4141 = vmul.f32 %v4116, %v4140
    %v4142 = vmin.f32 %v4141, 1.0
    %v4143 = vmax.f32 %v4142, -1.0
    %v4144 = vmul.f32 %v974, %v974
    %v4145 = vmin.f32 16.0, %v4144
    %v4146 = vmul.f32 %v4145, 2.1237322e-06
    %v4147 = vadd.f32 %v4146, 0.00028619796
    %v4148 = vmul.f32 %v4145, %v4147
    %v4149 = vadd.f32 %v4148, 0.0036580483
    %v4150 = vmul.f32 %v4145, %v4149
    %v4151 = vadd.f32 %v4150, 0.05243302
    %v4152 = vmul.f32 %v4145, %v4151
    %v4153 = vadd.f32 %v4152, 0.18741608
    %v4154 = vmul.f32 %v4145, %v4153
    %v4155 = vadd.f32 %v4154, 1.1283791
    %v4156 = vmul.f32 %v974, %v4155
    %v4157 = vmul.f32 %v4145, 3.8918573e-05
    %v4158 = vadd.f32 %v4157, 0.001143296
    %v4159 = vmul.f32 %v4145, %v4158
    %v4160 = vadd.f32 %v4159, 0.014752088
    %v4161 = vmul.f32 %v4145, %v4160
    %v4162 = vadd.f32 %v4161, 0.112945676
    %v4163 = vmul.f32 %v4145, %v4162
    %v4164 = vadd.f32 %v4163, 0.4994258
    %v4165 = vmul.f32 %v4145, %v4164
    %v4166 = vadd.f32 %v4165, 1.0
    %v4167 = vrcp.pop %v4166
    %v4168 = vmul.f32 %v4166, %v4167
    %v4169 = vsub.f32 1.0, %v4168
    %v4170 = vmul.f32 %v4167, %v4169
    %v4171 = vadd.f32 %v4167, %v4170
    %vm4172 = vweird.f32 %v4166
    %vm4173 = vweird.f32 %v4167
    %vm4174 = vmor %vm4172, %vm4173
    %v4175 = vsel %vm4174, %v4167, %v4171
    %v4176 = vand.u32 2147483647, %v4166
    %vm4177 = vcmp.eq.f32.partialorder %v4176, 8.507059e+37
    %v4178 = vand.u32 %v4166, 2147483648
    %v4179 = vor.u32 1.1754944e-38, %v4178
    %v4180 = vsel %vm4177, %v4179, %v4175
    %v4181 = vmul.f32 %v4156, %v4180
    %v4182 = vmin.f32 %v4181, 1.0
    %v4183 = vmax.f32 %v4182, -1.0
    %v4184 = vmul.f32 %v975, %v975
    %v4185 = vmin.f32 16.0, %v4184
    %v4186 = vmul.f32 %v4185, 2.1237322e-06
    %v4187 = vadd.f32 %v4186, 0.00028619796
    %v4188 = vmul.f32 %v4185, %v4187
    %v4189 = vadd.f32 %v4188, 0.0036580483
    %v4190 = vmul.f32 %v4185, %v4189
    %v4191 = vadd.f32 %v4190, 0.05243302
    %v4192 = vmul.f32 %v4185, %v4191
    %v4193 = vadd.f32 %v4192, 0.18741608
    %v4194 = vmul.f32 %v4185, %v4193
    %v4195 = vadd.f32 %v4194, 1.1283791
    %v4196 = vmul.f32 %v975, %v4195
    %v4197 = vmul.f32 %v4185, 3.8918573e-05
    %v4198 = vadd.f32 %v4197, 0.001143296
    %v4199 = vmul.f32 %v4185, %v4198
    %v4200 = vadd.f32 %v4199, 0.014752088
    %v4201 = vmul.f32 %v4185, %v4200
    %v4202 = vadd.f32 %v4201, 0.112945676
    %v4203 = vmul.f32 %v4185, %v4202
    %v4204 = vadd.f32 %v4203, 0.4994258
    %v4205 = vmul.f32 %v4185, %v4204
    %v4206 = vadd.f32 %v4205, 1.0
    %v4207 = vrcp.pop %v4206
    %v4208 = vmul.f32 %v4206, %v4207
    %v4209 = vsub.f32 1.0, %v4208
    %v4210 = vmul.f32 %v4207, %v4209
    %v4211 = vadd.f32 %v4207, %v4210
    %vm4212 = vweird.f32 %v4206
    %vm4213 = vweird.f32 %v4207
    %vm4214 = vmor %vm4212, %vm4213
    %v4215 = vsel %vm4214, %v4207, %v4211
    %v4216 = vand.u32 2147483647, %v4206
    %vm4217 = vcmp.eq.f32.partialorder %v4216, 8.507059e+37
    %v4218 = vand.u32 %v4206, 2147483648
    %v4219 = vor.u32 1.1754944e-38, %v4218
    %v4220 = vsel %vm4217, %v4219, %v4215
    %v4221 = vmul.f32 %v4196, %v4220
    %v4222 = vmin.f32 %v4221, 1.0
    %v4223 = vmax.f32 %v4222, -1.0
    %v4224 = vmul.f32 %v976, %v976
    %v4225 = vmin.f32 16.0, %v4224
    %v4226 = vmul.f32 %v4225, 2.1237322e-06
    %v4227 = vadd.f32 %v4226, 0.00028619796
    %v4228 = vmul.f32 %v4225, %v4227
    %v4229 = vadd.f32 %v4228, 0.0036580483
    %v4230 = vmul.f32 %v4225, %v4229
    %v4231 = vadd.f32 %v4230, 0.05243302
    %v4232 = vmul.f32 %v4225, %v4231
    %v4233 = vadd.f32 %v4232, 0.18741608
    %v4234 = vmul.f32 %v4225, %v4233
    %v4235 = vadd.f32 %v4234, 1.1283791
    %v4236 = vmul.f32 %v976, %v4235
    %v4237 = vmul.f32 %v4225, 3.8918573e-05
    %v4238 = vadd.f32 %v4237, 0.001143296
    %v4239 = vmul.f32 %v4225, %v4238
    %v4240 = vadd.f32 %v4239, 0.014752088
    %v4241 = vmul.f32 %v4225, %v4240
    %v4242 = vadd.f32 %v4241, 0.112945676
    %v4243 = vmul.f32 %v4225, %v4242
    %v4244 = vadd.f32 %v4243, 0.4994258
    %v4245 = vmul.f32 %v4225, %v4244
    %v4246 = vadd.f32 %v4245, 1.0
    %v4247 = vrcp.pop %v4246
    %v4248 = vmul.f32 %v4246, %v4247
    %v4249 = vsub.f32 1.0, %v4248
    %v4250 = vmul.f32 %v4247, %v4249
    %v4251 = vadd.f32 %v4247, %v4250
    %vm4252 = vweird.f32 %v4246
    %vm4253 = vweird.f32 %v4247
    %vm4254 = vmor %vm4252, %vm4253
    %v4255 = vsel %vm4254, %v4247, %v4251
    %v4256 = vand.u32 2147483647, %v4246
    %vm4257 = vcmp.eq.f32.partialorder %v4256, 8.507059e+37
    %v4258 = vand.u32 %v4246, 2147483648
    %v4259 = vor.u32 1.1754944e-38, %v4258
    %v4260 = vsel %vm4257, %v4259, %v4255
    %v4261 = vmul.f32 %v4236, %v4260
    %v4262 = vmin.f32 %v4261, 1.0
    %v4263 = vmax.f32 %v4262, -1.0
    %v4264 = vmul.f32 %v977, %v977
    %v4265 = vmin.f32 16.0, %v4264
    %v4266 = vmul.f32 %v4265, 2.1237322e-06
    %v4267 = vadd.f32 %v4266, 0.00028619796
    %v4268 = vmul.f32 %v4265, %v4267
    %v4269 = vadd.f32 %v4268, 0.0036580483
    %v4270 = vmul.f32 %v4265, %v4269
    %v4271 = vadd.f32 %v4270, 0.05243302
    %v4272 = vmul.f32 %v4265, %v4271
    %v4273 = vadd.f32 %v4272, 0.18741608
    %v4274 = vmul.f32 %v4265, %v4273
    %v4275 = vadd.f32 %v4274, 1.1283791
    %v4276 = vmul.f32 %v977, %v4275
    %v4277 = vmul.f32 %v4265, 3.8918573e-05
    %v4278 = vadd.f32 %v4277, 0.001143296
    %v4279 = vmul.f32 %v4265, %v4278
    %v4280 = vadd.f32 %v4279, 0.014752088
    %v4281 = vmul.f32 %v4265, %v4280
    %v4282 = vadd.f32 %v4281, 0.112945676
    %v4283 = vmul.f32 %v4265, %v4282
    %v4284 = vadd.f32 %v4283, 0.4994258
    %v4285 = vmul.f32 %v4265, %v4284
    %v4286 = vadd.f32 %v4285, 1.0
    %v4287 = vrcp.pop %v4286
    %v4288 = vmul.f32 %v4286, %v4287
    %v4289 = vsub.f32 1.0, %v4288
    %v4290 = vmul.f32 %v4287, %v4289
    %v4291 = vadd.f32 %v4287, %v4290
    %vm4292 = vweird.f32 %v4286
    %vm4293 = vweird.f32 %v4287
    %vm4294 = vmor %vm4292, %vm4293
    %v4295 = vsel %vm4294, %v4287, %v4291
    %v4296 = vand.u32 2147483647, %v4286
    %vm4297 = vcmp.eq.f32.partialorder %v4296, 8.507059e+37
    %v4298 = vand.u32 %v4286, 2147483648
    %v4299 = vor.u32 1.1754944e-38, %v4298
    %v4300 = vsel %vm4297, %v4299, %v4295
    %v4301 = vmul.f32 %v4276, %v4300
    %v4302 = vmin.f32 %v4301, 1.0
    %v4303 = vmax.f32 %v4302, -1.0
    %v4304 = vmul.f32 %v978, %v978
    %v4305 = vmin.f32 16.0, %v4304
    %v4306 = vmul.f32 %v4305, 2.1237322e-06
    %v4307 = vadd.f32 %v4306, 0.00028619796
    %v4308 = vmul.f32 %v4305, %v4307
    %v4309 = vadd.f32 %v4308, 0.0036580483
    %v4310 = vmul.f32 %v4305, %v4309
    %v4311 = vadd.f32 %v4310, 0.05243302
    %v4312 = vmul.f32 %v4305, %v4311
    %v4313 = vadd.f32 %v4312, 0.18741608
    %v4314 = vmul.f32 %v4305, %v4313
    %v4315 = vadd.f32 %v4314, 1.1283791
    %v4316 = vmul.f32 %v978, %v4315
    %v4317 = vmul.f32 %v4305, 3.8918573e-05
    %v4318 = vadd.f32 %v4317, 0.001143296
    %v4319 = vmul.f32 %v4305, %v4318
    %v4320 = vadd.f32 %v4319, 0.014752088
    %v4321 = vmul.f32 %v4305, %v4320
    %v4322 = vadd.f32 %v4321, 0.112945676
    %v4323 = vmul.f32 %v4305, %v4322
    %v4324 = vadd.f32 %v4323, 0.4994258
    %v4325 = vmul.f32 %v4305, %v4324
    %v4326 = vadd.f32 %v4325, 1.0
    %v4327 = vrcp.pop %v4326
    %v4328 = vmul.f32 %v4326, %v4327
    %v4329 = vsub.f32 1.0, %v4328
    %v4330 = vmul.f32 %v4327, %v4329
    %v4331 = vadd.f32 %v4327, %v4330
    %vm4332 = vweird.f32 %v4326
    %vm4333 = vweird.f32 %v4327
    %vm4334 = vmor %vm4332, %vm4333
    %v4335 = vsel %vm4334, %v4327, %v4331
    %v4336 = vand.u32 2147483647, %v4326
    %vm4337 = vcmp.eq.f32.partialorder %v4336, 8.507059e+37
    %v4338 = vand.u32 %v4326, 2147483648
    %v4339 = vor.u32 1.1754944e-38, %v4338
    %v4340 = vsel %vm4337, %v4339, %v4335
    %v4341 = vmul.f32 %v4316, %v4340
    %v4342 = vmin.f32 %v4341, 1.0
    %v4343 = vmax.f32 %v4342, -1.0
    %v4344 = vmul.f32 %v979, %v979
    %v4345 = vmin.f32 16.0, %v4344
    %v4346 = vmul.f32 %v4345, 2.1237322e-06
    %v4347 = vadd.f32 %v4346, 0.00028619796
    %v4348 = vmul.f32 %v4345, %v4347
    %v4349 = vadd.f32 %v4348, 0.0036580483
    %v4350 = vmul.f32 %v4345, %v4349
    %v4351 = vadd.f32 %v4350, 0.05243302
    %v4352 = vmul.f32 %v4345, %v4351
    %v4353 = vadd.f32 %v4352, 0.18741608
    %v4354 = vmul.f32 %v4345, %v4353
    %v4355 = vadd.f32 %v4354, 1.1283791
    %v4356 = vmul.f32 %v979, %v4355
    %v4357 = vmul.f32 %v4345, 3.8918573e-05
    %v4358 = vadd.f32 %v4357, 0.001143296
    %v4359 = vmul.f32 %v4345, %v4358
    %v4360 = vadd.f32 %v4359, 0.014752088
    %v4361 = vmul.f32 %v4345, %v4360
    %v4362 = vadd.f32 %v4361, 0.112945676
    %v4363 = vmul.f32 %v4345, %v4362
    %v4364 = vadd.f32 %v4363, 0.4994258
    %v4365 = vmul.f32 %v4345, %v4364
    %v4366 = vadd.f32 %v4365, 1.0
    %v4367 = vrcp.pop %v4366
    %v4368 = vmul.f32 %v4366, %v4367
    %v4369 = vsub.f32 1.0, %v4368
    %v4370 = vmul.f32 %v4367, %v4369
    %v4371 = vadd.f32 %v4367, %v4370
    %vm4372 = vweird.f32 %v4366
    %vm4373 = vweird.f32 %v4367
    %vm4374 = vmor %vm4372, %vm4373
    %v4375 = vsel %vm4374, %v4367, %v4371
    %v4376 = vand.u32 2147483647, %v4366
    %vm4377 = vcmp.eq.f32.partialorder %v4376, 8.507059e+37
    %v4378 = vand.u32 %v4366, 2147483648
    %v4379 = vor.u32 1.1754944e-38, %v4378
    %v4380 = vsel %vm4377, %v4379, %v4375
    %v4381 = vmul.f32 %v4356, %v4380
    %v4382 = vmin.f32 %v4381, 1.0
    %v4383 = vmax.f32 %v4382, -1.0
    %v4384 = vmul.f32 %v980, %v980
    %v4385 = vmin.f32 16.0, %v4384
    %v4386 = vmul.f32 %v4385, 2.1237322e-06
    %v4387 = vadd.f32 %v4386, 0.00028619796
    %v4388 = vmul.f32 %v4385, %v4387
    %v4389 = vadd.f32 %v4388, 0.0036580483
    %v4390 = vmul.f32 %v4385, %v4389
    %v4391 = vadd.f32 %v4390, 0.05243302
    %v4392 = vmul.f32 %v4385, %v4391
    %v4393 = vadd.f32 %v4392, 0.18741608
    %v4394 = vmul.f32 %v4385, %v4393
    %v4395 = vadd.f32 %v4394, 1.1283791
    %v4396 = vmul.f32 %v980, %v4395
    %v4397 = vmul.f32 %v4385, 3.8918573e-05
    %v4398 = vadd.f32 %v4397, 0.001143296
    %v4399 = vmul.f32 %v4385, %v4398
    %v4400 = vadd.f32 %v4399, 0.014752088
    %v4401 = vmul.f32 %v4385, %v4400
    %v4402 = vadd.f32 %v4401, 0.112945676
    %v4403 = vmul.f32 %v4385, %v4402
    %v4404 = vadd.f32 %v4403, 0.4994258
    %v4405 = vmul.f32 %v4385, %v4404
    %v4406 = vadd.f32 %v4405, 1.0
    %v4407 = vrcp.pop %v4406
    %v4408 = vmul.f32 %v4406, %v4407
    %v4409 = vsub.f32 1.0, %v4408
    %v4410 = vmul.f32 %v4407, %v4409
    %v4411 = vadd.f32 %v4407, %v4410
    %vm4412 = vweird.f32 %v4406
    %vm4413 = vweird.f32 %v4407
    %vm4414 = vmor %vm4412, %vm4413
    %v4415 = vsel %vm4414, %v4407, %v4411
    %v4416 = vand.u32 2147483647, %v4406
    %vm4417 = vcmp.eq.f32.partialorder %v4416, 8.507059e+37
    %v4418 = vand.u32 %v4406, 2147483648
    %v4419 = vor.u32 1.1754944e-38, %v4418
    %v4420 = vsel %vm4417, %v4419, %v4415
    %v4421 = vmul.f32 %v4396, %v4420
    %v4422 = vmin.f32 %v4421, 1.0
    %v4423 = vmax.f32 %v4422, -1.0
    %v4424 = vmul.f32 %v981, %v981
    %v4425 = vmin.f32 16.0, %v4424
    %v4426 = vmul.f32 %v4425, 2.1237322e-06
    %v4427 = vadd.f32 %v4426, 0.00028619796
    %v4428 = vmul.f32 %v4425, %v4427
    %v4429 = vadd.f32 %v4428, 0.0036580483
    %v4430 = vmul.f32 %v4425, %v4429
    %v4431 = vadd.f32 %v4430, 0.05243302
    %v4432 = vmul.f32 %v4425, %v4431
    %v4433 = vadd.f32 %v4432, 0.18741608
    %v4434 = vmul.f32 %v4425, %v4433
    %v4435 = vadd.f32 %v4434, 1.1283791
    %v4436 = vmul.f32 %v981, %v4435
    %v4437 = vmul.f32 %v4425, 3.8918573e-05
    %v4438 = vadd.f32 %v4437, 0.001143296
    %v4439 = vmul.f32 %v4425, %v4438
    %v4440 = vadd.f32 %v4439, 0.014752088
    %v4441 = vmul.f32 %v4425, %v4440
    %v4442 = vadd.f32 %v4441, 0.112945676
    %v4443 = vmul.f32 %v4425, %v4442
    %v4444 = vadd.f32 %v4443, 0.4994258
    %v4445 = vmul.f32 %v4425, %v4444
    %v4446 = vadd.f32 %v4445, 1.0
    %v4447 = vrcp.pop %v4446
    %v4448 = vmul.f32 %v4446, %v4447
    %v4449 = vsub.f32 1.0, %v4448
    %v4450 = vmul.f32 %v4447, %v4449
    %v4451 = vadd.f32 %v4447, %v4450
    %vm4452 = vweird.f32 %v4446
    %vm4453 = vweird.f32 %v4447
    %vm4454 = vmor %vm4452, %vm4453
    %v4455 = vsel %vm4454, %v4447, %v4451
    %v4456 = vand.u32 2147483647, %v4446
    %vm4457 = vcmp.eq.f32.partialorder %v4456, 8.507059e+37
    %v4458 = vand.u32 %v4446, 2147483648
    %v4459 = vor.u32 1.1754944e-38, %v4458
    %v4460 = vsel %vm4457, %v4459, %v4455
    %v4461 = vmul.f32 %v4436, %v4460
    %v4462 = vmin.f32 %v4461, 1.0
    %v4463 = vmax.f32 %v4462, -1.0
    %v4464 = vmul.f32 %v982, %v982
    %v4465 = vmin.f32 16.0, %v4464
    %v4466 = vmul.f32 %v4465, 2.1237322e-06
    %v4467 = vadd.f32 %v4466, 0.00028619796
    %v4468 = vmul.f32 %v4465, %v4467
    %v4469 = vadd.f32 %v4468, 0.0036580483
    %v4470 = vmul.f32 %v4465, %v4469
    %v4471 = vadd.f32 %v4470, 0.05243302
    %v4472 = vmul.f32 %v4465, %v4471
    %v4473 = vadd.f32 %v4472, 0.18741608
    %v4474 = vmul.f32 %v4465, %v4473
    %v4475 = vadd.f32 %v4474, 1.1283791
    %v4476 = vmul.f32 %v982, %v4475
    %v4477 = vmul.f32 %v4465, 3.8918573e-05
    %v4478 = vadd.f32 %v4477, 0.001143296
    %v4479 = vmul.f32 %v4465, %v4478
    %v4480 = vadd.f32 %v4479, 0.014752088
    %v4481 = vmul.f32 %v4465, %v4480
    %v4482 = vadd.f32 %v4481, 0.112945676
    %v4483 = vmul.f32 %v4465, %v4482
    %v4484 = vadd.f32 %v4483, 0.4994258
    %v4485 = vmul.f32 %v4465, %v4484
    %v4486 = vadd.f32 %v4485, 1.0
    %v4487 = vrcp.pop %v4486
    %v4488 = vmul.f32 %v4486, %v4487
    %v4489 = vsub.f32 1.0, %v4488
    %v4490 = vmul.f32 %v4487, %v4489
    %v4491 = vadd.f32 %v4487, %v4490
    %vm4492 = vweird.f32 %v4486
    %vm4493 = vweird.f32 %v4487
    %vm4494 = vmor %vm4492, %vm4493
    %v4495 = vsel %vm4494, %v4487, %v4491
    %v4496 = vand.u32 2147483647, %v4486
    %vm4497 = vcmp.eq.f32.partialorder %v4496, 8.507059e+37
    %v4498 = vand.u32 %v4486, 2147483648
    %v4499 = vor.u32 1.1754944e-38, %v4498
    %v4500 = vsel %vm4497, %v4499, %v4495
    %v4501 = vmul.f32 %v4476, %v4500
    %v4502 = vmin.f32 %v4501, 1.0
    %v4503 = vmax.f32 %v4502, -1.0
    %v4504 = vmul.f32 %v983, %v983
    %v4505 = vmin.f32 16.0, %v4504
    %v4506 = vmul.f32 %v4505, 2.1237322e-06
    %v4507 = vadd.f32 %v4506, 0.00028619796
    %v4508 = vmul.f32 %v4505, %v4507
    %v4509 = vadd.f32 %v4508, 0.0036580483
    %v4510 = vmul.f32 %v4505, %v4509
    %v4511 = vadd.f32 %v4510, 0.05243302
    %v4512 = vmul.f32 %v4505, %v4511
    %v4513 = vadd.f32 %v4512, 0.18741608
    %v4514 = vmul.f32 %v4505, %v4513
    %v4515 = vadd.f32 %v4514, 1.1283791
    %v4516 = vmul.f32 %v983, %v4515
    %v4517 = vmul.f32 %v4505, 3.8918573e-05
    %v4518 = vadd.f32 %v4517, 0.001143296
    %v4519 = vmul.f32 %v4505, %v4518
    %v4520 = vadd.f32 %v4519, 0.014752088
    %v4521 = vmul.f32 %v4505, %v4520
    %v4522 = vadd.f32 %v4521, 0.112945676
    %v4523 = vmul.f32 %v4505, %v4522
    %v4524 = vadd.f32 %v4523, 0.4994258
    %v4525 = vmul.f32 %v4505, %v4524
    %v4526 = vadd.f32 %v4525, 1.0
    %v4527 = vrcp.pop %v4526
    %v4528 = vmul.f32 %v4526, %v4527
    %v4529 = vsub.f32 1.0, %v4528
    %v4530 = vmul.f32 %v4527, %v4529
    %v4531 = vadd.f32 %v4527, %v4530
    %vm4532 = vweird.f32 %v4526
    %vm4533 = vweird.f32 %v4527
    %vm4534 = vmor %vm4532, %vm4533
    %v4535 = vsel %vm4534, %v4527, %v4531
    %v4536 = vand.u32 2147483647, %v4526
    %vm4537 = vcmp.eq.f32.partialorder %v4536, 8.507059e+37
    %v4538 = vand.u32 %v4526, 2147483648
    %v4539 = vor.u32 1.1754944e-38, %v4538
    %v4540 = vsel %vm4537, %v4539, %v4535
    %v4541 = vmul.f32 %v4516, %v4540
    %v4542 = vmin.f32 %v4541, 1.0
    %v4543 = vmax.f32 %v4542, -1.0
    %v4544 = vmul.f32 %v984, %v984
    %v4545 = vmin.f32 16.0, %v4544
    %v4546 = vmul.f32 %v4545, 2.1237322e-06
    %v4547 = vadd.f32 %v4546, 0.00028619796
    %v4548 = vmul.f32 %v4545, %v4547
    %v4549 = vadd.f32 %v4548, 0.0036580483
    %v4550 = vmul.f32 %v4545, %v4549
    %v4551 = vadd.f32 %v4550, 0.05243302
    %v4552 = vmul.f32 %v4545, %v4551
    %v4553 = vadd.f32 %v4552, 0.18741608
    %v4554 = vmul.f32 %v4545, %v4553
    %v4555 = vadd.f32 %v4554, 1.1283791
    %v4556 = vmul.f32 %v984, %v4555
    %v4557 = vmul.f32 %v4545, 3.8918573e-05
    %v4558 = vadd.f32 %v4557, 0.001143296
    %v4559 = vmul.f32 %v4545, %v4558
    %v4560 = vadd.f32 %v4559, 0.014752088
    %v4561 = vmul.f32 %v4545, %v4560
    %v4562 = vadd.f32 %v4561, 0.112945676
    %v4563 = vmul.f32 %v4545, %v4562
    %v4564 = vadd.f32 %v4563, 0.4994258
    %v4565 = vmul.f32 %v4545, %v4564
    %v4566 = vadd.f32 %v4565, 1.0
    %v4567 = vrcp.pop %v4566
    %v4568 = vmul.f32 %v4566, %v4567
    %v4569 = vsub.f32 1.0, %v4568
    %v4570 = vmul.f32 %v4567, %v4569
    %v4571 = vadd.f32 %v4567, %v4570
    %vm4572 = vweird.f32 %v4566
    %vm4573 = vweird.f32 %v4567
    %vm4574 = vmor %vm4572, %vm4573
    %v4575 = vsel %vm4574, %v4567, %v4571
    %v4576 = vand.u32 2147483647, %v4566
    %vm4577 = vcmp.eq.f32.partialorder %v4576, 8.507059e+37
    %v4578 = vand.u32 %v4566, 2147483648
    %v4579 = vor.u32 1.1754944e-38, %v4578
    %v4580 = vsel %vm4577, %v4579, %v4575
    %v4581 = vmul.f32 %v4556, %v4580
    %v4582 = vmin.f32 %v4581, 1.0
    %v4583 = vmax.f32 %v4582, -1.0
    %v4584 = vmul.f32 %v985, %v985
    %v4585 = vmin.f32 16.0, %v4584
    %v4586 = vmul.f32 %v4585, 2.1237322e-06
    %v4587 = vadd.f32 %v4586, 0.00028619796
    %v4588 = vmul.f32 %v4585, %v4587
    %v4589 = vadd.f32 %v4588, 0.0036580483
    %v4590 = vmul.f32 %v4585, %v4589
    %v4591 = vadd.f32 %v4590, 0.05243302
    %v4592 = vmul.f32 %v4585, %v4591
    %v4593 = vadd.f32 %v4592, 0.18741608
    %v4594 = vmul.f32 %v4585, %v4593
    %v4595 = vadd.f32 %v4594, 1.1283791
    %v4596 = vmul.f32 %v985, %v4595
    %v4597 = vmul.f32 %v4585, 3.8918573e-05
    %v4598 = vadd.f32 %v4597, 0.001143296
    %v4599 = vmul.f32 %v4585, %v4598
    %v4600 = vadd.f32 %v4599, 0.014752088
    %v4601 = vmul.f32 %v4585, %v4600
    %v4602 = vadd.f32 %v4601, 0.112945676
    %v4603 = vmul.f32 %v4585, %v4602
    %v4604 = vadd.f32 %v4603, 0.4994258
    %v4605 = vmul.f32 %v4585, %v4604
    %v4606 = vadd.f32 %v4605, 1.0
    %v4607 = vrcp.pop %v4606
    %v4608 = vmul.f32 %v4606, %v4607
    %v4609 = vsub.f32 1.0, %v4608
    %v4610 = vmul.f32 %v4607, %v4609
    %v4611 = vadd.f32 %v4607, %v4610
    %vm4612 = vweird.f32 %v4606
    %vm4613 = vweird.f32 %v4607
    %vm4614 = vmor %vm4612, %vm4613
    %v4615 = vsel %vm4614, %v4607, %v4611
    %v4616 = vand.u32 2147483647, %v4606
    %vm4617 = vcmp.eq.f32.partialorder %v4616, 8.507059e+37
    %v4618 = vand.u32 %v4606, 2147483648
    %v4619 = vor.u32 1.1754944e-38, %v4618
    %v4620 = vsel %vm4617, %v4619, %v4615
    %v4621 = vmul.f32 %v4596, %v4620
    %v4622 = vmin.f32 %v4621, 1.0
    %v4623 = vmax.f32 %v4622, -1.0
    %v4624 = vmul.f32 %v986, %v986
    %v4625 = vmin.f32 16.0, %v4624
    %v4626 = vmul.f32 %v4625, 2.1237322e-06
    %v4627 = vadd.f32 %v4626, 0.00028619796
    %v4628 = vmul.f32 %v4625, %v4627
    %v4629 = vadd.f32 %v4628, 0.0036580483
    %v4630 = vmul.f32 %v4625, %v4629
    %v4631 = vadd.f32 %v4630, 0.05243302
    %v4632 = vmul.f32 %v4625, %v4631
    %v4633 = vadd.f32 %v4632, 0.18741608
    %v4634 = vmul.f32 %v4625, %v4633
    %v4635 = vadd.f32 %v4634, 1.1283791
    %v4636 = vmul.f32 %v986, %v4635
    %v4637 = vmul.f32 %v4625, 3.8918573e-05
    %v4638 = vadd.f32 %v4637, 0.001143296
    %v4639 = vmul.f32 %v4625, %v4638
    %v4640 = vadd.f32 %v4639, 0.014752088
    %v4641 = vmul.f32 %v4625, %v4640
    %v4642 = vadd.f32 %v4641, 0.112945676
    %v4643 = vmul.f32 %v4625, %v4642
    %v4644 = vadd.f32 %v4643, 0.4994258
    %v4645 = vmul.f32 %v4625, %v4644
    %v4646 = vadd.f32 %v4645, 1.0
    %v4647 = vrcp.pop %v4646
    %v4648 = vmul.f32 %v4646, %v4647
    %v4649 = vsub.f32 1.0, %v4648
    %v4650 = vmul.f32 %v4647, %v4649
    %v4651 = vadd.f32 %v4647, %v4650
    %vm4652 = vweird.f32 %v4646
    %vm4653 = vweird.f32 %v4647
    %vm4654 = vmor %vm4652, %vm4653
    %v4655 = vsel %vm4654, %v4647, %v4651
    %v4656 = vand.u32 2147483647, %v4646
    %vm4657 = vcmp.eq.f32.partialorder %v4656, 8.507059e+37
    %v4658 = vand.u32 %v4646, 2147483648
    %v4659 = vor.u32 1.1754944e-38, %v4658
    %v4660 = vsel %vm4657, %v4659, %v4655
    %v4661 = vmul.f32 %v4636, %v4660
    %v4662 = vmin.f32 %v4661, 1.0
    %v4663 = vmax.f32 %v4662, -1.0
    %v4664 = vmul.f32 %v987, %v987
    %v4665 = vmin.f32 16.0, %v4664
    %v4666 = vmul.f32 %v4665, 2.1237322e-06
    %v4667 = vadd.f32 %v4666, 0.00028619796
    %v4668 = vmul.f32 %v4665, %v4667
    %v4669 = vadd.f32 %v4668, 0.0036580483
    %v4670 = vmul.f32 %v4665, %v4669
    %v4671 = vadd.f32 %v4670, 0.05243302
    %v4672 = vmul.f32 %v4665, %v4671
    %v4673 = vadd.f32 %v4672, 0.18741608
    %v4674 = vmul.f32 %v4665, %v4673
    %v4675 = vadd.f32 %v4674, 1.1283791
    %v4676 = vmul.f32 %v987, %v4675
    %v4677 = vmul.f32 %v4665, 3.8918573e-05
    %v4678 = vadd.f32 %v4677, 0.001143296
    %v4679 = vmul.f32 %v4665, %v4678
    %v4680 = vadd.f32 %v4679, 0.014752088
    %v4681 = vmul.f32 %v4665, %v4680
    %v4682 = vadd.f32 %v4681, 0.112945676
    %v4683 = vmul.f32 %v4665, %v4682
    %v4684 = vadd.f32 %v4683, 0.4994258
    %v4685 = vmul.f32 %v4665, %v4684
    %v4686 = vadd.f32 %v4685, 1.0
    %v4687 = vrcp.pop %v4686
    %v4688 = vmul.f32 %v4686, %v4687
    %v4689 = vsub.f32 1.0, %v4688
    %v4690 = vmul.f32 %v4687, %v4689
    %v4691 = vadd.f32 %v4687, %v4690
    %vm4692 = vweird.f32 %v4686
    %vm4693 = vweird.f32 %v4687
    %vm4694 = vmor %vm4692, %vm4693
    %v4695 = vsel %vm4694, %v4687, %v4691
    %v4696 = vand.u32 2147483647, %v4686
    %vm4697 = vcmp.eq.f32.partialorder %v4696, 8.507059e+37
    %v4698 = vand.u32 %v4686, 2147483648
    %v4699 = vor.u32 1.1754944e-38, %v4698
    %v4700 = vsel %vm4697, %v4699, %v4695
    %v4701 = vmul.f32 %v4676, %v4700
    %v4702 = vmin.f32 %v4701, 1.0
    %v4703 = vmax.f32 %v4702, -1.0
    %v4704 = vmul.f32 %v988, %v988
    %v4705 = vmin.f32 16.0, %v4704
    %v4706 = vmul.f32 %v4705, 2.1237322e-06
    %v4707 = vadd.f32 %v4706, 0.00028619796
    %v4708 = vmul.f32 %v4705, %v4707
    %v4709 = vadd.f32 %v4708, 0.0036580483
    %v4710 = vmul.f32 %v4705, %v4709
    %v4711 = vadd.f32 %v4710, 0.05243302
    %v4712 = vmul.f32 %v4705, %v4711
    %v4713 = vadd.f32 %v4712, 0.18741608
    %v4714 = vmul.f32 %v4705, %v4713
    %v4715 = vadd.f32 %v4714, 1.1283791
    %v4716 = vmul.f32 %v988, %v4715
    %v4717 = vmul.f32 %v4705, 3.8918573e-05
    %v4718 = vadd.f32 %v4717, 0.001143296
    %v4719 = vmul.f32 %v4705, %v4718
    %v4720 = vadd.f32 %v4719, 0.014752088
    %v4721 = vmul.f32 %v4705, %v4720
    %v4722 = vadd.f32 %v4721, 0.112945676
    %v4723 = vmul.f32 %v4705, %v4722
    %v4724 = vadd.f32 %v4723, 0.4994258
    %v4725 = vmul.f32 %v4705, %v4724
    %v4726 = vadd.f32 %v4725, 1.0
    %v4727 = vrcp.pop %v4726
    %v4728 = vmul.f32 %v4726, %v4727
    %v4729 = vsub.f32 1.0, %v4728
    %v4730 = vmul.f32 %v4727, %v4729
    %v4731 = vadd.f32 %v4727, %v4730
    %vm4732 = vweird.f32 %v4726
    %vm4733 = vweird.f32 %v4727
    %vm4734 = vmor %vm4732, %vm4733
    %v4735 = vsel %vm4734, %v4727, %v4731
    %v4736 = vand.u32 2147483647, %v4726
    %vm4737 = vcmp.eq.f32.partialorder %v4736, 8.507059e+37
    %v4738 = vand.u32 %v4726, 2147483648
    %v4739 = vor.u32 1.1754944e-38, %v4738
    %v4740 = vsel %vm4737, %v4739, %v4735
    %v4741 = vmul.f32 %v4716, %v4740
    %v4742 = vmin.f32 %v4741, 1.0
    %v4743 = vmax.f32 %v4742, -1.0
    %v4744 = vmul.f32 %v989, %v989
    %v4745 = vmin.f32 16.0, %v4744
    %v4746 = vmul.f32 %v4745, 2.1237322e-06
    %v4747 = vadd.f32 %v4746, 0.00028619796
    %v4748 = vmul.f32 %v4745, %v4747
    %v4749 = vadd.f32 %v4748, 0.0036580483
    %v4750 = vmul.f32 %v4745, %v4749
    %v4751 = vadd.f32 %v4750, 0.05243302
    %v4752 = vmul.f32 %v4745, %v4751
    %v4753 = vadd.f32 %v4752, 0.18741608
    %v4754 = vmul.f32 %v4745, %v4753
    %v4755 = vadd.f32 %v4754, 1.1283791
    %v4756 = vmul.f32 %v989, %v4755
    %v4757 = vmul.f32 %v4745, 3.8918573e-05
    %v4758 = vadd.f32 %v4757, 0.001143296
    %v4759 = vmul.f32 %v4745, %v4758
    %v4760 = vadd.f32 %v4759, 0.014752088
    %v4761 = vmul.f32 %v4745, %v4760
    %v4762 = vadd.f32 %v4761, 0.112945676
    %v4763 = vmul.f32 %v4745, %v4762
    %v4764 = vadd.f32 %v4763, 0.4994258
    %v4765 = vmul.f32 %v4745, %v4764
    %v4766 = vadd.f32 %v4765, 1.0
    %v4767 = vrcp.pop %v4766
    %v4768 = vmul.f32 %v4766, %v4767
    %v4769 = vsub.f32 1.0, %v4768
    %v4770 = vmul.f32 %v4767, %v4769
    %v4771 = vadd.f32 %v4767, %v4770
    %vm4772 = vweird.f32 %v4766
    %vm4773 = vweird.f32 %v4767
    %vm4774 = vmor %vm4772, %vm4773
    %v4775 = vsel %vm4774, %v4767, %v4771
    %v4776 = vand.u32 2147483647, %v4766
    %vm4777 = vcmp.eq.f32.partialorder %v4776, 8.507059e+37
    %v4778 = vand.u32 %v4766, 2147483648
    %v4779 = vor.u32 1.1754944e-38, %v4778
    %v4780 = vsel %vm4777, %v4779, %v4775
    %v4781 = vmul.f32 %v4756, %v4780
    %v4782 = vmin.f32 %v4781, 1.0
    %v4783 = vmax.f32 %v4782, -1.0
    %v4784 = vmul.f32 %v990, %v990
    %v4785 = vmin.f32 16.0, %v4784
    %v4786 = vmul.f32 %v4785, 2.1237322e-06
    %v4787 = vadd.f32 %v4786, 0.00028619796
    %v4788 = vmul.f32 %v4785, %v4787
    %v4789 = vadd.f32 %v4788, 0.0036580483
    %v4790 = vmul.f32 %v4785, %v4789
    %v4791 = vadd.f32 %v4790, 0.05243302
    %v4792 = vmul.f32 %v4785, %v4791
    %v4793 = vadd.f32 %v4792, 0.18741608
    %v4794 = vmul.f32 %v4785, %v4793
    %v4795 = vadd.f32 %v4794, 1.1283791
    %v4796 = vmul.f32 %v990, %v4795
    %v4797 = vmul.f32 %v4785, 3.8918573e-05
    %v4798 = vadd.f32 %v4797, 0.001143296
    %v4799 = vmul.f32 %v4785, %v4798
    %v4800 = vadd.f32 %v4799, 0.014752088
    %v4801 = vmul.f32 %v4785, %v4800
    %v4802 = vadd.f32 %v4801, 0.112945676
    %v4803 = vmul.f32 %v4785, %v4802
    %v4804 = vadd.f32 %v4803, 0.4994258
    %v4805 = vmul.f32 %v4785, %v4804
    %v4806 = vadd.f32 %v4805, 1.0
    %v4807 = vrcp.pop %v4806
    %v4808 = vmul.f32 %v4806, %v4807
    %v4809 = vsub.f32 1.0, %v4808
    %v4810 = vmul.f32 %v4807, %v4809
    %v4811 = vadd.f32 %v4807, %v4810
    %vm4812 = vweird.f32 %v4806
    %vm4813 = vweird.f32 %v4807
    %vm4814 = vmor %vm4812, %vm4813
    %v4815 = vsel %vm4814, %v4807, %v4811
    %v4816 = vand.u32 2147483647, %v4806
    %vm4817 = vcmp.eq.f32.partialorder %v4816, 8.507059e+37
    %v4818 = vand.u32 %v4806, 2147483648
    %v4819 = vor.u32 1.1754944e-38, %v4818
    %v4820 = vsel %vm4817, %v4819, %v4815
    %v4821 = vmul.f32 %v4796, %v4820
    %v4822 = vmin.f32 %v4821, 1.0
    %v4823 = vmax.f32 %v4822, -1.0
    %v4824 = vmul.f32 %v991, %v991
    %v4825 = vmin.f32 16.0, %v4824
    %v4826 = vmul.f32 %v4825, 2.1237322e-06
    %v4827 = vadd.f32 %v4826, 0.00028619796
    %v4828 = vmul.f32 %v4825, %v4827
    %v4829 = vadd.f32 %v4828, 0.0036580483
    %v4830 = vmul.f32 %v4825, %v4829
    %v4831 = vadd.f32 %v4830, 0.05243302
    %v4832 = vmul.f32 %v4825, %v4831
    %v4833 = vadd.f32 %v4832, 0.18741608
    %v4834 = vmul.f32 %v4825, %v4833
    %v4835 = vadd.f32 %v4834, 1.1283791
    %v4836 = vmul.f32 %v991, %v4835
    %v4837 = vmul.f32 %v4825, 3.8918573e-05
    %v4838 = vadd.f32 %v4837, 0.001143296
    %v4839 = vmul.f32 %v4825, %v4838
    %v4840 = vadd.f32 %v4839, 0.014752088
    %v4841 = vmul.f32 %v4825, %v4840
    %v4842 = vadd.f32 %v4841, 0.112945676
    %v4843 = vmul.f32 %v4825, %v4842
    %v4844 = vadd.f32 %v4843, 0.4994258
    %v4845 = vmul.f32 %v4825, %v4844
    %v4846 = vadd.f32 %v4845, 1.0
    %v4847 = vrcp.pop %v4846
    %v4848 = vmul.f32 %v4846, %v4847
    %v4849 = vsub.f32 1.0, %v4848
    %v4850 = vmul.f32 %v4847, %v4849
    %v4851 = vadd.f32 %v4847, %v4850
    %vm4852 = vweird.f32 %v4846
    %vm4853 = vweird.f32 %v4847
    %vm4854 = vmor %vm4852, %vm4853
    %v4855 = vsel %vm4854, %v4847, %v4851
    %v4856 = vand.u32 2147483647, %v4846
    %vm4857 = vcmp.eq.f32.partialorder %v4856, 8.507059e+37
    %v4858 = vand.u32 %v4846, 2147483648
    %v4859 = vor.u32 1.1754944e-38, %v4858
    %v4860 = vsel %vm4857, %v4859, %v4855
    %v4861 = vmul.f32 %v4836, %v4860
    %v4862 = vmin.f32 %v4861, 1.0
    %v4863 = vmax.f32 %v4862, -1.0
    %v4864 = vmul.f32 %v992, %v992
    %v4865 = vmin.f32 16.0, %v4864
    %v4866 = vmul.f32 %v4865, 2.1237322e-06
    %v4867 = vadd.f32 %v4866, 0.00028619796
    %v4868 = vmul.f32 %v4865, %v4867
    %v4869 = vadd.f32 %v4868, 0.0036580483
    %v4870 = vmul.f32 %v4865, %v4869
    %v4871 = vadd.f32 %v4870, 0.05243302
    %v4872 = vmul.f32 %v4865, %v4871
    %v4873 = vadd.f32 %v4872, 0.18741608
    %v4874 = vmul.f32 %v4865, %v4873
    %v4875 = vadd.f32 %v4874, 1.1283791
    %v4876 = vmul.f32 %v992, %v4875
    %v4877 = vmul.f32 %v4865, 3.8918573e-05
    %v4878 = vadd.f32 %v4877, 0.001143296
    %v4879 = vmul.f32 %v4865, %v4878
    %v4880 = vadd.f32 %v4879, 0.014752088
    %v4881 = vmul.f32 %v4865, %v4880
    %v4882 = vadd.f32 %v4881, 0.112945676
    %v4883 = vmul.f32 %v4865, %v4882
    %v4884 = vadd.f32 %v4883, 0.4994258
    %v4885 = vmul.f32 %v4865, %v4884
    %v4886 = vadd.f32 %v4885, 1.0
    %v4887 = vrcp.pop %v4886
    %v4888 = vmul.f32 %v4886, %v4887
    %v4889 = vsub.f32 1.0, %v4888
    %v4890 = vmul.f32 %v4887, %v4889
    %v4891 = vadd.f32 %v4887, %v4890
    %vm4892 = vweird.f32 %v4886
    %vm4893 = vweird.f32 %v4887
    %vm4894 = vmor %vm4892, %vm4893
    %v4895 = vsel %vm4894, %v4887, %v4891
    %v4896 = vand.u32 2147483647, %v4886
    %vm4897 = vcmp.eq.f32.partialorder %v4896, 8.507059e+37
    %v4898 = vand.u32 %v4886, 2147483648
    %v4899 = vor.u32 1.1754944e-38, %v4898
    %v4900 = vsel %vm4897, %v4899, %v4895
    %v4901 = vmul.f32 %v4876, %v4900
    %v4902 = vmin.f32 %v4901, 1.0
    %v4903 = vmax.f32 %v4902, -1.0
    %v4904 = vmul.f32 %v993, %v993
    %v4905 = vmin.f32 16.0, %v4904
    %v4906 = vmul.f32 %v4905, 2.1237322e-06
    %v4907 = vadd.f32 %v4906, 0.00028619796
    %v4908 = vmul.f32 %v4905, %v4907
    %v4909 = vadd.f32 %v4908, 0.0036580483
    %v4910 = vmul.f32 %v4905, %v4909
    %v4911 = vadd.f32 %v4910, 0.05243302
    %v4912 = vmul.f32 %v4905, %v4911
    %v4913 = vadd.f32 %v4912, 0.18741608
    %v4914 = vmul.f32 %v4905, %v4913
    %v4915 = vadd.f32 %v4914, 1.1283791
    %v4916 = vmul.f32 %v993, %v4915
    %v4917 = vmul.f32 %v4905, 3.8918573e-05
    %v4918 = vadd.f32 %v4917, 0.001143296
    %v4919 = vmul.f32 %v4905, %v4918
    %v4920 = vadd.f32 %v4919, 0.014752088
    %v4921 = vmul.f32 %v4905, %v4920
    %v4922 = vadd.f32 %v4921, 0.112945676
    %v4923 = vmul.f32 %v4905, %v4922
    %v4924 = vadd.f32 %v4923, 0.4994258
    %v4925 = vmul.f32 %v4905, %v4924
    %v4926 = vadd.f32 %v4925, 1.0
    %v4927 = vrcp.pop %v4926
    %v4928 = vmul.f32 %v4926, %v4927
    %v4929 = vsub.f32 1.0, %v4928
    %v4930 = vmul.f32 %v4927, %v4929
    %v4931 = vadd.f32 %v4927, %v4930
    %vm4932 = vweird.f32 %v4926
    %vm4933 = vweird.f32 %v4927
    %vm4934 = vmor %vm4932, %vm4933
    %v4935 = vsel %vm4934, %v4927, %v4931
    %v4936 = vand.u32 2147483647, %v4926
    %vm4937 = vcmp.eq.f32.partialorder %v4936, 8.507059e+37
    %v4938 = vand.u32 %v4926, 2147483648
    %v4939 = vor.u32 1.1754944e-38, %v4938
    %v4940 = vsel %vm4937, %v4939, %v4935
    %v4941 = vmul.f32 %v4916, %v4940
    %v4942 = vmin.f32 %v4941, 1.0
    %v4943 = vmax.f32 %v4942, -1.0
    %v4944 = vmul.f32 %v994, %v994
    %v4945 = vmin.f32 16.0, %v4944
    %v4946 = vmul.f32 %v4945, 2.1237322e-06
    %v4947 = vadd.f32 %v4946, 0.00028619796
    %v4948 = vmul.f32 %v4945, %v4947
    %v4949 = vadd.f32 %v4948, 0.0036580483
    %v4950 = vmul.f32 %v4945, %v4949
    %v4951 = vadd.f32 %v4950, 0.05243302
    %v4952 = vmul.f32 %v4945, %v4951
    %v4953 = vadd.f32 %v4952, 0.18741608
    %v4954 = vmul.f32 %v4945, %v4953
    %v4955 = vadd.f32 %v4954, 1.1283791
    %v4956 = vmul.f32 %v994, %v4955
    %v4957 = vmul.f32 %v4945, 3.8918573e-05
    %v4958 = vadd.f32 %v4957, 0.001143296
    %v4959 = vmul.f32 %v4945, %v4958
    %v4960 = vadd.f32 %v4959, 0.014752088
    %v4961 = vmul.f32 %v4945, %v4960
    %v4962 = vadd.f32 %v4961, 0.112945676
    %v4963 = vmul.f32 %v4945, %v4962
    %v4964 = vadd.f32 %v4963, 0.4994258
    %v4965 = vmul.f32 %v4945, %v4964
    %v4966 = vadd.f32 %v4965, 1.0
    %v4967 = vrcp.pop %v4966
    %v4968 = vmul.f32 %v4966, %v4967
    %v4969 = vsub.f32 1.0, %v4968
    %v4970 = vmul.f32 %v4967, %v4969
    %v4971 = vadd.f32 %v4967, %v4970
    %vm4972 = vweird.f32 %v4966
    %vm4973 = vweird.f32 %v4967
    %vm4974 = vmor %vm4972, %vm4973
    %v4975 = vsel %vm4974, %v4967, %v4971
    %v4976 = vand.u32 2147483647, %v4966
    %vm4977 = vcmp.eq.f32.partialorder %v4976, 8.507059e+37
    %v4978 = vand.u32 %v4966, 2147483648
    %v4979 = vor.u32 1.1754944e-38, %v4978
    %v4980 = vsel %vm4977, %v4979, %v4975
    %v4981 = vmul.f32 %v4956, %v4980
    %v4982 = vmin.f32 %v4981, 1.0
    %v4983 = vmax.f32 %v4982, -1.0
    %v4984 = vmul.f32 %v995, %v995
    %v4985 = vmin.f32 16.0, %v4984
    %v4986 = vmul.f32 %v4985, 2.1237322e-06
    %v4987 = vadd.f32 %v4986, 0.00028619796
    %v4988 = vmul.f32 %v4985, %v4987
    %v4989 = vadd.f32 %v4988, 0.0036580483
    %v4990 = vmul.f32 %v4985, %v4989
    %v4991 = vadd.f32 %v4990, 0.05243302
    %v4992 = vmul.f32 %v4985, %v4991
    %v4993 = vadd.f32 %v4992, 0.18741608
    %v4994 = vmul.f32 %v4985, %v4993
    %v4995 = vadd.f32 %v4994, 1.1283791
    %v4996 = vmul.f32 %v995, %v4995
    %v4997 = vmul.f32 %v4985, 3.8918573e-05
    %v4998 = vadd.f32 %v4997, 0.001143296
    %v4999 = vmul.f32 %v4985, %v4998
    %v5000 = vadd.f32 %v4999, 0.014752088
    %v5001 = vmul.f32 %v4985, %v5000
    %v5002 = vadd.f32 %v5001, 0.112945676
    %v5003 = vmul.f32 %v4985, %v5002
    %v5004 = vadd.f32 %v5003, 0.4994258
    %v5005 = vmul.f32 %v4985, %v5004
    %v5006 = vadd.f32 %v5005, 1.0
    %v5007 = vrcp.pop %v5006
    %v5008 = vmul.f32 %v5006, %v5007
    %v5009 = vsub.f32 1.0, %v5008
    %v5010 = vmul.f32 %v5007, %v5009
    %v5011 = vadd.f32 %v5007, %v5010
    %vm5012 = vweird.f32 %v5006
    %vm5013 = vweird.f32 %v5007
    %vm5014 = vmor %vm5012, %vm5013
    %v5015 = vsel %vm5014, %v5007, %v5011
    %v5016 = vand.u32 2147483647, %v5006
    %vm5017 = vcmp.eq.f32.partialorder %v5016, 8.507059e+37
    %v5018 = vand.u32 %v5006, 2147483648
    %v5019 = vor.u32 1.1754944e-38, %v5018
    %v5020 = vsel %vm5017, %v5019, %v5015
    %v5021 = vmul.f32 %v4996, %v5020
    %v5022 = vmin.f32 %v5021, 1.0
    %v5023 = vmax.f32 %v5022, -1.0
    %v5024 = vmul.f32 %v996, %v996
    %v5025 = vmin.f32 16.0, %v5024
    %v5026 = vmul.f32 %v5025, 2.1237322e-06
    %v5027 = vadd.f32 %v5026, 0.00028619796
    %v5028 = vmul.f32 %v5025, %v5027
    %v5029 = vadd.f32 %v5028, 0.0036580483
    %v5030 = vmul.f32 %v5025, %v5029
    %v5031 = vadd.f32 %v5030, 0.05243302
    %v5032 = vmul.f32 %v5025, %v5031
    %v5033 = vadd.f32 %v5032, 0.18741608
    %v5034 = vmul.f32 %v5025, %v5033
    %v5035 = vadd.f32 %v5034, 1.1283791
    %v5036 = vmul.f32 %v996, %v5035
    %v5037 = vmul.f32 %v5025, 3.8918573e-05
    %v5038 = vadd.f32 %v5037, 0.001143296
    %v5039 = vmul.f32 %v5025, %v5038
    %v5040 = vadd.f32 %v5039, 0.014752088
    %v5041 = vmul.f32 %v5025, %v5040
    %v5042 = vadd.f32 %v5041, 0.112945676
    %v5043 = vmul.f32 %v5025, %v5042
    %v5044 = vadd.f32 %v5043, 0.4994258
    %v5045 = vmul.f32 %v5025, %v5044
    %v5046 = vadd.f32 %v5045, 1.0
    %v5047 = vrcp.pop %v5046
    %v5048 = vmul.f32 %v5046, %v5047
    %v5049 = vsub.f32 1.0, %v5048
    %v5050 = vmul.f32 %v5047, %v5049
    %v5051 = vadd.f32 %v5047, %v5050
    %vm5052 = vweird.f32 %v5046
    %vm5053 = vweird.f32 %v5047
    %vm5054 = vmor %vm5052, %vm5053
    %v5055 = vsel %vm5054, %v5047, %v5051
    %v5056 = vand.u32 2147483647, %v5046
    %vm5057 = vcmp.eq.f32.partialorder %v5056, 8.507059e+37
    %v5058 = vand.u32 %v5046, 2147483648
    %v5059 = vor.u32 1.1754944e-38, %v5058
    %v5060 = vsel %vm5057, %v5059, %v5055
    %v5061 = vmul.f32 %v5036, %v5060
    %v5062 = vmin.f32 %v5061, 1.0
    %v5063 = vmax.f32 %v5062, -1.0
    %v5064 = vmul.f32 %v997, %v997
    %v5065 = vmin.f32 16.0, %v5064
    %v5066 = vmul.f32 %v5065, 2.1237322e-06
    %v5067 = vadd.f32 %v5066, 0.00028619796
    %v5068 = vmul.f32 %v5065, %v5067
    %v5069 = vadd.f32 %v5068, 0.0036580483
    %v5070 = vmul.f32 %v5065, %v5069
    %v5071 = vadd.f32 %v5070, 0.05243302
    %v5072 = vmul.f32 %v5065, %v5071
    %v5073 = vadd.f32 %v5072, 0.18741608
    %v5074 = vmul.f32 %v5065, %v5073
    %v5075 = vadd.f32 %v5074, 1.1283791
    %v5076 = vmul.f32 %v997, %v5075
    %v5077 = vmul.f32 %v5065, 3.8918573e-05
    %v5078 = vadd.f32 %v5077, 0.001143296
    %v5079 = vmul.f32 %v5065, %v5078
    %v5080 = vadd.f32 %v5079, 0.014752088
    %v5081 = vmul.f32 %v5065, %v5080
    %v5082 = vadd.f32 %v5081, 0.112945676
    %v5083 = vmul.f32 %v5065, %v5082
    %v5084 = vadd.f32 %v5083, 0.4994258
    %v5085 = vmul.f32 %v5065, %v5084
    %v5086 = vadd.f32 %v5085, 1.0
    %v5087 = vrcp.pop %v5086
    %v5088 = vmul.f32 %v5086, %v5087
    %v5089 = vsub.f32 1.0, %v5088
    %v5090 = vmul.f32 %v5087, %v5089
    %v5091 = vadd.f32 %v5087, %v5090
    %vm5092 = vweird.f32 %v5086
    %vm5093 = vweird.f32 %v5087
    %vm5094 = vmor %vm5092, %vm5093
    %v5095 = vsel %vm5094, %v5087, %v5091
    %v5096 = vand.u32 2147483647, %v5086
    %vm5097 = vcmp.eq.f32.partialorder %v5096, 8.507059e+37
    %v5098 = vand.u32 %v5086, 2147483648
    %v5099 = vor.u32 1.1754944e-38, %v5098
    %v5100 = vsel %vm5097, %v5099, %v5095
    %v5101 = vmul.f32 %v5076, %v5100
    %v5102 = vmin.f32 %v5101, 1.0
    %v5103 = vmax.f32 %v5102, -1.0
    %v5104 = vmul.f32 %v998, %v998
    %v5105 = vmin.f32 16.0, %v5104
    %v5106 = vmul.f32 %v5105, 2.1237322e-06
    %v5107 = vadd.f32 %v5106, 0.00028619796
    %v5108 = vmul.f32 %v5105, %v5107
    %v5109 = vadd.f32 %v5108, 0.0036580483
    %v5110 = vmul.f32 %v5105, %v5109
    %v5111 = vadd.f32 %v5110, 0.05243302
    %v5112 = vmul.f32 %v5105, %v5111
    %v5113 = vadd.f32 %v5112, 0.18741608
    %v5114 = vmul.f32 %v5105, %v5113
    %v5115 = vadd.f32 %v5114, 1.1283791
    %v5116 = vmul.f32 %v998, %v5115
    %v5117 = vmul.f32 %v5105, 3.8918573e-05
    %v5118 = vadd.f32 %v5117, 0.001143296
    %v5119 = vmul.f32 %v5105, %v5118
    %v5120 = vadd.f32 %v5119, 0.014752088
    %v5121 = vmul.f32 %v5105, %v5120
    %v5122 = vadd.f32 %v5121, 0.112945676
    %v5123 = vmul.f32 %v5105, %v5122
    %v5124 = vadd.f32 %v5123, 0.4994258
    %v5125 = vmul.f32 %v5105, %v5124
    %v5126 = vadd.f32 %v5125, 1.0
    %v5127 = vrcp.pop %v5126
    %v5128 = vmul.f32 %v5126, %v5127
    %v5129 = vsub.f32 1.0, %v5128
    %v5130 = vmul.f32 %v5127, %v5129
    %v5131 = vadd.f32 %v5127, %v5130
    %vm5132 = vweird.f32 %v5126
    %vm5133 = vweird.f32 %v5127
    %vm5134 = vmor %vm5132, %vm5133
    %v5135 = vsel %vm5134, %v5127, %v5131
    %v5136 = vand.u32 2147483647, %v5126
    %vm5137 = vcmp.eq.f32.partialorder %v5136, 8.507059e+37
    %v5138 = vand.u32 %v5126, 2147483648
    %v5139 = vor.u32 1.1754944e-38, %v5138
    %v5140 = vsel %vm5137, %v5139, %v5135
    %v5141 = vmul.f32 %v5116, %v5140
    %v5142 = vmin.f32 %v5141, 1.0
    %v5143 = vmax.f32 %v5142, -1.0
    %v5144 = vmul.f32 %v999, %v999
    %v5145 = vmin.f32 16.0, %v5144
    %v5146 = vmul.f32 %v5145, 2.1237322e-06
    %v5147 = vadd.f32 %v5146, 0.00028619796
    %v5148 = vmul.f32 %v5145, %v5147
    %v5149 = vadd.f32 %v5148, 0.0036580483
    %v5150 = vmul.f32 %v5145, %v5149
    %v5151 = vadd.f32 %v5150, 0.05243302
    %v5152 = vmul.f32 %v5145, %v5151
    %v5153 = vadd.f32 %v5152, 0.18741608
    %v5154 = vmul.f32 %v5145, %v5153
    %v5155 = vadd.f32 %v5154, 1.1283791
    %v5156 = vmul.f32 %v999, %v5155
    %v5157 = vmul.f32 %v5145, 3.8918573e-05
    %v5158 = vadd.f32 %v5157, 0.001143296
    %v5159 = vmul.f32 %v5145, %v5158
    %v5160 = vadd.f32 %v5159, 0.014752088
    %v5161 = vmul.f32 %v5145, %v5160
    %v5162 = vadd.f32 %v5161, 0.112945676
    %v5163 = vmul.f32 %v5145, %v5162
    %v5164 = vadd.f32 %v5163, 0.4994258
    %v5165 = vmul.f32 %v5145, %v5164
    %v5166 = vadd.f32 %v5165, 1.0
    %v5167 = vrcp.pop %v5166
    %v5168 = vmul.f32 %v5166, %v5167
    %v5169 = vsub.f32 1.0, %v5168
    %v5170 = vmul.f32 %v5167, %v5169
    %v5171 = vadd.f32 %v5167, %v5170
    %vm5172 = vweird.f32 %v5166
    %vm5173 = vweird.f32 %v5167
    %vm5174 = vmor %vm5172, %vm5173
    %v5175 = vsel %vm5174, %v5167, %v5171
    %v5176 = vand.u32 2147483647, %v5166
    %vm5177 = vcmp.eq.f32.partialorder %v5176, 8.507059e+37
    %v5178 = vand.u32 %v5166, 2147483648
    %v5179 = vor.u32 1.1754944e-38, %v5178
    %v5180 = vsel %vm5177, %v5179, %v5175
    %v5181 = vmul.f32 %v5156, %v5180
    %v5182 = vmin.f32 %v5181, 1.0
    %v5183 = vmax.f32 %v5182, -1.0
    %v5184 = vmul.f32 %v1000, %v1000
    %v5185 = vmin.f32 16.0, %v5184
    %v5186 = vmul.f32 %v5185, 2.1237322e-06
    %v5187 = vadd.f32 %v5186, 0.00028619796
    %v5188 = vmul.f32 %v5185, %v5187
    %v5189 = vadd.f32 %v5188, 0.0036580483
    %v5190 = vmul.f32 %v5185, %v5189
    %v5191 = vadd.f32 %v5190, 0.05243302
    %v5192 = vmul.f32 %v5185, %v5191
    %v5193 = vadd.f32 %v5192, 0.18741608
    %v5194 = vmul.f32 %v5185, %v5193
    %v5195 = vadd.f32 %v5194, 1.1283791
    %v5196 = vmul.f32 %v1000, %v5195
    %v5197 = vmul.f32 %v5185, 3.8918573e-05
    %v5198 = vadd.f32 %v5197, 0.001143296
    %v5199 = vmul.f32 %v5185, %v5198
    %v5200 = vadd.f32 %v5199, 0.014752088
    %v5201 = vmul.f32 %v5185, %v5200
    %v5202 = vadd.f32 %v5201, 0.112945676
    %v5203 = vmul.f32 %v5185, %v5202
    %v5204 = vadd.f32 %v5203, 0.4994258
    %v5205 = vmul.f32 %v5185, %v5204
    %v5206 = vadd.f32 %v5205, 1.0
    %v5207 = vrcp.pop %v5206
    %v5208 = vmul.f32 %v5206, %v5207
    %v5209 = vsub.f32 1.0, %v5208
    %v5210 = vmul.f32 %v5207, %v5209
    %v5211 = vadd.f32 %v5207, %v5210
    %vm5212 = vweird.f32 %v5206
    %vm5213 = vweird.f32 %v5207
    %vm5214 = vmor %vm5212, %vm5213
    %v5215 = vsel %vm5214, %v5207, %v5211
    %v5216 = vand.u32 2147483647, %v5206
    %vm5217 = vcmp.eq.f32.partialorder %v5216, 8.507059e+37
    %v5218 = vand.u32 %v5206, 2147483648
    %v5219 = vor.u32 1.1754944e-38, %v5218
    %v5220 = vsel %vm5217, %v5219, %v5215
    %v5221 = vmul.f32 %v5196, %v5220
    %v5222 = vmin.f32 %v5221, 1.0
    %v5223 = vmax.f32 %v5222, -1.0
    %v5224 = vmul.f32 %v1001, %v1001
    %v5225 = vmin.f32 16.0, %v5224
    %v5226 = vmul.f32 %v5225, 2.1237322e-06
    %v5227 = vadd.f32 %v5226, 0.00028619796
    %v5228 = vmul.f32 %v5225, %v5227
    %v5229 = vadd.f32 %v5228, 0.0036580483
    %v5230 = vmul.f32 %v5225, %v5229
    %v5231 = vadd.f32 %v5230, 0.05243302
    %v5232 = vmul.f32 %v5225, %v5231
    %v5233 = vadd.f32 %v5232, 0.18741608
    %v5234 = vmul.f32 %v5225, %v5233
    %v5235 = vadd.f32 %v5234, 1.1283791
    %v5236 = vmul.f32 %v1001, %v5235
    %v5237 = vmul.f32 %v5225, 3.8918573e-05
    %v5238 = vadd.f32 %v5237, 0.001143296
    %v5239 = vmul.f32 %v5225, %v5238
    %v5240 = vadd.f32 %v5239, 0.014752088
    %v5241 = vmul.f32 %v5225, %v5240
    %v5242 = vadd.f32 %v5241, 0.112945676
    %v5243 = vmul.f32 %v5225, %v5242
    %v5244 = vadd.f32 %v5243, 0.4994258
    %v5245 = vmul.f32 %v5225, %v5244
    %v5246 = vadd.f32 %v5245, 1.0
    %v5247 = vrcp.pop %v5246
    %v5248 = vmul.f32 %v5246, %v5247
    %v5249 = vsub.f32 1.0, %v5248
    %v5250 = vmul.f32 %v5247, %v5249
    %v5251 = vadd.f32 %v5247, %v5250
    %vm5252 = vweird.f32 %v5246
    %vm5253 = vweird.f32 %v5247
    %vm5254 = vmor %vm5252, %vm5253
    %v5255 = vsel %vm5254, %v5247, %v5251
    %v5256 = vand.u32 2147483647, %v5246
    %vm5257 = vcmp.eq.f32.partialorder %v5256, 8.507059e+37
    %v5258 = vand.u32 %v5246, 2147483648
    %v5259 = vor.u32 1.1754944e-38, %v5258
    %v5260 = vsel %vm5257, %v5259, %v5255
    %v5261 = vmul.f32 %v5236, %v5260
    %v5262 = vmin.f32 %v5261, 1.0
    %v5263 = vmax.f32 %v5262, -1.0
    %v5264 = vmul.f32 %v1002, %v1002
    %v5265 = vmin.f32 16.0, %v5264
    %v5266 = vmul.f32 %v5265, 2.1237322e-06
    %v5267 = vadd.f32 %v5266, 0.00028619796
    %v5268 = vmul.f32 %v5265, %v5267
    %v5269 = vadd.f32 %v5268, 0.0036580483
    %v5270 = vmul.f32 %v5265, %v5269
    %v5271 = vadd.f32 %v5270, 0.05243302
    %v5272 = vmul.f32 %v5265, %v5271
    %v5273 = vadd.f32 %v5272, 0.18741608
    %v5274 = vmul.f32 %v5265, %v5273
    %v5275 = vadd.f32 %v5274, 1.1283791
    %v5276 = vmul.f32 %v1002, %v5275
    %v5277 = vmul.f32 %v5265, 3.8918573e-05
    %v5278 = vadd.f32 %v5277, 0.001143296
    %v5279 = vmul.f32 %v5265, %v5278
    %v5280 = vadd.f32 %v5279, 0.014752088
    %v5281 = vmul.f32 %v5265, %v5280
    %v5282 = vadd.f32 %v5281, 0.112945676
    %v5283 = vmul.f32 %v5265, %v5282
    %v5284 = vadd.f32 %v5283, 0.4994258
    %v5285 = vmul.f32 %v5265, %v5284
    %v5286 = vadd.f32 %v5285, 1.0
    %v5287 = vrcp.pop %v5286
    %v5288 = vmul.f32 %v5286, %v5287
    %v5289 = vsub.f32 1.0, %v5288
    %v5290 = vmul.f32 %v5287, %v5289
    %v5291 = vadd.f32 %v5287, %v5290
    %vm5292 = vweird.f32 %v5286
    %vm5293 = vweird.f32 %v5287
    %vm5294 = vmor %vm5292, %vm5293
    %v5295 = vsel %vm5294, %v5287, %v5291
    %v5296 = vand.u32 2147483647, %v5286
    %vm5297 = vcmp.eq.f32.partialorder %v5296, 8.507059e+37
    %v5298 = vand.u32 %v5286, 2147483648
    %v5299 = vor.u32 1.1754944e-38, %v5298
    %v5300 = vsel %vm5297, %v5299, %v5295
    %v5301 = vmul.f32 %v5276, %v5300
    %v5302 = vmin.f32 %v5301, 1.0
    %v5303 = vmax.f32 %v5302, -1.0
    %v5304 = vmul.f32 %v1003, %v1003
    %v5305 = vmin.f32 16.0, %v5304
    %v5306 = vmul.f32 %v5305, 2.1237322e-06
    %v5307 = vadd.f32 %v5306, 0.00028619796
    %v5308 = vmul.f32 %v5305, %v5307
    %v5309 = vadd.f32 %v5308, 0.0036580483
    %v5310 = vmul.f32 %v5305, %v5309
    %v5311 = vadd.f32 %v5310, 0.05243302
    %v5312 = vmul.f32 %v5305, %v5311
    %v5313 = vadd.f32 %v5312, 0.18741608
    %v5314 = vmul.f32 %v5305, %v5313
    %v5315 = vadd.f32 %v5314, 1.1283791
    %v5316 = vmul.f32 %v1003, %v5315
    %v5317 = vmul.f32 %v5305, 3.8918573e-05
    %v5318 = vadd.f32 %v5317, 0.001143296
    %v5319 = vmul.f32 %v5305, %v5318
    %v5320 = vadd.f32 %v5319, 0.014752088
    %v5321 = vmul.f32 %v5305, %v5320
    %v5322 = vadd.f32 %v5321, 0.112945676
    %v5323 = vmul.f32 %v5305, %v5322
    %v5324 = vadd.f32 %v5323, 0.4994258
    %v5325 = vmul.f32 %v5305, %v5324
    %v5326 = vadd.f32 %v5325, 1.0
    %v5327 = vrcp.pop %v5326
    %v5328 = vmul.f32 %v5326, %v5327
    %v5329 = vsub.f32 1.0, %v5328
    %v5330 = vmul.f32 %v5327, %v5329
    %v5331 = vadd.f32 %v5327, %v5330
    %vm5332 = vweird.f32 %v5326
    %vm5333 = vweird.f32 %v5327
    %vm5334 = vmor %vm5332, %vm5333
    %v5335 = vsel %vm5334, %v5327, %v5331
    %v5336 = vand.u32 2147483647, %v5326
    %vm5337 = vcmp.eq.f32.partialorder %v5336, 8.507059e+37
    %v5338 = vand.u32 %v5326, 2147483648
    %v5339 = vor.u32 1.1754944e-38, %v5338
    %v5340 = vsel %vm5337, %v5339, %v5335
    %v5341 = vmul.f32 %v5316, %v5340
    %v5342 = vmin.f32 %v5341, 1.0
    %v5343 = vmax.f32 %v5342, -1.0
    %v5344 = vmul.f32 %v1004, %v1004
    %v5345 = vmin.f32 16.0, %v5344
    %v5346 = vmul.f32 %v5345, 2.1237322e-06
    %v5347 = vadd.f32 %v5346, 0.00028619796
    %v5348 = vmul.f32 %v5345, %v5347
    %v5349 = vadd.f32 %v5348, 0.0036580483
    %v5350 = vmul.f32 %v5345, %v5349
    %v5351 = vadd.f32 %v5350, 0.05243302
    %v5352 = vmul.f32 %v5345, %v5351
    %v5353 = vadd.f32 %v5352, 0.18741608
    %v5354 = vmul.f32 %v5345, %v5353
    %v5355 = vadd.f32 %v5354, 1.1283791
    %v5356 = vmul.f32 %v1004, %v5355
    %v5357 = vmul.f32 %v5345, 3.8918573e-05
    %v5358 = vadd.f32 %v5357, 0.001143296
    %v5359 = vmul.f32 %v5345, %v5358
    %v5360 = vadd.f32 %v5359, 0.014752088
    %v5361 = vmul.f32 %v5345, %v5360
    %v5362 = vadd.f32 %v5361, 0.112945676
    %v5363 = vmul.f32 %v5345, %v5362
    %v5364 = vadd.f32 %v5363, 0.4994258
    %v5365 = vmul.f32 %v5345, %v5364
    %v5366 = vadd.f32 %v5365, 1.0
    %v5367 = vrcp.pop %v5366
    %v5368 = vmul.f32 %v5366, %v5367
    %v5369 = vsub.f32 1.0, %v5368
    %v5370 = vmul.f32 %v5367, %v5369
    %v5371 = vadd.f32 %v5367, %v5370
    %vm5372 = vweird.f32 %v5366
    %vm5373 = vweird.f32 %v5367
    %vm5374 = vmor %vm5372, %vm5373
    %v5375 = vsel %vm5374, %v5367, %v5371
    %v5376 = vand.u32 2147483647, %v5366
    %vm5377 = vcmp.eq.f32.partialorder %v5376, 8.507059e+37
    %v5378 = vand.u32 %v5366, 2147483648
    %v5379 = vor.u32 1.1754944e-38, %v5378
    %v5380 = vsel %vm5377, %v5379, %v5375
    %v5381 = vmul.f32 %v5356, %v5380
    %v5382 = vmin.f32 %v5381, 1.0
    %v5383 = vmax.f32 %v5382, -1.0
    %v5384 = vmul.f32 %v1005, %v1005
    %v5385 = vmin.f32 16.0, %v5384
    %v5386 = vmul.f32 %v5385, 2.1237322e-06
    %v5387 = vadd.f32 %v5386, 0.00028619796
    %v5388 = vmul.f32 %v5385, %v5387
    %v5389 = vadd.f32 %v5388, 0.0036580483
    %v5390 = vmul.f32 %v5385, %v5389
    %v5391 = vadd.f32 %v5390, 0.05243302
    %v5392 = vmul.f32 %v5385, %v5391
    %v5393 = vadd.f32 %v5392, 0.18741608
    %v5394 = vmul.f32 %v5385, %v5393
    %v5395 = vadd.f32 %v5394, 1.1283791
    %v5396 = vmul.f32 %v1005, %v5395
    %v5397 = vmul.f32 %v5385, 3.8918573e-05
    %v5398 = vadd.f32 %v5397, 0.001143296
    %v5399 = vmul.f32 %v5385, %v5398
    %v5400 = vadd.f32 %v5399, 0.014752088
    %v5401 = vmul.f32 %v5385, %v5400
    %v5402 = vadd.f32 %v5401, 0.112945676
    %v5403 = vmul.f32 %v5385, %v5402
    %v5404 = vadd.f32 %v5403, 0.4994258
    %v5405 = vmul.f32 %v5385, %v5404
    %v5406 = vadd.f32 %v5405, 1.0
    %v5407 = vrcp.pop %v5406
    %v5408 = vmul.f32 %v5406, %v5407
    %v5409 = vsub.f32 1.0, %v5408
    %v5410 = vmul.f32 %v5407, %v5409
    %v5411 = vadd.f32 %v5407, %v5410
    %vm5412 = vweird.f32 %v5406
    %vm5413 = vweird.f32 %v5407
    %vm5414 = vmor %vm5412, %vm5413
    %v5415 = vsel %vm5414, %v5407, %v5411
    %v5416 = vand.u32 2147483647, %v5406
    %vm5417 = vcmp.eq.f32.partialorder %v5416, 8.507059e+37
    %v5418 = vand.u32 %v5406, 2147483648
    %v5419 = vor.u32 1.1754944e-38, %v5418
    %v5420 = vsel %vm5417, %v5419, %v5415
    %v5421 = vmul.f32 %v5396, %v5420
    %v5422 = vmin.f32 %v5421, 1.0
    %v5423 = vmax.f32 %v5422, -1.0
    %v5424 = vmul.f32 %v1006, %v1006
    %v5425 = vmin.f32 16.0, %v5424
    %v5426 = vmul.f32 %v5425, 2.1237322e-06
    %v5427 = vadd.f32 %v5426, 0.00028619796
    %v5428 = vmul.f32 %v5425, %v5427
    %v5429 = vadd.f32 %v5428, 0.0036580483
    %v5430 = vmul.f32 %v5425, %v5429
    %v5431 = vadd.f32 %v5430, 0.05243302
    %v5432 = vmul.f32 %v5425, %v5431
    %v5433 = vadd.f32 %v5432, 0.18741608
    %v5434 = vmul.f32 %v5425, %v5433
    %v5435 = vadd.f32 %v5434, 1.1283791
    %v5436 = vmul.f32 %v1006, %v5435
    %v5437 = vmul.f32 %v5425, 3.8918573e-05
    %v5438 = vadd.f32 %v5437, 0.001143296
    %v5439 = vmul.f32 %v5425, %v5438
    %v5440 = vadd.f32 %v5439, 0.014752088
    %v5441 = vmul.f32 %v5425, %v5440
    %v5442 = vadd.f32 %v5441, 0.112945676
    %v5443 = vmul.f32 %v5425, %v5442
    %v5444 = vadd.f32 %v5443, 0.4994258
    %v5445 = vmul.f32 %v5425, %v5444
    %v5446 = vadd.f32 %v5445, 1.0
    %v5447 = vrcp.pop %v5446
    %v5448 = vmul.f32 %v5446, %v5447
    %v5449 = vsub.f32 1.0, %v5448
    %v5450 = vmul.f32 %v5447, %v5449
    %v5451 = vadd.f32 %v5447, %v5450
    %vm5452 = vweird.f32 %v5446
    %vm5453 = vweird.f32 %v5447
    %vm5454 = vmor %vm5452, %vm5453
    %v5455 = vsel %vm5454, %v5447, %v5451
    %v5456 = vand.u32 2147483647, %v5446
    %vm5457 = vcmp.eq.f32.partialorder %v5456, 8.507059e+37
    %v5458 = vand.u32 %v5446, 2147483648
    %v5459 = vor.u32 1.1754944e-38, %v5458
    %v5460 = vsel %vm5457, %v5459, %v5455
    %v5461 = vmul.f32 %v5436, %v5460
    %v5462 = vmin.f32 %v5461, 1.0
    %v5463 = vmax.f32 %v5462, -1.0
    %v5464 = vmul.f32 %v1007, %v1007
    %v5465 = vmin.f32 16.0, %v5464
    %v5466 = vmul.f32 %v5465, 2.1237322e-06
    %v5467 = vadd.f32 %v5466, 0.00028619796
    %v5468 = vmul.f32 %v5465, %v5467
    %v5469 = vadd.f32 %v5468, 0.0036580483
    %v5470 = vmul.f32 %v5465, %v5469
    %v5471 = vadd.f32 %v5470, 0.05243302
    %v5472 = vmul.f32 %v5465, %v5471
    %v5473 = vadd.f32 %v5472, 0.18741608
    %v5474 = vmul.f32 %v5465, %v5473
    %v5475 = vadd.f32 %v5474, 1.1283791
    %v5476 = vmul.f32 %v1007, %v5475
    %v5477 = vmul.f32 %v5465, 3.8918573e-05
    %v5478 = vadd.f32 %v5477, 0.001143296
    %v5479 = vmul.f32 %v5465, %v5478
    %v5480 = vadd.f32 %v5479, 0.014752088
    %v5481 = vmul.f32 %v5465, %v5480
    %v5482 = vadd.f32 %v5481, 0.112945676
    %v5483 = vmul.f32 %v5465, %v5482
    %v5484 = vadd.f32 %v5483, 0.4994258
    %v5485 = vmul.f32 %v5465, %v5484
    %v5486 = vadd.f32 %v5485, 1.0
    %v5487 = vrcp.pop %v5486
    %v5488 = vmul.f32 %v5486, %v5487
    %v5489 = vsub.f32 1.0, %v5488
    %v5490 = vmul.f32 %v5487, %v5489
    %v5491 = vadd.f32 %v5487, %v5490
    %vm5492 = vweird.f32 %v5486
    %vm5493 = vweird.f32 %v5487
    %vm5494 = vmor %vm5492, %vm5493
    %v5495 = vsel %vm5494, %v5487, %v5491
    %v5496 = vand.u32 2147483647, %v5486
    %vm5497 = vcmp.eq.f32.partialorder %v5496, 8.507059e+37
    %v5498 = vand.u32 %v5486, 2147483648
    %v5499 = vor.u32 1.1754944e-38, %v5498
    %v5500 = vsel %vm5497, %v5499, %v5495
    %v5501 = vmul.f32 %v5476, %v5500
    %v5502 = vmin.f32 %v5501, 1.0
    %v5503 = vmax.f32 %v5502, -1.0
    %v5504 = vmul.f32 %v1008, %v1008
    %v5505 = vmin.f32 16.0, %v5504
    %v5506 = vmul.f32 %v5505, 2.1237322e-06
    %v5507 = vadd.f32 %v5506, 0.00028619796
    %v5508 = vmul.f32 %v5505, %v5507
    %v5509 = vadd.f32 %v5508, 0.0036580483
    %v5510 = vmul.f32 %v5505, %v5509
    %v5511 = vadd.f32 %v5510, 0.05243302
    %v5512 = vmul.f32 %v5505, %v5511
    %v5513 = vadd.f32 %v5512, 0.18741608
    %v5514 = vmul.f32 %v5505, %v5513
    %v5515 = vadd.f32 %v5514, 1.1283791
    %v5516 = vmul.f32 %v1008, %v5515
    %v5517 = vmul.f32 %v5505, 3.8918573e-05
    %v5518 = vadd.f32 %v5517, 0.001143296
    %v5519 = vmul.f32 %v5505, %v5518
    %v5520 = vadd.f32 %v5519, 0.014752088
    %v5521 = vmul.f32 %v5505, %v5520
    %v5522 = vadd.f32 %v5521, 0.112945676
    %v5523 = vmul.f32 %v5505, %v5522
    %v5524 = vadd.f32 %v5523, 0.4994258
    %v5525 = vmul.f32 %v5505, %v5524
    %v5526 = vadd.f32 %v5525, 1.0
    %v5527 = vrcp.pop %v5526
    %v5528 = vmul.f32 %v5526, %v5527
    %v5529 = vsub.f32 1.0, %v5528
    %v5530 = vmul.f32 %v5527, %v5529
    %v5531 = vadd.f32 %v5527, %v5530
    %vm5532 = vweird.f32 %v5526
    %vm5533 = vweird.f32 %v5527
    %vm5534 = vmor %vm5532, %vm5533
    %v5535 = vsel %vm5534, %v5527, %v5531
    %v5536 = vand.u32 2147483647, %v5526
    %vm5537 = vcmp.eq.f32.partialorder %v5536, 8.507059e+37
    %v5538 = vand.u32 %v5526, 2147483648
    %v5539 = vor.u32 1.1754944e-38, %v5538
    %v5540 = vsel %vm5537, %v5539, %v5535
    %v5541 = vmul.f32 %v5516, %v5540
    %v5542 = vmin.f32 %v5541, 1.0
    %v5543 = vmax.f32 %v5542, -1.0
    %v5544 = vmul.f32 %v1009, %v1009
    %v5545 = vmin.f32 16.0, %v5544
    %v5546 = vmul.f32 %v5545, 2.1237322e-06
    %v5547 = vadd.f32 %v5546, 0.00028619796
    %v5548 = vmul.f32 %v5545, %v5547
    %v5549 = vadd.f32 %v5548, 0.0036580483
    %v5550 = vmul.f32 %v5545, %v5549
    %v5551 = vadd.f32 %v5550, 0.05243302
    %v5552 = vmul.f32 %v5545, %v5551
    %v5553 = vadd.f32 %v5552, 0.18741608
    %v5554 = vmul.f32 %v5545, %v5553
    %v5555 = vadd.f32 %v5554, 1.1283791
    %v5556 = vmul.f32 %v1009, %v5555
    %v5557 = vmul.f32 %v5545, 3.8918573e-05
    %v5558 = vadd.f32 %v5557, 0.001143296
    %v5559 = vmul.f32 %v5545, %v5558
    %v5560 = vadd.f32 %v5559, 0.014752088
    %v5561 = vmul.f32 %v5545, %v5560
    %v5562 = vadd.f32 %v5561, 0.112945676
    %v5563 = vmul.f32 %v5545, %v5562
    %v5564 = vadd.f32 %v5563, 0.4994258
    %v5565 = vmul.f32 %v5545, %v5564
    %v5566 = vadd.f32 %v5565, 1.0
    %v5567 = vrcp.pop %v5566
    %v5568 = vmul.f32 %v5566, %v5567
    %v5569 = vsub.f32 1.0, %v5568
    %v5570 = vmul.f32 %v5567, %v5569
    %v5571 = vadd.f32 %v5567, %v5570
    %vm5572 = vweird.f32 %v5566
    %vm5573 = vweird.f32 %v5567
    %vm5574 = vmor %vm5572, %vm5573
    %v5575 = vsel %vm5574, %v5567, %v5571
    %v5576 = vand.u32 2147483647, %v5566
    %vm5577 = vcmp.eq.f32.partialorder %v5576, 8.507059e+37
    %v5578 = vand.u32 %v5566, 2147483648
    %v5579 = vor.u32 1.1754944e-38, %v5578
    %v5580 = vsel %vm5577, %v5579, %v5575
    %v5581 = vmul.f32 %v5556, %v5580
    %v5582 = vmin.f32 %v5581, 1.0
    %v5583 = vmax.f32 %v5582, -1.0
    %v5584 = vmul.f32 %v1010, %v1010
    %v5585 = vmin.f32 16.0, %v5584
    %v5586 = vmul.f32 %v5585, 2.1237322e-06
    %v5587 = vadd.f32 %v5586, 0.00028619796
    %v5588 = vmul.f32 %v5585, %v5587
    %v5589 = vadd.f32 %v5588, 0.0036580483
    %v5590 = vmul.f32 %v5585, %v5589
    %v5591 = vadd.f32 %v5590, 0.05243302
    %v5592 = vmul.f32 %v5585, %v5591
    %v5593 = vadd.f32 %v5592, 0.18741608
    %v5594 = vmul.f32 %v5585, %v5593
    %v5595 = vadd.f32 %v5594, 1.1283791
    %v5596 = vmul.f32 %v1010, %v5595
    %v5597 = vmul.f32 %v5585, 3.8918573e-05
    %v5598 = vadd.f32 %v5597, 0.001143296
    %v5599 = vmul.f32 %v5585, %v5598
    %v5600 = vadd.f32 %v5599, 0.014752088
    %v5601 = vmul.f32 %v5585, %v5600
    %v5602 = vadd.f32 %v5601, 0.112945676
    %v5603 = vmul.f32 %v5585, %v5602
    %v5604 = vadd.f32 %v5603, 0.4994258
    %v5605 = vmul.f32 %v5585, %v5604
    %v5606 = vadd.f32 %v5605, 1.0
    %v5607 = vrcp.pop %v5606
    %v5608 = vmul.f32 %v5606, %v5607
    %v5609 = vsub.f32 1.0, %v5608
    %v5610 = vmul.f32 %v5607, %v5609
    %v5611 = vadd.f32 %v5607, %v5610
    %vm5612 = vweird.f32 %v5606
    %vm5613 = vweird.f32 %v5607
    %vm5614 = vmor %vm5612, %vm5613
    %v5615 = vsel %vm5614, %v5607, %v5611
    %v5616 = vand.u32 2147483647, %v5606
    %vm5617 = vcmp.eq.f32.partialorder %v5616, 8.507059e+37
    %v5618 = vand.u32 %v5606, 2147483648
    %v5619 = vor.u32 1.1754944e-38, %v5618
    %v5620 = vsel %vm5617, %v5619, %v5615
    %v5621 = vmul.f32 %v5596, %v5620
    %v5622 = vmin.f32 %v5621, 1.0
    %v5623 = vmax.f32 %v5622, -1.0
    %v5624 = vmul.f32 %v1011, %v1011
    %v5625 = vmin.f32 16.0, %v5624
    %v5626 = vmul.f32 %v5625, 2.1237322e-06
    %v5627 = vadd.f32 %v5626, 0.00028619796
    %v5628 = vmul.f32 %v5625, %v5627
    %v5629 = vadd.f32 %v5628, 0.0036580483
    %v5630 = vmul.f32 %v5625, %v5629
    %v5631 = vadd.f32 %v5630, 0.05243302
    %v5632 = vmul.f32 %v5625, %v5631
    %v5633 = vadd.f32 %v5632, 0.18741608
    %v5634 = vmul.f32 %v5625, %v5633
    %v5635 = vadd.f32 %v5634, 1.1283791
    %v5636 = vmul.f32 %v1011, %v5635
    %v5637 = vmul.f32 %v5625, 3.8918573e-05
    %v5638 = vadd.f32 %v5637, 0.001143296
    %v5639 = vmul.f32 %v5625, %v5638
    %v5640 = vadd.f32 %v5639, 0.014752088
    %v5641 = vmul.f32 %v5625, %v5640
    %v5642 = vadd.f32 %v5641, 0.112945676
    %v5643 = vmul.f32 %v5625, %v5642
    %v5644 = vadd.f32 %v5643, 0.4994258
    %v5645 = vmul.f32 %v5625, %v5644
    %v5646 = vadd.f32 %v5645, 1.0
    %v5647 = vrcp.pop %v5646
    %v5648 = vmul.f32 %v5646, %v5647
    %v5649 = vsub.f32 1.0, %v5648
    %v5650 = vmul.f32 %v5647, %v5649
    %v5651 = vadd.f32 %v5647, %v5650
    %vm5652 = vweird.f32 %v5646
    %vm5653 = vweird.f32 %v5647
    %vm5654 = vmor %vm5652, %vm5653
    %v5655 = vsel %vm5654, %v5647, %v5651
    %v5656 = vand.u32 2147483647, %v5646
    %vm5657 = vcmp.eq.f32.partialorder %v5656, 8.507059e+37
    %v5658 = vand.u32 %v5646, 2147483648
    %v5659 = vor.u32 1.1754944e-38, %v5658
    %v5660 = vsel %vm5657, %v5659, %v5655
    %v5661 = vmul.f32 %v5636, %v5660
    %v5662 = vmin.f32 %v5661, 1.0
    %v5663 = vmax.f32 %v5662, -1.0
    %v5664 = vmul.f32 %v1012, %v1012
    %v5665 = vmin.f32 16.0, %v5664
    %v5666 = vmul.f32 %v5665, 2.1237322e-06
    %v5667 = vadd.f32 %v5666, 0.00028619796
    %v5668 = vmul.f32 %v5665, %v5667
    %v5669 = vadd.f32 %v5668, 0.0036580483
    %v5670 = vmul.f32 %v5665, %v5669
    %v5671 = vadd.f32 %v5670, 0.05243302
    %v5672 = vmul.f32 %v5665, %v5671
    %v5673 = vadd.f32 %v5672, 0.18741608
    %v5674 = vmul.f32 %v5665, %v5673
    %v5675 = vadd.f32 %v5674, 1.1283791
    %v5676 = vmul.f32 %v1012, %v5675
    %v5677 = vmul.f32 %v5665, 3.8918573e-05
    %v5678 = vadd.f32 %v5677, 0.001143296
    %v5679 = vmul.f32 %v5665, %v5678
    %v5680 = vadd.f32 %v5679, 0.014752088
    %v5681 = vmul.f32 %v5665, %v5680
    %v5682 = vadd.f32 %v5681, 0.112945676
    %v5683 = vmul.f32 %v5665, %v5682
    %v5684 = vadd.f32 %v5683, 0.4994258
    %v5685 = vmul.f32 %v5665, %v5684
    %v5686 = vadd.f32 %v5685, 1.0
    %v5687 = vrcp.pop %v5686
    %v5688 = vmul.f32 %v5686, %v5687
    %v5689 = vsub.f32 1.0, %v5688
    %v5690 = vmul.f32 %v5687, %v5689
    %v5691 = vadd.f32 %v5687, %v5690
    %vm5692 = vweird.f32 %v5686
    %vm5693 = vweird.f32 %v5687
    %vm5694 = vmor %vm5692, %vm5693
    %v5695 = vsel %vm5694, %v5687, %v5691
    %v5696 = vand.u32 2147483647, %v5686
    %vm5697 = vcmp.eq.f32.partialorder %v5696, 8.507059e+37
    %v5698 = vand.u32 %v5686, 2147483648
    %v5699 = vor.u32 1.1754944e-38, %v5698
    %v5700 = vsel %vm5697, %v5699, %v5695
    %v5701 = vmul.f32 %v5676, %v5700
    %v5702 = vmin.f32 %v5701, 1.0
    %v5703 = vmax.f32 %v5702, -1.0
    %v5704 = vmul.f32 %v1013, %v1013
    %v5705 = vmin.f32 16.0, %v5704
    %v5706 = vmul.f32 %v5705, 2.1237322e-06
    %v5707 = vadd.f32 %v5706, 0.00028619796
    %v5708 = vmul.f32 %v5705, %v5707
    %v5709 = vadd.f32 %v5708, 0.0036580483
    %v5710 = vmul.f32 %v5705, %v5709
    %v5711 = vadd.f32 %v5710, 0.05243302
    %v5712 = vmul.f32 %v5705, %v5711
    %v5713 = vadd.f32 %v5712, 0.18741608
    %v5714 = vmul.f32 %v5705, %v5713
    %v5715 = vadd.f32 %v5714, 1.1283791
    %v5716 = vmul.f32 %v1013, %v5715
    %v5717 = vmul.f32 %v5705, 3.8918573e-05
    %v5718 = vadd.f32 %v5717, 0.001143296
    %v5719 = vmul.f32 %v5705, %v5718
    %v5720 = vadd.f32 %v5719, 0.014752088
    %v5721 = vmul.f32 %v5705, %v5720
    %v5722 = vadd.f32 %v5721, 0.112945676
    %v5723 = vmul.f32 %v5705, %v5722
    %v5724 = vadd.f32 %v5723, 0.4994258
    %v5725 = vmul.f32 %v5705, %v5724
    %v5726 = vadd.f32 %v5725, 1.0
    %v5727 = vrcp.pop %v5726
    %v5728 = vmul.f32 %v5726, %v5727
    %v5729 = vsub.f32 1.0, %v5728
    %v5730 = vmul.f32 %v5727, %v5729
    %v5731 = vadd.f32 %v5727, %v5730
    %vm5732 = vweird.f32 %v5726
    %vm5733 = vweird.f32 %v5727
    %vm5734 = vmor %vm5732, %vm5733
    %v5735 = vsel %vm5734, %v5727, %v5731
    %v5736 = vand.u32 2147483647, %v5726
    %vm5737 = vcmp.eq.f32.partialorder %v5736, 8.507059e+37
    %v5738 = vand.u32 %v5726, 2147483648
    %v5739 = vor.u32 1.1754944e-38, %v5738
    %v5740 = vsel %vm5737, %v5739, %v5735
    %v5741 = vmul.f32 %v5716, %v5740
    %v5742 = vmin.f32 %v5741, 1.0
    %v5743 = vmax.f32 %v5742, -1.0
    %v5744 = vmul.f32 %v1014, %v1014
    %v5745 = vmin.f32 16.0, %v5744
    %v5746 = vmul.f32 %v5745, 2.1237322e-06
    %v5747 = vadd.f32 %v5746, 0.00028619796
    %v5748 = vmul.f32 %v5745, %v5747
    %v5749 = vadd.f32 %v5748, 0.0036580483
    %v5750 = vmul.f32 %v5745, %v5749
    %v5751 = vadd.f32 %v5750, 0.05243302
    %v5752 = vmul.f32 %v5745, %v5751
    %v5753 = vadd.f32 %v5752, 0.18741608
    %v5754 = vmul.f32 %v5745, %v5753
    %v5755 = vadd.f32 %v5754, 1.1283791
    %v5756 = vmul.f32 %v1014, %v5755
    %v5757 = vmul.f32 %v5745, 3.8918573e-05
    %v5758 = vadd.f32 %v5757, 0.001143296
    %v5759 = vmul.f32 %v5745, %v5758
    %v5760 = vadd.f32 %v5759, 0.014752088
    %v5761 = vmul.f32 %v5745, %v5760
    %v5762 = vadd.f32 %v5761, 0.112945676
    %v5763 = vmul.f32 %v5745, %v5762
    %v5764 = vadd.f32 %v5763, 0.4994258
    %v5765 = vmul.f32 %v5745, %v5764
    %v5766 = vadd.f32 %v5765, 1.0
    %v5767 = vrcp.pop %v5766
    %v5768 = vmul.f32 %v5766, %v5767
    %v5769 = vsub.f32 1.0, %v5768
    %v5770 = vmul.f32 %v5767, %v5769
    %v5771 = vadd.f32 %v5767, %v5770
    %vm5772 = vweird.f32 %v5766
    %vm5773 = vweird.f32 %v5767
    %vm5774 = vmor %vm5772, %vm5773
    %v5775 = vsel %vm5774, %v5767, %v5771
    %v5776 = vand.u32 2147483647, %v5766
    %vm5777 = vcmp.eq.f32.partialorder %v5776, 8.507059e+37
    %v5778 = vand.u32 %v5766, 2147483648
    %v5779 = vor.u32 1.1754944e-38, %v5778
    %v5780 = vsel %vm5777, %v5779, %v5775
    %v5781 = vmul.f32 %v5756, %v5780
    %v5782 = vmin.f32 %v5781, 1.0
    %v5783 = vmax.f32 %v5782, -1.0
    %v5784 = vmul.f32 %v1015, %v1015
    %v5785 = vmin.f32 16.0, %v5784
    %v5786 = vmul.f32 %v5785, 2.1237322e-06
    %v5787 = vadd.f32 %v5786, 0.00028619796
    %v5788 = vmul.f32 %v5785, %v5787
    %v5789 = vadd.f32 %v5788, 0.0036580483
    %v5790 = vmul.f32 %v5785, %v5789
    %v5791 = vadd.f32 %v5790, 0.05243302
    %v5792 = vmul.f32 %v5785, %v5791
    %v5793 = vadd.f32 %v5792, 0.18741608
    %v5794 = vmul.f32 %v5785, %v5793
    %v5795 = vadd.f32 %v5794, 1.1283791
    %v5796 = vmul.f32 %v1015, %v5795
    %v5797 = vmul.f32 %v5785, 3.8918573e-05
    %v5798 = vadd.f32 %v5797, 0.001143296
    %v5799 = vmul.f32 %v5785, %v5798
    %v5800 = vadd.f32 %v5799, 0.014752088
    %v5801 = vmul.f32 %v5785, %v5800
    %v5802 = vadd.f32 %v5801, 0.112945676
    %v5803 = vmul.f32 %v5785, %v5802
    %v5804 = vadd.f32 %v5803, 0.4994258
    %v5805 = vmul.f32 %v5785, %v5804
    %v5806 = vadd.f32 %v5805, 1.0
    %v5807 = vrcp.pop %v5806
    %v5808 = vmul.f32 %v5806, %v5807
    %v5809 = vsub.f32 1.0, %v5808
    %v5810 = vmul.f32 %v5807, %v5809
    %v5811 = vadd.f32 %v5807, %v5810
    %vm5812 = vweird.f32 %v5806
    %vm5813 = vweird.f32 %v5807
    %vm5814 = vmor %vm5812, %vm5813
    %v5815 = vsel %vm5814, %v5807, %v5811
    %v5816 = vand.u32 2147483647, %v5806
    %vm5817 = vcmp.eq.f32.partialorder %v5816, 8.507059e+37
    %v5818 = vand.u32 %v5806, 2147483648
    %v5819 = vor.u32 1.1754944e-38, %v5818
    %v5820 = vsel %vm5817, %v5819, %v5815
    %v5821 = vmul.f32 %v5796, %v5820
    %v5822 = vmin.f32 %v5821, 1.0
    %v5823 = vmax.f32 %v5822, -1.0
    %v5824 = vmul.f32 %v1016, %v1016
    %v5825 = vmin.f32 16.0, %v5824
    %v5826 = vmul.f32 %v5825, 2.1237322e-06
    %v5827 = vadd.f32 %v5826, 0.00028619796
    %v5828 = vmul.f32 %v5825, %v5827
    %v5829 = vadd.f32 %v5828, 0.0036580483
    %v5830 = vmul.f32 %v5825, %v5829
    %v5831 = vadd.f32 %v5830, 0.05243302
    %v5832 = vmul.f32 %v5825, %v5831
    %v5833 = vadd.f32 %v5832, 0.18741608
    %v5834 = vmul.f32 %v5825, %v5833
    %v5835 = vadd.f32 %v5834, 1.1283791
    %v5836 = vmul.f32 %v1016, %v5835
    %v5837 = vmul.f32 %v5825, 3.8918573e-05
    %v5838 = vadd.f32 %v5837, 0.001143296
    %v5839 = vmul.f32 %v5825, %v5838
    %v5840 = vadd.f32 %v5839, 0.014752088
    %v5841 = vmul.f32 %v5825, %v5840
    %v5842 = vadd.f32 %v5841, 0.112945676
    %v5843 = vmul.f32 %v5825, %v5842
    %v5844 = vadd.f32 %v5843, 0.4994258
    %v5845 = vmul.f32 %v5825, %v5844
    %v5846 = vadd.f32 %v5845, 1.0
    %v5847 = vrcp.pop %v5846
    %v5848 = vmul.f32 %v5846, %v5847
    %v5849 = vsub.f32 1.0, %v5848
    %v5850 = vmul.f32 %v5847, %v5849
    %v5851 = vadd.f32 %v5847, %v5850
    %vm5852 = vweird.f32 %v5846
    %vm5853 = vweird.f32 %v5847
    %vm5854 = vmor %vm5852, %vm5853
    %v5855 = vsel %vm5854, %v5847, %v5851
    %v5856 = vand.u32 2147483647, %v5846
    %vm5857 = vcmp.eq.f32.partialorder %v5856, 8.507059e+37
    %v5858 = vand.u32 %v5846, 2147483648
    %v5859 = vor.u32 1.1754944e-38, %v5858
    %v5860 = vsel %vm5857, %v5859, %v5855
    %v5861 = vmul.f32 %v5836, %v5860
    %v5862 = vmin.f32 %v5861, 1.0
    %v5863 = vmax.f32 %v5862, -1.0
    %v5864 = vmul.f32 %v1017, %v1017
    %v5865 = vmin.f32 16.0, %v5864
    %v5866 = vmul.f32 %v5865, 2.1237322e-06
    %v5867 = vadd.f32 %v5866, 0.00028619796
    %v5868 = vmul.f32 %v5865, %v5867
    %v5869 = vadd.f32 %v5868, 0.0036580483
    %v5870 = vmul.f32 %v5865, %v5869
    %v5871 = vadd.f32 %v5870, 0.05243302
    %v5872 = vmul.f32 %v5865, %v5871
    %v5873 = vadd.f32 %v5872, 0.18741608
    %v5874 = vmul.f32 %v5865, %v5873
    %v5875 = vadd.f32 %v5874, 1.1283791
    %v5876 = vmul.f32 %v1017, %v5875
    %v5877 = vmul.f32 %v5865, 3.8918573e-05
    %v5878 = vadd.f32 %v5877, 0.001143296
    %v5879 = vmul.f32 %v5865, %v5878
    %v5880 = vadd.f32 %v5879, 0.014752088
    %v5881 = vmul.f32 %v5865, %v5880
    %v5882 = vadd.f32 %v5881, 0.112945676
    %v5883 = vmul.f32 %v5865, %v5882
    %v5884 = vadd.f32 %v5883, 0.4994258
    %v5885 = vmul.f32 %v5865, %v5884
    %v5886 = vadd.f32 %v5885, 1.0
    %v5887 = vrcp.pop %v5886
    %v5888 = vmul.f32 %v5886, %v5887
    %v5889 = vsub.f32 1.0, %v5888
    %v5890 = vmul.f32 %v5887, %v5889
    %v5891 = vadd.f32 %v5887, %v5890
    %vm5892 = vweird.f32 %v5886
    %vm5893 = vweird.f32 %v5887
    %vm5894 = vmor %vm5892, %vm5893
    %v5895 = vsel %vm5894, %v5887, %v5891
    %v5896 = vand.u32 2147483647, %v5886
    %vm5897 = vcmp.eq.f32.partialorder %v5896, 8.507059e+37
    %v5898 = vand.u32 %v5886, 2147483648
    %v5899 = vor.u32 1.1754944e-38, %v5898
    %v5900 = vsel %vm5897, %v5899, %v5895
    %v5901 = vmul.f32 %v5876, %v5900
    %v5902 = vmin.f32 %v5901, 1.0
    %v5903 = vmax.f32 %v5902, -1.0
    %v5904 = vmul.f32 %v1018, %v1018
    %v5905 = vmin.f32 16.0, %v5904
    %v5906 = vmul.f32 %v5905, 2.1237322e-06
    %v5907 = vadd.f32 %v5906, 0.00028619796
    %v5908 = vmul.f32 %v5905, %v5907
    %v5909 = vadd.f32 %v5908, 0.0036580483
    %v5910 = vmul.f32 %v5905, %v5909
    %v5911 = vadd.f32 %v5910, 0.05243302
    %v5912 = vmul.f32 %v5905, %v5911
    %v5913 = vadd.f32 %v5912, 0.18741608
    %v5914 = vmul.f32 %v5905, %v5913
    %v5915 = vadd.f32 %v5914, 1.1283791
    %v5916 = vmul.f32 %v1018, %v5915
    %v5917 = vmul.f32 %v5905, 3.8918573e-05
    %v5918 = vadd.f32 %v5917, 0.001143296
    %v5919 = vmul.f32 %v5905, %v5918
    %v5920 = vadd.f32 %v5919, 0.014752088
    %v5921 = vmul.f32 %v5905, %v5920
    %v5922 = vadd.f32 %v5921, 0.112945676
    %v5923 = vmul.f32 %v5905, %v5922
    %v5924 = vadd.f32 %v5923, 0.4994258
    %v5925 = vmul.f32 %v5905, %v5924
    %v5926 = vadd.f32 %v5925, 1.0
    %v5927 = vrcp.pop %v5926
    %v5928 = vmul.f32 %v5926, %v5927
    %v5929 = vsub.f32 1.0, %v5928
    %v5930 = vmul.f32 %v5927, %v5929
    %v5931 = vadd.f32 %v5927, %v5930
    %vm5932 = vweird.f32 %v5926
    %vm5933 = vweird.f32 %v5927
    %vm5934 = vmor %vm5932, %vm5933
    %v5935 = vsel %vm5934, %v5927, %v5931
    %v5936 = vand.u32 2147483647, %v5926
    %vm5937 = vcmp.eq.f32.partialorder %v5936, 8.507059e+37
    %v5938 = vand.u32 %v5926, 2147483648
    %v5939 = vor.u32 1.1754944e-38, %v5938
    %v5940 = vsel %vm5937, %v5939, %v5935
    %v5941 = vmul.f32 %v5916, %v5940
    %v5942 = vmin.f32 %v5941, 1.0
    %v5943 = vmax.f32 %v5942, -1.0
    %v5944 = vmul.f32 %v1019, %v1019
    %v5945 = vmin.f32 16.0, %v5944
    %v5946 = vmul.f32 %v5945, 2.1237322e-06
    %v5947 = vadd.f32 %v5946, 0.00028619796
    %v5948 = vmul.f32 %v5945, %v5947
    %v5949 = vadd.f32 %v5948, 0.0036580483
    %v5950 = vmul.f32 %v5945, %v5949
    %v5951 = vadd.f32 %v5950, 0.05243302
    %v5952 = vmul.f32 %v5945, %v5951
    %v5953 = vadd.f32 %v5952, 0.18741608
    %v5954 = vmul.f32 %v5945, %v5953
    %v5955 = vadd.f32 %v5954, 1.1283791
    %v5956 = vmul.f32 %v1019, %v5955
    %v5957 = vmul.f32 %v5945, 3.8918573e-05
    %v5958 = vadd.f32 %v5957, 0.001143296
    %v5959 = vmul.f32 %v5945, %v5958
    %v5960 = vadd.f32 %v5959, 0.014752088
    %v5961 = vmul.f32 %v5945, %v5960
    %v5962 = vadd.f32 %v5961, 0.112945676
    %v5963 = vmul.f32 %v5945, %v5962
    %v5964 = vadd.f32 %v5963, 0.4994258
    %v5965 = vmul.f32 %v5945, %v5964
    %v5966 = vadd.f32 %v5965, 1.0
    %v5967 = vrcp.pop %v5966
    %v5968 = vmul.f32 %v5966, %v5967
    %v5969 = vsub.f32 1.0, %v5968
    %v5970 = vmul.f32 %v5967, %v5969
    %v5971 = vadd.f32 %v5967, %v5970
    %vm5972 = vweird.f32 %v5966
    %vm5973 = vweird.f32 %v5967
    %vm5974 = vmor %vm5972, %vm5973
    %v5975 = vsel %vm5974, %v5967, %v5971
    %v5976 = vand.u32 2147483647, %v5966
    %vm5977 = vcmp.eq.f32.partialorder %v5976, 8.507059e+37
    %v5978 = vand.u32 %v5966, 2147483648
    %v5979 = vor.u32 1.1754944e-38, %v5978
    %v5980 = vsel %vm5977, %v5979, %v5975
    %v5981 = vmul.f32 %v5956, %v5980
    %v5982 = vmin.f32 %v5981, 1.0
    %v5983 = vmax.f32 %v5982, -1.0
    %v5984 = vmul.f32 %v1020, %v1020
    %v5985 = vmin.f32 16.0, %v5984
    %v5986 = vmul.f32 %v5985, 2.1237322e-06
    %v5987 = vadd.f32 %v5986, 0.00028619796
    %v5988 = vmul.f32 %v5985, %v5987
    %v5989 = vadd.f32 %v5988, 0.0036580483
    %v5990 = vmul.f32 %v5985, %v5989
    %v5991 = vadd.f32 %v5990, 0.05243302
    %v5992 = vmul.f32 %v5985, %v5991
    %v5993 = vadd.f32 %v5992, 0.18741608
    %v5994 = vmul.f32 %v5985, %v5993
    %v5995 = vadd.f32 %v5994, 1.1283791
    %v5996 = vmul.f32 %v1020, %v5995
    %v5997 = vmul.f32 %v5985, 3.8918573e-05
    %v5998 = vadd.f32 %v5997, 0.001143296
    %v5999 = vmul.f32 %v5985, %v5998
    %v6000 = vadd.f32 %v5999, 0.014752088
    %v6001 = vmul.f32 %v5985, %v6000
    %v6002 = vadd.f32 %v6001, 0.112945676
    %v6003 = vmul.f32 %v5985, %v6002
    %v6004 = vadd.f32 %v6003, 0.4994258
    %v6005 = vmul.f32 %v5985, %v6004
    %v6006 = vadd.f32 %v6005, 1.0
    %v6007 = vrcp.pop %v6006
    %v6008 = vmul.f32 %v6006, %v6007
    %v6009 = vsub.f32 1.0, %v6008
    %v6010 = vmul.f32 %v6007, %v6009
    %v6011 = vadd.f32 %v6007, %v6010
    %vm6012 = vweird.f32 %v6006
    %vm6013 = vweird.f32 %v6007
    %vm6014 = vmor %vm6012, %vm6013
    %v6015 = vsel %vm6014, %v6007, %v6011
    %v6016 = vand.u32 2147483647, %v6006
    %vm6017 = vcmp.eq.f32.partialorder %v6016, 8.507059e+37
    %v6018 = vand.u32 %v6006, 2147483648
    %v6019 = vor.u32 1.1754944e-38, %v6018
    %v6020 = vsel %vm6017, %v6019, %v6015
    %v6021 = vmul.f32 %v5996, %v6020
    %v6022 = vmin.f32 %v6021, 1.0
    %v6023 = vmax.f32 %v6022, -1.0
    %v6024 = vmul.f32 %v1021, %v1021
    %v6025 = vmin.f32 16.0, %v6024
    %v6026 = vmul.f32 %v6025, 2.1237322e-06
    %v6027 = vadd.f32 %v6026, 0.00028619796
    %v6028 = vmul.f32 %v6025, %v6027
    %v6029 = vadd.f32 %v6028, 0.0036580483
    %v6030 = vmul.f32 %v6025, %v6029
    %v6031 = vadd.f32 %v6030, 0.05243302
    %v6032 = vmul.f32 %v6025, %v6031
    %v6033 = vadd.f32 %v6032, 0.18741608
    %v6034 = vmul.f32 %v6025, %v6033
    %v6035 = vadd.f32 %v6034, 1.1283791
    %v6036 = vmul.f32 %v1021, %v6035
    %v6037 = vmul.f32 %v6025, 3.8918573e-05
    %v6038 = vadd.f32 %v6037, 0.001143296
    %v6039 = vmul.f32 %v6025, %v6038
    %v6040 = vadd.f32 %v6039, 0.014752088
    %v6041 = vmul.f32 %v6025, %v6040
    %v6042 = vadd.f32 %v6041, 0.112945676
    %v6043 = vmul.f32 %v6025, %v6042
    %v6044 = vadd.f32 %v6043, 0.4994258
    %v6045 = vmul.f32 %v6025, %v6044
    %v6046 = vadd.f32 %v6045, 1.0
    %v6047 = vrcp.pop %v6046
    %v6048 = vmul.f32 %v6046, %v6047
    %v6049 = vsub.f32 1.0, %v6048
    %v6050 = vmul.f32 %v6047, %v6049
    %v6051 = vadd.f32 %v6047, %v6050
    %vm6052 = vweird.f32 %v6046
    %vm6053 = vweird.f32 %v6047
    %vm6054 = vmor %vm6052, %vm6053
    %v6055 = vsel %vm6054, %v6047, %v6051
    %v6056 = vand.u32 2147483647, %v6046
    %vm6057 = vcmp.eq.f32.partialorder %v6056, 8.507059e+37
    %v6058 = vand.u32 %v6046, 2147483648
    %v6059 = vor.u32 1.1754944e-38, %v6058
    %v6060 = vsel %vm6057, %v6059, %v6055
    %v6061 = vmul.f32 %v6036, %v6060
    %v6062 = vmin.f32 %v6061, 1.0
    %v6063 = vmax.f32 %v6062, -1.0
    %v6064 = vmul.f32 %v1022, %v1022
    %v6065 = vmin.f32 16.0, %v6064
    %v6066 = vmul.f32 %v6065, 2.1237322e-06
    %v6067 = vadd.f32 %v6066, 0.00028619796
    %v6068 = vmul.f32 %v6065, %v6067
    %v6069 = vadd.f32 %v6068, 0.0036580483
    %v6070 = vmul.f32 %v6065, %v6069
    %v6071 = vadd.f32 %v6070, 0.05243302
    %v6072 = vmul.f32 %v6065, %v6071
    %v6073 = vadd.f32 %v6072, 0.18741608
    %v6074 = vmul.f32 %v6065, %v6073
    %v6075 = vadd.f32 %v6074, 1.1283791
    %v6076 = vmul.f32 %v1022, %v6075
    %v6077 = vmul.f32 %v6065, 3.8918573e-05
    %v6078 = vadd.f32 %v6077, 0.001143296
    %v6079 = vmul.f32 %v6065, %v6078
    %v6080 = vadd.f32 %v6079, 0.014752088
    %v6081 = vmul.f32 %v6065, %v6080
    %v6082 = vadd.f32 %v6081, 0.112945676
    %v6083 = vmul.f32 %v6065, %v6082
    %v6084 = vadd.f32 %v6083, 0.4994258
    %v6085 = vmul.f32 %v6065, %v6084
    %v6086 = vadd.f32 %v6085, 1.0
    %v6087 = vrcp.pop %v6086
    %v6088 = vmul.f32 %v6086, %v6087
    %v6089 = vsub.f32 1.0, %v6088
    %v6090 = vmul.f32 %v6087, %v6089
    %v6091 = vadd.f32 %v6087, %v6090
    %vm6092 = vweird.f32 %v6086
    %vm6093 = vweird.f32 %v6087
    %vm6094 = vmor %vm6092, %vm6093
    %v6095 = vsel %vm6094, %v6087, %v6091
    %v6096 = vand.u32 2147483647, %v6086
    %vm6097 = vcmp.eq.f32.partialorder %v6096, 8.507059e+37
    %v6098 = vand.u32 %v6086, 2147483648
    %v6099 = vor.u32 1.1754944e-38, %v6098
    %v6100 = vsel %vm6097, %v6099, %v6095
    %v6101 = vmul.f32 %v6076, %v6100
    %v6102 = vmin.f32 %v6101, 1.0
    %v6103 = vmax.f32 %v6102, -1.0
    %v6104 = vmul.f32 %v1023, %v1023
    %v6105 = vmin.f32 16.0, %v6104
    %v6106 = vmul.f32 %v6105, 2.1237322e-06
    %v6107 = vadd.f32 %v6106, 0.00028619796
    %v6108 = vmul.f32 %v6105, %v6107
    %v6109 = vadd.f32 %v6108, 0.0036580483
    %v6110 = vmul.f32 %v6105, %v6109
    %v6111 = vadd.f32 %v6110, 0.05243302
    %v6112 = vmul.f32 %v6105, %v6111
    %v6113 = vadd.f32 %v6112, 0.18741608
    %v6114 = vmul.f32 %v6105, %v6113
    %v6115 = vadd.f32 %v6114, 1.1283791
    %v6116 = vmul.f32 %v1023, %v6115
    %v6117 = vmul.f32 %v6105, 3.8918573e-05
    %v6118 = vadd.f32 %v6117, 0.001143296
    %v6119 = vmul.f32 %v6105, %v6118
    %v6120 = vadd.f32 %v6119, 0.014752088
    %v6121 = vmul.f32 %v6105, %v6120
    %v6122 = vadd.f32 %v6121, 0.112945676
    %v6123 = vmul.f32 %v6105, %v6122
    %v6124 = vadd.f32 %v6123, 0.4994258
    %v6125 = vmul.f32 %v6105, %v6124
    %v6126 = vadd.f32 %v6125, 1.0
    %v6127 = vrcp.pop %v6126
    %v6128 = vmul.f32 %v6126, %v6127
    %v6129 = vsub.f32 1.0, %v6128
    %v6130 = vmul.f32 %v6127, %v6129
    %v6131 = vadd.f32 %v6127, %v6130
    %vm6132 = vweird.f32 %v6126
    %vm6133 = vweird.f32 %v6127
    %vm6134 = vmor %vm6132, %vm6133
    %v6135 = vsel %vm6134, %v6127, %v6131
    %v6136 = vand.u32 2147483647, %v6126
    %vm6137 = vcmp.eq.f32.partialorder %v6136, 8.507059e+37
    %v6138 = vand.u32 %v6126, 2147483648
    %v6139 = vor.u32 1.1754944e-38, %v6138
    %v6140 = vsel %vm6137, %v6139, %v6135
    %v6141 = vmul.f32 %v6116, %v6140
    %v6142 = vmin.f32 %v6141, 1.0
    %v6143 = vmax.f32 %v6142, -1.0
    %v6144 = vadd.f32 %v1063, 1.0
    %v6145 = vadd.f32 %v1103, 1.0
    %v6146 = vadd.f32 %v1143, 1.0
    %v6147 = vadd.f32 %v1183, 1.0
    %v6148 = vadd.f32 %v1223, 1.0
    %v6149 = vadd.f32 %v1263, 1.0
    %v6150 = vadd.f32 %v1303, 1.0
    %v6151 = vadd.f32 %v1343, 1.0
    %v6152 = vadd.f32 %v1383, 1.0
    %v6153 = vadd.f32 %v1423, 1.0
    %v6154 = vadd.f32 %v1463, 1.0
    %v6155 = vadd.f32 %v1503, 1.0
    %v6156 = vadd.f32 %v1543, 1.0
    %v6157 = vadd.f32 %v1583, 1.0
    %v6158 = vadd.f32 %v1623, 1.0
    %v6159 = vadd.f32 %v1663, 1.0
    %v6160 = vadd.f32 %v1703, 1.0
    %v6161 = vadd.f32 %v1743, 1.0
    %v6162 = vadd.f32 %v1783, 1.0
    %v6163 = vadd.f32 %v1823, 1.0
    %v6164 = vadd.f32 %v1863, 1.0
    %v6165 = vadd.f32 %v1903, 1.0
    %v6166 = vadd.f32 %v1943, 1.0
    %v6167 = vadd.f32 %v1983, 1.0
    %v6168 = vadd.f32 %v2023, 1.0
    %v6169 = vadd.f32 %v2063, 1.0
    %v6170 = vadd.f32 %v2103, 1.0
    %v6171 = vadd.f32 %v2143, 1.0
    %v6172 = vadd.f32 %v2183, 1.0
    %v6173 = vadd.f32 %v2223, 1.0
    %v6174 = vadd.f32 %v2263, 1.0
    %v6175 = vadd.f32 %v2303, 1.0
    %v6176 = vadd.f32 %v2343, 1.0
    %v6177 = vadd.f32 %v2383, 1.0
    %v6178 = vadd.f32 %v2423, 1.0
    %v6179 = vadd.f32 %v2463, 1.0
    %v6180 = vadd.f32 %v2503, 1.0
    %v6181 = vadd.f32 %v2543, 1.0
    %v6182 = vadd.f32 %v2583, 1.0
    %v6183 = vadd.f32 %v2623, 1.0
    %v6184 = vadd.f32 %v2663, 1.0
    %v6185 = vadd.f32 %v2703, 1.0
    %v6186 = vadd.f32 %v2743, 1.0
    %v6187 = vadd.f32 %v2783, 1.0
    %v6188 = vadd.f32 %v2823, 1.0
    %v6189 = vadd.f32 %v2863, 1.0
    %v6190 = vadd.f32 %v2903, 1.0
    %v6191 = vadd.f32 %v2943, 1.0
    %v6192 = vadd.f32 %v2983, 1.0
    %v6193 = vadd.f32 %v3023, 1.0
    %v6194 = vadd.f32 %v3063, 1.0
    %v6195 = vadd.f32 %v3103, 1.0
    %v6196 = vadd.f32 %v3143, 1.0
    %v6197 = vadd.f32 %v3183, 1.0
    %v6198 = vadd.f32 %v3223, 1.0
    %v6199 = vadd.f32 %v3263, 1.0
    %v6200 = vadd.f32 %v3303, 1.0
    %v6201 = vadd.f32 %v3343, 1.0
    %v6202 = vadd.f32 %v3383, 1.0
    %v6203 = vadd.f32 %v3423, 1.0
    %v6204 = vadd.f32 %v3463, 1.0
    %v6205 = vadd.f32 %v3503, 1.0
    %v6206 = vadd.f32 %v3543, 1.0
    %v6207 = vadd.f32 %v3583, 1.0
    %v6208 = vadd.f32 %v3623, 1.0
    %v6209 = vadd.f32 %v3663, 1.0
    %v6210 = vadd.f32 %v3703, 1.0
    %v6211 = vadd.f32 %v3743, 1.0
    %v6212 = vadd.f32 %v3783, 1.0
    %v6213 = vadd.f32 %v3823, 1.0
    %v6214 = vadd.f32 %v3863, 1.0
    %v6215 = vadd.f32 %v3903, 1.0
    %v6216 = vadd.f32 %v3943, 1.0
    %v6217 = vadd.f32 %v3983, 1.0
    %v6218 = vadd.f32 %v4023, 1.0
    %v6219 = vadd.f32 %v4063, 1.0
    %v6220 = vadd.f32 %v4103, 1.0
    %v6221 = vadd.f32 %v4143, 1.0
    %v6222 = vadd.f32 %v4183, 1.0
    %v6223 = vadd.f32 %v4223, 1.0
    %v6224 = vadd.f32 %v4263, 1.0
    %v6225 = vadd.f32 %v4303, 1.0
    %v6226 = vadd.f32 %v4343, 1.0
    %v6227 = vadd.f32 %v4383, 1.0
    %v6228 = vadd.f32 %v4423, 1.0
    %v6229 = vadd.f32 %v4463, 1.0
    %v6230 = vadd.f32 %v4503, 1.0
    %v6231 = vadd.f32 %v4543, 1.0
    %v6232 = vadd.f32 %v4583, 1.0
    %v6233 = vadd.f32 %v4623, 1.0
    %v6234 = vadd.f32 %v4663, 1.0
    %v6235 = vadd.f32 %v4703, 1.0
    %v6236 = vadd.f32 %v4743, 1.0
    %v6237 = vadd.f32 %v4783, 1.0
    %v6238 = vadd.f32 %v4823, 1.0
    %v6239 = vadd.f32 %v4863, 1.0
    %v6240 = vadd.f32 %v4903, 1.0
    %v6241 = vadd.f32 %v4943, 1.0
    %v6242 = vadd.f32 %v4983, 1.0
    %v6243 = vadd.f32 %v5023, 1.0
    %v6244 = vadd.f32 %v5063, 1.0
    %v6245 = vadd.f32 %v5103, 1.0
    %v6246 = vadd.f32 %v5143, 1.0
    %v6247 = vadd.f32 %v5183, 1.0
    %v6248 = vadd.f32 %v5223, 1.0
    %v6249 = vadd.f32 %v5263, 1.0
    %v6250 = vadd.f32 %v5303, 1.0
    %v6251 = vadd.f32 %v5343, 1.0
    %v6252 = vadd.f32 %v5383, 1.0
    %v6253 = vadd.f32 %v5423, 1.0
    %v6254 = vadd.f32 %v5463, 1.0
    %v6255 = vadd.f32 %v5503, 1.0
    %v6256 = vadd.f32 %v5543, 1.0
    %v6257 = vadd.f32 %v5583, 1.0
    %v6258 = vadd.f32 %v5623, 1.0
    %v6259 = vadd.f32 %v5663, 1.0
    %v6260 = vadd.f32 %v5703, 1.0
    %v6261 = vadd.f32 %v5743, 1.0
    %v6262 = vadd.f32 %v5783, 1.0
    %v6263 = vadd.f32 %v5823, 1.0
    %v6264 = vadd.f32 %v5863, 1.0
    %v6265 = vadd.f32 %v5903, 1.0
    %v6266 = vadd.f32 %v5943, 1.0
    %v6267 = vadd.f32 %v5983, 1.0
    %v6268 = vadd.f32 %v6023, 1.0
    %v6269 = vadd.f32 %v6063, 1.0
    %v6270 = vadd.f32 %v6103, 1.0
    %v6271 = vadd.f32 %v6143, 1.0
    %v6272 = vmul.f32 %v768, %v6144
    %v6273 = vmul.f32 %v769, %v6145
    %v6274 = vmul.f32 %v770, %v6146
    %v6275 = vmul.f32 %v771, %v6147
    %v6276 = vmul.f32 %v772, %v6148
    %v6277 = vmul.f32 %v773, %v6149
    %v6278 = vmul.f32 %v774, %v6150
    %v6279 = vmul.f32 %v775, %v6151
    %v6280 = vmul.f32 %v776, %v6152
    %v6281 = vmul.f32 %v777, %v6153
    %v6282 = vmul.f32 %v778, %v6154
    %v6283 = vmul.f32 %v779, %v6155
    %v6284 = vmul.f32 %v780, %v6156
    %v6285 = vmul.f32 %v781, %v6157
    %v6286 = vmul.f32 %v782, %v6158
    %v6287 = vmul.f32 %v783, %v6159
    %v6288 = vmul.f32 %v784, %v6160
    %v6289 = vmul.f32 %v785, %v6161
    %v6290 = vmul.f32 %v786, %v6162
    %v6291 = vmul.f32 %v787, %v6163
    %v6292 = vmul.f32 %v788, %v6164
    %v6293 = vmul.f32 %v789, %v6165
    %v6294 = vmul.f32 %v790, %v6166
    %v6295 = vmul.f32 %v791, %v6167
    %v6296 = vmul.f32 %v792, %v6168
    %v6297 = vmul.f32 %v793, %v6169
    %v6298 = vmul.f32 %v794, %v6170
    %v6299 = vmul.f32 %v795, %v6171
    %v6300 = vmul.f32 %v796, %v6172
    %v6301 = vmul.f32 %v797, %v6173
    %v6302 = vmul.f32 %v798, %v6174
    %v6303 = vmul.f32 %v799, %v6175
    %v6304 = vmul.f32 %v800, %v6176
    %v6305 = vmul.f32 %v801, %v6177
    %v6306 = vmul.f32 %v802, %v6178
    %v6307 = vmul.f32 %v803, %v6179
    %v6308 = vmul.f32 %v804, %v6180
    %v6309 = vmul.f32 %v805, %v6181
    %v6310 = vmul.f32 %v806, %v6182
    %v6311 = vmul.f32 %v807, %v6183
    %v6312 = vmul.f32 %v808, %v6184
    %v6313 = vmul.f32 %v809, %v6185
    %v6314 = vmul.f32 %v810, %v6186
    %v6315 = vmul.f32 %v811, %v6187
    %v6316 = vmul.f32 %v812, %v6188
    %v6317 = vmul.f32 %v813, %v6189
    %v6318 = vmul.f32 %v814, %v6190
    %v6319 = vmul.f32 %v815, %v6191
    %v6320 = vmul.f32 %v816, %v6192
    %v6321 = vmul.f32 %v817, %v6193
    %v6322 = vmul.f32 %v818, %v6194
    %v6323 = vmul.f32 %v819, %v6195
    %v6324 = vmul.f32 %v820, %v6196
    %v6325 = vmul.f32 %v821, %v6197
    %v6326 = vmul.f32 %v822, %v6198
    %v6327 = vmul.f32 %v823, %v6199
    %v6328 = vmul.f32 %v824, %v6200
    %v6329 = vmul.f32 %v825, %v6201
    %v6330 = vmul.f32 %v826, %v6202
    %v6331 = vmul.f32 %v827, %v6203
    %v6332 = vmul.f32 %v828, %v6204
    %v6333 = vmul.f32 %v829, %v6205
    %v6334 = vmul.f32 %v830, %v6206
    %v6335 = vmul.f32 %v831, %v6207
    %v6336 = vmul.f32 %v832, %v6208
    %v6337 = vmul.f32 %v833, %v6209
    %v6338 = vmul.f32 %v834, %v6210
    %v6339 = vmul.f32 %v835, %v6211
    %v6340 = vmul.f32 %v836, %v6212
    %v6341 = vmul.f32 %v837, %v6213
    %v6342 = vmul.f32 %v838, %v6214
    %v6343 = vmul.f32 %v839, %v6215
    %v6344 = vmul.f32 %v840, %v6216
    %v6345 = vmul.f32 %v841, %v6217
    %v6346 = vmul.f32 %v842, %v6218
    %v6347 = vmul.f32 %v843, %v6219
    %v6348 = vmul.f32 %v844, %v6220
    %v6349 = vmul.f32 %v845, %v6221
    %v6350 = vmul.f32 %v846, %v6222
    %v6351 = vmul.f32 %v847, %v6223
    %v6352 = vmul.f32 %v848, %v6224
    %v6353 = vmul.f32 %v849, %v6225
    %v6354 = vmul.f32 %v850, %v6226
    %v6355 = vmul.f32 %v851, %v6227
    %v6356 = vmul.f32 %v852, %v6228
    %v6357 = vmul.f32 %v853, %v6229
    %v6358 = vmul.f32 %v854, %v6230
    %v6359 = vmul.f32 %v855, %v6231
    %v6360 = vmul.f32 %v856, %v6232
    %v6361 = vmul.f32 %v857, %v6233
    %v6362 = vmul.f32 %v858, %v6234
    %v6363 = vmul.f32 %v859, %v6235
    %v6364 = vmul.f32 %v860, %v6236
    %v6365 = vmul.f32 %v861, %v6237
    %v6366 = vmul.f32 %v862, %v6238
    %v6367 = vmul.f32 %v863, %v6239
    %v6368 = vmul.f32 %v864, %v6240
    %v6369 = vmul.f32 %v865, %v6241
    %v6370 = vmul.f32 %v866, %v6242
    %v6371 = vmul.f32 %v867, %v6243
    %v6372 = vmul.f32 %v868, %v6244
    %v6373 = vmul.f32 %v869, %v6245
    %v6374 = vmul.f32 %v870, %v6246
    %v6375 = vmul.f32 %v871, %v6247
    %v6376 = vmul.f32 %v872, %v6248
    %v6377 = vmul.f32 %v873, %v6249
    %v6378 = vmul.f32 %v874, %v6250
    %v6379 = vmul.f32 %v875, %v6251
    %v6380 = vmul.f32 %v876, %v6252
    %v6381 = vmul.f32 %v877, %v6253
    %v6382 = vmul.f32 %v878, %v6254
    %v6383 = vmul.f32 %v879, %v6255
    %v6384 = vmul.f32 %v880, %v6256
    %v6385 = vmul.f32 %v881, %v6257
    %v6386 = vmul.f32 %v882, %v6258
    %v6387 = vmul.f32 %v883, %v6259
    %v6388 = vmul.f32 %v884, %v6260
    %v6389 = vmul.f32 %v885, %v6261
    %v6390 = vmul.f32 %v886, %v6262
    %v6391 = vmul.f32 %v887, %v6263
    %v6392 = vmul.f32 %v888, %v6264
    %v6393 = vmul.f32 %v889, %v6265
    %v6394 = vmul.f32 %v890, %v6266
    %v6395 = vmul.f32 %v891, %v6267
    %v6396 = vmul.f32 %v892, %v6268
    %v6397 = vmul.f32 %v893, %v6269
    %v6398 = vmul.f32 %v894, %v6270
    %v6399 = vmul.f32 %v895, %v6271
    %v6400 = vpack.c.bf16 %v6276, %v6272
    %v6401 = vpack.c.bf16 %v6277, %v6273
    %v6402 = vpack.c.bf16 %v6278, %v6274
    %v6403 = vpack.c.bf16 %v6279, %v6275
    %v6404 = vpack.c.bf16 %v6284, %v6280
    %v6405 = vpack.c.bf16 %v6285, %v6281
    %v6406 = vpack.c.bf16 %v6286, %v6282
    %v6407 = vpack.c.bf16 %v6287, %v6283
    %v6408 = vpack.c.bf16 %v6292, %v6288
    %v6409 = vpack.c.bf16 %v6293, %v6289
    %v6410 = vpack.c.bf16 %v6294, %v6290
    %v6411 = vpack.c.bf16 %v6295, %v6291
    %v6412 = vpack.c.bf16 %v6300, %v6296
    %v6413 = vpack.c.bf16 %v6301, %v6297
    %v6414 = vpack.c.bf16 %v6302, %v6298
    %v6415 = vpack.c.bf16 %v6303, %v6299
    %v6416 = vpack.c.bf16 %v6308, %v6304
    %v6417 = vpack.c.bf16 %v6309, %v6305
    %v6418 = vpack.c.bf16 %v6310, %v6306
    %v6419 = vpack.c.bf16 %v6311, %v6307
    %v6420 = vpack.c.bf16 %v6316, %v6312
    %v6421 = vpack.c.bf16 %v6317, %v6313
    %v6422 = vpack.c.bf16 %v6318, %v6314
    %v6423 = vpack.c.bf16 %v6319, %v6315
    %v6424 = vpack.c.bf16 %v6324, %v6320
    %v6425 = vpack.c.bf16 %v6325, %v6321
    %v6426 = vpack.c.bf16 %v6326, %v6322
    %v6427 = vpack.c.bf16 %v6327, %v6323
    %v6428 = vpack.c.bf16 %v6332, %v6328
    %v6429 = vpack.c.bf16 %v6333, %v6329
    %v6430 = vpack.c.bf16 %v6334, %v6330
    %v6431 = vpack.c.bf16 %v6335, %v6331
    %v6432 = vpack.c.bf16 %v6340, %v6336
    %v6433 = vpack.c.bf16 %v6341, %v6337
    %v6434 = vpack.c.bf16 %v6342, %v6338
    %v6435 = vpack.c.bf16 %v6343, %v6339
    %v6436 = vpack.c.bf16 %v6348, %v6344
    %v6437 = vpack.c.bf16 %v6349, %v6345
    %v6438 = vpack.c.bf16 %v6350, %v6346
    %v6439 = vpack.c.bf16 %v6351, %v6347
    %v6440 = vpack.c.bf16 %v6356, %v6352
    %v6441 = vpack.c.bf16 %v6357, %v6353
    %v6442 = vpack.c.bf16 %v6358, %v6354
    %v6443 = vpack.c.bf16 %v6359, %v6355
    %v6444 = vpack.c.bf16 %v6364, %v6360
    %v6445 = vpack.c.bf16 %v6365, %v6361
    %v6446 = vpack.c.bf16 %v6366, %v6362
    %v6447 = vpack.c.bf16 %v6367, %v6363
    %v6448 = vpack.c.bf16 %v6372, %v6368
    %v6449 = vpack.c.bf16 %v6373, %v6369
    %v6450 = vpack.c.bf16 %v6374, %v6370
    %v6451 = vpack.c.bf16 %v6375, %v6371
    %v6452 = vpack.c.bf16 %v6380, %v6376
    %v6453 = vpack.c.bf16 %v6381, %v6377
    %v6454 = vpack.c.bf16 %v6382, %v6378
    %v6455 = vpack.c.bf16 %v6383, %v6379
    %v6456 = vpack.c.bf16 %v6388, %v6384
    %v6457 = vpack.c.bf16 %v6389, %v6385
    %v6458 = vpack.c.bf16 %v6390, %v6386
    %v6459 = vpack.c.bf16 %v6391, %v6387
    %v6460 = vpack.c.bf16 %v6396, %v6392
    %v6461 = vpack.c.bf16 %v6397, %v6393
    %v6462 = vpack.c.bf16 %v6398, %v6394
    %v6463 = vpack.c.bf16 %v6399, %v6395
    %v6464 = vld [vmem:[#allocation8] sm:$0xf]
    %v6465 = vld [vmem:[#allocation8 + $0x4] sm:$0xf]
    %v6466 = vld [vmem:[#allocation8 + $0x8] sm:$0xf]
    %v6467 = vld [vmem:[#allocation8 + $0xc] sm:$0xf]
    %v6468 = vld [vmem:[#allocation8 + $0x10] sm:$0xf]
    %v6469 = vld [vmem:[#allocation8 + $0x14] sm:$0xf]
    %v6470 = vld [vmem:[#allocation8 + $0x18] sm:$0xf]
    %v6471 = vld [vmem:[#allocation8 + $0x1c] sm:$0xf]
    %v6472 = vld [vmem:[#allocation8 + $0x20] sm:$0xf]
    %v6473 = vld [vmem:[#allocation8 + $0x24] sm:$0xf]
    %v6474 = vld [vmem:[#allocation8 + $0x28] sm:$0xf]
    %v6475 = vld [vmem:[#allocation8 + $0x2c] sm:$0xf]
    %v6476 = vld [vmem:[#allocation8 + $0x30] sm:$0xf]
    %v6477 = vld [vmem:[#allocation8 + $0x34] sm:$0xf]
    %v6478 = vld [vmem:[#allocation8 + $0x38] sm:$0xf]
    %v6479 = vld [vmem:[#allocation8 + $0x3c] sm:$0xf]
    %v6480 = vld [vmem:[#allocation8 + $0x40] sm:$0xf]
    %v6481 = vld [vmem:[#allocation8 + $0x44] sm:$0xf]
    %v6482 = vld [vmem:[#allocation8 + $0x48] sm:$0xf]
    %v6483 = vld [vmem:[#allocation8 + $0x4c] sm:$0xf]
    %v6484 = vld [vmem:[#allocation8 + $0x50] sm:$0xf]
    %v6485 = vld [vmem:[#allocation8 + $0x54] sm:$0xf]
    %v6486 = vld [vmem:[#allocation8 + $0x58] sm:$0xf]
    %v6487 = vld [vmem:[#allocation8 + $0x5c] sm:$0xf]
    %v6488 = vld [vmem:[#allocation8 + $0x60] sm:$0xf]
    %v6489 = vld [vmem:[#allocation8 + $0x64] sm:$0xf]
    %v6490 = vld [vmem:[#allocation8 + $0x68] sm:$0xf]
    %v6491 = vld [vmem:[#allocation8 + $0x6c] sm:$0xf]
    %v6492 = vld [vmem:[#allocation8 + $0x70] sm:$0xf]
    %v6493 = vld [vmem:[#allocation8 + $0x74] sm:$0xf]
    %v6494 = vld [vmem:[#allocation8 + $0x78] sm:$0xf]
    %v6495 = vld [vmem:[#allocation8 + $0x7c] sm:$0xf]
    %v6496 = vld [vmem:[#allocation8 + $0x80] sm:$0xf]
    %v6497 = vld [vmem:[#allocation8 + $0x84] sm:$0xf]
    %v6498 = vld [vmem:[#allocation8 + $0x88] sm:$0xf]
    %v6499 = vld [vmem:[#allocation8 + $0x8c] sm:$0xf]
    %v6500 = vld [vmem:[#allocation8 + $0x90] sm:$0xf]
    %v6501 = vld [vmem:[#allocation8 + $0x94] sm:$0xf]
    %v6502 = vld [vmem:[#allocation8 + $0x98] sm:$0xf]
    %v6503 = vld [vmem:[#allocation8 + $0x9c] sm:$0xf]
    %v6504 = vld [vmem:[#allocation8 + $0xa0] sm:$0xf]
    %v6505 = vld [vmem:[#allocation8 + $0xa4] sm:$0xf]
    %v6506 = vld [vmem:[#allocation8 + $0xa8] sm:$0xf]
    %v6507 = vld [vmem:[#allocation8 + $0xac] sm:$0xf]
    %v6508 = vld [vmem:[#allocation8 + $0xb0] sm:$0xf]
    %v6509 = vld [vmem:[#allocation8 + $0xb4] sm:$0xf]
    %v6510 = vld [vmem:[#allocation8 + $0xb8] sm:$0xf]
    %v6511 = vld [vmem:[#allocation8 + $0xbc] sm:$0xf]
    %v6512 = vld [vmem:[#allocation8 + $0xc0] sm:$0xf]
    %v6513 = vld [vmem:[#allocation8 + $0xc4] sm:$0xf]
    %v6514 = vld [vmem:[#allocation8 + $0xc8] sm:$0xf]
    %v6515 = vld [vmem:[#allocation8 + $0xcc] sm:$0xf]
    %v6516 = vld [vmem:[#allocation8 + $0xd0] sm:$0xf]
    %v6517 = vld [vmem:[#allocation8 + $0xd4] sm:$0xf]
    %v6518 = vld [vmem:[#allocation8 + $0xd8] sm:$0xf]
    %v6519 = vld [vmem:[#allocation8 + $0xdc] sm:$0xf]
    %v6520 = vld [vmem:[#allocation8 + $0xe0] sm:$0xf]
    %v6521 = vld [vmem:[#allocation8 + $0xe4] sm:$0xf]
    %v6522 = vld [vmem:[#allocation8 + $0xe8] sm:$0xf]
    %v6523 = vld [vmem:[#allocation8 + $0xec] sm:$0xf]
    %v6524 = vld [vmem:[#allocation8 + $0xf0] sm:$0xf]
    %v6525 = vld [vmem:[#allocation8 + $0xf4] sm:$0xf]
    %v6526 = vld [vmem:[#allocation8 + $0xf8] sm:$0xf]
    %v6527 = vld [vmem:[#allocation8 + $0xfc] sm:$0xf]
    %v6528 = vld [vmem:[%s4] sm:$0x1]
    %v6530 = vperm.slane %v6528, 0
    %v6596 = vunpack.c.l.b16 %v6464
    %v6597 = vunpack.c.l.b16 %v6465
    %v6598 = vunpack.c.l.b16 %v6466
    %v6599 = vunpack.c.l.b16 %v6467
    %v6600 = vunpack.c.l.b16 %v6468
    %v6601 = vunpack.c.l.b16 %v6469
    %v6602 = vunpack.c.l.b16 %v6470
    %v6603 = vunpack.c.l.b16 %v6471
    %v6604 = vunpack.c.l.b16 %v6472
    %v6605 = vunpack.c.l.b16 %v6473
    %v6606 = vunpack.c.l.b16 %v6474
    %v6607 = vunpack.c.l.b16 %v6475
    %v6608 = vunpack.c.l.b16 %v6476
    %v6609 = vunpack.c.l.b16 %v6477
    %v6610 = vunpack.c.l.b16 %v6478
    %v6611 = vunpack.c.l.b16 %v6479
    %v6612 = vunpack.c.l.b16 %v6480
    %v6613 = vunpack.c.l.b16 %v6481
    %v6614 = vunpack.c.l.b16 %v6482
    %v6615 = vunpack.c.l.b16 %v6483
    %v6616 = vunpack.c.l.b16 %v6484
    %v6617 = vunpack.c.l.b16 %v6485
    %v6618 = vunpack.c.l.b16 %v6486
    %v6619 = vunpack.c.l.b16 %v6487
    %v6620 = vunpack.c.l.b16 %v6488
    %v6621 = vunpack.c.l.b16 %v6489
    %v6622 = vunpack.c.l.b16 %v6490
    %v6623 = vunpack.c.l.b16 %v6491
    %v6624 = vunpack.c.l.b16 %v6492
    %v6625 = vunpack.c.l.b16 %v6493
    %v6626 = vunpack.c.l.b16 %v6494
    %v6627 = vunpack.c.l.b16 %v6495
    %v6628 = vunpack.c.l.b16 %v6496
    %v6629 = vunpack.c.l.b16 %v6497
    %v6630 = vunpack.c.l.b16 %v6498
    %v6631 = vunpack.c.l.b16 %v6499
    %v6632 = vunpack.c.l.b16 %v6500
    %v6633 = vunpack.c.l.b16 %v6501
    %v6634 = vunpack.c.l.b16 %v6502
    %v6635 = vunpack.c.l.b16 %v6503
    %v6636 = vunpack.c.l.b16 %v6504
    %v6637 = vunpack.c.l.b16 %v6505
    %v6638 = vunpack.c.l.b16 %v6506
    %v6639 = vunpack.c.l.b16 %v6507
    %v6640 = vunpack.c.l.b16 %v6508
    %v6641 = vunpack.c.l.b16 %v6509
    %v6642 = vunpack.c.l.b16 %v6510
    %v6643 = vunpack.c.l.b16 %v6511
    %v6644 = vunpack.c.l.b16 %v6512
    %v6645 = vunpack.c.l.b16 %v6513
    %v6646 = vunpack.c.l.b16 %v6514
    %v6647 = vunpack.c.l.b16 %v6515
    %v6648 = vunpack.c.l.b16 %v6516
    %v6649 = vunpack.c.l.b16 %v6517
    %v6650 = vunpack.c.l.b16 %v6518
    %v6651 = vunpack.c.l.b16 %v6519
    %v6652 = vunpack.c.l.b16 %v6520
    %v6653 = vunpack.c.l.b16 %v6521
    %v6654 = vunpack.c.l.b16 %v6522
    %v6655 = vunpack.c.l.b16 %v6523
    %v6656 = vunpack.c.l.b16 %v6524
    %v6657 = vunpack.c.l.b16 %v6525
    %v6658 = vunpack.c.l.b16 %v6526
    %v6659 = vunpack.c.l.b16 %v6527
    %v6660 = vpack.c.b16 %v6597, %v6596
    %v6661 = vpack.c.b16 %v6599, %v6598
    %v6662 = vpack.c.b16 %v6601, %v6600
    %v6663 = vpack.c.b16 %v6603, %v6602
    %v6664 = vpack.c.b16 %v6605, %v6604
    %v6665 = vpack.c.b16 %v6607, %v6606
    %v6666 = vpack.c.b16 %v6609, %v6608
    %v6667 = vpack.c.b16 %v6611, %v6610
    %v6668 = vpack.c.b16 %v6613, %v6612
    %v6669 = vpack.c.b16 %v6615, %v6614
    %v6670 = vpack.c.b16 %v6617, %v6616
    %v6671 = vpack.c.b16 %v6619, %v6618
    %v6672 = vpack.c.b16 %v6621, %v6620
    %v6673 = vpack.c.b16 %v6623, %v6622
    %v6674 = vpack.c.b16 %v6625, %v6624
    %v6675 = vpack.c.b16 %v6627, %v6626
    %v6676 = vpack.c.b16 %v6629, %v6628
    %v6677 = vpack.c.b16 %v6631, %v6630
    %v6678 = vpack.c.b16 %v6633, %v6632
    %v6679 = vpack.c.b16 %v6635, %v6634
    %v6680 = vpack.c.b16 %v6637, %v6636
    %v6681 = vpack.c.b16 %v6639, %v6638
    %v6682 = vpack.c.b16 %v6641, %v6640
    %v6683 = vpack.c.b16 %v6643, %v6642
    %v6684 = vpack.c.b16 %v6645, %v6644
    %v6685 = vpack.c.b16 %v6647, %v6646
    %v6686 = vpack.c.b16 %v6649, %v6648
    %v6687 = vpack.c.b16 %v6651, %v6650
    %v6688 = vpack.c.b16 %v6653, %v6652
    %v6689 = vpack.c.b16 %v6655, %v6654
    %v6690 = vpack.c.b16 %v6657, %v6656
    %v6691 = vpack.c.b16 %v6659, %v6658
    %6724 = vmatpush.bf16.msra.mxu0 %v6667
    %6725 = vmatpush.bf16.msra.mxu0 %v6666
    %6726 = vmatpush.bf16.msra.mxu0 %v6665
    %6727 = vmatpush.bf16.msra.mxu0 %v6664
    %6728 = vmatpush.bf16.msra.mxu0 %v6663
    %6729 = vmatpush.bf16.msra.mxu0 %v6662
    %6730 = vmatpush.bf16.msra.mxu0 %v6661
    %6731 = vmatpush.bf16.msra.mxu0 %v6660
    %6732 = vmatmul.bf16.gmra.mxu0 %v6400
    %v6733 = vpop.f32.mrf.mxu0
    %v6734 = vadd.f32 %v6530, %v6733
    %v6735 = vpop.f32.mrf.mxu0
    %v6736 = vadd.f32 %v6530, %v6735
    %6737 = vmatmul.bf16.gmra.mxu0 %v6404
    %v6738 = vpop.f32.mrf.mxu0
    %v6739 = vadd.f32 %v6530, %v6738
    %v6740 = vpop.f32.mrf.mxu0
    %v6741 = vadd.f32 %v6530, %v6740
    %6742 = vmatmul.bf16.gmra.mxu0 %v6408
    %v6743 = vpop.f32.mrf.mxu0
    %v6744 = vadd.f32 %v6530, %v6743
    %v6745 = vpop.f32.mrf.mxu0
    %v6746 = vadd.f32 %v6530, %v6745
    %6747 = vmatmul.bf16.gmra.mxu0 %v6412
    %v6748 = vpop.f32.mrf.mxu0
    %v6749 = vadd.f32 %v6530, %v6748
    %v6750 = vpop.f32.mrf.mxu0
    %v6751 = vadd.f32 %v6530, %v6750
    %6752 = vmatmul.bf16.gmra.mxu0 %v6416
    %v6753 = vpop.f32.mrf.mxu0
    %v6754 = vadd.f32 %v6530, %v6753
    %v6755 = vpop.f32.mrf.mxu0
    %v6756 = vadd.f32 %v6530, %v6755
    %6757 = vmatmul.bf16.gmra.mxu0 %v6420
    %v6758 = vpop.f32.mrf.mxu0
    %v6759 = vadd.f32 %v6530, %v6758
    %v6760 = vpop.f32.mrf.mxu0
    %v6761 = vadd.f32 %v6530, %v6760
    %6762 = vmatmul.bf16.gmra.mxu0 %v6424
    %v6763 = vpop.f32.mrf.mxu0
    %v6764 = vadd.f32 %v6530, %v6763
    %v6765 = vpop.f32.mrf.mxu0
    %v6766 = vadd.f32 %v6530, %v6765
    %6767 = vmatmul.bf16.gmra.mxu0 %v6428
    %v6768 = vpop.f32.mrf.mxu0
    %v6769 = vadd.f32 %v6530, %v6768
    %v6770 = vpop.f32.mrf.mxu0
    %v6771 = vadd.f32 %v6530, %v6770
    %6772 = vmatmul.bf16.gmra.mxu0 %v6432
    %v6773 = vpop.f32.mrf.mxu0
    %v6774 = vadd.f32 %v6530, %v6773
    %v6775 = vpop.f32.mrf.mxu0
    %v6776 = vadd.f32 %v6530, %v6775
    %6777 = vmatmul.bf16.gmra.mxu0 %v6436
    %v6778 = vpop.f32.mrf.mxu0
    %v6779 = vadd.f32 %v6530, %v6778
    %v6780 = vpop.f32.mrf.mxu0
    %v6781 = vadd.f32 %v6530, %v6780
    %6782 = vmatmul.bf16.gmra.mxu0 %v6440
    %v6783 = vpop.f32.mrf.mxu0
    %v6784 = vadd.f32 %v6530, %v6783
    %v6785 = vpop.f32.mrf.mxu0
    %v6786 = vadd.f32 %v6530, %v6785
    %6787 = vmatmul.bf16.gmra.mxu0 %v6444
    %v6788 = vpop.f32.mrf.mxu0
    %v6789 = vadd.f32 %v6530, %v6788
    %v6790 = vpop.f32.mrf.mxu0
    %v6791 = vadd.f32 %v6530, %v6790
    %6792 = vmatmul.bf16.gmra.mxu0 %v6448
    %v6793 = vpop.f32.mrf.mxu0
    %v6794 = vadd.f32 %v6530, %v6793
    %v6795 = vpop.f32.mrf.mxu0
    %v6796 = vadd.f32 %v6530, %v6795
    %6797 = vmatmul.bf16.gmra.mxu0 %v6452
    %v6798 = vpop.f32.mrf.mxu0
    %v6799 = vadd.f32 %v6530, %v6798
    %v6800 = vpop.f32.mrf.mxu0
    %v6801 = vadd.f32 %v6530, %v6800
    %6802 = vmatmul.bf16.gmra.mxu0 %v6456
    %v6803 = vpop.f32.mrf.mxu0
    %v6804 = vadd.f32 %v6530, %v6803
    %v6805 = vpop.f32.mrf.mxu0
    %v6806 = vadd.f32 %v6530, %v6805
    %6807 = vmatmul.bf16.gmra.mxu0 %v6460
    %v6808 = vpop.f32.mrf.mxu0
    %v6809 = vadd.f32 %v6530, %v6808
    %v6810 = vpop.f32.mrf.mxu0
    %v6811 = vadd.f32 %v6530, %v6810
    %6812 = vdwg.mxu0
    %6813 = vmatpush.bf16.msra.mxu0 %v6675
    %6814 = vmatpush.bf16.msra.mxu0 %v6674
    %6815 = vmatpush.bf16.msra.mxu0 %v6673
    %6816 = vmatpush.bf16.msra.mxu0 %v6672
    %6817 = vmatpush.bf16.msra.mxu0 %v6671
    %6818 = vmatpush.bf16.msra.mxu0 %v6670
    %6819 = vmatpush.bf16.msra.mxu0 %v6669
    %6820 = vmatpush.bf16.msra.mxu0 %v6668
    %6821 = vmatmul.bf16.gmra.mxu0 %v6401
    %v6822 = vpop.f32.mrf.mxu0
    %v6823 = vadd.f32 %v6734, %v6822
    %v6824 = vpop.f32.mrf.mxu0
    %v6825 = vadd.f32 %v6736, %v6824
    %6826 = vmatmul.bf16.gmra.mxu0 %v6405
    %v6827 = vpop.f32.mrf.mxu0
    %v6828 = vadd.f32 %v6739, %v6827
    %v6829 = vpop.f32.mrf.mxu0
    %v6830 = vadd.f32 %v6741, %v6829
    %6831 = vmatmul.bf16.gmra.mxu0 %v6409
    %v6832 = vpop.f32.mrf.mxu0
    %v6833 = vadd.f32 %v6744, %v6832
    %v6834 = vpop.f32.mrf.mxu0
    %v6835 = vadd.f32 %v6746, %v6834
    %6836 = vmatmul.bf16.gmra.mxu0 %v6413
    %v6837 = vpop.f32.mrf.mxu0
    %v6838 = vadd.f32 %v6749, %v6837
    %v6839 = vpop.f32.mrf.mxu0
    %v6840 = vadd.f32 %v6751, %v6839
    %6841 = vmatmul.bf16.gmra.mxu0 %v6417
    %v6842 = vpop.f32.mrf.mxu0
    %v6843 = vadd.f32 %v6754, %v6842
    %v6844 = vpop.f32.mrf.mxu0
    %v6845 = vadd.f32 %v6756, %v6844
    %6846 = vmatmul.bf16.gmra.mxu0 %v6421
    %v6847 = vpop.f32.mrf.mxu0
    %v6848 = vadd.f32 %v6759, %v6847
    %v6849 = vpop.f32.mrf.mxu0
    %v6850 = vadd.f32 %v6761, %v6849
    %6851 = vmatmul.bf16.gmra.mxu0 %v6425
    %v6852 = vpop.f32.mrf.mxu0
    %v6853 = vadd.f32 %v6764, %v6852
    %v6854 = vpop.f32.mrf.mxu0
    %v6855 = vadd.f32 %v6766, %v6854
    %6856 = vmatmul.bf16.gmra.mxu0 %v6429
    %v6857 = vpop.f32.mrf.mxu0
    %v6858 = vadd.f32 %v6769, %v6857
    %v6859 = vpop.f32.mrf.mxu0
    %v6860 = vadd.f32 %v6771, %v6859
    %6861 = vmatmul.bf16.gmra.mxu0 %v6433
    %v6862 = vpop.f32.mrf.mxu0
    %v6863 = vadd.f32 %v6774, %v6862
    %v6864 = vpop.f32.mrf.mxu0
    %v6865 = vadd.f32 %v6776, %v6864
    %6866 = vmatmul.bf16.gmra.mxu0 %v6437
    %v6867 = vpop.f32.mrf.mxu0
    %v6868 = vadd.f32 %v6779, %v6867
    %v6869 = vpop.f32.mrf.mxu0
    %v6870 = vadd.f32 %v6781, %v6869
    %6871 = vmatmul.bf16.gmra.mxu0 %v6441
    %v6872 = vpop.f32.mrf.mxu0
    %v6873 = vadd.f32 %v6784, %v6872
    %v6874 = vpop.f32.mrf.mxu0
    %v6875 = vadd.f32 %v6786, %v6874
    %6876 = vmatmul.bf16.gmra.mxu0 %v6445
    %v6877 = vpop.f32.mrf.mxu0
    %v6878 = vadd.f32 %v6789, %v6877
    %v6879 = vpop.f32.mrf.mxu0
    %v6880 = vadd.f32 %v6791, %v6879
    %6881 = vmatmul.bf16.gmra.mxu0 %v6449
    %v6882 = vpop.f32.mrf.mxu0
    %v6883 = vadd.f32 %v6794, %v6882
    %v6884 = vpop.f32.mrf.mxu0
    %v6885 = vadd.f32 %v6796, %v6884
    %6886 = vmatmul.bf16.gmra.mxu0 %v6453
    %v6887 = vpop.f32.mrf.mxu0
    %v6888 = vadd.f32 %v6799, %v6887
    %v6889 = vpop.f32.mrf.mxu0
    %v6890 = vadd.f32 %v6801, %v6889
    %6891 = vmatmul.bf16.gmra.mxu0 %v6457
    %v6892 = vpop.f32.mrf.mxu0
    %v6893 = vadd.f32 %v6804, %v6892
    %v6894 = vpop.f32.mrf.mxu0
    %v6895 = vadd.f32 %v6806, %v6894
    %6896 = vmatmul.bf16.gmra.mxu0 %v6461
    %v6897 = vpop.f32.mrf.mxu0
    %v6898 = vadd.f32 %v6809, %v6897
    %v6899 = vpop.f32.mrf.mxu0
    %v6900 = vadd.f32 %v6811, %v6899
    %6901 = vdwg.mxu0
    %6902 = vmatpush.bf16.msra.mxu0 %v6683
    %6903 = vmatpush.bf16.msra.mxu0 %v6682
    %6904 = vmatpush.bf16.msra.mxu0 %v6681
    %6905 = vmatpush.bf16.msra.mxu0 %v6680
    %6906 = vmatpush.bf16.msra.mxu0 %v6679
    %6907 = vmatpush.bf16.msra.mxu0 %v6678
    %6908 = vmatpush.bf16.msra.mxu0 %v6677
    %6909 = vmatpush.bf16.msra.mxu0 %v6676
    %6910 = vmatmul.bf16.gmra.mxu0 %v6402
    %v6911 = vpop.f32.mrf.mxu0
    %v6912 = vadd.f32 %v6823, %v6911
    %v6913 = vpop.f32.mrf.mxu0
    %v6914 = vadd.f32 %v6825, %v6913
    %6915 = vmatmul.bf16.gmra.mxu0 %v6406
    %v6916 = vpop.f32.mrf.mxu0
    %v6917 = vadd.f32 %v6828, %v6916
    %v6918 = vpop.f32.mrf.mxu0
    %v6919 = vadd.f32 %v6830, %v6918
    %6920 = vmatmul.bf16.gmra.mxu0 %v6410
    %v6921 = vpop.f32.mrf.mxu0
    %v6922 = vadd.f32 %v6833, %v6921
    %v6923 = vpop.f32.mrf.mxu0
    %v6924 = vadd.f32 %v6835, %v6923
    %6925 = vmatmul.bf16.gmra.mxu0 %v6414
    %v6926 = vpop.f32.mrf.mxu0
    %v6927 = vadd.f32 %v6838, %v6926
    %v6928 = vpop.f32.mrf.mxu0
    %v6929 = vadd.f32 %v6840, %v6928
    %6930 = vmatmul.bf16.gmra.mxu0 %v6418
    %v6931 = vpop.f32.mrf.mxu0
    %v6932 = vadd.f32 %v6843, %v6931
    %v6933 = vpop.f32.mrf.mxu0
    %v6934 = vadd.f32 %v6845, %v6933
    %6935 = vmatmul.bf16.gmra.mxu0 %v6422
    %v6936 = vpop.f32.mrf.mxu0
    %v6937 = vadd.f32 %v6848, %v6936
    %v6938 = vpop.f32.mrf.mxu0
    %v6939 = vadd.f32 %v6850, %v6938
    %6940 = vmatmul.bf16.gmra.mxu0 %v6426
    %v6941 = vpop.f32.mrf.mxu0
    %v6942 = vadd.f32 %v6853, %v6941
    %v6943 = vpop.f32.mrf.mxu0
    %v6944 = vadd.f32 %v6855, %v6943
    %6945 = vmatmul.bf16.gmra.mxu0 %v6430
    %v6946 = vpop.f32.mrf.mxu0
    %v6947 = vadd.f32 %v6858, %v6946
    %v6948 = vpop.f32.mrf.mxu0
    %v6949 = vadd.f32 %v6860, %v6948
    %6950 = vmatmul.bf16.gmra.mxu0 %v6434
    %v6951 = vpop.f32.mrf.mxu0
    %v6952 = vadd.f32 %v6863, %v6951
    %v6953 = vpop.f32.mrf.mxu0
    %v6954 = vadd.f32 %v6865, %v6953
    %6955 = vmatmul.bf16.gmra.mxu0 %v6438
    %v6956 = vpop.f32.mrf.mxu0
    %v6957 = vadd.f32 %v6868, %v6956
    %v6958 = vpop.f32.mrf.mxu0
    %v6959 = vadd.f32 %v6870, %v6958
    %6960 = vmatmul.bf16.gmra.mxu0 %v6442
    %v6961 = vpop.f32.mrf.mxu0
    %v6962 = vadd.f32 %v6873, %v6961
    %v6963 = vpop.f32.mrf.mxu0
    %v6964 = vadd.f32 %v6875, %v6963
    %6965 = vmatmul.bf16.gmra.mxu0 %v6446
    %v6966 = vpop.f32.mrf.mxu0
    %v6967 = vadd.f32 %v6878, %v6966
    %v6968 = vpop.f32.mrf.mxu0
    %v6969 = vadd.f32 %v6880, %v6968
    %6970 = vmatmul.bf16.gmra.mxu0 %v6450
    %v6971 = vpop.f32.mrf.mxu0
    %v6972 = vadd.f32 %v6883, %v6971
    %v6973 = vpop.f32.mrf.mxu0
    %v6974 = vadd.f32 %v6885, %v6973
    %6975 = vmatmul.bf16.gmra.mxu0 %v6454
    %v6976 = vpop.f32.mrf.mxu0
    %v6977 = vadd.f32 %v6888, %v6976
    %v6978 = vpop.f32.mrf.mxu0
    %v6979 = vadd.f32 %v6890, %v6978
    %6980 = vmatmul.bf16.gmra.mxu0 %v6458
    %v6981 = vpop.f32.mrf.mxu0
    %v6982 = vadd.f32 %v6893, %v6981
    %v6983 = vpop.f32.mrf.mxu0
    %v6984 = vadd.f32 %v6895, %v6983
    %6985 = vmatmul.bf16.gmra.mxu0 %v6462
    %v6986 = vpop.f32.mrf.mxu0
    %v6987 = vadd.f32 %v6898, %v6986
    %v6988 = vpop.f32.mrf.mxu0
    %v6989 = vadd.f32 %v6900, %v6988
    %6990 = vdwg.mxu0
    %6991 = vmatpush.bf16.msra.mxu0 %v6691
    %6992 = vmatpush.bf16.msra.mxu0 %v6690
    %6993 = vmatpush.bf16.msra.mxu0 %v6689
    %6994 = vmatpush.bf16.msra.mxu0 %v6688
    %6995 = vmatpush.bf16.msra.mxu0 %v6687
    %6996 = vmatpush.bf16.msra.mxu0 %v6686
    %6997 = vmatpush.bf16.msra.mxu0 %v6685
    %6998 = vmatpush.bf16.msra.mxu0 %v6684
    %6999 = vmatmul.bf16.gmra.mxu0 %v6403
    %v7000 = vpop.f32.mrf.mxu0
    %v7001 = vadd.f32 %v6912, %v7000
    %v7002 = vpop.f32.mrf.mxu0
    %v7003 = vadd.f32 %v6914, %v7002
    %7004 = vmatmul.bf16.gmra.mxu0 %v6407
    %v7005 = vpop.f32.mrf.mxu0
    %v7006 = vadd.f32 %v6917, %v7005
    %v7007 = vpop.f32.mrf.mxu0
    %v7008 = vadd.f32 %v6919, %v7007
    %7009 = vmatmul.bf16.gmra.mxu0 %v6411
    %v7010 = vpop.f32.mrf.mxu0
    %v7011 = vadd.f32 %v6922, %v7010
    %v7012 = vpop.f32.mrf.mxu0
    %v7013 = vadd.f32 %v6924, %v7012
    %7014 = vmatmul.bf16.gmra.mxu0 %v6415
    %v7015 = vpop.f32.mrf.mxu0
    %v7016 = vadd.f32 %v6927, %v7015
    %v7017 = vpop.f32.mrf.mxu0
    %v7018 = vadd.f32 %v6929, %v7017
    %7019 = vmatmul.bf16.gmra.mxu0 %v6419
    %v7020 = vpop.f32.mrf.mxu0
    %v7021 = vadd.f32 %v6932, %v7020
    %v7022 = vpop.f32.mrf.mxu0
    %v7023 = vadd.f32 %v6934, %v7022
    %7024 = vmatmul.bf16.gmra.mxu0 %v6423
    %v7025 = vpop.f32.mrf.mxu0
    %v7026 = vadd.f32 %v6937, %v7025
    %v7027 = vpop.f32.mrf.mxu0
    %v7028 = vadd.f32 %v6939, %v7027
    %7029 = vmatmul.bf16.gmra.mxu0 %v6427
    %v7030 = vpop.f32.mrf.mxu0
    %v7031 = vadd.f32 %v6942, %v7030
    %v7032 = vpop.f32.mrf.mxu0
    %v7033 = vadd.f32 %v6944, %v7032
    %7034 = vmatmul.bf16.gmra.mxu0 %v6431
    %v7035 = vpop.f32.mrf.mxu0
    %v7036 = vadd.f32 %v6947, %v7035
    %v7037 = vpop.f32.mrf.mxu0
    %v7038 = vadd.f32 %v6949, %v7037
    %7039 = vmatmul.bf16.gmra.mxu0 %v6435
    %v7040 = vpop.f32.mrf.mxu0
    %v7041 = vadd.f32 %v6952, %v7040
    %v7042 = vpop.f32.mrf.mxu0
    %v7043 = vadd.f32 %v6954, %v7042
    %7044 = vmatmul.bf16.gmra.mxu0 %v6439
    %v7045 = vpop.f32.mrf.mxu0
    %v7046 = vadd.f32 %v6957, %v7045
    %v7047 = vpop.f32.mrf.mxu0
    %v7048 = vadd.f32 %v6959, %v7047
    %7049 = vmatmul.bf16.gmra.mxu0 %v6443
    %v7050 = vpop.f32.mrf.mxu0
    %v7051 = vadd.f32 %v6962, %v7050
    %v7052 = vpop.f32.mrf.mxu0
    %v7053 = vadd.f32 %v6964, %v7052
    %7054 = vmatmul.bf16.gmra.mxu0 %v6447
    %v7055 = vpop.f32.mrf.mxu0
    %v7056 = vadd.f32 %v6967, %v7055
    %v7057 = vpop.f32.mrf.mxu0
    %v7058 = vadd.f32 %v6969, %v7057
    %7059 = vmatmul.bf16.gmra.mxu0 %v6451
    %v7060 = vpop.f32.mrf.mxu0
    %v7061 = vadd.f32 %v6972, %v7060
    %v7062 = vpop.f32.mrf.mxu0
    %v7063 = vadd.f32 %v6974, %v7062
    %7064 = vmatmul.bf16.gmra.mxu0 %v6455
    %v7065 = vpop.f32.mrf.mxu0
    %v7066 = vadd.f32 %v6977, %v7065
    %v7067 = vpop.f32.mrf.mxu0
    %v7068 = vadd.f32 %v6979, %v7067
    %7069 = vmatmul.bf16.gmra.mxu0 %v6459
    %v7070 = vpop.f32.mrf.mxu0
    %v7071 = vadd.f32 %v6982, %v7070
    %v7072 = vpop.f32.mrf.mxu0
    %v7073 = vadd.f32 %v6984, %v7072
    %7074 = vmatmul.bf16.gmra.mxu0 %v6463
    %v7075 = vpop.f32.mrf.mxu0
    %v7076 = vadd.f32 %v6987, %v7075
    %v7077 = vpop.f32.mrf.mxu0
    %v7078 = vadd.f32 %v6989, %v7077
    %7079 = vdwg.mxu0
    %7080 = vst [vmem:[#allocation10] sm:$0xff] %v7001
    %7081 = vst [vmem:[#allocation10 + $0x8] sm:$0xff] %v7003
    %7082 = vst [vmem:[#allocation10 + $0x10] sm:$0xff] %v7006
    %7083 = vst [vmem:[#allocation10 + $0x18] sm:$0xff] %v7008
    %7084 = vst [vmem:[#allocation10 + $0x20] sm:$0xff] %v7011
    %7085 = vst [vmem:[#allocation10 + $0x28] sm:$0xff] %v7013
    %7086 = vst [vmem:[#allocation10 + $0x30] sm:$0xff] %v7016
    %7087 = vst [vmem:[#allocation10 + $0x38] sm:$0xff] %v7018
    %7088 = vst [vmem:[#allocation10 + $0x40] sm:$0xff] %v7021
    %7089 = vst [vmem:[#allocation10 + $0x48] sm:$0xff] %v7023
    %7090 = vst [vmem:[#allocation10 + $0x50] sm:$0xff] %v7026
    %7091 = vst [vmem:[#allocation10 + $0x58] sm:$0xff] %v7028
    %7092 = vst [vmem:[#allocation10 + $0x60] sm:$0xff] %v7031
    %7093 = vst [vmem:[#allocation10 + $0x68] sm:$0xff] %v7033
    %7094 = vst [vmem:[#allocation10 + $0x70] sm:$0xff] %v7036
    %7095 = vst [vmem:[#allocation10 + $0x78] sm:$0xff] %v7038
    %7096 = vst [vmem:[#allocation10 + $0x80] sm:$0xff] %v7041
    %7097 = vst [vmem:[#allocation10 + $0x88] sm:$0xff] %v7043
    %7098 = vst [vmem:[#allocation10 + $0x90] sm:$0xff] %v7046
    %7099 = vst [vmem:[#allocation10 + $0x98] sm:$0xff] %v7048
    %7100 = vst [vmem:[#allocation10 + $0xa0] sm:$0xff] %v7051
    %7101 = vst [vmem:[#allocation10 + $0xa8] sm:$0xff] %v7053
    %7102 = vst [vmem:[#allocation10 + $0xb0] sm:$0xff] %v7056
    %7103 = vst [vmem:[#allocation10 + $0xb8] sm:$0xff] %v7058
    %7104 = vst [vmem:[#allocation10 + $0xc0] sm:$0xff] %v7061
    %7105 = vst [vmem:[#allocation10 + $0xc8] sm:$0xff] %v7063
    %7106 = vst [vmem:[#allocation10 + $0xd0] sm:$0xff] %v7066
    %7107 = vst [vmem:[#allocation10 + $0xd8] sm:$0xff] %v7068
    %7108 = vst [vmem:[#allocation10 + $0xe0] sm:$0xff] %v7071
    %7109 = vst [vmem:[#allocation10 + $0xe8] sm:$0xff] %v7073
    %7110 = vst [vmem:[#allocation10 + $0xf0] sm:$0xff] %v7076
    %7111 = vst [vmem:[#allocation10 + $0xf8] sm:$0xff] %v7078
    // Predicated region
    $region38: #{tpu_custom_call.1} parent=1 // pred_check
      _
    $region39: #{tpu_custom_call.1} parent=1 // pred_check_branch
      %7113 = sbr.rel (0) target = $region41
    $region40: #{tpu_custom_call.1} parent=1 // pred_region
      %7115 = vsyncadd [#allocation4], 0
      %s7116 = sshll.u32 [#allocation10], 4
      %s7117 = int_to_ptr.vmem [resolvable:$true] %s7116
      %s7118 = sshll.u32 %s5, 4
      %s7119 = int_to_ptr.hbm [resolvable:$true] %s7118
      %7124 = dma.vmem_to_hbm [thread:$0]  %s7117, 4096, %s7119, [#allocation4], 128, 128, 8
    $region41: #{tpu_custom_call.1} parent=1 // pred_fallthru
      _
    // Predicated region
    $region42: #{tpu_custom_call.1} parent=1 // pred_check
      _
    $region43: #{tpu_custom_call.1} parent=1 // pred_check_branch
      %7126 = sbr.rel (0) target = $region45
    $region44: #{tpu_custom_call.1} parent=1 // pred_region
      %7128 = dma.done [#allocation4], 4096
    $region45: #{tpu_custom_call.1} parent=1 // pred_fallthru
      _
    %7129 = vsyncpa [#allocation3], 1
    %7130 = vsyncpa [#allocation6], 1
    %7131 = vsyncpa [#allocation9], 1
    %7132 = vsyncpa [#allocation4], 1

</llo_original>
